<compile_context>
chip_gen: v5e
topology: v5e:2x2
jax: 0.10.0
libtpu: 0.0.40
codegen_flags: <defaults>
</compile_context>

<pallas_src>
import math

import jax
import jax.numpy as jnp
from jax.experimental import pallas as pl
from jax.experimental.pallas import tpu as pltpu

# ----------------------------- tiny Mixtral config -----------------------------
VOCAB = 256
HIDDEN = 128
INTERMEDIATE = 256
NUM_LAYERS = 2
NUM_HEADS = 4
NUM_KV_HEADS = 2
HEAD_DIM = HIDDEN // NUM_HEADS          # 32
NUM_EXPERTS = 4
TOP_K = 2
RMS_EPS = 1e-6
ROPE_THETA = 10000.0

BATCH = 2
SEQ = 8
M_TOTAL = BATCH * SEQ

HQ = NUM_HEADS * HEAD_DIM               # 128
HK = NUM_KV_HEADS * HEAD_DIM            # 64
# fused QKV weight layout (rows -> output columns), each segment 128-aligned:
#   [0:128)   q            (1/sqrt(d) folded in)
#   [128:256) q_rot        (rotate_half + scale folded in)
#   [256:320) k            [320:384) zero pad
#   [384:448) k_rot        [448:512) zero pad
#   [512:576) v            [576:640) zero pad
QKV_W = 5 * HQ                          # 640
W13 = NUM_EXPERTS * 2 * INTERMEDIATE    # 2048 (fused up-proj rows)
W2C = NUM_EXPERTS * INTERMEDIATE        # 1024 (fused down-proj contraction)


# ----------------------------- in-kernel helpers -----------------------------
def _rms(x, w, eps=RMS_EPS):
    var = jnp.mean(x * x, axis=-1, keepdims=True)
    return x * jax.lax.rsqrt(var + eps) * w


def _dot_t(a, b):
    """a @ b.T with bf16 MXU operands and f32 accumulation (b is [out, in] bf16)."""
    return jax.lax.dot_general(a.astype(jnp.bfloat16), b,
                               (((1,), (1,)), ((), ())),
                               preferred_element_type=jnp.float32)


def _attn_block(x, ln, wqkv, wo, cosq, sinq, cosk, sink):
    xn = _rms(x, ln)
    qkv = _dot_t(xn, wqkv)                                 # [S, 640] f32, one fused matmul

    # RoPE via pre-folded rotation weights: x*cos + rotate_half(x)*sin.
    q = qkv[:, 0:HQ] * cosq + qkv[:, HQ:2 * HQ] * sinq                     # [S, 128]
    k = qkv[:, 2 * HQ:2 * HQ + HK] * cosk + qkv[:, 3 * HQ:3 * HQ + HK] * sink  # [S, 64]
    v = qkv[:, 4 * HQ:4 * HQ + HK]                                         # [S, 64]

    S = x.shape[0]
    row = jax.lax.broadcasted_iota(jnp.int32, (S, S), 0)
    col = jax.lax.broadcasted_iota(jnp.int32, (S, S), 1)
    causal = col <= row
    rep = NUM_HEADS // NUM_KV_HEADS

    heads = []
    for hh in range(NUM_HEADS):                            # static unroll, 4 heads
        kvh = hh // rep                                    # GQA: no repeated KV in memory
        qh = q[:, hh * HEAD_DIM:(hh + 1) * HEAD_DIM].astype(jnp.bfloat16)
        kh = k[:, kvh * HEAD_DIM:(kvh + 1) * HEAD_DIM].astype(jnp.bfloat16)
        vh = v[:, kvh * HEAD_DIM:(kvh + 1) * HEAD_DIM].astype(jnp.bfloat16)
        s = jax.lax.dot_general(qh, kh, (((1,), (1,)), ((), ())),
                                preferred_element_type=jnp.float32)        # q pre-scaled
        s = jnp.where(causal, s, -1e30)
        s = s - jnp.max(s, axis=-1, keepdims=True)         # softmax in f32
        p = jnp.exp(s)
        p = p / jnp.sum(p, axis=-1, keepdims=True)
        heads.append(jnp.dot(p.astype(jnp.bfloat16), vh,
                             preferred_element_type=jnp.float32))          # [S, D]
    attn = jnp.concatenate(heads, axis=-1)                 # [S, 128] lane-dense
    return x + _dot_t(attn, wo)                            # out-proj + residual


def _moe_block(x, ln, gate_w, w13, w2f):
    xn = _rms(x, ln)

    # Router in f32 (precision-sensitive top-k).
    rl = jax.lax.dot_general(xn, gate_w, (((1,), (1,)), ((), ())),
                             preferred_element_type=jnp.float32)           # [S, E]
    m = jnp.max(rl, axis=-1, keepdims=True)
    ex = jnp.exp(rl - m)
    probs = ex / jnp.sum(ex, axis=-1, keepdims=True)

    # Dense top-2 gate via rank counting (ties broken by lower index, like torch.topk).
    S = x.shape[0]
    col = jax.lax.broadcasted_iota(jnp.int32, (S, NUM_EXPERTS), 1)
    ranks = jnp.zeros((S, NUM_EXPERTS), jnp.int32)
    for ep in range(NUM_EXPERTS):
        pe = probs[:, ep:ep + 1]
        beats = (pe > probs) | ((pe == probs) & (ep < col))
        ranks = ranks + beats.astype(jnp.int32)
    sel = jnp.where(ranks < TOP_K, probs, 0.0)
    gate = sel / jnp.sum(sel, axis=-1, keepdims=True)      # [S, E]

    # Fused dense experts: ONE up-proj matmul + ONE down-proj matmul.
    # TODO(synk): at real sizes use a routed kernel (PrefetchScalarGridSpec group
    # offsets) so only top-2 routed tokens touch each expert's weights.
    u = _dot_t(xn, w13)                                    # [S, E*2I] f32
    parts = []
    for e in range(NUM_EXPERTS):                           # lane-aligned 256-wide slices
        off = e * 2 * INTERMEDIATE
        h1 = u[:, off:off + INTERMEDIATE]
        h3 = u[:, off + INTERMEDIATE:off + 2 * INTERMEDIATE]
        parts.append(h1 * jax.nn.sigmoid(h1) * h3 * gate[:, e:e + 1])      # SwiGLU * gate
    hg = jnp.concatenate(parts, axis=-1)                   # [S, E*I]
    return x + _dot_t(hg, w2f)                             # fused down-proj + residual


# ----------------------------- single fused forward kernel -----------------------------
def _net_kernel(h_ref, labels_ref, cosq_ref, sinq_ref, cosk_ref, sink_ref,
                ln1_ref, ln2_ref, wqkv_ref, wo_ref, gate_ref,
                w13_ref, w2_ref, fln_ref, lmh_ref, loss_ref):
    b = pl.program_id(0)
    x = h_ref[...]                                         # [S, H] f32 (this batch row)
    cosq, sinq = cosq_ref[...], sinq_ref[...]
    cosk, sink = cosk_ref[...], sink_ref[...]

    for li in range(NUM_LAYERS):                           # static unroll over layers
        x = _attn_block(x, ln1_ref[li], wqkv_ref[li], wo_ref[li],
                        cosq, sinq, cosk, sink)
        x = _moe_block(x, ln2_ref[li], gate_ref[li], w13_ref[li], w2_ref[li])

    # final norm + lm_head + cross-entropy (logits never hit HBM)
    xn = _rms(x, fln_ref[...])
    logits = _dot_t(xn, lmh_ref[...])                      # [S, V] f32
    labels = labels_ref[...]                               # [S, 1] int32
    mx = jnp.max(logits, axis=-1, keepdims=True)
    lse = jnp.log(jnp.sum(jnp.exp(logits - mx), axis=-1, keepdims=True)) + mx
    vcol = jax.lax.broadcasted_iota(jnp.int32, logits.shape, 1)
    tgt = jnp.sum(jnp.where(vcol == labels, logits, 0.0), axis=-1, keepdims=True)
    part = jnp.sum(lse - tgt, keepdims=True) * (1.0 / M_TOTAL)   # [1,1] mean contribution

    @pl.when(b == 0)
    def _():
        loss_ref[...] = jnp.zeros_like(loss_ref)
    loss_ref[...] += part


def net_pallas(h, labels2, cos_q, sin_q, cos_k, sin_k, p):
    L, H, E, I, V, S = NUM_LAYERS, HIDDEN, NUM_EXPERTS, INTERMEDIATE, VOCAB, SEQ
    out = pl.pallas_call(
        _net_kernel,
        out_shape=jax.ShapeDtypeStruct((1, 1), jnp.float32),
        grid=(BATCH,),
        in_specs=[
            pl.BlockSpec((S, H), lambda b: (b, 0)),                 # hidden (per batch)
            pl.BlockSpec((S, 1), lambda b: (b, 0)),                 # labels (per batch)
            pl.BlockSpec((S, HQ), lambda b: (0, 0)),                # cos_q
            pl.BlockSpec((S, HQ), lambda b: (0, 0)),                # sin_q
            pl.BlockSpec((S, HK), lambda b: (0, 0)),                # cos_k
            pl.BlockSpec((S, HK), lambda b: (0, 0)),                # sin_k
            pl.BlockSpec((L, 1, H), lambda b: (0, 0, 0)),           # input_ln (stacked)
            pl.BlockSpec((L, 1, H), lambda b: (0, 0, 0)),           # post_ln  (stacked)
            pl.BlockSpec((L, QKV_W, H), lambda b: (0, 0, 0)),       # fused qkv weights
            pl.BlockSpec((L, H, H), lambda b: (0, 0, 0)),           # o-proj
            pl.BlockSpec((L, E, H), lambda b: (0, 0, 0)),           # router (f32)
            pl.BlockSpec((L, W13, H), lambda b: (0, 0, 0)),         # fused w1|w3
            pl.BlockSpec((L, H, W2C), lambda b: (0, 0, 0)),         # fused w2
            pl.BlockSpec((1, H), lambda b: (0, 0)),                 # final_ln
            pl.BlockSpec((V, H), lambda b: (0, 0)),                 # lm_head
        ],
        out_specs=pl.BlockSpec((1, 1), lambda b: (0, 0)),
        compiler_params=pltpu.CompilerParams(dimension_semantics=("arbitrary",)),
    )(h, labels2, cos_q, sin_q, cos_k, sin_k,
      p["input_ln"], p["post_ln"], p["w_qkv"], p["wo"], p["gate"],
      p["w13"], p["w2"], p["final_ln"], p["lm_head"])
    return out[0, 0]


# ----------------------------- plain-JAX glue -----------------------------
def rope_cos_sin(seq_len, dim):
    inv_freq = 1.0 / (ROPE_THETA ** (jnp.arange(0, dim, 2, dtype=jnp.float32) / dim))
    pos = jnp.arange(seq_len, dtype=jnp.float32)
    freqs = pos[:, None] * inv_freq[None, :]
    emb = jnp.concatenate([freqs, freqs], axis=-1)         # [S, D]
    return jnp.cos(emb), jnp.sin(emb)


@jax.jit
def net_forward(params, input_ids, labels):
    B, S = input_ids.shape
    M = B * S
    # TODO(synk): embedding gather stays in plain JAX (no clean Pallas equivalent at
    # this size; would otherwise be a one-row DMA gather per token).
    h = params["embed"][input_ids].reshape(M, HIDDEN)      # [M, H] f32

    cos, sin = rope_cos_sin(S, HEAD_DIM)                   # constants under jit
    cos_q = jnp.tile(cos, (1, NUM_HEADS))
    sin_q = jnp.tile(sin, (1, NUM_HEADS))
    cos_k = jnp.tile(cos, (1, NUM_KV_HEADS))
    sin_k = jnp.tile(sin, (1, NUM_KV_HEADS))
    labels2 = labels.reshape(M, 1).astype(jnp.int32)

    return net_pallas(h, labels2, cos_q, sin_q, cos_k, sin_k, params)


# ----------------------------- params: raw init + one-time folding -----------------------------
def init_raw_params(key):
    """Raw PyTorch-layout ([out, in]) weights, matching the nn.Module parameters."""
    scale = 0.02

    def norm(k, shape):
        return scale * jax.random.normal(k, shape, dtype=jnp.float32)

    keys = jax.random.split(key, 3 + NUM_LAYERS)
    params = {
        "embed": norm(keys[0], (VOCAB, HIDDEN)),
        "lm_head": norm(keys[1], (VOCAB, HIDDEN)),
        "final_ln": jnp.ones((HIDDEN,), jnp.float32),
        "layers": [],
    }
    for li in range(NUM_LAYERS):
        lk = jax.random.split(keys[3 + li], 8)
        params["layers"].append({
            "input_ln": jnp.ones((HIDDEN,), jnp.float32),
            "post_ln": jnp.ones((HIDDEN,), jnp.float32),
            "wq": norm(lk[0], (NUM_HEADS * HEAD_DIM, HIDDEN)),
            "wk": norm(lk[1], (NUM_KV_HEADS * HEAD_DIM, HIDDEN)),
            "wv": norm(lk[2], (NUM_KV_HEADS * HEAD_DIM, HIDDEN)),
            "wo": norm(lk[3], (HIDDEN, NUM_HEADS * HEAD_DIM)),
            "gate": norm(lk[4], (NUM_EXPERTS, HIDDEN)),
            "w1": norm(lk[5], (NUM_EXPERTS, INTERMEDIATE, HIDDEN)),
            "w2": norm(lk[6], (NUM_EXPERTS, HIDDEN, INTERMEDIATE)),
            "w3": norm(lk[7], (NUM_EXPERTS, INTERMEDIATE, HIDDEN)),
        })
    return params


def prepare_params(raw):
    """One-time weight preprocessing: fuse QKV, fold RoPE rotate_half + 1/sqrt(d) scale,
    fuse MoE up/down projections across experts, stack over layers, cast MXU weights
    to bf16. Done once, outside the forward pass."""
    D = HEAD_DIM
    half = D // 2
    # rotate_half as a right-multiply matrix R (per head), block-diagonal per head.
    R = jnp.zeros((D, D), jnp.float32)
    R = R.at[half:, :half].set(-jnp.eye(half, dtype=jnp.float32))
    R = R.at[:half, half:].set(jnp.eye(half, dtype=jnp.float32))
    P_q = jnp.kron(jnp.eye(NUM_HEADS, dtype=jnp.float32), R)        # [128, 128]
    P_k = jnp.kron(jnp.eye(NUM_KV_HEADS, dtype=jnp.float32), R)     # [64, 64]
    attn_scale = 1.0 / math.sqrt(D)
    pad = jnp.zeros((HK, HIDDEN), jnp.float32)

    in_ln, post_ln, wqkv_s, wo_s, gate_s, w13_s, w2_s = [], [], [], [], [], [], []
    for L in raw["layers"]:
        wq, wk, wv = L["wq"], L["wk"], L["wv"]
        w_qkv = jnp.concatenate([
            wq * attn_scale,                 # q        (scale folded)
            (P_q.T @ wq) * attn_scale,       # q_rot
            wk, pad,                         # k        (+ pad to 128-aligned segment)
            P_k.T @ wk, pad,                 # k_rot
            wv, pad,                         # v
        ], axis=0).astype(jnp.bfloat16)      # [640, H]
        # fused MoE up-proj: per expert [w1_e ; w3_e] stacked -> [E*2I, H]
        w13 = jnp.concatenate(
            [jnp.concatenate([L["w1"][e], L["w3"][e]], axis=0)
             for e in range(NUM_EXPERTS)], axis=0).astype(jnp.bfloat16)
        # fused MoE down-proj: concat over contraction dim -> [H, E*I]
        w2f = jnp.concatenate([L["w2"][e] for e in range(NUM_EXPERTS)],
                              axis=1).astype(jnp.bfloat16)
        in_ln.append(L["input_ln"].reshape(1, HIDDEN))
        post_ln.append(L["post_ln"].reshape(1, HIDDEN))
        wqkv_s.append(w_qkv)
        wo_s.append(L["wo"].astype(jnp.bfloat16))
        gate_s.append(L["gate"])                              # router kept f32
        w13_s.append(w13)
        w2_s.append(w2f)

    return {
        "embed": raw["embed"],
        "final_ln": raw["final_ln"].reshape(1, HIDDEN),
        "lm_head": raw["lm_head"].astype(jnp.bfloat16),
        "input_ln": jnp.stack(in_ln),        # [L, 1, H]
        "post_ln": jnp.stack(post_ln),       # [L, 1, H]
        "w_qkv": jnp.stack(wqkv_s),          # [L, 640, H] bf16
        "wo": jnp.stack(wo_s),               # [L, H, H] bf16
        "gate": jnp.stack(gate_s),           # [L, E, H] f32
        "w13": jnp.stack(w13_s),             # [L, E*2I, H] bf16
        "w2": jnp.stack(w2_s),               # [L, H, E*I] bf16
    }


if __name__ == "__main__":
    root = jax.random.PRNGKey(0)
    kp, ki, kl = jax.random.split(root, 3)
    params = prepare_params(init_raw_params(kp))
    input_ids = jax.random.randint(ki, (BATCH, SEQ), 0, VOCAB, dtype=jnp.int32)
    labels = jax.random.randint(kl, (BATCH, SEQ), 0, VOCAB, dtype=jnp.int32)

    loss = net_forward(params, input_ids, labels)
    jax.block_until_ready(loss)
    assert loss.shape == () and jnp.isfinite(loss)
    print("KERNEL_OK")
</pallas_src>

<mosaic_0001>
module attributes {stable_mosaic.version = 11 : i64} {
  func.func @_net_kernel(%arg0: i32, %arg1: memref<8x128xf32, #tpu.memory_space<vmem>>, %arg2: memref<8x1xi32, #tpu.memory_space<vmem>>, %arg3: memref<8x128xf32, #tpu.memory_space<vmem>>, %arg4: memref<8x128xf32, #tpu.memory_space<vmem>>, %arg5: memref<8x64xf32, #tpu.memory_space<vmem>>, %arg6: memref<8x64xf32, #tpu.memory_space<vmem>>, %arg7: memref<2x1x128xf32, #tpu.memory_space<vmem>>, %arg8: memref<2x1x128xf32, #tpu.memory_space<vmem>>, %arg9: memref<2x640x128xbf16, #tpu.memory_space<vmem>>, %arg10: memref<2x128x128xbf16, #tpu.memory_space<vmem>>, %arg11: memref<2x4x128xf32, #tpu.memory_space<vmem>>, %arg12: memref<2x2048x128xbf16, #tpu.memory_space<vmem>>, %arg13: memref<2x128x1024xbf16, #tpu.memory_space<vmem>>, %arg14: memref<1x128xf32, #tpu.memory_space<vmem>>, %arg15: memref<256x128xbf16, #tpu.memory_space<vmem>>, %arg16: memref<1x1xf32, #tpu.memory_space<vmem>>) attributes {dimension_semantics = [#tpu.dimension_semantics<arbitrary>], iteration_bounds = array<i64: 2>, scalar_prefetch = 0 : i64, scratch_operands = 0 : i64, tpu.core_type = #tpu.core_type<tc>, window_params = [{transform_indices = @transform_0, window_bounds = array<i64: 8, 128>}, {transform_indices = @transform_1, window_bounds = array<i64: 8, 1>}, {pipeline_mode = #tpu.pipeline_mode<synchronous>, transform_indices = @transform_2, window_bounds = array<i64: 8, 128>}, {pipeline_mode = #tpu.pipeline_mode<synchronous>, transform_indices = @transform_3, window_bounds = array<i64: 8, 128>}, {pipeline_mode = #tpu.pipeline_mode<synchronous>, transform_indices = @transform_4, window_bounds = array<i64: 8, 64>}, {pipeline_mode = #tpu.pipeline_mode<synchronous>, transform_indices = @transform_5, window_bounds = array<i64: 8, 64>}, {pipeline_mode = #tpu.pipeline_mode<synchronous>, transform_indices = @transform_6, window_bounds = array<i64: 2, 1, 128>}, {pipeline_mode = #tpu.pipeline_mode<synchronous>, transform_indices = @transform_7, window_bounds = array<i64: 2, 1, 128>}, {pipeline_mode = #tpu.pipeline_mode<synchronous>, transform_indices = @transform_8, window_bounds = array<i64: 2, 640, 128>}, {pipeline_mode = #tpu.pipeline_mode<synchronous>, transform_indices = @transform_9, window_bounds = array<i64: 2, 128, 128>}, {pipeline_mode = #tpu.pipeline_mode<synchronous>, transform_indices = @transform_10, window_bounds = array<i64: 2, 4, 128>}, {pipeline_mode = #tpu.pipeline_mode<synchronous>, transform_indices = @transform_11, window_bounds = array<i64: 2, 2048, 128>}, {pipeline_mode = #tpu.pipeline_mode<synchronous>, transform_indices = @transform_12, window_bounds = array<i64: 2, 128, 1024>}, {pipeline_mode = #tpu.pipeline_mode<synchronous>, transform_indices = @transform_13, window_bounds = array<i64: 1, 128>}, {pipeline_mode = #tpu.pipeline_mode<synchronous>, transform_indices = @transform_14, window_bounds = array<i64: 256, 128>}, {pipeline_mode = #tpu.pipeline_mode<synchronous>, transform_indices = @transform_15, window_bounds = array<i64: 1, 1>}]} {
    %c0 = arith.constant 0 : index
    %c0_0 = arith.constant 0 : index
    %0 = vector.load %arg1[%c0, %c0_0] : memref<8x128xf32, #tpu.memory_space<vmem>>, vector<8x128xf32>
    %c0_1 = arith.constant 0 : index
    %c0_2 = arith.constant 0 : index
    %1 = vector.load %arg3[%c0_1, %c0_2] : memref<8x128xf32, #tpu.memory_space<vmem>>, vector<8x128xf32>
    %c0_3 = arith.constant 0 : index
    %c0_4 = arith.constant 0 : index
    %2 = vector.load %arg4[%c0_3, %c0_4] : memref<8x128xf32, #tpu.memory_space<vmem>>, vector<8x128xf32>
    %c0_5 = arith.constant 0 : index
    %c0_6 = arith.constant 0 : index
    %3 = vector.load %arg5[%c0_5, %c0_6] : memref<8x64xf32, #tpu.memory_space<vmem>>, vector<8x64xf32>
    %c0_7 = arith.constant 0 : index
    %c0_8 = arith.constant 0 : index
    %4 = vector.load %arg6[%c0_7, %c0_8] : memref<8x64xf32, #tpu.memory_space<vmem>>, vector<8x64xf32>
    %c0_9 = arith.constant 0 : index
    %c0_10 = arith.constant 0 : index
    %c0_11 = arith.constant 0 : index
    %5 = vector.load %arg7[%c0_9, %c0_10, %c0_11] : memref<2x1x128xf32, #tpu.memory_space<vmem>>, vector<1x1x128xf32>
    %6 = vector.shape_cast %5 : vector<1x1x128xf32> to vector<1x128xf32>
    %c0_12 = arith.constant 0 : index
    %c0_13 = arith.constant 0 : index
    %c0_14 = arith.constant 0 : index
    %7 = vector.load %arg9[%c0_12, %c0_13, %c0_14] : memref<2x640x128xbf16, #tpu.memory_space<vmem>>, vector<1x640x128xbf16>
    %8 = vector.shape_cast %7 : vector<1x640x128xbf16> to vector<640x128xbf16>
    %c0_15 = arith.constant 0 : index
    %c0_16 = arith.constant 0 : index
    %c0_17 = arith.constant 0 : index
    %9 = vector.load %arg10[%c0_15, %c0_16, %c0_17] : memref<2x128x128xbf16, #tpu.memory_space<vmem>>, vector<1x128x128xbf16>
    %10 = vector.shape_cast %9 : vector<1x128x128xbf16> to vector<128x128xbf16>
    %11 = arith.mulf %0, %0 : vector<8x128xf32>
    %cst = arith.constant dense<0.000000e+00> : vector<8xf32>
    %12 = vector.multi_reduction <add>, %11, %cst [1] : vector<8x128xf32> to vector<8xf32>
    %13 = vector.shape_cast %12 : vector<8xf32> to vector<8x1xf32>
    %cst_18 = arith.constant 1.280000e+02 : f32
    %14 = vector.broadcast %cst_18 : f32 to vector<8x1xf32>
    %15 = arith.divf %13, %14 : vector<8x1xf32>
    %cst_19 = arith.constant 9.99999997E-7 : f32
    %16 = vector.broadcast %cst_19 : f32 to vector<8x1xf32>
    %17 = arith.addf %15, %16 : vector<8x1xf32>
    %18 = math.rsqrt %17 : vector<8x1xf32>
    %19 = vector.broadcast %18 : vector<8x1xf32> to vector<8x128xf32>
    %20 = arith.mulf %0, %19 : vector<8x128xf32>
    %21 = vector.broadcast %6 : vector<1x128xf32> to vector<8x128xf32>
    %22 = arith.mulf %20, %21 : vector<8x128xf32>
    %23 = arith.truncf %22 : vector<8x128xf32> to vector<8x128xbf16>
    %cst_20 = arith.constant dense<0.000000e+00> : vector<8x640xf32>
    %24 = tpu.matmul %23, %8, %cst_20 {dimension_numbers = #tpu.dot_dimension_numbers<[1], [1], [0], [0], [0, 0, 1, 0], [], []>} : vector<8x128xbf16>, vector<640x128xbf16>, vector<8x640xf32> -> vector<8x640xf32>
    %25 = vector.extract_strided_slice %24 {offsets = [0, 0], sizes = [8, 128], strides = [1, 1]} : vector<8x640xf32> to vector<8x128xf32>
    %26 = arith.mulf %25, %1 : vector<8x128xf32>
    %27 = vector.extract_strided_slice %24 {offsets = [0, 128], sizes = [8, 128], strides = [1, 1]} : vector<8x640xf32> to vector<8x128xf32>
    %28 = arith.mulf %27, %2 : vector<8x128xf32>
    %29 = arith.addf %26, %28 : vector<8x128xf32>
    %30 = vector.extract_strided_slice %24 {offsets = [0, 256], sizes = [8, 64], strides = [1, 1]} : vector<8x640xf32> to vector<8x64xf32>
    %31 = arith.mulf %30, %3 : vector<8x64xf32>
    %32 = vector.extract_strided_slice %24 {offsets = [0, 384], sizes = [8, 64], strides = [1, 1]} : vector<8x640xf32> to vector<8x64xf32>
    %33 = arith.mulf %32, %4 : vector<8x64xf32>
    %34 = arith.addf %31, %33 : vector<8x64xf32>
    %35 = vector.extract_strided_slice %24 {offsets = [0, 512], sizes = [8, 64], strides = [1, 1]} : vector<8x640xf32> to vector<8x64xf32>
    %36 = tpu.iota {dimensions = array<i32: 0>} : vector<8x8xi32>
    %37 = tpu.iota {dimensions = array<i32: 1>} : vector<8x8xi32>
    %38 = arith.cmpi sle, %37, %36 : vector<8x8xi32>
    %39 = vector.extract_strided_slice %29 {offsets = [0, 0], sizes = [8, 32], strides = [1, 1]} : vector<8x128xf32> to vector<8x32xf32>
    %40 = arith.truncf %39 : vector<8x32xf32> to vector<8x32xbf16>
    %41 = vector.extract_strided_slice %34 {offsets = [0, 0], sizes = [8, 32], strides = [1, 1]} : vector<8x64xf32> to vector<8x32xf32>
    %42 = arith.truncf %41 : vector<8x32xf32> to vector<8x32xbf16>
    %43 = vector.extract_strided_slice %35 {offsets = [0, 0], sizes = [8, 32], strides = [1, 1]} : vector<8x64xf32> to vector<8x32xf32>
    %44 = arith.truncf %43 : vector<8x32xf32> to vector<8x32xbf16>
    %cst_21 = arith.constant dense<0.000000e+00> : vector<8x8xf32>
    %45 = tpu.matmul %40, %42, %cst_21 {dimension_numbers = #tpu.dot_dimension_numbers<[1], [1], [0], [0], [0, 0, 1, 0], [], []>} : vector<8x32xbf16>, vector<8x32xbf16>, vector<8x8xf32> -> vector<8x8xf32>
    %cst_22 = arith.constant -1.000000e+30 : f32
    %46 = vector.broadcast %cst_22 : f32 to vector<8x8xf32>
    %47 = arith.select %38, %45, %46 : vector<8x8xi1>, vector<8x8xf32>
    %cst_23 = arith.constant dense<0xFF800000> : vector<8xf32>
    %48 = vector.multi_reduction <maximumf>, %47, %cst_23 [1] : vector<8x8xf32> to vector<8xf32>
    %49 = vector.shape_cast %48 : vector<8xf32> to vector<8x1xf32>
    %50 = vector.broadcast %49 : vector<8x1xf32> to vector<8x8xf32>
    %51 = arith.subf %47, %50 : vector<8x8xf32>
    %52 = math.exp %51 : vector<8x8xf32>
    %cst_24 = arith.constant dense<0.000000e+00> : vector<8xf32>
    %53 = vector.multi_reduction <add>, %52, %cst_24 [1] : vector<8x8xf32> to vector<8xf32>
    %54 = vector.shape_cast %53 : vector<8xf32> to vector<8x1xf32>
    %55 = vector.broadcast %54 : vector<8x1xf32> to vector<8x8xf32>
    %56 = arith.divf %52, %55 : vector<8x8xf32>
    %57 = arith.truncf %56 : vector<8x8xf32> to vector<8x8xbf16>
    %cst_25 = arith.constant dense<0.000000e+00> : vector<8x32xf32>
    %58 = tpu.matmul %57, %44, %cst_25 {dimension_numbers = #tpu.dot_dimension_numbers<[1], [0], [0], [1], [0, 0, 1, 1], [], []>} : vector<8x8xbf16>, vector<8x32xbf16>, vector<8x32xf32> -> vector<8x32xf32>
    %59 = vector.extract_strided_slice %29 {offsets = [0, 32], sizes = [8, 32], strides = [1, 1]} : vector<8x128xf32> to vector<8x32xf32>
    %60 = arith.truncf %59 : vector<8x32xf32> to vector<8x32xbf16>
    %61 = vector.extract_strided_slice %34 {offsets = [0, 0], sizes = [8, 32], strides = [1, 1]} : vector<8x64xf32> to vector<8x32xf32>
    %62 = arith.truncf %61 : vector<8x32xf32> to vector<8x32xbf16>
    %63 = vector.extract_strided_slice %35 {offsets = [0, 0], sizes = [8, 32], strides = [1, 1]} : vector<8x64xf32> to vector<8x32xf32>
    %64 = arith.truncf %63 : vector<8x32xf32> to vector<8x32xbf16>
    %cst_26 = arith.constant dense<0.000000e+00> : vector<8x8xf32>
    %65 = tpu.matmul %60, %62, %cst_26 {dimension_numbers = #tpu.dot_dimension_numbers<[1], [1], [0], [0], [0, 0, 1, 0], [], []>} : vector<8x32xbf16>, vector<8x32xbf16>, vector<8x8xf32> -> vector<8x8xf32>
    %cst_27 = arith.constant -1.000000e+30 : f32
    %66 = vector.broadcast %cst_27 : f32 to vector<8x8xf32>
    %67 = arith.select %38, %65, %66 : vector<8x8xi1>, vector<8x8xf32>
    %cst_28 = arith.constant dense<0xFF800000> : vector<8xf32>
    %68 = vector.multi_reduction <maximumf>, %67, %cst_28 [1] : vector<8x8xf32> to vector<8xf32>
    %69 = vector.shape_cast %68 : vector<8xf32> to vector<8x1xf32>
    %70 = vector.broadcast %69 : vector<8x1xf32> to vector<8x8xf32>
    %71 = arith.subf %67, %70 : vector<8x8xf32>
    %72 = math.exp %71 : vector<8x8xf32>
    %cst_29 = arith.constant dense<0.000000e+00> : vector<8xf32>
    %73 = vector.multi_reduction <add>, %72, %cst_29 [1] : vector<8x8xf32> to vector<8xf32>
    %74 = vector.shape_cast %73 : vector<8xf32> to vector<8x1xf32>
    %75 = vector.broadcast %74 : vector<8x1xf32> to vector<8x8xf32>
    %76 = arith.divf %72, %75 : vector<8x8xf32>
    %77 = arith.truncf %76 : vector<8x8xf32> to vector<8x8xbf16>
    %cst_30 = arith.constant dense<0.000000e+00> : vector<8x32xf32>
    %78 = tpu.matmul %77, %64, %cst_30 {dimension_numbers = #tpu.dot_dimension_numbers<[1], [0], [0], [1], [0, 0, 1, 1], [], []>} : vector<8x8xbf16>, vector<8x32xbf16>, vector<8x32xf32> -> vector<8x32xf32>
    %79 = vector.extract_strided_slice %29 {offsets = [0, 64], sizes = [8, 32], strides = [1, 1]} : vector<8x128xf32> to vector<8x32xf32>
    %80 = arith.truncf %79 : vector<8x32xf32> to vector<8x32xbf16>
    %81 = vector.extract_strided_slice %34 {offsets = [0, 32], sizes = [8, 32], strides = [1, 1]} : vector<8x64xf32> to vector<8x32xf32>
    %82 = arith.truncf %81 : vector<8x32xf32> to vector<8x32xbf16>
    %83 = vector.extract_strided_slice %35 {offsets = [0, 32], sizes = [8, 32], strides = [1, 1]} : vector<8x64xf32> to vector<8x32xf32>
    %84 = arith.truncf %83 : vector<8x32xf32> to vector<8x32xbf16>
    %cst_31 = arith.constant dense<0.000000e+00> : vector<8x8xf32>
    %85 = tpu.matmul %80, %82, %cst_31 {dimension_numbers = #tpu.dot_dimension_numbers<[1], [1], [0], [0], [0, 0, 1, 0], [], []>} : vector<8x32xbf16>, vector<8x32xbf16>, vector<8x8xf32> -> vector<8x8xf32>
    %cst_32 = arith.constant -1.000000e+30 : f32
    %86 = vector.broadcast %cst_32 : f32 to vector<8x8xf32>
    %87 = arith.select %38, %85, %86 : vector<8x8xi1>, vector<8x8xf32>
    %cst_33 = arith.constant dense<0xFF800000> : vector<8xf32>
    %88 = vector.multi_reduction <maximumf>, %87, %cst_33 [1] : vector<8x8xf32> to vector<8xf32>
    %89 = vector.shape_cast %88 : vector<8xf32> to vector<8x1xf32>
    %90 = vector.broadcast %89 : vector<8x1xf32> to vector<8x8xf32>
    %91 = arith.subf %87, %90 : vector<8x8xf32>
    %92 = math.exp %91 : vector<8x8xf32>
    %cst_34 = arith.constant dense<0.000000e+00> : vector<8xf32>
    %93 = vector.multi_reduction <add>, %92, %cst_34 [1] : vector<8x8xf32> to vector<8xf32>
    %94 = vector.shape_cast %93 : vector<8xf32> to vector<8x1xf32>
    %95 = vector.broadcast %94 : vector<8x1xf32> to vector<8x8xf32>
    %96 = arith.divf %92, %95 : vector<8x8xf32>
    %97 = arith.truncf %96 : vector<8x8xf32> to vector<8x8xbf16>
    %cst_35 = arith.constant dense<0.000000e+00> : vector<8x32xf32>
    %98 = tpu.matmul %97, %84, %cst_35 {dimension_numbers = #tpu.dot_dimension_numbers<[1], [0], [0], [1], [0, 0, 1, 1], [], []>} : vector<8x8xbf16>, vector<8x32xbf16>, vector<8x32xf32> -> vector<8x32xf32>
    %99 = vector.extract_strided_slice %29 {offsets = [0, 96], sizes = [8, 32], strides = [1, 1]} : vector<8x128xf32> to vector<8x32xf32>
    %100 = arith.truncf %99 : vector<8x32xf32> to vector<8x32xbf16>
    %101 = vector.extract_strided_slice %34 {offsets = [0, 32], sizes = [8, 32], strides = [1, 1]} : vector<8x64xf32> to vector<8x32xf32>
    %102 = arith.truncf %101 : vector<8x32xf32> to vector<8x32xbf16>
    %103 = vector.extract_strided_slice %35 {offsets = [0, 32], sizes = [8, 32], strides = [1, 1]} : vector<8x64xf32> to vector<8x32xf32>
    %104 = arith.truncf %103 : vector<8x32xf32> to vector<8x32xbf16>
    %cst_36 = arith.constant dense<0.000000e+00> : vector<8x8xf32>
    %105 = tpu.matmul %100, %102, %cst_36 {dimension_numbers = #tpu.dot_dimension_numbers<[1], [1], [0], [0], [0, 0, 1, 0], [], []>} : vector<8x32xbf16>, vector<8x32xbf16>, vector<8x8xf32> -> vector<8x8xf32>
    %cst_37 = arith.constant -1.000000e+30 : f32
    %106 = vector.broadcast %cst_37 : f32 to vector<8x8xf32>
    %107 = arith.select %38, %105, %106 : vector<8x8xi1>, vector<8x8xf32>
    %cst_38 = arith.constant dense<0xFF800000> : vector<8xf32>
    %108 = vector.multi_reduction <maximumf>, %107, %cst_38 [1] : vector<8x8xf32> to vector<8xf32>
    %109 = vector.shape_cast %108 : vector<8xf32> to vector<8x1xf32>
    %110 = vector.broadcast %109 : vector<8x1xf32> to vector<8x8xf32>
    %111 = arith.subf %107, %110 : vector<8x8xf32>
    %112 = math.exp %111 : vector<8x8xf32>
    %cst_39 = arith.constant dense<0.000000e+00> : vector<8xf32>
    %113 = vector.multi_reduction <add>, %112, %cst_39 [1] : vector<8x8xf32> to vector<8xf32>
    %114 = vector.shape_cast %113 : vector<8xf32> to vector<8x1xf32>
    %115 = vector.broadcast %114 : vector<8x1xf32> to vector<8x8xf32>
    %116 = arith.divf %112, %115 : vector<8x8xf32>
    %117 = arith.truncf %116 : vector<8x8xf32> to vector<8x8xbf16>
    %cst_40 = arith.constant dense<0.000000e+00> : vector<8x32xf32>
    %118 = tpu.matmul %117, %104, %cst_40 {dimension_numbers = #tpu.dot_dimension_numbers<[1], [0], [0], [1], [0, 0, 1, 1], [], []>} : vector<8x8xbf16>, vector<8x32xbf16>, vector<8x32xf32> -> vector<8x32xf32>
    %119 = tpu.concatenate %58, %78, %98, %118 in 1 : vector<8x32xf32>, vector<8x32xf32>, vector<8x32xf32>, vector<8x32xf32> -> vector<8x128xf32>
    %120 = arith.truncf %119 : vector<8x128xf32> to vector<8x128xbf16>
    %cst_41 = arith.constant dense<0.000000e+00> : vector<8x128xf32>
    %121 = tpu.matmul %120, %10, %cst_41 {dimension_numbers = #tpu.dot_dimension_numbers<[1], [1], [0], [0], [0, 0, 1, 0], [], []>} : vector<8x128xbf16>, vector<128x128xbf16>, vector<8x128xf32> -> vector<8x128xf32>
    %122 = arith.addf %0, %121 : vector<8x128xf32>
    %c0_42 = arith.constant 0 : index
    %c0_43 = arith.constant 0 : index
    %c0_44 = arith.constant 0 : index
    %123 = vector.load %arg8[%c0_42, %c0_43, %c0_44] : memref<2x1x128xf32, #tpu.memory_space<vmem>>, vector<1x1x128xf32>
    %124 = vector.shape_cast %123 : vector<1x1x128xf32> to vector<1x128xf32>
    %c0_45 = arith.constant 0 : index
    %c0_46 = arith.constant 0 : index
    %c0_47 = arith.constant 0 : index
    %125 = vector.load %arg11[%c0_45, %c0_46, %c0_47] : memref<2x4x128xf32, #tpu.memory_space<vmem>>, vector<1x4x128xf32>
    %126 = vector.shape_cast %125 : vector<1x4x128xf32> to vector<4x128xf32>
    %c0_48 = arith.constant 0 : index
    %c0_49 = arith.constant 0 : index
    %c0_50 = arith.constant 0 : index
    %127 = vector.load %arg12[%c0_48, %c0_49, %c0_50] : memref<2x2048x128xbf16, #tpu.memory_space<vmem>>, vector<1x2048x128xbf16>
    %128 = vector.shape_cast %127 : vector<1x2048x128xbf16> to vector<2048x128xbf16>
    %c0_51 = arith.constant 0 : index
    %c0_52 = arith.constant 0 : index
    %c0_53 = arith.constant 0 : index
    %129 = vector.load %arg13[%c0_51, %c0_52, %c0_53] : memref<2x128x1024xbf16, #tpu.memory_space<vmem>>, vector<1x128x1024xbf16>
    %130 = vector.shape_cast %129 : vector<1x128x1024xbf16> to vector<128x1024xbf16>
    %131 = arith.mulf %122, %122 : vector<8x128xf32>
    %cst_54 = arith.constant dense<0.000000e+00> : vector<8xf32>
    %132 = vector.multi_reduction <add>, %131, %cst_54 [1] : vector<8x128xf32> to vector<8xf32>
    %133 = vector.shape_cast %132 : vector<8xf32> to vector<8x1xf32>
    %cst_55 = arith.constant 1.280000e+02 : f32
    %134 = vector.broadcast %cst_55 : f32 to vector<8x1xf32>
    %135 = arith.divf %133, %134 : vector<8x1xf32>
    %cst_56 = arith.constant 9.99999997E-7 : f32
    %136 = vector.broadcast %cst_56 : f32 to vector<8x1xf32>
    %137 = arith.addf %135, %136 : vector<8x1xf32>
    %138 = math.rsqrt %137 : vector<8x1xf32>
    %139 = vector.broadcast %138 : vector<8x1xf32> to vector<8x128xf32>
    %140 = arith.mulf %122, %139 : vector<8x128xf32>
    %141 = vector.broadcast %124 : vector<1x128xf32> to vector<8x128xf32>
    %142 = arith.mulf %140, %141 : vector<8x128xf32>
    %cst_57 = arith.constant dense<0.000000e+00> : vector<8x4xf32>
    %143 = tpu.matmul %142, %126, %cst_57 {dimension_numbers = #tpu.dot_dimension_numbers<[1], [1], [0], [0], [0, 0, 1, 0], [], []>} : vector<8x128xf32>, vector<4x128xf32>, vector<8x4xf32> -> vector<8x4xf32>
    %cst_58 = arith.constant dense<0xFF800000> : vector<8xf32>
    %144 = vector.multi_reduction <maximumf>, %143, %cst_58 [1] : vector<8x4xf32> to vector<8xf32>
    %145 = vector.shape_cast %144 : vector<8xf32> to vector<8x1xf32>
    %146 = vector.broadcast %145 : vector<8x1xf32> to vector<8x4xf32>
    %147 = arith.subf %143, %146 : vector<8x4xf32>
    %148 = math.exp %147 : vector<8x4xf32>
    %cst_59 = arith.constant dense<0.000000e+00> : vector<8xf32>
    %149 = vector.multi_reduction <add>, %148, %cst_59 [1] : vector<8x4xf32> to vector<8xf32>
    %150 = vector.shape_cast %149 : vector<8xf32> to vector<8x1xf32>
    %151 = vector.broadcast %150 : vector<8x1xf32> to vector<8x4xf32>
    %152 = arith.divf %148, %151 : vector<8x4xf32>
    %153 = tpu.iota {dimensions = array<i32: 1>} : vector<8x4xi32>
    %c0_i32 = arith.constant 0 : i32
    %154 = vector.broadcast %c0_i32 : i32 to vector<8x4xi32>
    %155 = vector.extract_strided_slice %152 {offsets = [0, 0], sizes = [8, 1], strides = [1, 1]} : vector<8x4xf32> to vector<8x1xf32>
    %156 = vector.broadcast %155 : vector<8x1xf32> to vector<8x4xf32>
    %157 = arith.cmpf ogt, %156, %152 : vector<8x4xf32>
    %158 = vector.broadcast %155 : vector<8x1xf32> to vector<8x4xf32>
    %159 = arith.cmpf oeq, %158, %152 : vector<8x4xf32>
    %c0_i32_60 = arith.constant 0 : i32
    %160 = vector.broadcast %c0_i32_60 : i32 to vector<8x4xi32>
    %161 = arith.cmpi sgt, %153, %160 : vector<8x4xi32>
    %162 = arith.andi %159, %161 : vector<8x4xi1>
    %163 = arith.ori %157, %162 : vector<8x4xi1>
    %164 = arith.extui %163 : vector<8x4xi1> to vector<8x4xi32>
    %165 = arith.addi %154, %164 : vector<8x4xi32>
    %166 = vector.extract_strided_slice %152 {offsets = [0, 1], sizes = [8, 1], strides = [1, 1]} : vector<8x4xf32> to vector<8x1xf32>
    %167 = vector.broadcast %166 : vector<8x1xf32> to vector<8x4xf32>
    %168 = arith.cmpf ogt, %167, %152 : vector<8x4xf32>
    %169 = vector.broadcast %166 : vector<8x1xf32> to vector<8x4xf32>
    %170 = arith.cmpf oeq, %169, %152 : vector<8x4xf32>
    %c1_i32 = arith.constant 1 : i32
    %171 = vector.broadcast %c1_i32 : i32 to vector<8x4xi32>
    %172 = arith.cmpi sgt, %153, %171 : vector<8x4xi32>
    %173 = arith.andi %170, %172 : vector<8x4xi1>
    %174 = arith.ori %168, %173 : vector<8x4xi1>
    %175 = arith.extui %174 : vector<8x4xi1> to vector<8x4xi32>
    %176 = arith.addi %165, %175 : vector<8x4xi32>
    %177 = vector.extract_strided_slice %152 {offsets = [0, 2], sizes = [8, 1], strides = [1, 1]} : vector<8x4xf32> to vector<8x1xf32>
    %178 = vector.broadcast %177 : vector<8x1xf32> to vector<8x4xf32>
    %179 = arith.cmpf ogt, %178, %152 : vector<8x4xf32>
    %180 = vector.broadcast %177 : vector<8x1xf32> to vector<8x4xf32>
    %181 = arith.cmpf oeq, %180, %152 : vector<8x4xf32>
    %c2_i32 = arith.constant 2 : i32
    %182 = vector.broadcast %c2_i32 : i32 to vector<8x4xi32>
    %183 = arith.cmpi sgt, %153, %182 : vector<8x4xi32>
    %184 = arith.andi %181, %183 : vector<8x4xi1>
    %185 = arith.ori %179, %184 : vector<8x4xi1>
    %186 = arith.extui %185 : vector<8x4xi1> to vector<8x4xi32>
    %187 = arith.addi %176, %186 : vector<8x4xi32>
    %188 = vector.extract_strided_slice %152 {offsets = [0, 3], sizes = [8, 1], strides = [1, 1]} : vector<8x4xf32> to vector<8x1xf32>
    %189 = vector.broadcast %188 : vector<8x1xf32> to vector<8x4xf32>
    %190 = arith.cmpf ogt, %189, %152 : vector<8x4xf32>
    %191 = vector.broadcast %188 : vector<8x1xf32> to vector<8x4xf32>
    %192 = arith.cmpf oeq, %191, %152 : vector<8x4xf32>
    %c3_i32 = arith.constant 3 : i32
    %193 = vector.broadcast %c3_i32 : i32 to vector<8x4xi32>
    %194 = arith.cmpi sgt, %153, %193 : vector<8x4xi32>
    %195 = arith.andi %192, %194 : vector<8x4xi1>
    %196 = arith.ori %190, %195 : vector<8x4xi1>
    %197 = arith.extui %196 : vector<8x4xi1> to vector<8x4xi32>
    %198 = arith.addi %187, %197 : vector<8x4xi32>
    %c2_i32_61 = arith.constant 2 : i32
    %199 = vector.broadcast %c2_i32_61 : i32 to vector<8x4xi32>
    %200 = arith.cmpi slt, %198, %199 : vector<8x4xi32>
    %cst_62 = arith.constant 0.000000e+00 : f32
    %201 = vector.broadcast %cst_62 : f32 to vector<8x4xf32>
    %202 = arith.select %200, %152, %201 : vector<8x4xi1>, vector<8x4xf32>
    %cst_63 = arith.constant dense<0.000000e+00> : vector<8xf32>
    %203 = vector.multi_reduction <add>, %202, %cst_63 [1] : vector<8x4xf32> to vector<8xf32>
    %204 = vector.shape_cast %203 : vector<8xf32> to vector<8x1xf32>
    %205 = vector.broadcast %204 : vector<8x1xf32> to vector<8x4xf32>
    %206 = arith.divf %202, %205 : vector<8x4xf32>
    %207 = arith.truncf %142 : vector<8x128xf32> to vector<8x128xbf16>
    %cst_64 = arith.constant dense<0.000000e+00> : vector<8x2048xf32>
    %208 = tpu.matmul %207, %128, %cst_64 {dimension_numbers = #tpu.dot_dimension_numbers<[1], [1], [0], [0], [0, 0, 1, 0], [], []>} : vector<8x128xbf16>, vector<2048x128xbf16>, vector<8x2048xf32> -> vector<8x2048xf32>
    %209 = vector.extract_strided_slice %208 {offsets = [0, 0], sizes = [8, 256], strides = [1, 1]} : vector<8x2048xf32> to vector<8x256xf32>
    %210 = vector.extract_strided_slice %208 {offsets = [0, 256], sizes = [8, 256], strides = [1, 1]} : vector<8x2048xf32> to vector<8x256xf32>
    %211 = arith.negf %209 : vector<8x256xf32>
    %212 = math.exp %211 : vector<8x256xf32>
    %cst_65 = arith.constant 1.000000e+00 : f32
    %213 = vector.broadcast %cst_65 : f32 to vector<8x256xf32>
    %214 = arith.addf %213, %212 : vector<8x256xf32>
    %215 = arith.divf %213, %214 : vector<8x256xf32>
    %216 = arith.mulf %209, %215 : vector<8x256xf32>
    %217 = arith.mulf %216, %210 : vector<8x256xf32>
    %218 = vector.extract_strided_slice %206 {offsets = [0, 0], sizes = [8, 1], strides = [1, 1]} : vector<8x4xf32> to vector<8x1xf32>
    %219 = vector.broadcast %218 : vector<8x1xf32> to vector<8x256xf32>
    %220 = arith.mulf %217, %219 : vector<8x256xf32>
    %221 = vector.extract_strided_slice %208 {offsets = [0, 512], sizes = [8, 256], strides = [1, 1]} : vector<8x2048xf32> to vector<8x256xf32>
    %222 = vector.extract_strided_slice %208 {offsets = [0, 768], sizes = [8, 256], strides = [1, 1]} : vector<8x2048xf32> to vector<8x256xf32>
    %223 = arith.negf %221 : vector<8x256xf32>
    %224 = math.exp %223 : vector<8x256xf32>
    %cst_66 = arith.constant 1.000000e+00 : f32
    %225 = vector.broadcast %cst_66 : f32 to vector<8x256xf32>
    %226 = arith.addf %225, %224 : vector<8x256xf32>
    %227 = arith.divf %225, %226 : vector<8x256xf32>
    %228 = arith.mulf %221, %227 : vector<8x256xf32>
    %229 = arith.mulf %228, %222 : vector<8x256xf32>
    %230 = vector.extract_strided_slice %206 {offsets = [0, 1], sizes = [8, 1], strides = [1, 1]} : vector<8x4xf32> to vector<8x1xf32>
    %231 = vector.broadcast %230 : vector<8x1xf32> to vector<8x256xf32>
    %232 = arith.mulf %229, %231 : vector<8x256xf32>
    %233 = vector.extract_strided_slice %208 {offsets = [0, 1024], sizes = [8, 256], strides = [1, 1]} : vector<8x2048xf32> to vector<8x256xf32>
    %234 = vector.extract_strided_slice %208 {offsets = [0, 1280], sizes = [8, 256], strides = [1, 1]} : vector<8x2048xf32> to vector<8x256xf32>
    %235 = arith.negf %233 : vector<8x256xf32>
    %236 = math.exp %235 : vector<8x256xf32>
    %cst_67 = arith.constant 1.000000e+00 : f32
    %237 = vector.broadcast %cst_67 : f32 to vector<8x256xf32>
    %238 = arith.addf %237, %236 : vector<8x256xf32>
    %239 = arith.divf %237, %238 : vector<8x256xf32>
    %240 = arith.mulf %233, %239 : vector<8x256xf32>
    %241 = arith.mulf %240, %234 : vector<8x256xf32>
    %242 = vector.extract_strided_slice %206 {offsets = [0, 2], sizes = [8, 1], strides = [1, 1]} : vector<8x4xf32> to vector<8x1xf32>
    %243 = vector.broadcast %242 : vector<8x1xf32> to vector<8x256xf32>
    %244 = arith.mulf %241, %243 : vector<8x256xf32>
    %245 = vector.extract_strided_slice %208 {offsets = [0, 1536], sizes = [8, 256], strides = [1, 1]} : vector<8x2048xf32> to vector<8x256xf32>
    %246 = vector.extract_strided_slice %208 {offsets = [0, 1792], sizes = [8, 256], strides = [1, 1]} : vector<8x2048xf32> to vector<8x256xf32>
    %247 = arith.negf %245 : vector<8x256xf32>
    %248 = math.exp %247 : vector<8x256xf32>
    %cst_68 = arith.constant 1.000000e+00 : f32
    %249 = vector.broadcast %cst_68 : f32 to vector<8x256xf32>
    %250 = arith.addf %249, %248 : vector<8x256xf32>
    %251 = arith.divf %249, %250 : vector<8x256xf32>
    %252 = arith.mulf %245, %251 : vector<8x256xf32>
    %253 = arith.mulf %252, %246 : vector<8x256xf32>
    %254 = vector.extract_strided_slice %206 {offsets = [0, 3], sizes = [8, 1], strides = [1, 1]} : vector<8x4xf32> to vector<8x1xf32>
    %255 = vector.broadcast %254 : vector<8x1xf32> to vector<8x256xf32>
    %256 = arith.mulf %253, %255 : vector<8x256xf32>
    %257 = tpu.concatenate %220, %232, %244, %256 in 1 : vector<8x256xf32>, vector<8x256xf32>, vector<8x256xf32>, vector<8x256xf32> -> vector<8x1024xf32>
    %258 = arith.truncf %257 : vector<8x1024xf32> to vector<8x1024xbf16>
    %cst_69 = arith.constant dense<0.000000e+00> : vector<8x128xf32>
    %259 = tpu.matmul %258, %130, %cst_69 {dimension_numbers = #tpu.dot_dimension_numbers<[1], [1], [0], [0], [0, 0, 1, 0], [], []>} : vector<8x1024xbf16>, vector<128x1024xbf16>, vector<8x128xf32> -> vector<8x128xf32>
    %260 = arith.addf %122, %259 : vector<8x128xf32>
    %c1 = arith.constant 1 : index
    %c0_70 = arith.constant 0 : index
    %c0_71 = arith.constant 0 : index
    %261 = vector.load %arg7[%c1, %c0_70, %c0_71] : memref<2x1x128xf32, #tpu.memory_space<vmem>>, vector<1x1x128xf32>
    %262 = vector.shape_cast %261 : vector<1x1x128xf32> to vector<1x128xf32>
    %c1_72 = arith.constant 1 : index
    %c0_73 = arith.constant 0 : index
    %c0_74 = arith.constant 0 : index
    %263 = vector.load %arg9[%c1_72, %c0_73, %c0_74] : memref<2x640x128xbf16, #tpu.memory_space<vmem>>, vector<1x640x128xbf16>
    %264 = vector.shape_cast %263 : vector<1x640x128xbf16> to vector<640x128xbf16>
    %c1_75 = arith.constant 1 : index
    %c0_76 = arith.constant 0 : index
    %c0_77 = arith.constant 0 : index
    %265 = vector.load %arg10[%c1_75, %c0_76, %c0_77] : memref<2x128x128xbf16, #tpu.memory_space<vmem>>, vector<1x128x128xbf16>
    %266 = vector.shape_cast %265 : vector<1x128x128xbf16> to vector<128x128xbf16>
    %267 = arith.mulf %260, %260 : vector<8x128xf32>
    %cst_78 = arith.constant dense<0.000000e+00> : vector<8xf32>
    %268 = vector.multi_reduction <add>, %267, %cst_78 [1] : vector<8x128xf32> to vector<8xf32>
    %269 = vector.shape_cast %268 : vector<8xf32> to vector<8x1xf32>
    %cst_79 = arith.constant 1.280000e+02 : f32
    %270 = vector.broadcast %cst_79 : f32 to vector<8x1xf32>
    %271 = arith.divf %269, %270 : vector<8x1xf32>
    %cst_80 = arith.constant 9.99999997E-7 : f32
    %272 = vector.broadcast %cst_80 : f32 to vector<8x1xf32>
    %273 = arith.addf %271, %272 : vector<8x1xf32>
    %274 = math.rsqrt %273 : vector<8x1xf32>
    %275 = vector.broadcast %274 : vector<8x1xf32> to vector<8x128xf32>
    %276 = arith.mulf %260, %275 : vector<8x128xf32>
    %277 = vector.broadcast %262 : vector<1x128xf32> to vector<8x128xf32>
    %278 = arith.mulf %276, %277 : vector<8x128xf32>
    %279 = arith.truncf %278 : vector<8x128xf32> to vector<8x128xbf16>
    %cst_81 = arith.constant dense<0.000000e+00> : vector<8x640xf32>
    %280 = tpu.matmul %279, %264, %cst_81 {dimension_numbers = #tpu.dot_dimension_numbers<[1], [1], [0], [0], [0, 0, 1, 0], [], []>} : vector<8x128xbf16>, vector<640x128xbf16>, vector<8x640xf32> -> vector<8x640xf32>
    %281 = vector.extract_strided_slice %280 {offsets = [0, 0], sizes = [8, 128], strides = [1, 1]} : vector<8x640xf32> to vector<8x128xf32>
    %282 = arith.mulf %281, %1 : vector<8x128xf32>
    %283 = vector.extract_strided_slice %280 {offsets = [0, 128], sizes = [8, 128], strides = [1, 1]} : vector<8x640xf32> to vector<8x128xf32>
    %284 = arith.mulf %283, %2 : vector<8x128xf32>
    %285 = arith.addf %282, %284 : vector<8x128xf32>
    %286 = vector.extract_strided_slice %280 {offsets = [0, 256], sizes = [8, 64], strides = [1, 1]} : vector<8x640xf32> to vector<8x64xf32>
    %287 = arith.mulf %286, %3 : vector<8x64xf32>
    %288 = vector.extract_strided_slice %280 {offsets = [0, 384], sizes = [8, 64], strides = [1, 1]} : vector<8x640xf32> to vector<8x64xf32>
    %289 = arith.mulf %288, %4 : vector<8x64xf32>
    %290 = arith.addf %287, %289 : vector<8x64xf32>
    %291 = vector.extract_strided_slice %280 {offsets = [0, 512], sizes = [8, 64], strides = [1, 1]} : vector<8x640xf32> to vector<8x64xf32>
    %292 = tpu.iota {dimensions = array<i32: 0>} : vector<8x8xi32>
    %293 = tpu.iota {dimensions = array<i32: 1>} : vector<8x8xi32>
    %294 = arith.cmpi sle, %293, %292 : vector<8x8xi32>
    %295 = vector.extract_strided_slice %285 {offsets = [0, 0], sizes = [8, 32], strides = [1, 1]} : vector<8x128xf32> to vector<8x32xf32>
    %296 = arith.truncf %295 : vector<8x32xf32> to vector<8x32xbf16>
    %297 = vector.extract_strided_slice %290 {offsets = [0, 0], sizes = [8, 32], strides = [1, 1]} : vector<8x64xf32> to vector<8x32xf32>
    %298 = arith.truncf %297 : vector<8x32xf32> to vector<8x32xbf16>
    %299 = vector.extract_strided_slice %291 {offsets = [0, 0], sizes = [8, 32], strides = [1, 1]} : vector<8x64xf32> to vector<8x32xf32>
    %300 = arith.truncf %299 : vector<8x32xf32> to vector<8x32xbf16>
    %cst_82 = arith.constant dense<0.000000e+00> : vector<8x8xf32>
    %301 = tpu.matmul %296, %298, %cst_82 {dimension_numbers = #tpu.dot_dimension_numbers<[1], [1], [0], [0], [0, 0, 1, 0], [], []>} : vector<8x32xbf16>, vector<8x32xbf16>, vector<8x8xf32> -> vector<8x8xf32>
    %cst_83 = arith.constant -1.000000e+30 : f32
    %302 = vector.broadcast %cst_83 : f32 to vector<8x8xf32>
    %303 = arith.select %294, %301, %302 : vector<8x8xi1>, vector<8x8xf32>
    %cst_84 = arith.constant dense<0xFF800000> : vector<8xf32>
    %304 = vector.multi_reduction <maximumf>, %303, %cst_84 [1] : vector<8x8xf32> to vector<8xf32>
    %305 = vector.shape_cast %304 : vector<8xf32> to vector<8x1xf32>
    %306 = vector.broadcast %305 : vector<8x1xf32> to vector<8x8xf32>
    %307 = arith.subf %303, %306 : vector<8x8xf32>
    %308 = math.exp %307 : vector<8x8xf32>
    %cst_85 = arith.constant dense<0.000000e+00> : vector<8xf32>
    %309 = vector.multi_reduction <add>, %308, %cst_85 [1] : vector<8x8xf32> to vector<8xf32>
    %310 = vector.shape_cast %309 : vector<8xf32> to vector<8x1xf32>
    %311 = vector.broadcast %310 : vector<8x1xf32> to vector<8x8xf32>
    %312 = arith.divf %308, %311 : vector<8x8xf32>
    %313 = arith.truncf %312 : vector<8x8xf32> to vector<8x8xbf16>
    %cst_86 = arith.constant dense<0.000000e+00> : vector<8x32xf32>
    %314 = tpu.matmul %313, %300, %cst_86 {dimension_numbers = #tpu.dot_dimension_numbers<[1], [0], [0], [1], [0, 0, 1, 1], [], []>} : vector<8x8xbf16>, vector<8x32xbf16>, vector<8x32xf32> -> vector<8x32xf32>
    %315 = vector.extract_strided_slice %285 {offsets = [0, 32], sizes = [8, 32], strides = [1, 1]} : vector<8x128xf32> to vector<8x32xf32>
    %316 = arith.truncf %315 : vector<8x32xf32> to vector<8x32xbf16>
    %317 = vector.extract_strided_slice %290 {offsets = [0, 0], sizes = [8, 32], strides = [1, 1]} : vector<8x64xf32> to vector<8x32xf32>
    %318 = arith.truncf %317 : vector<8x32xf32> to vector<8x32xbf16>
    %319 = vector.extract_strided_slice %291 {offsets = [0, 0], sizes = [8, 32], strides = [1, 1]} : vector<8x64xf32> to vector<8x32xf32>
    %320 = arith.truncf %319 : vector<8x32xf32> to vector<8x32xbf16>
    %cst_87 = arith.constant dense<0.000000e+00> : vector<8x8xf32>
    %321 = tpu.matmul %316, %318, %cst_87 {dimension_numbers = #tpu.dot_dimension_numbers<[1], [1], [0], [0], [0, 0, 1, 0], [], []>} : vector<8x32xbf16>, vector<8x32xbf16>, vector<8x8xf32> -> vector<8x8xf32>
    %cst_88 = arith.constant -1.000000e+30 : f32
    %322 = vector.broadcast %cst_88 : f32 to vector<8x8xf32>
    %323 = arith.select %294, %321, %322 : vector<8x8xi1>, vector<8x8xf32>
    %cst_89 = arith.constant dense<0xFF800000> : vector<8xf32>
    %324 = vector.multi_reduction <maximumf>, %323, %cst_89 [1] : vector<8x8xf32> to vector<8xf32>
    %325 = vector.shape_cast %324 : vector<8xf32> to vector<8x1xf32>
    %326 = vector.broadcast %325 : vector<8x1xf32> to vector<8x8xf32>
    %327 = arith.subf %323, %326 : vector<8x8xf32>
    %328 = math.exp %327 : vector<8x8xf32>
    %cst_90 = arith.constant dense<0.000000e+00> : vector<8xf32>
    %329 = vector.multi_reduction <add>, %328, %cst_90 [1] : vector<8x8xf32> to vector<8xf32>
    %330 = vector.shape_cast %329 : vector<8xf32> to vector<8x1xf32>
    %331 = vector.broadcast %330 : vector<8x1xf32> to vector<8x8xf32>
    %332 = arith.divf %328, %331 : vector<8x8xf32>
    %333 = arith.truncf %332 : vector<8x8xf32> to vector<8x8xbf16>
    %cst_91 = arith.constant dense<0.000000e+00> : vector<8x32xf32>
    %334 = tpu.matmul %333, %320, %cst_91 {dimension_numbers = #tpu.dot_dimension_numbers<[1], [0], [0], [1], [0, 0, 1, 1], [], []>} : vector<8x8xbf16>, vector<8x32xbf16>, vector<8x32xf32> -> vector<8x32xf32>
    %335 = vector.extract_strided_slice %285 {offsets = [0, 64], sizes = [8, 32], strides = [1, 1]} : vector<8x128xf32> to vector<8x32xf32>
    %336 = arith.truncf %335 : vector<8x32xf32> to vector<8x32xbf16>
    %337 = vector.extract_strided_slice %290 {offsets = [0, 32], sizes = [8, 32], strides = [1, 1]} : vector<8x64xf32> to vector<8x32xf32>
    %338 = arith.truncf %337 : vector<8x32xf32> to vector<8x32xbf16>
    %339 = vector.extract_strided_slice %291 {offsets = [0, 32], sizes = [8, 32], strides = [1, 1]} : vector<8x64xf32> to vector<8x32xf32>
    %340 = arith.truncf %339 : vector<8x32xf32> to vector<8x32xbf16>
    %cst_92 = arith.constant dense<0.000000e+00> : vector<8x8xf32>
    %341 = tpu.matmul %336, %338, %cst_92 {dimension_numbers = #tpu.dot_dimension_numbers<[1], [1], [0], [0], [0, 0, 1, 0], [], []>} : vector<8x32xbf16>, vector<8x32xbf16>, vector<8x8xf32> -> vector<8x8xf32>
    %cst_93 = arith.constant -1.000000e+30 : f32
    %342 = vector.broadcast %cst_93 : f32 to vector<8x8xf32>
    %343 = arith.select %294, %341, %342 : vector<8x8xi1>, vector<8x8xf32>
    %cst_94 = arith.constant dense<0xFF800000> : vector<8xf32>
    %344 = vector.multi_reduction <maximumf>, %343, %cst_94 [1] : vector<8x8xf32> to vector<8xf32>
    %345 = vector.shape_cast %344 : vector<8xf32> to vector<8x1xf32>
    %346 = vector.broadcast %345 : vector<8x1xf32> to vector<8x8xf32>
    %347 = arith.subf %343, %346 : vector<8x8xf32>
    %348 = math.exp %347 : vector<8x8xf32>
    %cst_95 = arith.constant dense<0.000000e+00> : vector<8xf32>
    %349 = vector.multi_reduction <add>, %348, %cst_95 [1] : vector<8x8xf32> to vector<8xf32>
    %350 = vector.shape_cast %349 : vector<8xf32> to vector<8x1xf32>
    %351 = vector.broadcast %350 : vector<8x1xf32> to vector<8x8xf32>
    %352 = arith.divf %348, %351 : vector<8x8xf32>
    %353 = arith.truncf %352 : vector<8x8xf32> to vector<8x8xbf16>
    %cst_96 = arith.constant dense<0.000000e+00> : vector<8x32xf32>
    %354 = tpu.matmul %353, %340, %cst_96 {dimension_numbers = #tpu.dot_dimension_numbers<[1], [0], [0], [1], [0, 0, 1, 1], [], []>} : vector<8x8xbf16>, vector<8x32xbf16>, vector<8x32xf32> -> vector<8x32xf32>
    %355 = vector.extract_strided_slice %285 {offsets = [0, 96], sizes = [8, 32], strides = [1, 1]} : vector<8x128xf32> to vector<8x32xf32>
    %356 = arith.truncf %355 : vector<8x32xf32> to vector<8x32xbf16>
    %357 = vector.extract_strided_slice %290 {offsets = [0, 32], sizes = [8, 32], strides = [1, 1]} : vector<8x64xf32> to vector<8x32xf32>
    %358 = arith.truncf %357 : vector<8x32xf32> to vector<8x32xbf16>
    %359 = vector.extract_strided_slice %291 {offsets = [0, 32], sizes = [8, 32], strides = [1, 1]} : vector<8x64xf32> to vector<8x32xf32>
    %360 = arith.truncf %359 : vector<8x32xf32> to vector<8x32xbf16>
    %cst_97 = arith.constant dense<0.000000e+00> : vector<8x8xf32>
    %361 = tpu.matmul %356, %358, %cst_97 {dimension_numbers = #tpu.dot_dimension_numbers<[1], [1], [0], [0], [0, 0, 1, 0], [], []>} : vector<8x32xbf16>, vector<8x32xbf16>, vector<8x8xf32> -> vector<8x8xf32>
    %cst_98 = arith.constant -1.000000e+30 : f32
    %362 = vector.broadcast %cst_98 : f32 to vector<8x8xf32>
    %363 = arith.select %294, %361, %362 : vector<8x8xi1>, vector<8x8xf32>
    %cst_99 = arith.constant dense<0xFF800000> : vector<8xf32>
    %364 = vector.multi_reduction <maximumf>, %363, %cst_99 [1] : vector<8x8xf32> to vector<8xf32>
    %365 = vector.shape_cast %364 : vector<8xf32> to vector<8x1xf32>
    %366 = vector.broadcast %365 : vector<8x1xf32> to vector<8x8xf32>
    %367 = arith.subf %363, %366 : vector<8x8xf32>
    %368 = math.exp %367 : vector<8x8xf32>
    %cst_100 = arith.constant dense<0.000000e+00> : vector<8xf32>
    %369 = vector.multi_reduction <add>, %368, %cst_100 [1] : vector<8x8xf32> to vector<8xf32>
    %370 = vector.shape_cast %369 : vector<8xf32> to vector<8x1xf32>
    %371 = vector.broadcast %370 : vector<8x1xf32> to vector<8x8xf32>
    %372 = arith.divf %368, %371 : vector<8x8xf32>
    %373 = arith.truncf %372 : vector<8x8xf32> to vector<8x8xbf16>
    %cst_101 = arith.constant dense<0.000000e+00> : vector<8x32xf32>
    %374 = tpu.matmul %373, %360, %cst_101 {dimension_numbers = #tpu.dot_dimension_numbers<[1], [0], [0], [1], [0, 0, 1, 1], [], []>} : vector<8x8xbf16>, vector<8x32xbf16>, vector<8x32xf32> -> vector<8x32xf32>
    %375 = tpu.concatenate %314, %334, %354, %374 in 1 : vector<8x32xf32>, vector<8x32xf32>, vector<8x32xf32>, vector<8x32xf32> -> vector<8x128xf32>
    %376 = arith.truncf %375 : vector<8x128xf32> to vector<8x128xbf16>
    %cst_102 = arith.constant dense<0.000000e+00> : vector<8x128xf32>
    %377 = tpu.matmul %376, %266, %cst_102 {dimension_numbers = #tpu.dot_dimension_numbers<[1], [1], [0], [0], [0, 0, 1, 0], [], []>} : vector<8x128xbf16>, vector<128x128xbf16>, vector<8x128xf32> -> vector<8x128xf32>
    %378 = arith.addf %260, %377 : vector<8x128xf32>
    %c1_103 = arith.constant 1 : index
    %c0_104 = arith.constant 0 : index
    %c0_105 = arith.constant 0 : index
    %379 = vector.load %arg8[%c1_103, %c0_104, %c0_105] : memref<2x1x128xf32, #tpu.memory_space<vmem>>, vector<1x1x128xf32>
    %380 = vector.shape_cast %379 : vector<1x1x128xf32> to vector<1x128xf32>
    %c1_106 = arith.constant 1 : index
    %c0_107 = arith.constant 0 : index
    %c0_108 = arith.constant 0 : index
    %381 = vector.load %arg11[%c1_106, %c0_107, %c0_108] : memref<2x4x128xf32, #tpu.memory_space<vmem>>, vector<1x4x128xf32>
    %382 = vector.shape_cast %381 : vector<1x4x128xf32> to vector<4x128xf32>
    %c1_109 = arith.constant 1 : index
    %c0_110 = arith.constant 0 : index
    %c0_111 = arith.constant 0 : index
    %383 = vector.load %arg12[%c1_109, %c0_110, %c0_111] : memref<2x2048x128xbf16, #tpu.memory_space<vmem>>, vector<1x2048x128xbf16>
    %384 = vector.shape_cast %383 : vector<1x2048x128xbf16> to vector<2048x128xbf16>
    %c1_112 = arith.constant 1 : index
    %c0_113 = arith.constant 0 : index
    %c0_114 = arith.constant 0 : index
    %385 = vector.load %arg13[%c1_112, %c0_113, %c0_114] : memref<2x128x1024xbf16, #tpu.memory_space<vmem>>, vector<1x128x1024xbf16>
    %386 = vector.shape_cast %385 : vector<1x128x1024xbf16> to vector<128x1024xbf16>
    %387 = arith.mulf %378, %378 : vector<8x128xf32>
    %cst_115 = arith.constant dense<0.000000e+00> : vector<8xf32>
    %388 = vector.multi_reduction <add>, %387, %cst_115 [1] : vector<8x128xf32> to vector<8xf32>
    %389 = vector.shape_cast %388 : vector<8xf32> to vector<8x1xf32>
    %cst_116 = arith.constant 1.280000e+02 : f32
    %390 = vector.broadcast %cst_116 : f32 to vector<8x1xf32>
    %391 = arith.divf %389, %390 : vector<8x1xf32>
    %cst_117 = arith.constant 9.99999997E-7 : f32
    %392 = vector.broadcast %cst_117 : f32 to vector<8x1xf32>
    %393 = arith.addf %391, %392 : vector<8x1xf32>
    %394 = math.rsqrt %393 : vector<8x1xf32>
    %395 = vector.broadcast %394 : vector<8x1xf32> to vector<8x128xf32>
    %396 = arith.mulf %378, %395 : vector<8x128xf32>
    %397 = vector.broadcast %380 : vector<1x128xf32> to vector<8x128xf32>
    %398 = arith.mulf %396, %397 : vector<8x128xf32>
    %cst_118 = arith.constant dense<0.000000e+00> : vector<8x4xf32>
    %399 = tpu.matmul %398, %382, %cst_118 {dimension_numbers = #tpu.dot_dimension_numbers<[1], [1], [0], [0], [0, 0, 1, 0], [], []>} : vector<8x128xf32>, vector<4x128xf32>, vector<8x4xf32> -> vector<8x4xf32>
    %cst_119 = arith.constant dense<0xFF800000> : vector<8xf32>
    %400 = vector.multi_reduction <maximumf>, %399, %cst_119 [1] : vector<8x4xf32> to vector<8xf32>
    %401 = vector.shape_cast %400 : vector<8xf32> to vector<8x1xf32>
    %402 = vector.broadcast %401 : vector<8x1xf32> to vector<8x4xf32>
    %403 = arith.subf %399, %402 : vector<8x4xf32>
    %404 = math.exp %403 : vector<8x4xf32>
    %cst_120 = arith.constant dense<0.000000e+00> : vector<8xf32>
    %405 = vector.multi_reduction <add>, %404, %cst_120 [1] : vector<8x4xf32> to vector<8xf32>
    %406 = vector.shape_cast %405 : vector<8xf32> to vector<8x1xf32>
    %407 = vector.broadcast %406 : vector<8x1xf32> to vector<8x4xf32>
    %408 = arith.divf %404, %407 : vector<8x4xf32>
    %409 = tpu.iota {dimensions = array<i32: 1>} : vector<8x4xi32>
    %c0_i32_121 = arith.constant 0 : i32
    %410 = vector.broadcast %c0_i32_121 : i32 to vector<8x4xi32>
    %411 = vector.extract_strided_slice %408 {offsets = [0, 0], sizes = [8, 1], strides = [1, 1]} : vector<8x4xf32> to vector<8x1xf32>
    %412 = vector.broadcast %411 : vector<8x1xf32> to vector<8x4xf32>
    %413 = arith.cmpf ogt, %412, %408 : vector<8x4xf32>
    %414 = vector.broadcast %411 : vector<8x1xf32> to vector<8x4xf32>
    %415 = arith.cmpf oeq, %414, %408 : vector<8x4xf32>
    %c0_i32_122 = arith.constant 0 : i32
    %416 = vector.broadcast %c0_i32_122 : i32 to vector<8x4xi32>
    %417 = arith.cmpi sgt, %409, %416 : vector<8x4xi32>
    %418 = arith.andi %415, %417 : vector<8x4xi1>
    %419 = arith.ori %413, %418 : vector<8x4xi1>
    %420 = arith.extui %419 : vector<8x4xi1> to vector<8x4xi32>
    %421 = arith.addi %410, %420 : vector<8x4xi32>
    %422 = vector.extract_strided_slice %408 {offsets = [0, 1], sizes = [8, 1], strides = [1, 1]} : vector<8x4xf32> to vector<8x1xf32>
    %423 = vector.broadcast %422 : vector<8x1xf32> to vector<8x4xf32>
    %424 = arith.cmpf ogt, %423, %408 : vector<8x4xf32>
    %425 = vector.broadcast %422 : vector<8x1xf32> to vector<8x4xf32>
    %426 = arith.cmpf oeq, %425, %408 : vector<8x4xf32>
    %c1_i32_123 = arith.constant 1 : i32
    %427 = vector.broadcast %c1_i32_123 : i32 to vector<8x4xi32>
    %428 = arith.cmpi sgt, %409, %427 : vector<8x4xi32>
    %429 = arith.andi %426, %428 : vector<8x4xi1>
    %430 = arith.ori %424, %429 : vector<8x4xi1>
    %431 = arith.extui %430 : vector<8x4xi1> to vector<8x4xi32>
    %432 = arith.addi %421, %431 : vector<8x4xi32>
    %433 = vector.extract_strided_slice %408 {offsets = [0, 2], sizes = [8, 1], strides = [1, 1]} : vector<8x4xf32> to vector<8x1xf32>
    %434 = vector.broadcast %433 : vector<8x1xf32> to vector<8x4xf32>
    %435 = arith.cmpf ogt, %434, %408 : vector<8x4xf32>
    %436 = vector.broadcast %433 : vector<8x1xf32> to vector<8x4xf32>
    %437 = arith.cmpf oeq, %436, %408 : vector<8x4xf32>
    %c2_i32_124 = arith.constant 2 : i32
    %438 = vector.broadcast %c2_i32_124 : i32 to vector<8x4xi32>
    %439 = arith.cmpi sgt, %409, %438 : vector<8x4xi32>
    %440 = arith.andi %437, %439 : vector<8x4xi1>
    %441 = arith.ori %435, %440 : vector<8x4xi1>
    %442 = arith.extui %441 : vector<8x4xi1> to vector<8x4xi32>
    %443 = arith.addi %432, %442 : vector<8x4xi32>
    %444 = vector.extract_strided_slice %408 {offsets = [0, 3], sizes = [8, 1], strides = [1, 1]} : vector<8x4xf32> to vector<8x1xf32>
    %445 = vector.broadcast %444 : vector<8x1xf32> to vector<8x4xf32>
    %446 = arith.cmpf ogt, %445, %408 : vector<8x4xf32>
    %447 = vector.broadcast %444 : vector<8x1xf32> to vector<8x4xf32>
    %448 = arith.cmpf oeq, %447, %408 : vector<8x4xf32>
    %c3_i32_125 = arith.constant 3 : i32
    %449 = vector.broadcast %c3_i32_125 : i32 to vector<8x4xi32>
    %450 = arith.cmpi sgt, %409, %449 : vector<8x4xi32>
    %451 = arith.andi %448, %450 : vector<8x4xi1>
    %452 = arith.ori %446, %451 : vector<8x4xi1>
    %453 = arith.extui %452 : vector<8x4xi1> to vector<8x4xi32>
    %454 = arith.addi %443, %453 : vector<8x4xi32>
    %c2_i32_126 = arith.constant 2 : i32
    %455 = vector.broadcast %c2_i32_126 : i32 to vector<8x4xi32>
    %456 = arith.cmpi slt, %454, %455 : vector<8x4xi32>
    %cst_127 = arith.constant 0.000000e+00 : f32
    %457 = vector.broadcast %cst_127 : f32 to vector<8x4xf32>
    %458 = arith.select %456, %408, %457 : vector<8x4xi1>, vector<8x4xf32>
    %cst_128 = arith.constant dense<0.000000e+00> : vector<8xf32>
    %459 = vector.multi_reduction <add>, %458, %cst_128 [1] : vector<8x4xf32> to vector<8xf32>
    %460 = vector.shape_cast %459 : vector<8xf32> to vector<8x1xf32>
    %461 = vector.broadcast %460 : vector<8x1xf32> to vector<8x4xf32>
    %462 = arith.divf %458, %461 : vector<8x4xf32>
    %463 = arith.truncf %398 : vector<8x128xf32> to vector<8x128xbf16>
    %cst_129 = arith.constant dense<0.000000e+00> : vector<8x2048xf32>
    %464 = tpu.matmul %463, %384, %cst_129 {dimension_numbers = #tpu.dot_dimension_numbers<[1], [1], [0], [0], [0, 0, 1, 0], [], []>} : vector<8x128xbf16>, vector<2048x128xbf16>, vector<8x2048xf32> -> vector<8x2048xf32>
    %465 = vector.extract_strided_slice %464 {offsets = [0, 0], sizes = [8, 256], strides = [1, 1]} : vector<8x2048xf32> to vector<8x256xf32>
    %466 = vector.extract_strided_slice %464 {offsets = [0, 256], sizes = [8, 256], strides = [1, 1]} : vector<8x2048xf32> to vector<8x256xf32>
    %467 = arith.negf %465 : vector<8x256xf32>
    %468 = math.exp %467 : vector<8x256xf32>
    %cst_130 = arith.constant 1.000000e+00 : f32
    %469 = vector.broadcast %cst_130 : f32 to vector<8x256xf32>
    %470 = arith.addf %469, %468 : vector<8x256xf32>
    %471 = arith.divf %469, %470 : vector<8x256xf32>
    %472 = arith.mulf %465, %471 : vector<8x256xf32>
    %473 = arith.mulf %472, %466 : vector<8x256xf32>
    %474 = vector.extract_strided_slice %462 {offsets = [0, 0], sizes = [8, 1], strides = [1, 1]} : vector<8x4xf32> to vector<8x1xf32>
    %475 = vector.broadcast %474 : vector<8x1xf32> to vector<8x256xf32>
    %476 = arith.mulf %473, %475 : vector<8x256xf32>
    %477 = vector.extract_strided_slice %464 {offsets = [0, 512], sizes = [8, 256], strides = [1, 1]} : vector<8x2048xf32> to vector<8x256xf32>
    %478 = vector.extract_strided_slice %464 {offsets = [0, 768], sizes = [8, 256], strides = [1, 1]} : vector<8x2048xf32> to vector<8x256xf32>
    %479 = arith.negf %477 : vector<8x256xf32>
    %480 = math.exp %479 : vector<8x256xf32>
    %cst_131 = arith.constant 1.000000e+00 : f32
    %481 = vector.broadcast %cst_131 : f32 to vector<8x256xf32>
    %482 = arith.addf %481, %480 : vector<8x256xf32>
    %483 = arith.divf %481, %482 : vector<8x256xf32>
    %484 = arith.mulf %477, %483 : vector<8x256xf32>
    %485 = arith.mulf %484, %478 : vector<8x256xf32>
    %486 = vector.extract_strided_slice %462 {offsets = [0, 1], sizes = [8, 1], strides = [1, 1]} : vector<8x4xf32> to vector<8x1xf32>
    %487 = vector.broadcast %486 : vector<8x1xf32> to vector<8x256xf32>
    %488 = arith.mulf %485, %487 : vector<8x256xf32>
    %489 = vector.extract_strided_slice %464 {offsets = [0, 1024], sizes = [8, 256], strides = [1, 1]} : vector<8x2048xf32> to vector<8x256xf32>
    %490 = vector.extract_strided_slice %464 {offsets = [0, 1280], sizes = [8, 256], strides = [1, 1]} : vector<8x2048xf32> to vector<8x256xf32>
    %491 = arith.negf %489 : vector<8x256xf32>
    %492 = math.exp %491 : vector<8x256xf32>
    %cst_132 = arith.constant 1.000000e+00 : f32
    %493 = vector.broadcast %cst_132 : f32 to vector<8x256xf32>
    %494 = arith.addf %493, %492 : vector<8x256xf32>
    %495 = arith.divf %493, %494 : vector<8x256xf32>
    %496 = arith.mulf %489, %495 : vector<8x256xf32>
    %497 = arith.mulf %496, %490 : vector<8x256xf32>
    %498 = vector.extract_strided_slice %462 {offsets = [0, 2], sizes = [8, 1], strides = [1, 1]} : vector<8x4xf32> to vector<8x1xf32>
    %499 = vector.broadcast %498 : vector<8x1xf32> to vector<8x256xf32>
    %500 = arith.mulf %497, %499 : vector<8x256xf32>
    %501 = vector.extract_strided_slice %464 {offsets = [0, 1536], sizes = [8, 256], strides = [1, 1]} : vector<8x2048xf32> to vector<8x256xf32>
    %502 = vector.extract_strided_slice %464 {offsets = [0, 1792], sizes = [8, 256], strides = [1, 1]} : vector<8x2048xf32> to vector<8x256xf32>
    %503 = arith.negf %501 : vector<8x256xf32>
    %504 = math.exp %503 : vector<8x256xf32>
    %cst_133 = arith.constant 1.000000e+00 : f32
    %505 = vector.broadcast %cst_133 : f32 to vector<8x256xf32>
    %506 = arith.addf %505, %504 : vector<8x256xf32>
    %507 = arith.divf %505, %506 : vector<8x256xf32>
    %508 = arith.mulf %501, %507 : vector<8x256xf32>
    %509 = arith.mulf %508, %502 : vector<8x256xf32>
    %510 = vector.extract_strided_slice %462 {offsets = [0, 3], sizes = [8, 1], strides = [1, 1]} : vector<8x4xf32> to vector<8x1xf32>
    %511 = vector.broadcast %510 : vector<8x1xf32> to vector<8x256xf32>
    %512 = arith.mulf %509, %511 : vector<8x256xf32>
    %513 = tpu.concatenate %476, %488, %500, %512 in 1 : vector<8x256xf32>, vector<8x256xf32>, vector<8x256xf32>, vector<8x256xf32> -> vector<8x1024xf32>
    %514 = arith.truncf %513 : vector<8x1024xf32> to vector<8x1024xbf16>
    %cst_134 = arith.constant dense<0.000000e+00> : vector<8x128xf32>
    %515 = tpu.matmul %514, %386, %cst_134 {dimension_numbers = #tpu.dot_dimension_numbers<[1], [1], [0], [0], [0, 0, 1, 0], [], []>} : vector<8x1024xbf16>, vector<128x1024xbf16>, vector<8x128xf32> -> vector<8x128xf32>
    %516 = arith.addf %378, %515 : vector<8x128xf32>
    %c0_135 = arith.constant 0 : index
    %c0_136 = arith.constant 0 : index
    %517 = vector.load %arg14[%c0_135, %c0_136] : memref<1x128xf32, #tpu.memory_space<vmem>>, vector<1x128xf32>
    %518 = arith.mulf %516, %516 : vector<8x128xf32>
    %cst_137 = arith.constant dense<0.000000e+00> : vector<8xf32>
    %519 = vector.multi_reduction <add>, %518, %cst_137 [1] : vector<8x128xf32> to vector<8xf32>
    %520 = vector.shape_cast %519 : vector<8xf32> to vector<8x1xf32>
    %cst_138 = arith.constant 1.280000e+02 : f32
    %521 = vector.broadcast %cst_138 : f32 to vector<8x1xf32>
    %522 = arith.divf %520, %521 : vector<8x1xf32>
    %cst_139 = arith.constant 9.99999997E-7 : f32
    %523 = vector.broadcast %cst_139 : f32 to vector<8x1xf32>
    %524 = arith.addf %522, %523 : vector<8x1xf32>
    %525 = math.rsqrt %524 : vector<8x1xf32>
    %526 = vector.broadcast %525 : vector<8x1xf32> to vector<8x128xf32>
    %527 = arith.mulf %516, %526 : vector<8x128xf32>
    %528 = vector.broadcast %517 : vector<1x128xf32> to vector<8x128xf32>
    %529 = arith.mulf %527, %528 : vector<8x128xf32>
    %c0_140 = arith.constant 0 : index
    %c0_141 = arith.constant 0 : index
    %530 = vector.load %arg15[%c0_140, %c0_141] : memref<256x128xbf16, #tpu.memory_space<vmem>>, vector<256x128xbf16>
    %531 = arith.truncf %529 : vector<8x128xf32> to vector<8x128xbf16>
    %cst_142 = arith.constant dense<0.000000e+00> : vector<8x256xf32>
    %532 = tpu.matmul %531, %530, %cst_142 {dimension_numbers = #tpu.dot_dimension_numbers<[1], [1], [0], [0], [0, 0, 1, 0], [], []>} : vector<8x128xbf16>, vector<256x128xbf16>, vector<8x256xf32> -> vector<8x256xf32>
    %c0_143 = arith.constant 0 : index
    %c0_144 = arith.constant 0 : index
    %533 = vector.load %arg2[%c0_143, %c0_144] : memref<8x1xi32, #tpu.memory_space<vmem>>, vector<8x1xi32>
    %cst_145 = arith.constant dense<0xFF800000> : vector<8xf32>
    %534 = vector.multi_reduction <maximumf>, %532, %cst_145 [1] : vector<8x256xf32> to vector<8xf32>
    %535 = vector.shape_cast %534 : vector<8xf32> to vector<8x1xf32>
    %536 = vector.broadcast %535 : vector<8x1xf32> to vector<8x256xf32>
    %537 = arith.subf %532, %536 : vector<8x256xf32>
    %538 = math.exp %537 : vector<8x256xf32>
    %cst_146 = arith.constant dense<0.000000e+00> : vector<8xf32>
    %539 = vector.multi_reduction <add>, %538, %cst_146 [1] : vector<8x256xf32> to vector<8xf32>
    %540 = vector.shape_cast %539 : vector<8xf32> to vector<8x1xf32>
    %541 = math.log %540 : vector<8x1xf32>
    %542 = arith.addf %541, %535 : vector<8x1xf32>
    %543 = tpu.iota {dimensions = array<i32: 1>} : vector<8x256xi32>
    %544 = vector.broadcast %533 : vector<8x1xi32> to vector<8x256xi32>
    %545 = arith.cmpi eq, %543, %544 : vector<8x256xi32>
    %cst_147 = arith.constant 0.000000e+00 : f32
    %546 = vector.broadcast %cst_147 : f32 to vector<8x256xf32>
    %547 = arith.select %545, %532, %546 : vector<8x256xi1>, vector<8x256xf32>
    %cst_148 = arith.constant dense<0.000000e+00> : vector<8xf32>
    %548 = vector.multi_reduction <add>, %547, %cst_148 [1] : vector<8x256xf32> to vector<8xf32>
    %549 = vector.shape_cast %548 : vector<8xf32> to vector<8x1xf32>
    %550 = arith.subf %542, %549 : vector<8x1xf32>
    %551 = vector.shape_cast %550 : vector<8x1xf32> to vector<1x8x1xf32>
    %cst_149 = arith.constant dense<0.000000e+00> : vector<1xf32>
    %552 = vector.multi_reduction <add>, %551, %cst_149 [1, 2] : vector<1x8x1xf32> to vector<1xf32>
    %553 = vector.shape_cast %552 : vector<1xf32> to vector<1x1x1xf32>
    %554 = vector.extract %553[0, 0, 0] : f32 from vector<1x1x1xf32>
    %555 = vector.broadcast %554 : f32 to vector<1x1xf32>
    %cst_150 = arith.constant 6.250000e-02 : f32
    %556 = vector.broadcast %cst_150 : f32 to vector<1x1xf32>
    %557 = arith.mulf %555, %556 : vector<1x1xf32>
    %c0_i32_151 = arith.constant 0 : i32
    %558 = arith.cmpi eq, %arg0, %c0_i32_151 : i32
    %559 = arith.extui %558 : i1 to i32
    %c0_i32_152 = arith.constant 0 : i32
    %560 = arith.cmpi ne, %559, %c0_i32_152 : i32
    scf.if %560 {
      %cst_157 = arith.constant 0.000000e+00 : f32
      %564 = vector.broadcast %cst_157 : f32 to vector<1x1xf32>
      %c0_158 = arith.constant 0 : index
      %c0_159 = arith.constant 0 : index
      %565 = vector.load %arg16[%c0_158, %c0_159] : memref<1x1xf32, #tpu.memory_space<vmem>>, vector<1x1xf32>
      tpu.vector_store %arg16[%c0_158, %c0_159], %564 {strides = array<i32>} : memref<1x1xf32, #tpu.memory_space<vmem>>, vector<1x1xf32>,
    } else {
    }
    %c0_153 = arith.constant 0 : index
    %c0_154 = arith.constant 0 : index
    %561 = vector.load %arg16[%c0_153, %c0_154] : memref<1x1xf32, #tpu.memory_space<vmem>>, vector<1x1xf32>
    %562 = arith.addf %561, %557 : vector<1x1xf32>
    %c0_155 = arith.constant 0 : index
    %c0_156 = arith.constant 0 : index
    %563 = vector.load %arg16[%c0_155, %c0_156] : memref<1x1xf32, #tpu.memory_space<vmem>>, vector<1x1xf32>
    tpu.vector_store %arg16[%c0_155, %c0_156], %562 {strides = array<i32>} : memref<1x1xf32, #tpu.memory_space<vmem>>, vector<1x1xf32>,
    return
  }
  func.func @transform_0(%arg0: i32) -> (i32, i32) {
    %c0_i32 = arith.constant 0 : i32
    %c0_i32_0 = arith.constant 0 : i32
    return %arg0, %c0_i32 : i32, i32
  }
  func.func @transform_1(%arg0: i32) -> (i32, i32) {
    %c0_i32 = arith.constant 0 : i32
    %c0_i32_0 = arith.constant 0 : i32
    return %arg0, %c0_i32 : i32, i32
  }
  func.func @transform_2(%arg0: i32) -> (i32, i32) {
    %c0_i32 = arith.constant 0 : i32
    %c0_i32_0 = arith.constant 0 : i32
    %c0_i32_1 = arith.constant 0 : i32
    return %c0_i32, %c0_i32_0 : i32, i32
  }
  func.func @transform_3(%arg0: i32) -> (i32, i32) {
    %c0_i32 = arith.constant 0 : i32
    %c0_i32_0 = arith.constant 0 : i32
    %c0_i32_1 = arith.constant 0 : i32
    return %c0_i32, %c0_i32_0 : i32, i32
  }
  func.func @transform_4(%arg0: i32) -> (i32, i32) {
    %c0_i32 = arith.constant 0 : i32
    %c0_i32_0 = arith.constant 0 : i32
    %c0_i32_1 = arith.constant 0 : i32
    return %c0_i32, %c0_i32_0 : i32, i32
  }
  func.func @transform_5(%arg0: i32) -> (i32, i32) {
    %c0_i32 = arith.constant 0 : i32
    %c0_i32_0 = arith.constant 0 : i32
    %c0_i32_1 = arith.constant 0 : i32
    return %c0_i32, %c0_i32_0 : i32, i32
  }
  func.func @transform_6(%arg0: i32) -> (i32, i32, i32) {
    %c0_i32 = arith.constant 0 : i32
    %c0_i32_0 = arith.constant 0 : i32
    %c0_i32_1 = arith.constant 0 : i32
    %c0_i32_2 = arith.constant 0 : i32
    return %c0_i32, %c0_i32_0, %c0_i32_1 : i32, i32, i32
  }
  func.func @transform_7(%arg0: i32) -> (i32, i32, i32) {
    %c0_i32 = arith.constant 0 : i32
    %c0_i32_0 = arith.constant 0 : i32
    %c0_i32_1 = arith.constant 0 : i32
    %c0_i32_2 = arith.constant 0 : i32
    return %c0_i32, %c0_i32_0, %c0_i32_1 : i32, i32, i32
  }
  func.func @transform_8(%arg0: i32) -> (i32, i32, i32) {
    %c0_i32 = arith.constant 0 : i32
    %c0_i32_0 = arith.constant 0 : i32
    %c0_i32_1 = arith.constant 0 : i32
    %c0_i32_2 = arith.constant 0 : i32
    return %c0_i32, %c0_i32_0, %c0_i32_1 : i32, i32, i32
  }
  func.func @transform_9(%arg0: i32) -> (i32, i32, i32) {
    %c0_i32 = arith.constant 0 : i32
    %c0_i32_0 = arith.constant 0 : i32
    %c0_i32_1 = arith.constant 0 : i32
    %c0_i32_2 = arith.constant 0 : i32
    return %c0_i32, %c0_i32_0, %c0_i32_1 : i32, i32, i32
  }
  func.func @transform_10(%arg0: i32) -> (i32, i32, i32) {
    %c0_i32 = arith.constant 0 : i32
    %c0_i32_0 = arith.constant 0 : i32
    %c0_i32_1 = arith.constant 0 : i32
    %c0_i32_2 = arith.constant 0 : i32
    return %c0_i32, %c0_i32_0, %c0_i32_1 : i32, i32, i32
  }
  func.func @transform_11(%arg0: i32) -> (i32, i32, i32) {
    %c0_i32 = arith.constant 0 : i32
    %c0_i32_0 = arith.constant 0 : i32
    %c0_i32_1 = arith.constant 0 : i32
    %c0_i32_2 = arith.constant 0 : i32
    return %c0_i32, %c0_i32_0, %c0_i32_1 : i32, i32, i32
  }
  func.func @transform_12(%arg0: i32) -> (i32, i32, i32) {
    %c0_i32 = arith.constant 0 : i32
    %c0_i32_0 = arith.constant 0 : i32
    %c0_i32_1 = arith.constant 0 : i32
    %c0_i32_2 = arith.constant 0 : i32
    return %c0_i32, %c0_i32_0, %c0_i32_1 : i32, i32, i32
  }
  func.func @transform_13(%arg0: i32) -> (i32, i32) {
    %c0_i32 = arith.constant 0 : i32
    %c0_i32_0 = arith.constant 0 : i32
    %c0_i32_1 = arith.constant 0 : i32
    return %c0_i32, %c0_i32_0 : i32, i32
  }
  func.func @transform_14(%arg0: i32) -> (i32, i32) {
    %c0_i32 = arith.constant 0 : i32
    %c0_i32_0 = arith.constant 0 : i32
    %c0_i32_1 = arith.constant 0 : i32
    return %c0_i32, %c0_i32_0 : i32, i32
  }
  func.func @transform_15(%arg0: i32) -> (i32, i32) {
    %c0_i32 = arith.constant 0 : i32
    %c0_i32_0 = arith.constant 0 : i32
    %c0_i32_1 = arith.constant 0 : i32
    return %c0_i32, %c0_i32_0 : i32, i32
  }
}

</mosaic_0001>

<llo_original>
// kernel: tile.34
$region0: #{tile.34}
  %s0 = inlined_call_operand.vmem [shape: f32[8,2,32], index: 0, kind: input, shape index: {}]
  %s1 = inlined_call_operand.vmem [shape: f32[8,64], index: 1, kind: output, shape index: {}]
  $region1: #{tile.34} parent=0
    #allocation0 [shape = 'u8[32768]{0}', space=vmem, size = 0x8000, scoped, tag = 'scoped mem for input reshape']
    %s3 = ssub.s32 4, 1
    %s4 = scalar_lea.vmem %s0, 14
    %v5 = vld [vmem:[%s4] sm:%s3]
    %s6 = scalar_lea.vmem [#allocation0], 56
    %7 = vst [vmem:[%s6] sm:%s3] %v5
    %s8 = scalar_lea.vmem %s0, 12
    %v9 = vld [vmem:[%s8] sm:%s3]
    %s10 = scalar_lea.vmem [#allocation0], 48
    %11 = vst [vmem:[%s10] sm:%s3] %v9
    %s12 = scalar_lea.vmem %s0, 10
    %v13 = vld [vmem:[%s12] sm:%s3]
    %s14 = scalar_lea.vmem [#allocation0], 40
    %15 = vst [vmem:[%s14] sm:%s3] %v13
    %s16 = scalar_lea.vmem %s0, 8
    %v17 = vld [vmem:[%s16] sm:%s3]
    %s18 = scalar_lea.vmem [#allocation0], 32
    %19 = vst [vmem:[%s18] sm:%s3] %v17
    %s20 = scalar_lea.vmem %s0, 6
    %v21 = vld [vmem:[%s20] sm:%s3]
    %s22 = scalar_lea.vmem [#allocation0], 24
    %23 = vst [vmem:[%s22] sm:%s3] %v21
    %s24 = scalar_lea.vmem %s0, 4
    %v25 = vld [vmem:[%s24] sm:%s3]
    %s26 = scalar_lea.vmem [#allocation0], 16
    %27 = vst [vmem:[%s26] sm:%s3] %v25
    %s28 = scalar_lea.vmem %s0, 2
    %v29 = vld [vmem:[%s28] sm:%s3]
    %s30 = scalar_lea.vmem [#allocation0], 8
    %31 = vst [vmem:[%s30] sm:%s3] %v29
    %v32 = vld [vmem:[%s0] sm:%s3]
    %33 = vst [vmem:[#allocation0] sm:%s3] %v32
    %v34 = vld [vmem:[#allocation0] ss:$8 sm:$0xf]
    %v35 = vld [vmem:[#allocation0] ss:$8 sm:$0xf0]
    %vm36 = vcmask 1047556
    %v37 = vsel %vm36, %v35, %v34
    %vm38 = vcmask 261120
    %39 = vst.msk [vmem:[%s1] sm:$0xff] %vm38, %v37
    %s40 = scalar_lea.vmem [#allocation0], 1
    %v41 = vld [vmem:[%s40] ss:$8 sm:$0xf]
    %s42 = scalar_lea.vmem [#allocation0], 1
    %v43 = vld [vmem:[%s42] ss:$8 sm:$0xf0]
    %vm44 = vcmask 1047556
    %v45 = vsel %vm44, %v43, %v41
    %46 = vrot.lane.b32.xlu0 %v45, 32
    %v47 = vpop.permute.xlu0 %46
    %vm48 = vcmask 523520
    %49 = vst.msk [vmem:[%s1] sm:$0xff] %vm48, %v47

// kernel: tile.24
$region0: #{tile.24}
  %s0 = inlined_call_operand.vmem [shape: f32[8,4,32], index: 0, kind: input, shape index: {}]
  %s1 = inlined_call_operand.vmem [shape: f32[8,128], index: 1, kind: output, shape index: {}]
  $region1: #{tile.24} parent=0
    #allocation0 [shape = 'u8[32768]{0}', space=vmem, size = 0x8000, scoped, tag = 'scoped mem for input reshape']
    %s3 = ssub.s32 16, 1
    %s4 = scalar_lea.vmem %s0, 28
    %v5 = vld [vmem:[%s4] sm:%s3]
    %s6 = scalar_lea.vmem [#allocation0], 56
    %7 = vst [vmem:[%s6] sm:%s3] %v5
    %s8 = scalar_lea.vmem %s0, 24
    %v9 = vld [vmem:[%s8] sm:%s3]
    %s10 = scalar_lea.vmem [#allocation0], 48
    %11 = vst [vmem:[%s10] sm:%s3] %v9
    %s12 = scalar_lea.vmem %s0, 20
    %v13 = vld [vmem:[%s12] sm:%s3]
    %s14 = scalar_lea.vmem [#allocation0], 40
    %15 = vst [vmem:[%s14] sm:%s3] %v13
    %s16 = scalar_lea.vmem %s0, 16
    %v17 = vld [vmem:[%s16] sm:%s3]
    %s18 = scalar_lea.vmem [#allocation0], 32
    %19 = vst [vmem:[%s18] sm:%s3] %v17
    %s20 = scalar_lea.vmem %s0, 12
    %v21 = vld [vmem:[%s20] sm:%s3]
    %s22 = scalar_lea.vmem [#allocation0], 24
    %23 = vst [vmem:[%s22] sm:%s3] %v21
    %s24 = scalar_lea.vmem %s0, 8
    %v25 = vld [vmem:[%s24] sm:%s3]
    %s26 = scalar_lea.vmem [#allocation0], 16
    %27 = vst [vmem:[%s26] sm:%s3] %v25
    %s28 = scalar_lea.vmem %s0, 4
    %v29 = vld [vmem:[%s28] sm:%s3]
    %s30 = scalar_lea.vmem [#allocation0], 8
    %31 = vst [vmem:[%s30] sm:%s3] %v29
    %v32 = vld [vmem:[%s0] sm:%s3]
    %33 = vst [vmem:[#allocation0] sm:%s3] %v32
    %v34 = vld [vmem:[#allocation0] ss:$8 sm:$0xf]
    %v35 = vld [vmem:[#allocation0] ss:$8 sm:$0xf0]
    %vm36 = vcmask 1047556
    %v37 = vsel %vm36, %v35, %v34
    %vm38 = vcmask 261120
    %39 = vst.msk [vmem:[%s1] sm:$0xff] %vm38, %v37
    %s40 = scalar_lea.vmem [#allocation0], 3
    %v41 = vld [vmem:[%s40] ss:$8 sm:$0xf]
    %s42 = scalar_lea.vmem [#allocation0], 3
    %v43 = vld [vmem:[%s42] ss:$8 sm:$0xf0]
    %vm44 = vcmask 1047556
    %v45 = vsel %vm44, %v43, %v41
    %46 = vrot.lane.b32.xlu0 %v45, 96
    %v47 = vpop.permute.xlu0 %46
    %vm48 = vcmask 1048320
    %49 = vst.msk [vmem:[%s1] sm:$0xff] %vm48, %v47
    %s50 = scalar_lea.vmem [#allocation0], 2
    %v51 = vld [vmem:[%s50] ss:$8 sm:$0xf]
    %s52 = scalar_lea.vmem [#allocation0], 2
    %v53 = vld [vmem:[%s52] ss:$8 sm:$0xf0]
    %vm54 = vcmask 1047556
    %v55 = vsel %vm54, %v53, %v51
    %56 = vrot.lane.b32.xlu0 %v55, 64
    %v57 = vpop.permute.xlu0 %56
    %vm58 = vcmask 785920
    %59 = vst.msk [vmem:[%s1] sm:$0xff] %vm58, %v57
    %s60 = scalar_lea.vmem [#allocation0], 1
    %v61 = vld [vmem:[%s60] ss:$8 sm:$0xf]
    %s62 = scalar_lea.vmem [#allocation0], 1
    %v63 = vld [vmem:[%s62] ss:$8 sm:$0xf0]
    %vm64 = vcmask 1047556
    %v65 = vsel %vm64, %v63, %v61
    %66 = vrot.lane.b32.xlu0 %v65, 32
    %v67 = vpop.permute.xlu0 %66
    %vm68 = vcmask 523520
    %69 = vst.msk [vmem:[%s1] sm:$0xff] %vm68, %v67

// kernel: net_forward.1
$region0: #{net_forward.1}
  #allocation0 [shape = 'u32[]', space=smem, size = 0x4, offset = 0x4, fixed_abs, tag = 'smem constant byte address 0x4 - core index']
  #allocation1 [shape = 'u32[72,128]{1,0:T(1,128)}', space=vmem, size = 0x9000, scoped, tag = 'internal scratch']
  %s0 = inlined_call_operand.vmem [shape: f32[16,128], index: 0, kind: input, shape index: {}]
  %s1 = inlined_call_operand.vmem [shape: s32[16,1], index: 1, kind: input, shape index: {}]
  %s2 = inlined_call_operand.vmem [shape: f32[8,128], index: 2, kind: input, shape index: {}]
  %s3 = inlined_call_operand.vmem [shape: f32[8,128], index: 3, kind: input, shape index: {}]
  %s4 = inlined_call_operand.vmem [shape: f32[8,64], index: 4, kind: input, shape index: {}]
  %s5 = inlined_call_operand.vmem [shape: f32[8,64], index: 5, kind: input, shape index: {}]
  %s6 = inlined_call_operand.vmem [shape: f32[2,1,128], index: 6, kind: input, shape index: {}]
  %s7 = inlined_call_operand.vmem [shape: f32[2,1,128], index: 7, kind: input, shape index: {}]
  %s8 = inlined_call_operand.hbm [shape: bf16[2,640,128], index: 8, kind: input, shape index: {}]
  %s9 = inlined_call_operand.vmem [shape: bf16[2,128,128], index: 9, kind: input, shape index: {}]
  %s10 = inlined_call_operand.vmem [shape: f32[2,4,128], index: 10, kind: input, shape index: {}]
  %s11 = inlined_call_operand.hbm [shape: bf16[2,2048,128], index: 11, kind: input, shape index: {}]
  %s12 = inlined_call_operand.hbm [shape: bf16[2,128,1024], index: 12, kind: input, shape index: {}]
  %s13 = inlined_call_operand.vmem [shape: f32[1,128], index: 13, kind: input, shape index: {}]
  %s14 = inlined_call_operand.vmem [shape: bf16[256,128], index: 14, kind: input, shape index: {}]
  %s15 = inlined_call_operand.hbm [shape: f32[1,1], index: 15, kind: output, shape index: {}]
  %s16 = sld [smem:[#allocation0]]
  $region109: #{net_forward.1} parent=0
    _
  %s18 = ssub.s32 1, %s16
  %s19 = scalar_select 0, %s18, %s16
  $region1: #{net_forward.1} parent=0
    #allocation2 [shape = 'u8[327680]{0}', space=vmem, size = 0x50000, scoped, tag = 'input window, operand 8, single buffered']
    #allocation3 [shape = 's32[2]{0}', space=sflag, size = 0x8, scoped, tag = 'scoped memory for net_forward.1']
    #allocation4 [shape = 's32[2]{0}', space=sflag, size = 0x8, scoped, tag = 'scoped memory for net_forward.1']
    #allocation5 [shape = 'u8[1048576]{0}', space=vmem, size = 0x100000, scoped, tag = 'input window, operand 11, single buffered']
    #allocation6 [shape = 's32[1]{0}', space=sflag, size = 0x4, scoped, tag = 'scoped memory for net_forward.1']
    #allocation7 [shape = 'u8[524288]{0}', space=vmem, size = 0x80000, scoped, tag = 'input window, operand 12, single buffered']
    #allocation8 [shape = 'u8[512]{0}', space=vmem, size = 0x400, scoped, tag = 'output window, operand 0, single buffered']
    %20 = vsyncpa [#allocation3], 0
    %21 = vsyncpa [#allocation6], 0
    %22 = vsyncpa [#allocation4], 0
    loop: start=0, step=1, limit=4
    $region2: #{net_forward.1} parent=1 // loop_pre_header
      _
    $region3: #{net_forward.1} parent=1 // loop_header
      %s24 = sphi 0, %s28
      %p25 = scmp.ge.s32.totalorder %s24, 4
      %s34 = sphi 0, %s36
      %s37 = sphi 0, %s34
      %s38 = sphi 0, %s37
      %s54 = sphi 0, %s38
      %s60 = sphi 0, %s62
      %s63 = sphi 0, %s60
      %s64 = sphi 0, %s63
      %s80 = sphi 0, %s64
      %s84 = sphi 0, %s84
      %s86 = sphi 0, %s84
      %s87 = sphi 0, %s86
      %s101 = sphi 0, %s87
      %s105 = sphi 0, %s105
      %s107 = sphi 0, %s105
      %s108 = sphi 0, %s107
      %s122 = sphi 0, %s108
      %s126 = sphi 0, %s126
      %s128 = sphi 0, %s126
      %s129 = sphi 0, %s128
      %s143 = sphi 0, %s129
      %s147 = sphi 0, %s147
      %s149 = sphi 0, %s147
      %s150 = sphi 0, %s149
      %s164 = sphi 0, %s150
      %s168 = sphi 0, %s168
      %s170 = sphi 0, %s168
      %s171 = sphi 0, %s170
      %s185 = sphi 0, %s171
      %s189 = sphi 0, %s189
      %s191 = sphi 0, %s189
      %s192 = sphi 0, %s191
      %s206 = sphi 0, %s192
      %s210 = sphi 0, %s210
      %s212 = sphi 0, %s210
      %s213 = sphi 0, %s212
      %s227 = sphi 0, %s213
      %s231 = sphi 0, %s231
      %s233 = sphi 0, %s231
      %s234 = sphi 0, %s233
      %s248 = sphi 0, %s234
      %s252 = sphi 0, %s252
      %s254 = sphi 0, %s252
      %s255 = sphi 0, %s254
      %s269 = sphi 0, %s255
      %s273 = sphi 0, %s273
      %s275 = sphi 0, %s273
      %s276 = sphi 0, %s275
      %s290 = sphi 0, %s276
      %s294 = sphi 0, %s294
      %s296 = sphi 0, %s294
      %s297 = sphi 0, %s296
      %s311 = sphi 0, %s297
      %s315 = sphi 0, %s315
      %s317 = sphi 0, %s315
      %s318 = sphi 0, %s317
      %s332 = sphi 0, %s318
      %s336 = sphi 0, %s336
      %s338 = sphi 0, %s336
      %s339 = sphi 0, %s338
      %s353 = sphi 0, %s339
      %s357 = sphi 0, %s357
      %s359 = sphi 0, %s357
      %s360 = sphi 0, %s359
      %s374 = sphi 0, %s360
    $region4: #{net_forward.1} parent=1 // loop_header_branch
      %27 = sbr.rel (%p25) target = $region8
    $region5: #{net_forward.1} parent=1 // loop_body
      %s29 = ssub.s32 %s24, 1
      %s30 = ssub.s32 %s24, 2
      %s31 = sadd.s32 %s24, 1
      %s32 = ssub.s32 %s24, %s31
      %p33 = scmp.eq.s32.totalorder %s32, 0
      %s35 = sadd.s32 %s34, 1
      %s36 = scalar_select %p33, %s34, %s35
      %p39 = pneg %p33
      %p40 = scmp.eq.s32.totalorder %s24, 1
      %p41 = por %p39, %p40
      %p42 = scmp.ne.s32.totalorder %s34, %s37
      %p43 = scmp.eq.s32.totalorder %s24, 0
      %p44 = por %p42, %p43
      %p45 = scmp.ne.s32.totalorder %s34, %s37
      %p46 = scmp.eq.s32.totalorder %s29, 1
      %p47 = por %p45, %p46
      %p48 = scmp.ne.s32.totalorder %s37, %s38
      %p49 = scmp.eq.s32.totalorder %s29, 0
      %p50 = por %p48, %p49
      %p51 = scmp.ne.s32.totalorder %s37, %s38
      %p52 = scmp.eq.s32.totalorder %s30, 1
      %p53 = por %p51, %p52
      %p55 = scmp.ne.s32.totalorder %s38, %s54
      %p56 = scmp.eq.s32.totalorder %s30, 0
      %p57 = por %p55, %p56
      %s58 = ssub.s32 %s24, %s31
      %p59 = scmp.eq.s32.totalorder %s58, 0
      %s61 = sadd.s32 %s60, 1
      %s62 = scalar_select %p59, %s60, %s61
      %p65 = pneg %p59
      %p66 = scmp.eq.s32.totalorder %s24, 1
      %p67 = por %p65, %p66
      %p68 = scmp.ne.s32.totalorder %s60, %s63
      %p69 = scmp.eq.s32.totalorder %s24, 0
      %p70 = por %p68, %p69
      %p71 = scmp.ne.s32.totalorder %s60, %s63
      %p72 = scmp.eq.s32.totalorder %s29, 1
      %p73 = por %p71, %p72
      %p74 = scmp.ne.s32.totalorder %s63, %s64
      %p75 = scmp.eq.s32.totalorder %s29, 0
      %p76 = por %p74, %p75
      %p77 = scmp.ne.s32.totalorder %s63, %s64
      %p78 = scmp.eq.s32.totalorder %s30, 1
      %p79 = por %p77, %p78
      %p81 = scmp.ne.s32.totalorder %s64, %s80
      %p82 = scmp.eq.s32.totalorder %s30, 0
      %p83 = por %p81, %p82
      %s85 = sadd.s32 %s84, 1
      %p88 = scmp.eq.s32.totalorder %s24, 1
      %p89 = scmp.ne.s32.totalorder %s84, %s86
      %p90 = scmp.eq.s32.totalorder %s24, 0
      %p91 = por %p89, %p90
      %p92 = scmp.ne.s32.totalorder %s84, %s86
      %p93 = scmp.eq.s32.totalorder %s29, 1
      %p94 = por %p92, %p93
      %p95 = scmp.ne.s32.totalorder %s86, %s87
      %p96 = scmp.eq.s32.totalorder %s29, 0
      %p97 = por %p95, %p96
      %p98 = scmp.ne.s32.totalorder %s86, %s87
      %p99 = scmp.eq.s32.totalorder %s30, 1
      %p100 = por %p98, %p99
      %p102 = scmp.ne.s32.totalorder %s87, %s101
      %p103 = scmp.eq.s32.totalorder %s30, 0
      %p104 = por %p102, %p103
      %s106 = sadd.s32 %s105, 1
      %p109 = scmp.eq.s32.totalorder %s24, 1
      %p110 = scmp.ne.s32.totalorder %s105, %s107
      %p111 = scmp.eq.s32.totalorder %s24, 0
      %p112 = por %p110, %p111
      %p113 = scmp.ne.s32.totalorder %s105, %s107
      %p114 = scmp.eq.s32.totalorder %s29, 1
      %p115 = por %p113, %p114
      %p116 = scmp.ne.s32.totalorder %s107, %s108
      %p117 = scmp.eq.s32.totalorder %s29, 0
      %p118 = por %p116, %p117
      %p119 = scmp.ne.s32.totalorder %s107, %s108
      %p120 = scmp.eq.s32.totalorder %s30, 1
      %p121 = por %p119, %p120
      %p123 = scmp.ne.s32.totalorder %s108, %s122
      %p124 = scmp.eq.s32.totalorder %s30, 0
      %p125 = por %p123, %p124
      %s127 = sadd.s32 %s126, 1
      %p130 = scmp.eq.s32.totalorder %s24, 1
      %p131 = scmp.ne.s32.totalorder %s126, %s128
      %p132 = scmp.eq.s32.totalorder %s24, 0
      %p133 = por %p131, %p132
      %p134 = scmp.ne.s32.totalorder %s126, %s128
      %p135 = scmp.eq.s32.totalorder %s29, 1
      %p136 = por %p134, %p135
      %p137 = scmp.ne.s32.totalorder %s128, %s129
      %p138 = scmp.eq.s32.totalorder %s29, 0
      %p139 = por %p137, %p138
      %p140 = scmp.ne.s32.totalorder %s128, %s129
      %p141 = scmp.eq.s32.totalorder %s30, 1
      %p142 = por %p140, %p141
      %p144 = scmp.ne.s32.totalorder %s129, %s143
      %p145 = scmp.eq.s32.totalorder %s30, 0
      %p146 = por %p144, %p145
      %s148 = sadd.s32 %s147, 1
      %p151 = scmp.eq.s32.totalorder %s24, 1
      %p152 = scmp.ne.s32.totalorder %s147, %s149
      %p153 = scmp.eq.s32.totalorder %s24, 0
      %p154 = por %p152, %p153
      %p155 = scmp.ne.s32.totalorder %s147, %s149
      %p156 = scmp.eq.s32.totalorder %s29, 1
      %p157 = por %p155, %p156
      %p158 = scmp.ne.s32.totalorder %s149, %s150
      %p159 = scmp.eq.s32.totalorder %s29, 0
      %p160 = por %p158, %p159
      %p161 = scmp.ne.s32.totalorder %s149, %s150
      %p162 = scmp.eq.s32.totalorder %s30, 1
      %p163 = por %p161, %p162
      %p165 = scmp.ne.s32.totalorder %s150, %s164
      %p166 = scmp.eq.s32.totalorder %s30, 0
      %p167 = por %p165, %p166
      %s169 = sadd.s32 %s168, 1
      %p172 = scmp.eq.s32.totalorder %s24, 1
      %p173 = scmp.ne.s32.totalorder %s168, %s170
      %p174 = scmp.eq.s32.totalorder %s24, 0
      %p175 = por %p173, %p174
      %p176 = scmp.ne.s32.totalorder %s168, %s170
      %p177 = scmp.eq.s32.totalorder %s29, 1
      %p178 = por %p176, %p177
      %p179 = scmp.ne.s32.totalorder %s170, %s171
      %p180 = scmp.eq.s32.totalorder %s29, 0
      %p181 = por %p179, %p180
      %p182 = scmp.ne.s32.totalorder %s170, %s171
      %p183 = scmp.eq.s32.totalorder %s30, 1
      %p184 = por %p182, %p183
      %p186 = scmp.ne.s32.totalorder %s171, %s185
      %p187 = scmp.eq.s32.totalorder %s30, 0
      %p188 = por %p186, %p187
      %s190 = sadd.s32 %s189, 1
      %p193 = scmp.eq.s32.totalorder %s24, 1
      %p194 = scmp.ne.s32.totalorder %s189, %s191
      %p195 = scmp.eq.s32.totalorder %s24, 0
      %p196 = por %p194, %p195
      %p197 = scmp.ne.s32.totalorder %s189, %s191
      %p198 = scmp.eq.s32.totalorder %s29, 1
      %p199 = por %p197, %p198
      %p200 = scmp.ne.s32.totalorder %s191, %s192
      %p201 = scmp.eq.s32.totalorder %s29, 0
      %p202 = por %p200, %p201
      %p203 = scmp.ne.s32.totalorder %s191, %s192
      %p204 = scmp.eq.s32.totalorder %s30, 1
      %p205 = por %p203, %p204
      %p207 = scmp.ne.s32.totalorder %s192, %s206
      %p208 = scmp.eq.s32.totalorder %s30, 0
      %p209 = por %p207, %p208
      %s211 = sadd.s32 %s210, 1
      %p214 = scmp.eq.s32.totalorder %s24, 1
      %p215 = scmp.ne.s32.totalorder %s210, %s212
      %p216 = scmp.eq.s32.totalorder %s24, 0
      %p217 = por %p215, %p216
      %p218 = scmp.ne.s32.totalorder %s210, %s212
      %p219 = scmp.eq.s32.totalorder %s29, 1
      %p220 = por %p218, %p219
      %p221 = scmp.ne.s32.totalorder %s212, %s213
      %p222 = scmp.eq.s32.totalorder %s29, 0
      %p223 = por %p221, %p222
      %p224 = scmp.ne.s32.totalorder %s212, %s213
      %p225 = scmp.eq.s32.totalorder %s30, 1
      %p226 = por %p224, %p225
      %p228 = scmp.ne.s32.totalorder %s213, %s227
      %p229 = scmp.eq.s32.totalorder %s30, 0
      %p230 = por %p228, %p229
      %s232 = sadd.s32 %s231, 1
      %p235 = scmp.eq.s32.totalorder %s24, 1
      %p236 = scmp.ne.s32.totalorder %s231, %s233
      %p237 = scmp.eq.s32.totalorder %s24, 0
      %p238 = por %p236, %p237
      %p239 = scmp.ne.s32.totalorder %s231, %s233
      %p240 = scmp.eq.s32.totalorder %s29, 1
      %p241 = por %p239, %p240
      %p242 = scmp.ne.s32.totalorder %s233, %s234
      %p243 = scmp.eq.s32.totalorder %s29, 0
      %p244 = por %p242, %p243
      %p245 = scmp.ne.s32.totalorder %s233, %s234
      %p246 = scmp.eq.s32.totalorder %s30, 1
      %p247 = por %p245, %p246
      %p249 = scmp.ne.s32.totalorder %s234, %s248
      %p250 = scmp.eq.s32.totalorder %s30, 0
      %p251 = por %p249, %p250
      %s253 = sadd.s32 %s252, 1
      %p256 = scmp.eq.s32.totalorder %s24, 1
      %p257 = scmp.ne.s32.totalorder %s252, %s254
      %p258 = scmp.eq.s32.totalorder %s24, 0
      %p259 = por %p257, %p258
      %p260 = scmp.ne.s32.totalorder %s252, %s254
      %p261 = scmp.eq.s32.totalorder %s29, 1
      %p262 = por %p260, %p261
      %p263 = scmp.ne.s32.totalorder %s254, %s255
      %p264 = scmp.eq.s32.totalorder %s29, 0
      %p265 = por %p263, %p264
      %p266 = scmp.ne.s32.totalorder %s254, %s255
      %p267 = scmp.eq.s32.totalorder %s30, 1
      %p268 = por %p266, %p267
      %p270 = scmp.ne.s32.totalorder %s255, %s269
      %p271 = scmp.eq.s32.totalorder %s30, 0
      %p272 = por %p270, %p271
      %s274 = sadd.s32 %s273, 1
      %p277 = scmp.eq.s32.totalorder %s24, 1
      %p278 = scmp.ne.s32.totalorder %s273, %s275
      %p279 = scmp.eq.s32.totalorder %s24, 0
      %p280 = por %p278, %p279
      %p281 = scmp.ne.s32.totalorder %s273, %s275
      %p282 = scmp.eq.s32.totalorder %s29, 1
      %p283 = por %p281, %p282
      %p284 = scmp.ne.s32.totalorder %s275, %s276
      %p285 = scmp.eq.s32.totalorder %s29, 0
      %p286 = por %p284, %p285
      %p287 = scmp.ne.s32.totalorder %s275, %s276
      %p288 = scmp.eq.s32.totalorder %s30, 1
      %p289 = por %p287, %p288
      %p291 = scmp.ne.s32.totalorder %s276, %s290
      %p292 = scmp.eq.s32.totalorder %s30, 0
      %p293 = por %p291, %p292
      %s295 = sadd.s32 %s294, 1
      %p298 = scmp.eq.s32.totalorder %s24, 1
      %p299 = scmp.ne.s32.totalorder %s294, %s296
      %p300 = scmp.eq.s32.totalorder %s24, 0
      %p301 = por %p299, %p300
      %p302 = scmp.ne.s32.totalorder %s294, %s296
      %p303 = scmp.eq.s32.totalorder %s29, 1
      %p304 = por %p302, %p303
      %p305 = scmp.ne.s32.totalorder %s296, %s297
      %p306 = scmp.eq.s32.totalorder %s29, 0
      %p307 = por %p305, %p306
      %p308 = scmp.ne.s32.totalorder %s296, %s297
      %p309 = scmp.eq.s32.totalorder %s30, 1
      %p310 = por %p308, %p309
      %p312 = scmp.ne.s32.totalorder %s297, %s311
      %p313 = scmp.eq.s32.totalorder %s30, 0
      %p314 = por %p312, %p313
      %s316 = sadd.s32 %s315, 1
      %p319 = scmp.eq.s32.totalorder %s24, 1
      %p320 = scmp.ne.s32.totalorder %s315, %s317
      %p321 = scmp.eq.s32.totalorder %s24, 0
      %p322 = por %p320, %p321
      %p323 = scmp.ne.s32.totalorder %s315, %s317
      %p324 = scmp.eq.s32.totalorder %s29, 1
      %p325 = por %p323, %p324
      %p326 = scmp.ne.s32.totalorder %s317, %s318
      %p327 = scmp.eq.s32.totalorder %s29, 0
      %p328 = por %p326, %p327
      %p329 = scmp.ne.s32.totalorder %s317, %s318
      %p330 = scmp.eq.s32.totalorder %s30, 1
      %p331 = por %p329, %p330
      %p333 = scmp.ne.s32.totalorder %s318, %s332
      %p334 = scmp.eq.s32.totalorder %s30, 0
      %p335 = por %p333, %p334
      %s337 = sadd.s32 %s336, 1
      %p340 = scmp.eq.s32.totalorder %s24, 1
      %p341 = scmp.ne.s32.totalorder %s336, %s338
      %p342 = scmp.eq.s32.totalorder %s24, 0
      %p343 = por %p341, %p342
      %p344 = scmp.ne.s32.totalorder %s336, %s338
      %p345 = scmp.eq.s32.totalorder %s29, 1
      %p346 = por %p344, %p345
      %p347 = scmp.ne.s32.totalorder %s338, %s339
      %p348 = scmp.eq.s32.totalorder %s29, 0
      %p349 = por %p347, %p348
      %p350 = scmp.ne.s32.totalorder %s338, %s339
      %p351 = scmp.eq.s32.totalorder %s30, 1
      %p352 = por %p350, %p351
      %p354 = scmp.ne.s32.totalorder %s339, %s353
      %p355 = scmp.eq.s32.totalorder %s30, 0
      %p356 = por %p354, %p355
      %s358 = sadd.s32 %s357, 1
      %p361 = scmp.eq.s32.totalorder %s24, 1
      %p362 = scmp.ne.s32.totalorder %s357, %s359
      %p363 = scmp.eq.s32.totalorder %s24, 0
      %p364 = por %p362, %p363
      %p365 = scmp.ne.s32.totalorder %s357, %s359
      %p366 = scmp.eq.s32.totalorder %s29, 1
      %p367 = por %p365, %p366
      %p368 = scmp.ne.s32.totalorder %s359, %s360
      %p369 = scmp.eq.s32.totalorder %s29, 0
      %p370 = por %p368, %p369
      %p371 = scmp.ne.s32.totalorder %s359, %s360
      %p372 = scmp.eq.s32.totalorder %s30, 1
      %p373 = por %p371, %p372
      %p375 = scmp.ne.s32.totalorder %s360, %s374
      %p376 = scmp.eq.s32.totalorder %s30, 0
      %p377 = por %p375, %p376
      %p378 = scmp.le.s32.totalorder 1, %s24
      %p379 = scmp.lt.s32.totalorder %s24, 3
      %p380 = pnand %p378, %p379
      %p381 = pneg %p380
      // Predicated region
      $region9: #{net_forward.1} parent=5 // pred_check
        _
      $region10: #{net_forward.1} parent=5 // pred_check_branch
        %383 = sbr.rel (%p380) target = $region12
      $region11: #{net_forward.1} parent=5 // pred_region
        %s384 = ssub.s32 %s24, 1
        // Predicated region
        $region13: #{net_forward.1} parent=11 // pred_check
          %p385 = pneg %p97
        $region14: #{net_forward.1} parent=11 // pred_check_branch
          %387 = sbr.rel (%p385) target = $region16
        $region15: #{net_forward.1} parent=11 // pred_region
          _
        $region16: #{net_forward.1} parent=11 // pred_fallthru
          _
        // Predicated region
        $region17: #{net_forward.1} parent=11 // pred_check
          %p388 = pneg %p118
        $region18: #{net_forward.1} parent=11 // pred_check_branch
          %390 = sbr.rel (%p388) target = $region20
        $region19: #{net_forward.1} parent=11 // pred_region
          _
        $region20: #{net_forward.1} parent=11 // pred_fallthru
          _
        // Predicated region
        $region21: #{net_forward.1} parent=11 // pred_check
          %p391 = pneg %p139
        $region22: #{net_forward.1} parent=11 // pred_check_branch
          %393 = sbr.rel (%p391) target = $region24
        $region23: #{net_forward.1} parent=11 // pred_region
          _
        $region24: #{net_forward.1} parent=11 // pred_fallthru
          _
        // Predicated region
        $region25: #{net_forward.1} parent=11 // pred_check
          %p394 = pneg %p160
        $region26: #{net_forward.1} parent=11 // pred_check_branch
          %396 = sbr.rel (%p394) target = $region28
        $region27: #{net_forward.1} parent=11 // pred_region
          _
        $region28: #{net_forward.1} parent=11 // pred_fallthru
          _
        // Predicated region
        $region29: #{net_forward.1} parent=11 // pred_check
          %p397 = pneg %p181
        $region30: #{net_forward.1} parent=11 // pred_check_branch
          %399 = sbr.rel (%p397) target = $region32
        $region31: #{net_forward.1} parent=11 // pred_region
          _
        $region32: #{net_forward.1} parent=11 // pred_fallthru
          _
        // Predicated region
        $region33: #{net_forward.1} parent=11 // pred_check
          %p400 = pneg %p202
        $region34: #{net_forward.1} parent=11 // pred_check_branch
          %402 = sbr.rel (%p400) target = $region36
        $region35: #{net_forward.1} parent=11 // pred_region
          _
        $region36: #{net_forward.1} parent=11 // pred_fallthru
          _
        // Predicated region
        $region37: #{net_forward.1} parent=11 // pred_check
          %p403 = pneg %p223
        $region38: #{net_forward.1} parent=11 // pred_check_branch
          %405 = sbr.rel (%p403) target = $region40
        $region39: #{net_forward.1} parent=11 // pred_region
          %407 = vsyncadd [#allocation3], 0
          %s408 = sshll.u32 %s8, 4
          %s409 = int_to_ptr.hbm [resolvable:$true] %s408
          %s410 = sshll.u32 [#allocation2], 4
          %s411 = int_to_ptr.vmem [resolvable:$true] %s410
          %416 = dma.hbm_to_vmem [thread:$0]  %s409, 10240, %s411, [#allocation3], 64, 64, 4
        $region40: #{net_forward.1} parent=11 // pred_fallthru
          _
        // Predicated region
        $region41: #{net_forward.1} parent=11 // pred_check
          %p417 = pneg %p244
        $region42: #{net_forward.1} parent=11 // pred_check_branch
          %419 = sbr.rel (%p417) target = $region44
        $region43: #{net_forward.1} parent=11 // pred_region
          _
        $region44: #{net_forward.1} parent=11 // pred_fallthru
          _
        // Predicated region
        $region45: #{net_forward.1} parent=11 // pred_check
          %p420 = pneg %p265
        $region46: #{net_forward.1} parent=11 // pred_check_branch
          %422 = sbr.rel (%p420) target = $region48
        $region47: #{net_forward.1} parent=11 // pred_region
          _
        $region48: #{net_forward.1} parent=11 // pred_fallthru
          _
        // Predicated region
        $region49: #{net_forward.1} parent=11 // pred_check
          %p423 = pneg %p286
        $region50: #{net_forward.1} parent=11 // pred_check_branch
          %425 = sbr.rel (%p423) target = $region52
        $region51: #{net_forward.1} parent=11 // pred_region
          %427 = vsyncadd [#allocation6], 0
          %s428 = sshll.u32 %s11, 4
          %s429 = int_to_ptr.hbm [resolvable:$true] %s428
          %s430 = sshll.u32 [#allocation5], 4
          %s431 = int_to_ptr.vmem [resolvable:$true] %s430
          %436 = dma.hbm_to_vmem [thread:$0]  %s429, 32768, %s431, [#allocation6], 64, 64, 4
        $region52: #{net_forward.1} parent=11 // pred_fallthru
          _
        // Predicated region
        $region53: #{net_forward.1} parent=11 // pred_check
          %p437 = pneg %p307
        $region54: #{net_forward.1} parent=11 // pred_check_branch
          %439 = sbr.rel (%p437) target = $region56
        $region55: #{net_forward.1} parent=11 // pred_region
          %441 = vsyncadd [#allocation6], 0
          %s442 = sshll.u32 %s12, 4
          %s443 = int_to_ptr.hbm [resolvable:$true] %s442
          %s444 = sshll.u32 [#allocation7], 4
          %s445 = int_to_ptr.vmem [resolvable:$true] %s444
          %450 = dma.hbm_to_vmem [thread:$0]  %s443, 16384, %s445, [#allocation6], 512, 512, 32
        $region56: #{net_forward.1} parent=11 // pred_fallthru
          _
        // Predicated region
        $region57: #{net_forward.1} parent=11 // pred_check
          %p451 = pneg %p328
        $region58: #{net_forward.1} parent=11 // pred_check_branch
          %453 = sbr.rel (%p451) target = $region60
        $region59: #{net_forward.1} parent=11 // pred_region
          _
        $region60: #{net_forward.1} parent=11 // pred_fallthru
          _
        // Predicated region
        $region61: #{net_forward.1} parent=11 // pred_check
          %p454 = pneg %p349
        $region62: #{net_forward.1} parent=11 // pred_check_branch
          %456 = sbr.rel (%p454) target = $region64
        $region63: #{net_forward.1} parent=11 // pred_region
          _
        $region64: #{net_forward.1} parent=11 // pred_fallthru
          _
      $region12: #{net_forward.1} parent=5 // pred_fallthru
        _
      %p457 = scmp.lt.s32.totalorder %s24, 2
      // Predicated region
      $region65: #{net_forward.1} parent=5 // pred_check
        %p458 = pneg %p457
      $region66: #{net_forward.1} parent=5 // pred_check_branch
        %460 = sbr.rel (%p458) target = $region68
      $region67: #{net_forward.1} parent=5 // pred_region
        // Predicated region
        $region69: #{net_forward.1} parent=67 // pred_check
          %p461 = pneg %p44
        $region70: #{net_forward.1} parent=67 // pred_check_branch
          %463 = sbr.rel (%p461) target = $region72
        $region71: #{net_forward.1} parent=67 // pred_region
          %p464 = scmp.lt.s32.totalorder %s24, 1
          %s465 = scalar_select %p464, %s24, 1
          %s466 = smul.addr %s465, 8
          %s467 = scalar_lea.vmem %s0, %s466
        $region72: #{net_forward.1} parent=67 // pred_fallthru
          _
        // Predicated region
        $region73: #{net_forward.1} parent=67 // pred_check
          %p468 = pneg %p70
        $region74: #{net_forward.1} parent=67 // pred_check_branch
          %470 = sbr.rel (%p468) target = $region76
        $region75: #{net_forward.1} parent=67 // pred_region
          %p471 = scmp.lt.s32.totalorder %s24, 1
          %s472 = scalar_select %p471, %s24, 1
          %s473 = smul.addr %s472, 8
          %s474 = scalar_lea.vmem %s1, %s473
        $region76: #{net_forward.1} parent=67 // pred_fallthru
          _
      $region68: #{net_forward.1} parent=5 // pred_fallthru
        _
      %p475 = scmp.le.s32.totalorder 1, %s24
      %p476 = scmp.lt.s32.totalorder %s24, 3
      %p477 = pnand %p475, %p476
      %p478 = pneg %p477
      // Predicated region
      $region77: #{net_forward.1} parent=5 // pred_check
        _
      $region78: #{net_forward.1} parent=5 // pred_check_branch
        %480 = sbr.rel (%p477) target = $region80
      $region79: #{net_forward.1} parent=5 // pred_region
        %s481 = ssub.s32 %s24, 1
        // Predicated region
        $region81: #{net_forward.1} parent=79 // pred_check
          %p482 = pneg %p223
        $region82: #{net_forward.1} parent=79 // pred_check_branch
          %484 = sbr.rel (%p482) target = $region84
        $region83: #{net_forward.1} parent=79 // pred_region
          %486 = dma.done [#allocation3], 10240
        $region84: #{net_forward.1} parent=79 // pred_fallthru
          _
        // Predicated region
        $region85: #{net_forward.1} parent=79 // pred_check
          %p487 = pneg %p286
        $region86: #{net_forward.1} parent=79 // pred_check_branch
          %489 = sbr.rel (%p487) target = $region88
        $region87: #{net_forward.1} parent=79 // pred_region
          %491 = dma.done [#allocation6], 32768
        $region88: #{net_forward.1} parent=79 // pred_fallthru
          _
        // Predicated region
        $region89: #{net_forward.1} parent=79 // pred_check
          %p492 = pneg %p307
        $region90: #{net_forward.1} parent=79 // pred_check_branch
          %494 = sbr.rel (%p492) target = $region92
        $region91: #{net_forward.1} parent=79 // pred_region
          %496 = dma.done [#allocation6], 16384
        $region92: #{net_forward.1} parent=79 // pred_fallthru
          _
        %p497 = scmp.lt.s32.totalorder %s29, 1
        %s498 = scalar_select %p497, %s29, 1
        %s499 = smul.addr %s498, 8
        %s500 = scalar_lea.vmem %s0, %s499
        %p501 = pneg %p50
        %p502 = pneg %p47
        %p503 = scmp.lt.s32.totalorder %s29, 1
        %s504 = scalar_select %p503, %s29, 1
        %s505 = smul.addr %s504, 8
        %s506 = scalar_lea.vmem %s1, %s505
        %p507 = pneg %p76
        %p508 = pneg %p73
        %p509 = pneg %p97
        %p510 = pneg %p94
        %p511 = pneg %p118
        %p512 = pneg %p115
        %p513 = pneg %p139
        %p514 = pneg %p136
        %p515 = pneg %p160
        %p516 = pneg %p157
        %p517 = pneg %p181
        %p518 = pneg %p178
        %p519 = pneg %p202
        %p520 = pneg %p199
        %p521 = pneg %p223
        %p522 = pneg %p220
        %p523 = pneg %p244
        %p524 = pneg %p241
        %p525 = pneg %p265
        %p526 = pneg %p262
        %p527 = pneg %p286
        %p528 = pneg %p283
        %p529 = pneg %p307
        %p530 = pneg %p304
        %p531 = pneg %p328
        %p532 = pneg %p325
        %p533 = pneg %p349
        %p534 = pneg %p346
        %p535 = pneg %p370
        %p536 = pneg %p367
        %p537 = scmp.lt.s32.totalorder %s29, 1
        %s538 = scalar_select %p537, %s29, 1
        %s539 = smul.addr %s538, 8
        %s540 = scalar_lea.vmem %s0, %s539
        %p541 = scmp.lt.s32.totalorder %s29, 1
        %s542 = scalar_select %p541, %s29, 1
        %s543 = smul.addr %s542, 8
        %s544 = scalar_lea.vmem %s1, %s543
        %v546 = vld [vmem:[%s540] sm:$0xff]
        %v547 = vld [vmem:[%s2] sm:$0xff]
        %v548 = vld [vmem:[%s3] sm:$0xff]
        %v549 = vld [vmem:[%s4] sm:$0xff]
        %v550 = vld [vmem:[%s5] sm:$0xff]
        %v551 = vld [vmem:[%s6] sm:$0x1]
        %v552 = vld [vmem:[#allocation2] sm:$0xf]
        %v553 = vld [vmem:[#allocation2 + $0x4] sm:$0xf]
        %v554 = vld [vmem:[#allocation2 + $0x8] sm:$0xf]
        %v555 = vld [vmem:[#allocation2 + $0xc] sm:$0xf]
        %v556 = vld [vmem:[#allocation2 + $0x10] sm:$0xf]
        %v557 = vld [vmem:[#allocation2 + $0x14] sm:$0xf]
        %v558 = vld [vmem:[#allocation2 + $0x18] sm:$0xf]
        %v559 = vld [vmem:[#allocation2 + $0x1c] sm:$0xf]
        %v560 = vld [vmem:[#allocation2 + $0x20] sm:$0xf]
        %v561 = vld [vmem:[#allocation2 + $0x24] sm:$0xf]
        %v562 = vld [vmem:[#allocation2 + $0x28] sm:$0xf]
        %v563 = vld [vmem:[#allocation2 + $0x2c] sm:$0xf]
        %v564 = vld [vmem:[#allocation2 + $0x30] sm:$0xf]
        %v565 = vld [vmem:[#allocation2 + $0x34] sm:$0xf]
        %v566 = vld [vmem:[#allocation2 + $0x38] sm:$0xf]
        %v567 = vld [vmem:[#allocation2 + $0x3c] sm:$0xf]
        %v568 = vld [vmem:[#allocation2 + $0x40] sm:$0xf]
        %v569 = vld [vmem:[#allocation2 + $0x44] sm:$0xf]
        %v570 = vld [vmem:[#allocation2 + $0x48] sm:$0xf]
        %v571 = vld [vmem:[#allocation2 + $0x4c] sm:$0xf]
        %v572 = vld [vmem:[#allocation2 + $0x50] sm:$0xf]
        %v573 = vld [vmem:[#allocation2 + $0x54] sm:$0xf]
        %v574 = vld [vmem:[#allocation2 + $0x58] sm:$0xf]
        %v575 = vld [vmem:[#allocation2 + $0x5c] sm:$0xf]
        %v576 = vld [vmem:[#allocation2 + $0x60] sm:$0xf]
        %v577 = vld [vmem:[#allocation2 + $0x64] sm:$0xf]
        %v578 = vld [vmem:[#allocation2 + $0x68] sm:$0xf]
        %v579 = vld [vmem:[#allocation2 + $0x6c] sm:$0xf]
        %v580 = vld [vmem:[#allocation2 + $0x70] sm:$0xf]
        %v581 = vld [vmem:[#allocation2 + $0x74] sm:$0xf]
        %v582 = vld [vmem:[#allocation2 + $0x78] sm:$0xf]
        %v583 = vld [vmem:[#allocation2 + $0x7c] sm:$0xf]
        %v584 = vld [vmem:[#allocation2 + $0x80] sm:$0xf]
        %v585 = vld [vmem:[#allocation2 + $0x84] sm:$0xf]
        %v586 = vld [vmem:[#allocation2 + $0x88] sm:$0xf]
        %v587 = vld [vmem:[#allocation2 + $0x8c] sm:$0xf]
        %v588 = vld [vmem:[#allocation2 + $0x90] sm:$0xf]
        %v589 = vld [vmem:[#allocation2 + $0x94] sm:$0xf]
        %v590 = vld [vmem:[#allocation2 + $0x98] sm:$0xf]
        %v591 = vld [vmem:[#allocation2 + $0x9c] sm:$0xf]
        %v592 = vld [vmem:[#allocation2 + $0xa0] sm:$0xf]
        %v593 = vld [vmem:[#allocation2 + $0xa4] sm:$0xf]
        %v594 = vld [vmem:[#allocation2 + $0xa8] sm:$0xf]
        %v595 = vld [vmem:[#allocation2 + $0xac] sm:$0xf]
        %v596 = vld [vmem:[#allocation2 + $0xb0] sm:$0xf]
        %v597 = vld [vmem:[#allocation2 + $0xb4] sm:$0xf]
        %v598 = vld [vmem:[#allocation2 + $0xb8] sm:$0xf]
        %v599 = vld [vmem:[#allocation2 + $0xbc] sm:$0xf]
        %v600 = vld [vmem:[#allocation2 + $0xc0] sm:$0xf]
        %v601 = vld [vmem:[#allocation2 + $0xc4] sm:$0xf]
        %v602 = vld [vmem:[#allocation2 + $0xc8] sm:$0xf]
        %v603 = vld [vmem:[#allocation2 + $0xcc] sm:$0xf]
        %v604 = vld [vmem:[#allocation2 + $0xd0] sm:$0xf]
        %v605 = vld [vmem:[#allocation2 + $0xd4] sm:$0xf]
        %v606 = vld [vmem:[#allocation2 + $0xd8] sm:$0xf]
        %v607 = vld [vmem:[#allocation2 + $0xdc] sm:$0xf]
        %v608 = vld [vmem:[#allocation2 + $0xe0] sm:$0xf]
        %v609 = vld [vmem:[#allocation2 + $0xe4] sm:$0xf]
        %v610 = vld [vmem:[#allocation2 + $0xe8] sm:$0xf]
        %v611 = vld [vmem:[#allocation2 + $0xec] sm:$0xf]
        %v612 = vld [vmem:[#allocation2 + $0xf0] sm:$0xf]
        %v613 = vld [vmem:[#allocation2 + $0xf4] sm:$0xf]
        %v614 = vld [vmem:[#allocation2 + $0xf8] sm:$0xf]
        %v615 = vld [vmem:[#allocation2 + $0xfc] sm:$0xf]
        %v616 = vld [vmem:[#allocation2 + $0x100] sm:$0xf]
        %v617 = vld [vmem:[#allocation2 + $0x104] sm:$0xf]
        %v618 = vld [vmem:[#allocation2 + $0x108] sm:$0xf]
        %v619 = vld [vmem:[#allocation2 + $0x10c] sm:$0xf]
        %v620 = vld [vmem:[#allocation2 + $0x110] sm:$0xf]
        %v621 = vld [vmem:[#allocation2 + $0x114] sm:$0xf]
        %v622 = vld [vmem:[#allocation2 + $0x118] sm:$0xf]
        %v623 = vld [vmem:[#allocation2 + $0x11c] sm:$0xf]
        %v624 = vld [vmem:[#allocation2 + $0x120] sm:$0xf]
        %v625 = vld [vmem:[#allocation2 + $0x124] sm:$0xf]
        %v626 = vld [vmem:[#allocation2 + $0x128] sm:$0xf]
        %v627 = vld [vmem:[#allocation2 + $0x12c] sm:$0xf]
        %v628 = vld [vmem:[#allocation2 + $0x130] sm:$0xf]
        %v629 = vld [vmem:[#allocation2 + $0x134] sm:$0xf]
        %v630 = vld [vmem:[#allocation2 + $0x138] sm:$0xf]
        %v631 = vld [vmem:[#allocation2 + $0x13c] sm:$0xf]
        %v632 = vld [vmem:[%s9] sm:$0xf]
        %v633 = vld [vmem:[%s9 + $0x4] sm:$0xf]
        %v634 = vld [vmem:[%s9 + $0x8] sm:$0xf]
        %v635 = vld [vmem:[%s9 + $0xc] sm:$0xf]
        %v636 = vld [vmem:[%s9 + $0x10] sm:$0xf]
        %v637 = vld [vmem:[%s9 + $0x14] sm:$0xf]
        %v638 = vld [vmem:[%s9 + $0x18] sm:$0xf]
        %v639 = vld [vmem:[%s9 + $0x1c] sm:$0xf]
        %v640 = vld [vmem:[%s9 + $0x20] sm:$0xf]
        %v641 = vld [vmem:[%s9 + $0x24] sm:$0xf]
        %v642 = vld [vmem:[%s9 + $0x28] sm:$0xf]
        %v643 = vld [vmem:[%s9 + $0x2c] sm:$0xf]
        %v644 = vld [vmem:[%s9 + $0x30] sm:$0xf]
        %v645 = vld [vmem:[%s9 + $0x34] sm:$0xf]
        %v646 = vld [vmem:[%s9 + $0x38] sm:$0xf]
        %v647 = vld [vmem:[%s9 + $0x3c] sm:$0xf]
        %v648 = vmul.f32 %v546, %v546
        %649 = vadd.xlane.f32.xlu0 %v648
        %v650 = vpop.xlane.xlu0 %649
        %v651 = vrcp.pop 128.0
        %v652 = vmul.f32 128.0, %v651
        %v653 = vsub.f32 1.0, %v652
        %v654 = vmul.f32 %v651, %v653
        %v655 = vadd.f32 %v651, %v654
        %vm656 = vweird.f32 %v651
        %v657 = vsel %vm656, %v651, %v655
        %v658 = vmul.f32 %v650, %v657
        %v659 = vadd.f32 %v658, 1e-06
        %v660 = vrsqrt.pop %v659
        %v661 = vmul.f32 %v660, %v659
        %v662 = vmul.f32 %v661, %v660
        %v663 = vmul.f32 0.5, %v662
        %v664 = vsub.f32 1.5, %v663
        %v665 = vmul.f32 %v660, %v664
        %vm666 = vweird.f32 %v659
        %vm667 = vweird.f32 %v660
        %vm668 = vmor %vm666, %vm667
        %v669 = vsel %vm668, %v660, %v665
        %v670 = vmul.f32 %v546, %v669
        %v672 = vperm.slane %v551, 0
        %v674 = vmul.f32 %v670, %v672
        %v675 = vpack.c.bf16 %v674, %v674
        %v756 = vunpack.c.l.b16 %v552
        %v757 = vunpack.c.l.b16 %v553
        %v758 = vunpack.c.l.b16 %v554
        %v759 = vunpack.c.l.b16 %v555
        %v760 = vunpack.c.l.b16 %v556
        %v761 = vunpack.c.l.b16 %v557
        %v762 = vunpack.c.l.b16 %v558
        %v763 = vunpack.c.l.b16 %v559
        %v764 = vunpack.c.l.b16 %v560
        %v765 = vunpack.c.l.b16 %v561
        %v766 = vunpack.c.l.b16 %v562
        %v767 = vunpack.c.l.b16 %v563
        %v768 = vunpack.c.l.b16 %v564
        %v769 = vunpack.c.l.b16 %v565
        %v770 = vunpack.c.l.b16 %v566
        %v771 = vunpack.c.l.b16 %v567
        %v772 = vunpack.c.l.b16 %v568
        %v773 = vunpack.c.l.b16 %v569
        %v774 = vunpack.c.l.b16 %v570
        %v775 = vunpack.c.l.b16 %v571
        %v776 = vunpack.c.l.b16 %v572
        %v777 = vunpack.c.l.b16 %v573
        %v778 = vunpack.c.l.b16 %v574
        %v779 = vunpack.c.l.b16 %v575
        %v780 = vunpack.c.l.b16 %v576
        %v781 = vunpack.c.l.b16 %v577
        %v782 = vunpack.c.l.b16 %v578
        %v783 = vunpack.c.l.b16 %v579
        %v784 = vunpack.c.l.b16 %v580
        %v785 = vunpack.c.l.b16 %v581
        %v786 = vunpack.c.l.b16 %v582
        %v787 = vunpack.c.l.b16 %v583
        %v788 = vunpack.c.l.b16 %v584
        %v789 = vunpack.c.l.b16 %v585
        %v790 = vunpack.c.l.b16 %v586
        %v791 = vunpack.c.l.b16 %v587
        %v792 = vunpack.c.l.b16 %v588
        %v793 = vunpack.c.l.b16 %v589
        %v794 = vunpack.c.l.b16 %v590
        %v795 = vunpack.c.l.b16 %v591
        %v796 = vunpack.c.l.b16 %v592
        %v797 = vunpack.c.l.b16 %v593
        %v798 = vunpack.c.l.b16 %v594
        %v799 = vunpack.c.l.b16 %v595
        %v800 = vunpack.c.l.b16 %v596
        %v801 = vunpack.c.l.b16 %v597
        %v802 = vunpack.c.l.b16 %v598
        %v803 = vunpack.c.l.b16 %v599
        %v804 = vunpack.c.l.b16 %v600
        %v805 = vunpack.c.l.b16 %v601
        %v806 = vunpack.c.l.b16 %v602
        %v807 = vunpack.c.l.b16 %v603
        %v808 = vunpack.c.l.b16 %v604
        %v809 = vunpack.c.l.b16 %v605
        %v810 = vunpack.c.l.b16 %v606
        %v811 = vunpack.c.l.b16 %v607
        %v812 = vunpack.c.l.b16 %v608
        %v813 = vunpack.c.l.b16 %v609
        %v814 = vunpack.c.l.b16 %v610
        %v815 = vunpack.c.l.b16 %v611
        %v816 = vunpack.c.l.b16 %v612
        %v817 = vunpack.c.l.b16 %v613
        %v818 = vunpack.c.l.b16 %v614
        %v819 = vunpack.c.l.b16 %v615
        %v820 = vunpack.c.l.b16 %v616
        %v821 = vunpack.c.l.b16 %v617
        %v822 = vunpack.c.l.b16 %v618
        %v823 = vunpack.c.l.b16 %v619
        %v824 = vunpack.c.l.b16 %v620
        %v825 = vunpack.c.l.b16 %v621
        %v826 = vunpack.c.l.b16 %v622
        %v827 = vunpack.c.l.b16 %v623
        %v828 = vunpack.c.l.b16 %v624
        %v829 = vunpack.c.l.b16 %v625
        %v830 = vunpack.c.l.b16 %v626
        %v831 = vunpack.c.l.b16 %v627
        %v832 = vunpack.c.l.b16 %v628
        %v833 = vunpack.c.l.b16 %v629
        %v834 = vunpack.c.l.b16 %v630
        %v835 = vunpack.c.l.b16 %v631
        %v836 = vpack.c.b16 %v757, %v756
        %v837 = vpack.c.b16 %v759, %v758
        %v838 = vpack.c.b16 %v761, %v760
        %v839 = vpack.c.b16 %v763, %v762
        %v840 = vpack.c.b16 %v765, %v764
        %v841 = vpack.c.b16 %v767, %v766
        %v842 = vpack.c.b16 %v769, %v768
        %v843 = vpack.c.b16 %v771, %v770
        %v844 = vpack.c.b16 %v773, %v772
        %v845 = vpack.c.b16 %v775, %v774
        %v846 = vpack.c.b16 %v777, %v776
        %v847 = vpack.c.b16 %v779, %v778
        %v848 = vpack.c.b16 %v781, %v780
        %v849 = vpack.c.b16 %v783, %v782
        %v850 = vpack.c.b16 %v785, %v784
        %v851 = vpack.c.b16 %v787, %v786
        %v852 = vpack.c.b16 %v789, %v788
        %v853 = vpack.c.b16 %v791, %v790
        %v854 = vpack.c.b16 %v793, %v792
        %v855 = vpack.c.b16 %v795, %v794
        %v856 = vpack.c.b16 %v797, %v796
        %v857 = vpack.c.b16 %v799, %v798
        %v858 = vpack.c.b16 %v801, %v800
        %v859 = vpack.c.b16 %v803, %v802
        %v860 = vpack.c.b16 %v805, %v804
        %v861 = vpack.c.b16 %v807, %v806
        %v862 = vpack.c.b16 %v809, %v808
        %v863 = vpack.c.b16 %v811, %v810
        %v864 = vpack.c.b16 %v813, %v812
        %v865 = vpack.c.b16 %v815, %v814
        %v866 = vpack.c.b16 %v817, %v816
        %v867 = vpack.c.b16 %v819, %v818
        %v868 = vpack.c.b16 %v821, %v820
        %v869 = vpack.c.b16 %v823, %v822
        %v870 = vpack.c.b16 %v825, %v824
        %v871 = vpack.c.b16 %v827, %v826
        %v872 = vpack.c.b16 %v829, %v828
        %v873 = vpack.c.b16 %v831, %v830
        %v874 = vpack.c.b16 %v833, %v832
        %v875 = vpack.c.b16 %v835, %v834
        %916 = vmatpush.bf16.xpose.msra.mxu0 %v843
        %917 = vmatpush.bf16.xpose.msra.mxu0 %v842
        %918 = vmatpush.bf16.xpose.msra.mxu0 %v841
        %919 = vmatpush.bf16.xpose.msra.mxu0 %v840
        %920 = vmatpush.bf16.xpose.msra.mxu0 %v839
        %921 = vmatpush.bf16.xpose.msra.mxu0 %v838
        %922 = vmatpush.bf16.xpose.msra.mxu0 %v837
        %923 = vmatpush.bf16.xpose.msra.mxu0 %v836
        %924 = vmatmul.bf16.gmra.mxu0 %v675
        %v925 = vpop.f32.mrf.mxu0
        %v926 = vadd.f32 0.0, %v925
        %v927 = vpop.f32.mrf.mxu0
        %928 = vdwg.mxu0
        %929 = vmatpush.bf16.xpose.msra.mxu0 %v851
        %930 = vmatpush.bf16.xpose.msra.mxu0 %v850
        %931 = vmatpush.bf16.xpose.msra.mxu0 %v849
        %932 = vmatpush.bf16.xpose.msra.mxu0 %v848
        %933 = vmatpush.bf16.xpose.msra.mxu0 %v847
        %934 = vmatpush.bf16.xpose.msra.mxu0 %v846
        %935 = vmatpush.bf16.xpose.msra.mxu0 %v845
        %936 = vmatpush.bf16.xpose.msra.mxu0 %v844
        %937 = vmatmul.bf16.gmra.mxu0 %v675
        %v938 = vpop.f32.mrf.mxu0
        %v939 = vadd.f32 0.0, %v938
        %v940 = vpop.f32.mrf.mxu0
        %941 = vdwg.mxu0
        %942 = vmatpush.bf16.xpose.msra.mxu0 %v859
        %943 = vmatpush.bf16.xpose.msra.mxu0 %v858
        %944 = vmatpush.bf16.xpose.msra.mxu0 %v857
        %945 = vmatpush.bf16.xpose.msra.mxu0 %v856
        %946 = vmatpush.bf16.xpose.msra.mxu0 %v855
        %947 = vmatpush.bf16.xpose.msra.mxu0 %v854
        %948 = vmatpush.bf16.xpose.msra.mxu0 %v853
        %949 = vmatpush.bf16.xpose.msra.mxu0 %v852
        %950 = vmatmul.bf16.gmra.mxu0 %v675
        %v951 = vpop.f32.mrf.mxu0
        %v952 = vadd.f32 0.0, %v951
        %v953 = vpop.f32.mrf.mxu0
        %954 = vdwg.mxu0
        %955 = vmatpush.bf16.xpose.msra.mxu0 %v867
        %956 = vmatpush.bf16.xpose.msra.mxu0 %v866
        %957 = vmatpush.bf16.xpose.msra.mxu0 %v865
        %958 = vmatpush.bf16.xpose.msra.mxu0 %v864
        %959 = vmatpush.bf16.xpose.msra.mxu0 %v863
        %960 = vmatpush.bf16.xpose.msra.mxu0 %v862
        %961 = vmatpush.bf16.xpose.msra.mxu0 %v861
        %962 = vmatpush.bf16.xpose.msra.mxu0 %v860
        %963 = vmatmul.bf16.gmra.mxu0 %v675
        %v964 = vpop.f32.mrf.mxu0
        %v965 = vadd.f32 0.0, %v964
        %v966 = vpop.f32.mrf.mxu0
        %967 = vdwg.mxu0
        %968 = vmatpush.bf16.xpose.msra.mxu0 %v875
        %969 = vmatpush.bf16.xpose.msra.mxu0 %v874
        %970 = vmatpush.bf16.xpose.msra.mxu0 %v873
        %971 = vmatpush.bf16.xpose.msra.mxu0 %v872
        %972 = vmatpush.bf16.xpose.msra.mxu0 %v871
        %973 = vmatpush.bf16.xpose.msra.mxu0 %v870
        %974 = vmatpush.bf16.xpose.msra.mxu0 %v869
        %975 = vmatpush.bf16.xpose.msra.mxu0 %v868
        %976 = vmatmul.bf16.gmra.mxu0 %v675
        %v977 = vpop.f32.mrf.mxu0
        %v978 = vadd.f32 0.0, %v977
        %v979 = vpop.f32.mrf.mxu0
        %980 = vdwg.mxu0
        %v981 = vmul.f32 %v926, %v547
        %v982 = vmul.f32 %v939, %v548
        %v983 = vadd.f32 %v981, %v982
        %v984 = vmul.f32 %v952, %v549
        %v985 = vmul.f32 %v965, %v550
        %v986 = vadd.f32 %v984, %v985
        %v987 = vlaneseq
        %v988 = vshrl.u32 %v987, 7
        %v989 = vlaneseq
        %v990 = vand.u32 %v989, 127
        %vm991 = vcmp.le.s32.totalorder %v990, %v988
        %v992 = vpack.c.bf16 %v983, %v983
        %v993 = vpack.c.bf16 %v986, %v986
        %v994 = vpack.c.bf16 %v978, %v978
        %vm995 = vcmask 261120
        %v997 = vsel %vm995, %v992, 0
        %v1000 = vsel %vm995, %v993, 0
        %1002 = vmatpush.bf16.xpose.msra.mxu0 0
        %1003 = vmatpush.bf16.xpose.msra.mxu0 0
        %1004 = vmatpush.bf16.xpose.msra.mxu0 0
        %1005 = vmatpush.bf16.xpose.msra.mxu0 0
        %1006 = vmatpush.bf16.xpose.msra.mxu0 0
        %1007 = vmatpush.bf16.xpose.msra.mxu0 0
        %1008 = vmatpush.bf16.xpose.msra.mxu0 0
        %1009 = vmatpush.bf16.xpose.msra.mxu0 %v1000
        %1010 = vmatmul.bf16.gmra.mxu0 %v997
        %v1011 = vpop.f32.mrf.mxu0
        %v1012 = vadd.f32 0.0, %v1011
        %v1013 = vpop.f32.mrf.mxu0
        %1014 = vdwg.mxu0
        %v1015 = vsel %vm991, %v1012, -1e+30
        %vm1016 = vcmask 64512
        %v1017 = vsel %vm1016, %v1015, -inf
        %1018 = vmax.xlane.f32.xlu0 %v1017
        %v1019 = vpop.xlane.xlu0 %1018
        %v1020 = vsub.f32 %v1015, %v1019
        %v1021 = vmul.f32 %v1020, 1.442695
        %v1022 = vpow.pop %v1021
        %v1023 = vsel %vm1016, %v1022, 0.0
        %1024 = vadd.xlane.f32.xlu0 %v1023
        %v1025 = vpop.xlane.xlu0 %1024
        %v1026 = vrcp.pop %v1025
        %v1027 = vmul.f32 %v1025, %v1026
        %v1028 = vsub.f32 1.0, %v1027
        %v1029 = vmul.f32 %v1026, %v1028
        %v1030 = vadd.f32 %v1026, %v1029
        %vm1031 = vweird.f32 %v1025
        %vm1032 = vweird.f32 %v1026
        %vm1033 = vmor %vm1031, %vm1032
        %v1034 = vsel %vm1033, %v1026, %v1030
        %v1035 = vand.u32 2147483647, %v1025
        %vm1036 = vcmp.eq.f32.partialorder %v1035, 8.507059e+37
        %v1037 = vand.u32 %v1025, 2147483648
        %v1038 = vor.u32 1.1754944e-38, %v1037
        %v1039 = vsel %vm1036, %v1038, %v1034
        %v1040 = vmul.f32 %v1022, %v1039
        %v1041 = vpack.c.bf16 %v1040, %v1040
        %v1043 = vsel %vm1016, %v1041, 0
        %vm1045 = vcmask 1043456
        %v1047 = vsel %vm1045, %v994, 0
        %1049 = vmatpush.bf16.msra.mxu0 0
        %1050 = vmatpush.bf16.msra.mxu0 0
        %1051 = vmatpush.bf16.msra.mxu0 0
        %1052 = vmatpush.bf16.msra.mxu0 0
        %1053 = vmatpush.bf16.msra.mxu0 0
        %1054 = vmatpush.bf16.msra.mxu0 0
        %1055 = vmatpush.bf16.msra.mxu0 0
        %1056 = vmatpush.bf16.msra.mxu0 %v1047
        %1057 = vmatmul.bf16.gmra.mxu0 %v1043
        %v1058 = vpop.f32.mrf.mxu0
        %v1059 = vadd.f32 0.0, %v1058
        %v1060 = vpop.f32.mrf.mxu0
        %1061 = vdwg.mxu0
        %1063 = vrot.lane.b32.xlu0 %v992, 96
        %v1064 = vpop.permute.xlu0 %1063
        %v1066 = vsel %vm995, %v1064, 0
        %1068 = vmatpush.bf16.xpose.msra.mxu0 0
        %1069 = vmatpush.bf16.xpose.msra.mxu0 0
        %1070 = vmatpush.bf16.xpose.msra.mxu0 0
        %1071 = vmatpush.bf16.xpose.msra.mxu0 0
        %1072 = vmatpush.bf16.xpose.msra.mxu0 0
        %1073 = vmatpush.bf16.xpose.msra.mxu0 0
        %1074 = vmatpush.bf16.xpose.msra.mxu0 0
        %1075 = vmatpush.bf16.xpose.msra.mxu0 %v1000
        %1076 = vmatmul.bf16.gmra.mxu0 %v1066
        %v1077 = vpop.f32.mrf.mxu0
        %v1078 = vadd.f32 0.0, %v1077
        %v1079 = vpop.f32.mrf.mxu0
        %1080 = vdwg.mxu0
        %v1081 = vsel %vm991, %v1078, -1e+30
        %v1082 = vsel %vm1016, %v1081, -inf
        %1083 = vmax.xlane.f32.xlu0 %v1082
        %v1084 = vpop.xlane.xlu0 %1083
        %v1085 = vsub.f32 %v1081, %v1084
        %v1086 = vmul.f32 %v1085, 1.442695
        %v1087 = vpow.pop %v1086
        %v1088 = vsel %vm1016, %v1087, 0.0
        %1089 = vadd.xlane.f32.xlu0 %v1088
        %v1090 = vpop.xlane.xlu0 %1089
        %v1091 = vrcp.pop %v1090
        %v1092 = vmul.f32 %v1090, %v1091
        %v1093 = vsub.f32 1.0, %v1092
        %v1094 = vmul.f32 %v1091, %v1093
        %v1095 = vadd.f32 %v1091, %v1094
        %vm1096 = vweird.f32 %v1090
        %vm1097 = vweird.f32 %v1091
        %vm1098 = vmor %vm1096, %vm1097
        %v1099 = vsel %vm1098, %v1091, %v1095
        %v1100 = vand.u32 2147483647, %v1090
        %vm1101 = vcmp.eq.f32.partialorder %v1100, 8.507059e+37
        %v1102 = vand.u32 %v1090, 2147483648
        %v1103 = vor.u32 1.1754944e-38, %v1102
        %v1104 = vsel %vm1101, %v1103, %v1099
        %v1105 = vmul.f32 %v1087, %v1104
        %v1106 = vpack.c.bf16 %v1105, %v1105
        %v1108 = vsel %vm1016, %v1106, 0
        %1110 = vmatpush.bf16.msra.mxu0 0
        %1111 = vmatpush.bf16.msra.mxu0 0
        %1112 = vmatpush.bf16.msra.mxu0 0
        %1113 = vmatpush.bf16.msra.mxu0 0
        %1114 = vmatpush.bf16.msra.mxu0 0
        %1115 = vmatpush.bf16.msra.mxu0 0
        %1116 = vmatpush.bf16.msra.mxu0 0
        %1117 = vmatpush.bf16.msra.mxu0 %v1047
        %1118 = vmatmul.bf16.gmra.mxu0 %v1108
        %v1119 = vpop.f32.mrf.mxu0
        %v1120 = vadd.f32 0.0, %v1119
        %v1121 = vpop.f32.mrf.mxu0
        %1122 = vdwg.mxu0
        %1123 = vrot.lane.b32.xlu0 %v992, 64
        %v1124 = vpop.permute.xlu0 %1123
        %1126 = vrot.lane.b32.xlu0 %v993, 96
        %v1127 = vpop.permute.xlu0 %1126
        %v1129 = vsel %vm995, %v1124, 0
        %v1132 = vsel %vm995, %v1127, 0
        %1134 = vmatpush.bf16.xpose.msra.mxu0 0
        %1135 = vmatpush.bf16.xpose.msra.mxu0 0
        %1136 = vmatpush.bf16.xpose.msra.mxu0 0
        %1137 = vmatpush.bf16.xpose.msra.mxu0 0
        %1138 = vmatpush.bf16.xpose.msra.mxu0 0
        %1139 = vmatpush.bf16.xpose.msra.mxu0 0
        %1140 = vmatpush.bf16.xpose.msra.mxu0 0
        %1141 = vmatpush.bf16.xpose.msra.mxu0 %v1132
        %1142 = vmatmul.bf16.gmra.mxu0 %v1129
        %v1143 = vpop.f32.mrf.mxu0
        %v1144 = vadd.f32 0.0, %v1143
        %v1145 = vpop.f32.mrf.mxu0
        %1146 = vdwg.mxu0
        %v1147 = vsel %vm991, %v1144, -1e+30
        %v1148 = vsel %vm1016, %v1147, -inf
        %1149 = vmax.xlane.f32.xlu0 %v1148
        %v1150 = vpop.xlane.xlu0 %1149
        %v1151 = vsub.f32 %v1147, %v1150
        %v1152 = vmul.f32 %v1151, 1.442695
        %v1153 = vpow.pop %v1152
        %v1154 = vsel %vm1016, %v1153, 0.0
        %1155 = vadd.xlane.f32.xlu0 %v1154
        %v1156 = vpop.xlane.xlu0 %1155
        %v1157 = vrcp.pop %v1156
        %v1158 = vmul.f32 %v1156, %v1157
        %v1159 = vsub.f32 1.0, %v1158
        %v1160 = vmul.f32 %v1157, %v1159
        %v1161 = vadd.f32 %v1157, %v1160
        %vm1162 = vweird.f32 %v1156
        %vm1163 = vweird.f32 %v1157
        %vm1164 = vmor %vm1162, %vm1163
        %v1165 = vsel %vm1164, %v1157, %v1161
        %v1166 = vand.u32 2147483647, %v1156
        %vm1167 = vcmp.eq.f32.partialorder %v1166, 8.507059e+37
        %v1168 = vand.u32 %v1156, 2147483648
        %v1169 = vor.u32 1.1754944e-38, %v1168
        %v1170 = vsel %vm1167, %v1169, %v1165
        %v1171 = vmul.f32 %v1153, %v1170
        %v1172 = vpack.c.bf16 %v1171, %v1171
        %1174 = vrot.lane.b32.xlu0 %v994, 96
        %v1175 = vpop.permute.xlu0 %1174
        %v1177 = vsel %vm1016, %v1172, 0
        %v1180 = vsel %vm1045, %v1175, 0
        %1182 = vmatpush.bf16.msra.mxu0 0
        %1183 = vmatpush.bf16.msra.mxu0 0
        %1184 = vmatpush.bf16.msra.mxu0 0
        %1185 = vmatpush.bf16.msra.mxu0 0
        %1186 = vmatpush.bf16.msra.mxu0 0
        %1187 = vmatpush.bf16.msra.mxu0 0
        %1188 = vmatpush.bf16.msra.mxu0 0
        %1189 = vmatpush.bf16.msra.mxu0 %v1180
        %1190 = vmatmul.bf16.gmra.mxu0 %v1177
        %v1191 = vpop.f32.mrf.mxu0
        %v1192 = vadd.f32 0.0, %v1191
        %v1193 = vpop.f32.mrf.mxu0
        %1194 = vdwg.mxu0
        %1195 = vrot.lane.b32.xlu0 %v992, 32
        %v1196 = vpop.permute.xlu0 %1195
        %v1198 = vsel %vm995, %v1196, 0
        %1200 = vmatpush.bf16.xpose.msra.mxu0 0
        %1201 = vmatpush.bf16.xpose.msra.mxu0 0
        %1202 = vmatpush.bf16.xpose.msra.mxu0 0
        %1203 = vmatpush.bf16.xpose.msra.mxu0 0
        %1204 = vmatpush.bf16.xpose.msra.mxu0 0
        %1205 = vmatpush.bf16.xpose.msra.mxu0 0
        %1206 = vmatpush.bf16.xpose.msra.mxu0 0
        %1207 = vmatpush.bf16.xpose.msra.mxu0 %v1132
        %1208 = vmatmul.bf16.gmra.mxu0 %v1198
        %v1209 = vpop.f32.mrf.mxu0
        %v1210 = vadd.f32 0.0, %v1209
        %v1211 = vpop.f32.mrf.mxu0
        %1212 = vdwg.mxu0
        %v1213 = vsel %vm991, %v1210, -1e+30
        %v1214 = vsel %vm1016, %v1213, -inf
        %1215 = vmax.xlane.f32.xlu0 %v1214
        %v1216 = vpop.xlane.xlu0 %1215
        %v1217 = vsub.f32 %v1213, %v1216
        %v1218 = vmul.f32 %v1217, 1.442695
        %v1219 = vpow.pop %v1218
        %v1220 = vsel %vm1016, %v1219, 0.0
        %1221 = vadd.xlane.f32.xlu0 %v1220
        %v1222 = vpop.xlane.xlu0 %1221
        %v1223 = vrcp.pop %v1222
        %v1224 = vmul.f32 %v1222, %v1223
        %v1225 = vsub.f32 1.0, %v1224
        %v1226 = vmul.f32 %v1223, %v1225
        %v1227 = vadd.f32 %v1223, %v1226
        %vm1228 = vweird.f32 %v1222
        %vm1229 = vweird.f32 %v1223
        %vm1230 = vmor %vm1228, %vm1229
        %v1231 = vsel %vm1230, %v1223, %v1227
        %v1232 = vand.u32 2147483647, %v1222
        %vm1233 = vcmp.eq.f32.partialorder %v1232, 8.507059e+37
        %v1234 = vand.u32 %v1222, 2147483648
        %v1235 = vor.u32 1.1754944e-38, %v1234
        %v1236 = vsel %vm1233, %v1235, %v1231
        %v1237 = vmul.f32 %v1219, %v1236
        %v1238 = vpack.c.bf16 %v1237, %v1237
        %v1240 = vsel %vm1016, %v1238, 0
        %1242 = vmatpush.bf16.msra.mxu0 0
        %1243 = vmatpush.bf16.msra.mxu0 0
        %1244 = vmatpush.bf16.msra.mxu0 0
        %1245 = vmatpush.bf16.msra.mxu0 0
        %1246 = vmatpush.bf16.msra.mxu0 0
        %1247 = vmatpush.bf16.msra.mxu0 0
        %1248 = vmatpush.bf16.msra.mxu0 0
        %1249 = vmatpush.bf16.msra.mxu0 %v1180
        %1250 = vmatmul.bf16.gmra.mxu0 %v1240
        %v1251 = vpop.f32.mrf.mxu0
        %v1252 = vadd.f32 0.0, %v1251
        %v1253 = vpop.f32.mrf.mxu0
        %1254 = vdwg.mxu0
        %1256 = vrot.lane.b32.xlu0 %v1120, 32
        %v1257 = vpop.permute.xlu0 %1256
        %1260 = vrot.lane.b32.xlu0 %v1192, 64
        %v1261 = vpop.permute.xlu0 %1260
        %1264 = vrot.lane.b32.xlu0 %v1252, 96
        %v1265 = vpop.permute.xlu0 %1264
        %v1267 = vsel %vm995, %v1059, %v1257
        %vm1268 = vcmask 523264
        %v1269 = vsel %vm1268, %v1267, %v1261
        %vm1270 = vcmask 785408
        %v1271 = vsel %vm1270, %v1269, %v1265
        %v1272 = vpack.c.bf16 %v1271, %v1271
        %v1289 = vunpack.c.l.b16 %v632
        %v1290 = vunpack.c.l.b16 %v633
        %v1291 = vunpack.c.l.b16 %v634
        %v1292 = vunpack.c.l.b16 %v635
        %v1293 = vunpack.c.l.b16 %v636
        %v1294 = vunpack.c.l.b16 %v637
        %v1295 = vunpack.c.l.b16 %v638
        %v1296 = vunpack.c.l.b16 %v639
        %v1297 = vunpack.c.l.b16 %v640
        %v1298 = vunpack.c.l.b16 %v641
        %v1299 = vunpack.c.l.b16 %v642
        %v1300 = vunpack.c.l.b16 %v643
        %v1301 = vunpack.c.l.b16 %v644
        %v1302 = vunpack.c.l.b16 %v645
        %v1303 = vunpack.c.l.b16 %v646
        %v1304 = vunpack.c.l.b16 %v647
        %v1305 = vpack.c.b16 %v1290, %v1289
        %v1306 = vpack.c.b16 %v1292, %v1291
        %v1307 = vpack.c.b16 %v1294, %v1293
        %v1308 = vpack.c.b16 %v1296, %v1295
        %v1309 = vpack.c.b16 %v1298, %v1297
        %v1310 = vpack.c.b16 %v1300, %v1299
        %v1311 = vpack.c.b16 %v1302, %v1301
        %v1312 = vpack.c.b16 %v1304, %v1303
        %1321 = vmatpush.bf16.xpose.msra.mxu0 %v1312
        %1322 = vmatpush.bf16.xpose.msra.mxu0 %v1311
        %1323 = vmatpush.bf16.xpose.msra.mxu0 %v1310
        %1324 = vmatpush.bf16.xpose.msra.mxu0 %v1309
        %1325 = vmatpush.bf16.xpose.msra.mxu0 %v1308
        %1326 = vmatpush.bf16.xpose.msra.mxu0 %v1307
        %1327 = vmatpush.bf16.xpose.msra.mxu0 %v1306
        %1328 = vmatpush.bf16.xpose.msra.mxu0 %v1305
        %1329 = vmatmul.bf16.gmra.mxu0 %v1272
        %v1330 = vpop.f32.mrf.mxu0
        %v1331 = vadd.f32 0.0, %v1330
        %v1332 = vpop.f32.mrf.mxu0
        %1333 = vdwg.mxu0
        %v1334 = vadd.f32 %v546, %v1331
        %v1335 = vld [vmem:[%s7] sm:$0x1]
        %v1336 = vld [vmem:[%s10] sm:$0xf]
        %v1337 = vld [vmem:[#allocation5] sm:$0xf]
        %v1338 = vld [vmem:[#allocation5 + $0x4] sm:$0xf]
        %v1339 = vld [vmem:[#allocation5 + $0x8] sm:$0xf]
        %v1340 = vld [vmem:[#allocation5 + $0xc] sm:$0xf]
        %v1341 = vld [vmem:[#allocation5 + $0x10] sm:$0xf]
        %v1342 = vld [vmem:[#allocation5 + $0x14] sm:$0xf]
        %v1343 = vld [vmem:[#allocation5 + $0x18] sm:$0xf]
        %v1344 = vld [vmem:[#allocation5 + $0x1c] sm:$0xf]
        %v1345 = vld [vmem:[#allocation5 + $0x20] sm:$0xf]
        %v1346 = vld [vmem:[#allocation5 + $0x24] sm:$0xf]
        %v1347 = vld [vmem:[#allocation5 + $0x28] sm:$0xf]
        %v1348 = vld [vmem:[#allocation5 + $0x2c] sm:$0xf]
        %v1349 = vld [vmem:[#allocation5 + $0x30] sm:$0xf]
        %v1350 = vld [vmem:[#allocation5 + $0x34] sm:$0xf]
        %v1351 = vld [vmem:[#allocation5 + $0x38] sm:$0xf]
        %v1352 = vld [vmem:[#allocation5 + $0x3c] sm:$0xf]
        %v1353 = vld [vmem:[#allocation5 + $0x40] sm:$0xf]
        %v1354 = vld [vmem:[#allocation5 + $0x44] sm:$0xf]
        %v1355 = vld [vmem:[#allocation5 + $0x48] sm:$0xf]
        %v1356 = vld [vmem:[#allocation5 + $0x4c] sm:$0xf]
        %v1357 = vld [vmem:[#allocation5 + $0x50] sm:$0xf]
        %v1358 = vld [vmem:[#allocation5 + $0x54] sm:$0xf]
        %v1359 = vld [vmem:[#allocation5 + $0x58] sm:$0xf]
        %v1360 = vld [vmem:[#allocation5 + $0x5c] sm:$0xf]
        %v1361 = vld [vmem:[#allocation5 + $0x60] sm:$0xf]
        %v1362 = vld [vmem:[#allocation5 + $0x64] sm:$0xf]
        %v1363 = vld [vmem:[#allocation5 + $0x68] sm:$0xf]
        %v1364 = vld [vmem:[#allocation5 + $0x6c] sm:$0xf]
        %v1365 = vld [vmem:[#allocation5 + $0x70] sm:$0xf]
        %v1366 = vld [vmem:[#allocation5 + $0x74] sm:$0xf]
        %v1367 = vld [vmem:[#allocation5 + $0x78] sm:$0xf]
        %v1368 = vld [vmem:[#allocation5 + $0x7c] sm:$0xf]
        %v1369 = vld [vmem:[#allocation5 + $0x80] sm:$0xf]
        %v1370 = vld [vmem:[#allocation5 + $0x84] sm:$0xf]
        %v1371 = vld [vmem:[#allocation5 + $0x88] sm:$0xf]
        %v1372 = vld [vmem:[#allocation5 + $0x8c] sm:$0xf]
        %v1373 = vld [vmem:[#allocation5 + $0x90] sm:$0xf]
        %v1374 = vld [vmem:[#allocation5 + $0x94] sm:$0xf]
        %v1375 = vld [vmem:[#allocation5 + $0x98] sm:$0xf]
        %v1376 = vld [vmem:[#allocation5 + $0x9c] sm:$0xf]
        %v1377 = vld [vmem:[#allocation5 + $0xa0] sm:$0xf]
        %v1378 = vld [vmem:[#allocation5 + $0xa4] sm:$0xf]
        %v1379 = vld [vmem:[#allocation5 + $0xa8] sm:$0xf]
        %v1380 = vld [vmem:[#allocation5 + $0xac] sm:$0xf]
        %v1381 = vld [vmem:[#allocation5 + $0xb0] sm:$0xf]
        %v1382 = vld [vmem:[#allocation5 + $0xb4] sm:$0xf]
        %v1383 = vld [vmem:[#allocation5 + $0xb8] sm:$0xf]
        %v1384 = vld [vmem:[#allocation5 + $0xbc] sm:$0xf]
        %v1385 = vld [vmem:[#allocation5 + $0xc0] sm:$0xf]
        %v1386 = vld [vmem:[#allocation5 + $0xc4] sm:$0xf]
        %v1387 = vld [vmem:[#allocation5 + $0xc8] sm:$0xf]
        %v1388 = vld [vmem:[#allocation5 + $0xcc] sm:$0xf]
        %v1389 = vld [vmem:[#allocation5 + $0xd0] sm:$0xf]
        %v1390 = vld [vmem:[#allocation5 + $0xd4] sm:$0xf]
        %v1391 = vld [vmem:[#allocation5 + $0xd8] sm:$0xf]
        %v1392 = vld [vmem:[#allocation5 + $0xdc] sm:$0xf]
        %v1393 = vld [vmem:[#allocation5 + $0xe0] sm:$0xf]
        %v1394 = vld [vmem:[#allocation5 + $0xe4] sm:$0xf]
        %v1395 = vld [vmem:[#allocation5 + $0xe8] sm:$0xf]
        %v1396 = vld [vmem:[#allocation5 + $0xec] sm:$0xf]
        %v1397 = vld [vmem:[#allocation5 + $0xf0] sm:$0xf]
        %v1398 = vld [vmem:[#allocation5 + $0xf4] sm:$0xf]
        %v1399 = vld [vmem:[#allocation5 + $0xf8] sm:$0xf]
        %v1400 = vld [vmem:[#allocation5 + $0xfc] sm:$0xf]
        %v1401 = vld [vmem:[#allocation5 + $0x100] sm:$0xf]
        %v1402 = vld [vmem:[#allocation5 + $0x104] sm:$0xf]
        %v1403 = vld [vmem:[#allocation5 + $0x108] sm:$0xf]
        %v1404 = vld [vmem:[#allocation5 + $0x10c] sm:$0xf]
        %v1405 = vld [vmem:[#allocation5 + $0x110] sm:$0xf]
        %v1406 = vld [vmem:[#allocation5 + $0x114] sm:$0xf]
        %v1407 = vld [vmem:[#allocation5 + $0x118] sm:$0xf]
        %v1408 = vld [vmem:[#allocation5 + $0x11c] sm:$0xf]
        %v1409 = vld [vmem:[#allocation5 + $0x120] sm:$0xf]
        %v1410 = vld [vmem:[#allocation5 + $0x124] sm:$0xf]
        %v1411 = vld [vmem:[#allocation5 + $0x128] sm:$0xf]
        %v1412 = vld [vmem:[#allocation5 + $0x12c] sm:$0xf]
        %v1413 = vld [vmem:[#allocation5 + $0x130] sm:$0xf]
        %v1414 = vld [vmem:[#allocation5 + $0x134] sm:$0xf]
        %v1415 = vld [vmem:[#allocation5 + $0x138] sm:$0xf]
        %v1416 = vld [vmem:[#allocation5 + $0x13c] sm:$0xf]
        %v1417 = vld [vmem:[#allocation5 + $0x140] sm:$0xf]
        %v1418 = vld [vmem:[#allocation5 + $0x144] sm:$0xf]
        %v1419 = vld [vmem:[#allocation5 + $0x148] sm:$0xf]
        %v1420 = vld [vmem:[#allocation5 + $0x14c] sm:$0xf]
        %v1421 = vld [vmem:[#allocation5 + $0x150] sm:$0xf]
        %v1422 = vld [vmem:[#allocation5 + $0x154] sm:$0xf]
        %v1423 = vld [vmem:[#allocation5 + $0x158] sm:$0xf]
        %v1424 = vld [vmem:[#allocation5 + $0x15c] sm:$0xf]
        %v1425 = vld [vmem:[#allocation5 + $0x160] sm:$0xf]
        %v1426 = vld [vmem:[#allocation5 + $0x164] sm:$0xf]
        %v1427 = vld [vmem:[#allocation5 + $0x168] sm:$0xf]
        %v1428 = vld [vmem:[#allocation5 + $0x16c] sm:$0xf]
        %v1429 = vld [vmem:[#allocation5 + $0x170] sm:$0xf]
        %v1430 = vld [vmem:[#allocation5 + $0x174] sm:$0xf]
        %v1431 = vld [vmem:[#allocation5 + $0x178] sm:$0xf]
        %v1432 = vld [vmem:[#allocation5 + $0x17c] sm:$0xf]
        %v1433 = vld [vmem:[#allocation5 + $0x180] sm:$0xf]
        %v1434 = vld [vmem:[#allocation5 + $0x184] sm:$0xf]
        %v1435 = vld [vmem:[#allocation5 + $0x188] sm:$0xf]
        %v1436 = vld [vmem:[#allocation5 + $0x18c] sm:$0xf]
        %v1437 = vld [vmem:[#allocation5 + $0x190] sm:$0xf]
        %v1438 = vld [vmem:[#allocation5 + $0x194] sm:$0xf]
        %v1439 = vld [vmem:[#allocation5 + $0x198] sm:$0xf]
        %v1440 = vld [vmem:[#allocation5 + $0x19c] sm:$0xf]
        %v1441 = vld [vmem:[#allocation5 + $0x1a0] sm:$0xf]
        %v1442 = vld [vmem:[#allocation5 + $0x1a4] sm:$0xf]
        %v1443 = vld [vmem:[#allocation5 + $0x1a8] sm:$0xf]
        %v1444 = vld [vmem:[#allocation5 + $0x1ac] sm:$0xf]
        %v1445 = vld [vmem:[#allocation5 + $0x1b0] sm:$0xf]
        %v1446 = vld [vmem:[#allocation5 + $0x1b4] sm:$0xf]
        %v1447 = vld [vmem:[#allocation5 + $0x1b8] sm:$0xf]
        %v1448 = vld [vmem:[#allocation5 + $0x1bc] sm:$0xf]
        %v1449 = vld [vmem:[#allocation5 + $0x1c0] sm:$0xf]
        %v1450 = vld [vmem:[#allocation5 + $0x1c4] sm:$0xf]
        %v1451 = vld [vmem:[#allocation5 + $0x1c8] sm:$0xf]
        %v1452 = vld [vmem:[#allocation5 + $0x1cc] sm:$0xf]
        %v1453 = vld [vmem:[#allocation5 + $0x1d0] sm:$0xf]
        %v1454 = vld [vmem:[#allocation5 + $0x1d4] sm:$0xf]
        %v1455 = vld [vmem:[#allocation5 + $0x1d8] sm:$0xf]
        %v1456 = vld [vmem:[#allocation5 + $0x1dc] sm:$0xf]
        %v1457 = vld [vmem:[#allocation5 + $0x1e0] sm:$0xf]
        %v1458 = vld [vmem:[#allocation5 + $0x1e4] sm:$0xf]
        %v1459 = vld [vmem:[#allocation5 + $0x1e8] sm:$0xf]
        %v1460 = vld [vmem:[#allocation5 + $0x1ec] sm:$0xf]
        %v1461 = vld [vmem:[#allocation5 + $0x1f0] sm:$0xf]
        %v1462 = vld [vmem:[#allocation5 + $0x1f4] sm:$0xf]
        %v1463 = vld [vmem:[#allocation5 + $0x1f8] sm:$0xf]
        %v1464 = vld [vmem:[#allocation5 + $0x1fc] sm:$0xf]
        %v1465 = vld [vmem:[#allocation5 + $0x200] sm:$0xf]
        %v1466 = vld [vmem:[#allocation5 + $0x204] sm:$0xf]
        %v1467 = vld [vmem:[#allocation5 + $0x208] sm:$0xf]
        %v1468 = vld [vmem:[#allocation5 + $0x20c] sm:$0xf]
        %v1469 = vld [vmem:[#allocation5 + $0x210] sm:$0xf]
        %v1470 = vld [vmem:[#allocation5 + $0x214] sm:$0xf]
        %v1471 = vld [vmem:[#allocation5 + $0x218] sm:$0xf]
        %v1472 = vld [vmem:[#allocation5 + $0x21c] sm:$0xf]
        %v1473 = vld [vmem:[#allocation5 + $0x220] sm:$0xf]
        %v1474 = vld [vmem:[#allocation5 + $0x224] sm:$0xf]
        %v1475 = vld [vmem:[#allocation5 + $0x228] sm:$0xf]
        %v1476 = vld [vmem:[#allocation5 + $0x22c] sm:$0xf]
        %v1477 = vld [vmem:[#allocation5 + $0x230] sm:$0xf]
        %v1478 = vld [vmem:[#allocation5 + $0x234] sm:$0xf]
        %v1479 = vld [vmem:[#allocation5 + $0x238] sm:$0xf]
        %v1480 = vld [vmem:[#allocation5 + $0x23c] sm:$0xf]
        %v1481 = vld [vmem:[#allocation5 + $0x240] sm:$0xf]
        %v1482 = vld [vmem:[#allocation5 + $0x244] sm:$0xf]
        %v1483 = vld [vmem:[#allocation5 + $0x248] sm:$0xf]
        %v1484 = vld [vmem:[#allocation5 + $0x24c] sm:$0xf]
        %v1485 = vld [vmem:[#allocation5 + $0x250] sm:$0xf]
        %v1486 = vld [vmem:[#allocation5 + $0x254] sm:$0xf]
        %v1487 = vld [vmem:[#allocation5 + $0x258] sm:$0xf]
        %v1488 = vld [vmem:[#allocation5 + $0x25c] sm:$0xf]
        %v1489 = vld [vmem:[#allocation5 + $0x260] sm:$0xf]
        %v1490 = vld [vmem:[#allocation5 + $0x264] sm:$0xf]
        %v1491 = vld [vmem:[#allocation5 + $0x268] sm:$0xf]
        %v1492 = vld [vmem:[#allocation5 + $0x26c] sm:$0xf]
        %v1493 = vld [vmem:[#allocation5 + $0x270] sm:$0xf]
        %v1494 = vld [vmem:[#allocation5 + $0x274] sm:$0xf]
        %v1495 = vld [vmem:[#allocation5 + $0x278] sm:$0xf]
        %v1496 = vld [vmem:[#allocation5 + $0x27c] sm:$0xf]
        %v1497 = vld [vmem:[#allocation5 + $0x280] sm:$0xf]
        %v1498 = vld [vmem:[#allocation5 + $0x284] sm:$0xf]
        %v1499 = vld [vmem:[#allocation5 + $0x288] sm:$0xf]
        %v1500 = vld [vmem:[#allocation5 + $0x28c] sm:$0xf]
        %v1501 = vld [vmem:[#allocation5 + $0x290] sm:$0xf]
        %v1502 = vld [vmem:[#allocation5 + $0x294] sm:$0xf]
        %v1503 = vld [vmem:[#allocation5 + $0x298] sm:$0xf]
        %v1504 = vld [vmem:[#allocation5 + $0x29c] sm:$0xf]
        %v1505 = vld [vmem:[#allocation5 + $0x2a0] sm:$0xf]
        %v1506 = vld [vmem:[#allocation5 + $0x2a4] sm:$0xf]
        %v1507 = vld [vmem:[#allocation5 + $0x2a8] sm:$0xf]
        %v1508 = vld [vmem:[#allocation5 + $0x2ac] sm:$0xf]
        %v1509 = vld [vmem:[#allocation5 + $0x2b0] sm:$0xf]
        %v1510 = vld [vmem:[#allocation5 + $0x2b4] sm:$0xf]
        %v1511 = vld [vmem:[#allocation5 + $0x2b8] sm:$0xf]
        %v1512 = vld [vmem:[#allocation5 + $0x2bc] sm:$0xf]
        %v1513 = vld [vmem:[#allocation5 + $0x2c0] sm:$0xf]
        %v1514 = vld [vmem:[#allocation5 + $0x2c4] sm:$0xf]
        %v1515 = vld [vmem:[#allocation5 + $0x2c8] sm:$0xf]
        %v1516 = vld [vmem:[#allocation5 + $0x2cc] sm:$0xf]
        %v1517 = vld [vmem:[#allocation5 + $0x2d0] sm:$0xf]
        %v1518 = vld [vmem:[#allocation5 + $0x2d4] sm:$0xf]
        %v1519 = vld [vmem:[#allocation5 + $0x2d8] sm:$0xf]
        %v1520 = vld [vmem:[#allocation5 + $0x2dc] sm:$0xf]
        %v1521 = vld [vmem:[#allocation5 + $0x2e0] sm:$0xf]
        %v1522 = vld [vmem:[#allocation5 + $0x2e4] sm:$0xf]
        %v1523 = vld [vmem:[#allocation5 + $0x2e8] sm:$0xf]
        %v1524 = vld [vmem:[#allocation5 + $0x2ec] sm:$0xf]
        %v1525 = vld [vmem:[#allocation5 + $0x2f0] sm:$0xf]
        %v1526 = vld [vmem:[#allocation5 + $0x2f4] sm:$0xf]
        %v1527 = vld [vmem:[#allocation5 + $0x2f8] sm:$0xf]
        %v1528 = vld [vmem:[#allocation5 + $0x2fc] sm:$0xf]
        %v1529 = vld [vmem:[#allocation5 + $0x300] sm:$0xf]
        %v1530 = vld [vmem:[#allocation5 + $0x304] sm:$0xf]
        %v1531 = vld [vmem:[#allocation5 + $0x308] sm:$0xf]
        %v1532 = vld [vmem:[#allocation5 + $0x30c] sm:$0xf]
        %v1533 = vld [vmem:[#allocation5 + $0x310] sm:$0xf]
        %v1534 = vld [vmem:[#allocation5 + $0x314] sm:$0xf]
        %v1535 = vld [vmem:[#allocation5 + $0x318] sm:$0xf]
        %v1536 = vld [vmem:[#allocation5 + $0x31c] sm:$0xf]
        %v1537 = vld [vmem:[#allocation5 + $0x320] sm:$0xf]
        %v1538 = vld [vmem:[#allocation5 + $0x324] sm:$0xf]
        %v1539 = vld [vmem:[#allocation5 + $0x328] sm:$0xf]
        %v1540 = vld [vmem:[#allocation5 + $0x32c] sm:$0xf]
        %v1541 = vld [vmem:[#allocation5 + $0x330] sm:$0xf]
        %v1542 = vld [vmem:[#allocation5 + $0x334] sm:$0xf]
        %v1543 = vld [vmem:[#allocation5 + $0x338] sm:$0xf]
        %v1544 = vld [vmem:[#allocation5 + $0x33c] sm:$0xf]
        %v1545 = vld [vmem:[#allocation5 + $0x340] sm:$0xf]
        %v1546 = vld [vmem:[#allocation5 + $0x344] sm:$0xf]
        %v1547 = vld [vmem:[#allocation5 + $0x348] sm:$0xf]
        %v1548 = vld [vmem:[#allocation5 + $0x34c] sm:$0xf]
        %v1549 = vld [vmem:[#allocation5 + $0x350] sm:$0xf]
        %v1550 = vld [vmem:[#allocation5 + $0x354] sm:$0xf]
        %v1551 = vld [vmem:[#allocation5 + $0x358] sm:$0xf]
        %v1552 = vld [vmem:[#allocation5 + $0x35c] sm:$0xf]
        %v1553 = vld [vmem:[#allocation5 + $0x360] sm:$0xf]
        %v1554 = vld [vmem:[#allocation5 + $0x364] sm:$0xf]
        %v1555 = vld [vmem:[#allocation5 + $0x368] sm:$0xf]
        %v1556 = vld [vmem:[#allocation5 + $0x36c] sm:$0xf]
        %v1557 = vld [vmem:[#allocation5 + $0x370] sm:$0xf]
        %v1558 = vld [vmem:[#allocation5 + $0x374] sm:$0xf]
        %v1559 = vld [vmem:[#allocation5 + $0x378] sm:$0xf]
        %v1560 = vld [vmem:[#allocation5 + $0x37c] sm:$0xf]
        %v1561 = vld [vmem:[#allocation5 + $0x380] sm:$0xf]
        %v1562 = vld [vmem:[#allocation5 + $0x384] sm:$0xf]
        %v1563 = vld [vmem:[#allocation5 + $0x388] sm:$0xf]
        %v1564 = vld [vmem:[#allocation5 + $0x38c] sm:$0xf]
        %v1565 = vld [vmem:[#allocation5 + $0x390] sm:$0xf]
        %v1566 = vld [vmem:[#allocation5 + $0x394] sm:$0xf]
        %v1567 = vld [vmem:[#allocation5 + $0x398] sm:$0xf]
        %v1568 = vld [vmem:[#allocation5 + $0x39c] sm:$0xf]
        %v1569 = vld [vmem:[#allocation5 + $0x3a0] sm:$0xf]
        %v1570 = vld [vmem:[#allocation5 + $0x3a4] sm:$0xf]
        %v1571 = vld [vmem:[#allocation5 + $0x3a8] sm:$0xf]
        %v1572 = vld [vmem:[#allocation5 + $0x3ac] sm:$0xf]
        %v1573 = vld [vmem:[#allocation5 + $0x3b0] sm:$0xf]
        %v1574 = vld [vmem:[#allocation5 + $0x3b4] sm:$0xf]
        %v1575 = vld [vmem:[#allocation5 + $0x3b8] sm:$0xf]
        %v1576 = vld [vmem:[#allocation5 + $0x3bc] sm:$0xf]
        %v1577 = vld [vmem:[#allocation5 + $0x3c0] sm:$0xf]
        %v1578 = vld [vmem:[#allocation5 + $0x3c4] sm:$0xf]
        %v1579 = vld [vmem:[#allocation5 + $0x3c8] sm:$0xf]
        %v1580 = vld [vmem:[#allocation5 + $0x3cc] sm:$0xf]
        %v1581 = vld [vmem:[#allocation5 + $0x3d0] sm:$0xf]
        %v1582 = vld [vmem:[#allocation5 + $0x3d4] sm:$0xf]
        %v1583 = vld [vmem:[#allocation5 + $0x3d8] sm:$0xf]
        %v1584 = vld [vmem:[#allocation5 + $0x3dc] sm:$0xf]
        %v1585 = vld [vmem:[#allocation5 + $0x3e0] sm:$0xf]
        %v1586 = vld [vmem:[#allocation5 + $0x3e4] sm:$0xf]
        %v1587 = vld [vmem:[#allocation5 + $0x3e8] sm:$0xf]
        %v1588 = vld [vmem:[#allocation5 + $0x3ec] sm:$0xf]
        %v1589 = vld [vmem:[#allocation5 + $0x3f0] sm:$0xf]
        %v1590 = vld [vmem:[#allocation5 + $0x3f4] sm:$0xf]
        %v1591 = vld [vmem:[#allocation5 + $0x3f8] sm:$0xf]
        %v1592 = vld [vmem:[#allocation5 + $0x3fc] sm:$0xf]
        %v1593 = vld [vmem:[#allocation7] sm:$0xff]
        %v1594 = vld [vmem:[#allocation7 + $0x8] sm:$0xff]
        %v1595 = vld [vmem:[#allocation7 + $0x10] sm:$0xff]
        %v1596 = vld [vmem:[#allocation7 + $0x18] sm:$0xff]
        %v1597 = vld [vmem:[#allocation7 + $0x20] sm:$0xff]
        %v1598 = vld [vmem:[#allocation7 + $0x28] sm:$0xff]
        %v1599 = vld [vmem:[#allocation7 + $0x30] sm:$0xff]
        %v1600 = vld [vmem:[#allocation7 + $0x38] sm:$0xff]
        %v1601 = vld [vmem:[#allocation7 + $0x40] sm:$0xff]
        %v1602 = vld [vmem:[#allocation7 + $0x48] sm:$0xff]
        %v1603 = vld [vmem:[#allocation7 + $0x50] sm:$0xff]
        %v1604 = vld [vmem:[#allocation7 + $0x58] sm:$0xff]
        %v1605 = vld [vmem:[#allocation7 + $0x60] sm:$0xff]
        %v1606 = vld [vmem:[#allocation7 + $0x68] sm:$0xff]
        %v1607 = vld [vmem:[#allocation7 + $0x70] sm:$0xff]
        %v1608 = vld [vmem:[#allocation7 + $0x78] sm:$0xff]
        %v1609 = vld [vmem:[#allocation7 + $0x80] sm:$0xff]
        %v1610 = vld [vmem:[#allocation7 + $0x88] sm:$0xff]
        %v1611 = vld [vmem:[#allocation7 + $0x90] sm:$0xff]
        %v1612 = vld [vmem:[#allocation7 + $0x98] sm:$0xff]
        %v1613 = vld [vmem:[#allocation7 + $0xa0] sm:$0xff]
        %v1614 = vld [vmem:[#allocation7 + $0xa8] sm:$0xff]
        %v1615 = vld [vmem:[#allocation7 + $0xb0] sm:$0xff]
        %v1616 = vld [vmem:[#allocation7 + $0xb8] sm:$0xff]
        %v1617 = vld [vmem:[#allocation7 + $0xc0] sm:$0xff]
        %v1618 = vld [vmem:[#allocation7 + $0xc8] sm:$0xff]
        %v1619 = vld [vmem:[#allocation7 + $0xd0] sm:$0xff]
        %v1620 = vld [vmem:[#allocation7 + $0xd8] sm:$0xff]
        %v1621 = vld [vmem:[#allocation7 + $0xe0] sm:$0xff]
        %v1622 = vld [vmem:[#allocation7 + $0xe8] sm:$0xff]
        %v1623 = vld [vmem:[#allocation7 + $0xf0] sm:$0xff]
        %v1624 = vld [vmem:[#allocation7 + $0xf8] sm:$0xff]
        %v1625 = vld [vmem:[#allocation7 + $0x100] sm:$0xff]
        %v1626 = vld [vmem:[#allocation7 + $0x108] sm:$0xff]
        %v1627 = vld [vmem:[#allocation7 + $0x110] sm:$0xff]
        %v1628 = vld [vmem:[#allocation7 + $0x118] sm:$0xff]
        %v1629 = vld [vmem:[#allocation7 + $0x120] sm:$0xff]
        %v1630 = vld [vmem:[#allocation7 + $0x128] sm:$0xff]
        %v1631 = vld [vmem:[#allocation7 + $0x130] sm:$0xff]
        %v1632 = vld [vmem:[#allocation7 + $0x138] sm:$0xff]
        %v1633 = vld [vmem:[#allocation7 + $0x140] sm:$0xff]
        %v1634 = vld [vmem:[#allocation7 + $0x148] sm:$0xff]
        %v1635 = vld [vmem:[#allocation7 + $0x150] sm:$0xff]
        %v1636 = vld [vmem:[#allocation7 + $0x158] sm:$0xff]
        %v1637 = vld [vmem:[#allocation7 + $0x160] sm:$0xff]
        %v1638 = vld [vmem:[#allocation7 + $0x168] sm:$0xff]
        %v1639 = vld [vmem:[#allocation7 + $0x170] sm:$0xff]
        %v1640 = vld [vmem:[#allocation7 + $0x178] sm:$0xff]
        %v1641 = vld [vmem:[#allocation7 + $0x180] sm:$0xff]
        %v1642 = vld [vmem:[#allocation7 + $0x188] sm:$0xff]
        %v1643 = vld [vmem:[#allocation7 + $0x190] sm:$0xff]
        %v1644 = vld [vmem:[#allocation7 + $0x198] sm:$0xff]
        %v1645 = vld [vmem:[#allocation7 + $0x1a0] sm:$0xff]
        %v1646 = vld [vmem:[#allocation7 + $0x1a8] sm:$0xff]
        %v1647 = vld [vmem:[#allocation7 + $0x1b0] sm:$0xff]
        %v1648 = vld [vmem:[#allocation7 + $0x1b8] sm:$0xff]
        %v1649 = vld [vmem:[#allocation7 + $0x1c0] sm:$0xff]
        %v1650 = vld [vmem:[#allocation7 + $0x1c8] sm:$0xff]
        %v1651 = vld [vmem:[#allocation7 + $0x1d0] sm:$0xff]
        %v1652 = vld [vmem:[#allocation7 + $0x1d8] sm:$0xff]
        %v1653 = vld [vmem:[#allocation7 + $0x1e0] sm:$0xff]
        %v1654 = vld [vmem:[#allocation7 + $0x1e8] sm:$0xff]
        %v1655 = vld [vmem:[#allocation7 + $0x1f0] sm:$0xff]
        %v1656 = vld [vmem:[#allocation7 + $0x1f8] sm:$0xff]
        %v1657 = vmul.f32 %v1334, %v1334
        %1658 = vadd.xlane.f32.xlu0 %v1657
        %v1659 = vpop.xlane.xlu0 %1658
        %v1660 = vmul.f32 %v1659, %v657
        %v1661 = vadd.f32 %v1660, 1e-06
        %v1662 = vrsqrt.pop %v1661
        %v1663 = vmul.f32 %v1662, %v1661
        %v1664 = vmul.f32 %v1663, %v1662
        %v1665 = vmul.f32 0.5, %v1664
        %v1666 = vsub.f32 1.5, %v1665
        %v1667 = vmul.f32 %v1662, %v1666
        %vm1668 = vweird.f32 %v1661
        %vm1669 = vweird.f32 %v1662
        %vm1670 = vmor %vm1668, %vm1669
        %v1671 = vsel %vm1670, %v1662, %v1667
        %v1672 = vmul.f32 %v1334, %v1671
        %v1674 = vperm.slane %v1335, 0
        %v1676 = vmul.f32 %v1672, %v1674
        %1677 = vmatpush.xpose.msra.mxu0 0.0
        %1678 = vmatpush.xpose.msra.mxu0 0.0
        %1679 = vmatpush.xpose.msra.mxu0 0.0
        %1680 = vmatpush.xpose.msra.mxu0 0.0
        %1681 = vmatpush.xpose.msra.mxu0 0.0
        %1682 = vmatpush.xpose.msra.mxu0 0.0
        %1683 = vmatpush.xpose.msra.mxu0 0.0
        %1684 = vmatpush.xpose.msra.mxu0 0.0
        %1685 = vmatpush.xpose.msra.mxu0 0.0
        %1686 = vmatpush.xpose.msra.mxu0 0.0
        %1687 = vmatpush.xpose.msra.mxu0 0.0
        %1688 = vmatpush.xpose.msra.mxu0 0.0
        %1689 = vmatpush.xpose.msra.mxu0 0.0
        %1690 = vmatpush.xpose.msra.mxu0 0.0
        %1691 = vmatpush.xpose.msra.mxu0 0.0
        %1692 = vmatpush.xpose.msra.mxu0 %v1336
        %1693 = vmatmul.f32.gmra.mxu0 %v1676
        %v1694 = vpop.f32.mrf.mxu0
        %v1695 = vadd.f32 0.0, %v1694
        %1696 = vdwg.mxu0
        %vm1697 = vcmask 31744
        %v1698 = vsel %vm1697, %v1695, -inf
        %1699 = vmax.xlane.f32.xlu0 %v1698
        %v1700 = vpop.xlane.xlu0 %1699
        %v1701 = vsub.f32 %v1695, %v1700
        %v1702 = vmul.f32 %v1701, 1.442695
        %v1703 = vpow.pop %v1702
        %v1704 = vsel %vm1697, %v1703, 0.0
        %1705 = vadd.xlane.f32.xlu0 %v1704
        %v1706 = vpop.xlane.xlu0 %1705
        %v1707 = vrcp.pop %v1706
        %v1708 = vmul.f32 %v1706, %v1707
        %v1709 = vsub.f32 1.0, %v1708
        %v1710 = vmul.f32 %v1707, %v1709
        %v1711 = vadd.f32 %v1707, %v1710
        %vm1712 = vweird.f32 %v1706
        %vm1713 = vweird.f32 %v1707
        %vm1714 = vmor %vm1712, %vm1713
        %v1715 = vsel %vm1714, %v1707, %v1711
        %v1716 = vand.u32 2147483647, %v1706
        %vm1717 = vcmp.eq.f32.partialorder %v1716, 8.507059e+37
        %v1718 = vand.u32 %v1706, 2147483648
        %v1719 = vor.u32 1.1754944e-38, %v1718
        %v1720 = vsel %vm1717, %v1719, %v1715
        %v1721 = vmul.f32 %v1703, %v1720
        %1723 = vset.pattern.permute.xlu0 0
        %1724 = vperm.xlu0 %1723, %v1721
        %v1725 = vpop.permute.xlu0 %1724
        %vm1727 = vcmp.gt.f32.partialorder %v1725, %v1721
        %vm1728 = vcmp.eq.f32.partialorder %v1725, %v1721
        %vm1729 = vcmp.gt.s32.totalorder %v990, 0
        %vm1730 = vmand %vm1728, %vm1729
        %vm1731 = vmor %vm1727, %vm1730
        %v1732 = vsel %vm1731, 1, 0
        %1733 = vset.pattern.permute.xlu0 1
        %1734 = vperm.xlu0 %1733, %v1721
        %v1735 = vpop.permute.xlu0 %1734
        %vm1737 = vcmp.gt.f32.partialorder %v1735, %v1721
        %vm1738 = vcmp.eq.f32.partialorder %v1735, %v1721
        %vm1739 = vcmp.gt.s32.totalorder %v990, 1
        %vm1740 = vmand %vm1738, %vm1739
        %vm1741 = vmor %vm1737, %vm1740
        %v1742 = vsel %vm1741, 1, 0
        %v1743 = vadd.s32 %v1732, %v1742
        %1744 = vset.pattern.permute.xlu0 2
        %1745 = vperm.xlu0 %1744, %v1721
        %v1746 = vpop.permute.xlu0 %1745
        %vm1748 = vcmp.gt.f32.partialorder %v1746, %v1721
        %vm1749 = vcmp.eq.f32.partialorder %v1746, %v1721
        %vm1750 = vcmp.gt.s32.totalorder %v990, 2
        %vm1751 = vmand %vm1749, %vm1750
        %vm1752 = vmor %vm1748, %vm1751
        %v1753 = vsel %vm1752, 1, 0
        %v1754 = vadd.s32 %v1743, %v1753
        %1755 = vset.pattern.permute.xlu0 3
        %1756 = vperm.xlu0 %1755, %v1721
        %v1757 = vpop.permute.xlu0 %1756
        %vm1759 = vcmp.gt.f32.partialorder %v1757, %v1721
        %vm1760 = vcmp.eq.f32.partialorder %v1757, %v1721
        %vm1761 = vcmp.gt.s32.totalorder %v990, 3
        %vm1762 = vmand %vm1760, %vm1761
        %vm1763 = vmor %vm1759, %vm1762
        %v1764 = vsel %vm1763, 1, 0
        %v1765 = vadd.s32 %v1754, %v1764
        %vm1766 = vcmp.lt.s32.totalorder %v1765, 2
        %v1767 = vsel %vm1766, %v1721, 0.0
        %v1768 = vsel %vm1697, %v1767, 0.0
        %1769 = vadd.xlane.f32.xlu0 %v1768
        %v1770 = vpop.xlane.xlu0 %1769
        %v1771 = vrcp.pop %v1770
        %v1772 = vmul.f32 %v1770, %v1771
        %v1773 = vsub.f32 1.0, %v1772
        %v1774 = vmul.f32 %v1771, %v1773
        %v1775 = vadd.f32 %v1771, %v1774
        %vm1776 = vweird.f32 %v1770
        %vm1777 = vweird.f32 %v1771
        %vm1778 = vmor %vm1776, %vm1777
        %v1779 = vsel %vm1778, %v1771, %v1775
        %v1780 = vand.u32 2147483647, %v1770
        %vm1781 = vcmp.eq.f32.partialorder %v1780, 8.507059e+37
        %v1782 = vand.u32 %v1770, 2147483648
        %v1783 = vor.u32 1.1754944e-38, %v1782
        %v1784 = vsel %vm1781, %v1783, %v1779
        %v1785 = vmul.f32 %v1767, %v1784
        %v1786 = vpack.c.bf16 %v1676, %v1676
        %v2043 = vunpack.c.l.b16 %v1337
        %v2044 = vunpack.c.l.b16 %v1338
        %v2045 = vunpack.c.l.b16 %v1339
        %v2046 = vunpack.c.l.b16 %v1340
        %v2047 = vunpack.c.l.b16 %v1341
        %v2048 = vunpack.c.l.b16 %v1342
        %v2049 = vunpack.c.l.b16 %v1343
        %v2050 = vunpack.c.l.b16 %v1344
        %v2051 = vunpack.c.l.b16 %v1345
        %v2052 = vunpack.c.l.b16 %v1346
        %v2053 = vunpack.c.l.b16 %v1347
        %v2054 = vunpack.c.l.b16 %v1348
        %v2055 = vunpack.c.l.b16 %v1349
        %v2056 = vunpack.c.l.b16 %v1350
        %v2057 = vunpack.c.l.b16 %v1351
        %v2058 = vunpack.c.l.b16 %v1352
        %v2059 = vunpack.c.l.b16 %v1353
        %v2060 = vunpack.c.l.b16 %v1354
        %v2061 = vunpack.c.l.b16 %v1355
        %v2062 = vunpack.c.l.b16 %v1356
        %v2063 = vunpack.c.l.b16 %v1357
        %v2064 = vunpack.c.l.b16 %v1358
        %v2065 = vunpack.c.l.b16 %v1359
        %v2066 = vunpack.c.l.b16 %v1360
        %v2067 = vunpack.c.l.b16 %v1361
        %v2068 = vunpack.c.l.b16 %v1362
        %v2069 = vunpack.c.l.b16 %v1363
        %v2070 = vunpack.c.l.b16 %v1364
        %v2071 = vunpack.c.l.b16 %v1365
        %v2072 = vunpack.c.l.b16 %v1366
        %v2073 = vunpack.c.l.b16 %v1367
        %v2074 = vunpack.c.l.b16 %v1368
        %v2075 = vunpack.c.l.b16 %v1369
        %v2076 = vunpack.c.l.b16 %v1370
        %v2077 = vunpack.c.l.b16 %v1371
        %v2078 = vunpack.c.l.b16 %v1372
        %v2079 = vunpack.c.l.b16 %v1373
        %v2080 = vunpack.c.l.b16 %v1374
        %v2081 = vunpack.c.l.b16 %v1375
        %v2082 = vunpack.c.l.b16 %v1376
        %v2083 = vunpack.c.l.b16 %v1377
        %v2084 = vunpack.c.l.b16 %v1378
        %v2085 = vunpack.c.l.b16 %v1379
        %v2086 = vunpack.c.l.b16 %v1380
        %v2087 = vunpack.c.l.b16 %v1381
        %v2088 = vunpack.c.l.b16 %v1382
        %v2089 = vunpack.c.l.b16 %v1383
        %v2090 = vunpack.c.l.b16 %v1384
        %v2091 = vunpack.c.l.b16 %v1385
        %v2092 = vunpack.c.l.b16 %v1386
        %v2093 = vunpack.c.l.b16 %v1387
        %v2094 = vunpack.c.l.b16 %v1388
        %v2095 = vunpack.c.l.b16 %v1389
        %v2096 = vunpack.c.l.b16 %v1390
        %v2097 = vunpack.c.l.b16 %v1391
        %v2098 = vunpack.c.l.b16 %v1392
        %v2099 = vunpack.c.l.b16 %v1393
        %v2100 = vunpack.c.l.b16 %v1394
        %v2101 = vunpack.c.l.b16 %v1395
        %v2102 = vunpack.c.l.b16 %v1396
        %v2103 = vunpack.c.l.b16 %v1397
        %v2104 = vunpack.c.l.b16 %v1398
        %v2105 = vunpack.c.l.b16 %v1399
        %v2106 = vunpack.c.l.b16 %v1400
        %v2107 = vunpack.c.l.b16 %v1401
        %v2108 = vunpack.c.l.b16 %v1402
        %v2109 = vunpack.c.l.b16 %v1403
        %v2110 = vunpack.c.l.b16 %v1404
        %v2111 = vunpack.c.l.b16 %v1405
        %v2112 = vunpack.c.l.b16 %v1406
        %v2113 = vunpack.c.l.b16 %v1407
        %v2114 = vunpack.c.l.b16 %v1408
        %v2115 = vunpack.c.l.b16 %v1409
        %v2116 = vunpack.c.l.b16 %v1410
        %v2117 = vunpack.c.l.b16 %v1411
        %v2118 = vunpack.c.l.b16 %v1412
        %v2119 = vunpack.c.l.b16 %v1413
        %v2120 = vunpack.c.l.b16 %v1414
        %v2121 = vunpack.c.l.b16 %v1415
        %v2122 = vunpack.c.l.b16 %v1416
        %v2123 = vunpack.c.l.b16 %v1417
        %v2124 = vunpack.c.l.b16 %v1418
        %v2125 = vunpack.c.l.b16 %v1419
        %v2126 = vunpack.c.l.b16 %v1420
        %v2127 = vunpack.c.l.b16 %v1421
        %v2128 = vunpack.c.l.b16 %v1422
        %v2129 = vunpack.c.l.b16 %v1423
        %v2130 = vunpack.c.l.b16 %v1424
        %v2131 = vunpack.c.l.b16 %v1425
        %v2132 = vunpack.c.l.b16 %v1426
        %v2133 = vunpack.c.l.b16 %v1427
        %v2134 = vunpack.c.l.b16 %v1428
        %v2135 = vunpack.c.l.b16 %v1429
        %v2136 = vunpack.c.l.b16 %v1430
        %v2137 = vunpack.c.l.b16 %v1431
        %v2138 = vunpack.c.l.b16 %v1432
        %v2139 = vunpack.c.l.b16 %v1433
        %v2140 = vunpack.c.l.b16 %v1434
        %v2141 = vunpack.c.l.b16 %v1435
        %v2142 = vunpack.c.l.b16 %v1436
        %v2143 = vunpack.c.l.b16 %v1437
        %v2144 = vunpack.c.l.b16 %v1438
        %v2145 = vunpack.c.l.b16 %v1439
        %v2146 = vunpack.c.l.b16 %v1440
        %v2147 = vunpack.c.l.b16 %v1441
        %v2148 = vunpack.c.l.b16 %v1442
        %v2149 = vunpack.c.l.b16 %v1443
        %v2150 = vunpack.c.l.b16 %v1444
        %v2151 = vunpack.c.l.b16 %v1445
        %v2152 = vunpack.c.l.b16 %v1446
        %v2153 = vunpack.c.l.b16 %v1447
        %v2154 = vunpack.c.l.b16 %v1448
        %v2155 = vunpack.c.l.b16 %v1449
        %v2156 = vunpack.c.l.b16 %v1450
        %v2157 = vunpack.c.l.b16 %v1451
        %v2158 = vunpack.c.l.b16 %v1452
        %v2159 = vunpack.c.l.b16 %v1453
        %v2160 = vunpack.c.l.b16 %v1454
        %v2161 = vunpack.c.l.b16 %v1455
        %v2162 = vunpack.c.l.b16 %v1456
        %v2163 = vunpack.c.l.b16 %v1457
        %v2164 = vunpack.c.l.b16 %v1458
        %v2165 = vunpack.c.l.b16 %v1459
        %v2166 = vunpack.c.l.b16 %v1460
        %v2167 = vunpack.c.l.b16 %v1461
        %v2168 = vunpack.c.l.b16 %v1462
        %v2169 = vunpack.c.l.b16 %v1463
        %v2170 = vunpack.c.l.b16 %v1464
        %v2171 = vunpack.c.l.b16 %v1465
        %v2172 = vunpack.c.l.b16 %v1466
        %v2173 = vunpack.c.l.b16 %v1467
        %v2174 = vunpack.c.l.b16 %v1468
        %v2175 = vunpack.c.l.b16 %v1469
        %v2176 = vunpack.c.l.b16 %v1470
        %v2177 = vunpack.c.l.b16 %v1471
        %v2178 = vunpack.c.l.b16 %v1472
        %v2179 = vunpack.c.l.b16 %v1473
        %v2180 = vunpack.c.l.b16 %v1474
        %v2181 = vunpack.c.l.b16 %v1475
        %v2182 = vunpack.c.l.b16 %v1476
        %v2183 = vunpack.c.l.b16 %v1477
        %v2184 = vunpack.c.l.b16 %v1478
        %v2185 = vunpack.c.l.b16 %v1479
        %v2186 = vunpack.c.l.b16 %v1480
        %v2187 = vunpack.c.l.b16 %v1481
        %v2188 = vunpack.c.l.b16 %v1482
        %v2189 = vunpack.c.l.b16 %v1483
        %v2190 = vunpack.c.l.b16 %v1484
        %v2191 = vunpack.c.l.b16 %v1485
        %v2192 = vunpack.c.l.b16 %v1486
        %v2193 = vunpack.c.l.b16 %v1487
        %v2194 = vunpack.c.l.b16 %v1488
        %v2195 = vunpack.c.l.b16 %v1489
        %v2196 = vunpack.c.l.b16 %v1490
        %v2197 = vunpack.c.l.b16 %v1491
        %v2198 = vunpack.c.l.b16 %v1492
        %v2199 = vunpack.c.l.b16 %v1493
        %v2200 = vunpack.c.l.b16 %v1494
        %v2201 = vunpack.c.l.b16 %v1495
        %v2202 = vunpack.c.l.b16 %v1496
        %v2203 = vunpack.c.l.b16 %v1497
        %v2204 = vunpack.c.l.b16 %v1498
        %v2205 = vunpack.c.l.b16 %v1499
        %v2206 = vunpack.c.l.b16 %v1500
        %v2207 = vunpack.c.l.b16 %v1501
        %v2208 = vunpack.c.l.b16 %v1502
        %v2209 = vunpack.c.l.b16 %v1503
        %v2210 = vunpack.c.l.b16 %v1504
        %v2211 = vunpack.c.l.b16 %v1505
        %v2212 = vunpack.c.l.b16 %v1506
        %v2213 = vunpack.c.l.b16 %v1507
        %v2214 = vunpack.c.l.b16 %v1508
        %v2215 = vunpack.c.l.b16 %v1509
        %v2216 = vunpack.c.l.b16 %v1510
        %v2217 = vunpack.c.l.b16 %v1511
        %v2218 = vunpack.c.l.b16 %v1512
        %v2219 = vunpack.c.l.b16 %v1513
        %v2220 = vunpack.c.l.b16 %v1514
        %v2221 = vunpack.c.l.b16 %v1515
        %v2222 = vunpack.c.l.b16 %v1516
        %v2223 = vunpack.c.l.b16 %v1517
        %v2224 = vunpack.c.l.b16 %v1518
        %v2225 = vunpack.c.l.b16 %v1519
        %v2226 = vunpack.c.l.b16 %v1520
        %v2227 = vunpack.c.l.b16 %v1521
        %v2228 = vunpack.c.l.b16 %v1522
        %v2229 = vunpack.c.l.b16 %v1523
        %v2230 = vunpack.c.l.b16 %v1524
        %v2231 = vunpack.c.l.b16 %v1525
        %v2232 = vunpack.c.l.b16 %v1526
        %v2233 = vunpack.c.l.b16 %v1527
        %v2234 = vunpack.c.l.b16 %v1528
        %v2235 = vunpack.c.l.b16 %v1529
        %v2236 = vunpack.c.l.b16 %v1530
        %v2237 = vunpack.c.l.b16 %v1531
        %v2238 = vunpack.c.l.b16 %v1532
        %v2239 = vunpack.c.l.b16 %v1533
        %v2240 = vunpack.c.l.b16 %v1534
        %v2241 = vunpack.c.l.b16 %v1535
        %v2242 = vunpack.c.l.b16 %v1536
        %v2243 = vunpack.c.l.b16 %v1537
        %v2244 = vunpack.c.l.b16 %v1538
        %v2245 = vunpack.c.l.b16 %v1539
        %v2246 = vunpack.c.l.b16 %v1540
        %v2247 = vunpack.c.l.b16 %v1541
        %v2248 = vunpack.c.l.b16 %v1542
        %v2249 = vunpack.c.l.b16 %v1543
        %v2250 = vunpack.c.l.b16 %v1544
        %v2251 = vunpack.c.l.b16 %v1545
        %v2252 = vunpack.c.l.b16 %v1546
        %v2253 = vunpack.c.l.b16 %v1547
        %v2254 = vunpack.c.l.b16 %v1548
        %v2255 = vunpack.c.l.b16 %v1549
        %v2256 = vunpack.c.l.b16 %v1550
        %v2257 = vunpack.c.l.b16 %v1551
        %v2258 = vunpack.c.l.b16 %v1552
        %v2259 = vunpack.c.l.b16 %v1553
        %v2260 = vunpack.c.l.b16 %v1554
        %v2261 = vunpack.c.l.b16 %v1555
        %v2262 = vunpack.c.l.b16 %v1556
        %v2263 = vunpack.c.l.b16 %v1557
        %v2264 = vunpack.c.l.b16 %v1558
        %v2265 = vunpack.c.l.b16 %v1559
        %v2266 = vunpack.c.l.b16 %v1560
        %v2267 = vunpack.c.l.b16 %v1561
        %v2268 = vunpack.c.l.b16 %v1562
        %v2269 = vunpack.c.l.b16 %v1563
        %v2270 = vunpack.c.l.b16 %v1564
        %v2271 = vunpack.c.l.b16 %v1565
        %v2272 = vunpack.c.l.b16 %v1566
        %v2273 = vunpack.c.l.b16 %v1567
        %v2274 = vunpack.c.l.b16 %v1568
        %v2275 = vunpack.c.l.b16 %v1569
        %v2276 = vunpack.c.l.b16 %v1570
        %v2277 = vunpack.c.l.b16 %v1571
        %v2278 = vunpack.c.l.b16 %v1572
        %v2279 = vunpack.c.l.b16 %v1573
        %v2280 = vunpack.c.l.b16 %v1574
        %v2281 = vunpack.c.l.b16 %v1575
        %v2282 = vunpack.c.l.b16 %v1576
        %v2283 = vunpack.c.l.b16 %v1577
        %v2284 = vunpack.c.l.b16 %v1578
        %v2285 = vunpack.c.l.b16 %v1579
        %v2286 = vunpack.c.l.b16 %v1580
        %v2287 = vunpack.c.l.b16 %v1581
        %v2288 = vunpack.c.l.b16 %v1582
        %v2289 = vunpack.c.l.b16 %v1583
        %v2290 = vunpack.c.l.b16 %v1584
        %v2291 = vunpack.c.l.b16 %v1585
        %v2292 = vunpack.c.l.b16 %v1586
        %v2293 = vunpack.c.l.b16 %v1587
        %v2294 = vunpack.c.l.b16 %v1588
        %v2295 = vunpack.c.l.b16 %v1589
        %v2296 = vunpack.c.l.b16 %v1590
        %v2297 = vunpack.c.l.b16 %v1591
        %v2298 = vunpack.c.l.b16 %v1592
        %v2299 = vpack.c.b16 %v2044, %v2043
        %v2300 = vpack.c.b16 %v2046, %v2045
        %v2301 = vpack.c.b16 %v2048, %v2047
        %v2302 = vpack.c.b16 %v2050, %v2049
        %v2303 = vpack.c.b16 %v2052, %v2051
        %v2304 = vpack.c.b16 %v2054, %v2053
        %v2305 = vpack.c.b16 %v2056, %v2055
        %v2306 = vpack.c.b16 %v2058, %v2057
        %v2307 = vpack.c.b16 %v2060, %v2059
        %v2308 = vpack.c.b16 %v2062, %v2061
        %v2309 = vpack.c.b16 %v2064, %v2063
        %v2310 = vpack.c.b16 %v2066, %v2065
        %v2311 = vpack.c.b16 %v2068, %v2067
        %v2312 = vpack.c.b16 %v2070, %v2069
        %v2313 = vpack.c.b16 %v2072, %v2071
        %v2314 = vpack.c.b16 %v2074, %v2073
        %v2315 = vpack.c.b16 %v2076, %v2075
        %v2316 = vpack.c.b16 %v2078, %v2077
        %v2317 = vpack.c.b16 %v2080, %v2079
        %v2318 = vpack.c.b16 %v2082, %v2081
        %v2319 = vpack.c.b16 %v2084, %v2083
        %v2320 = vpack.c.b16 %v2086, %v2085
        %v2321 = vpack.c.b16 %v2088, %v2087
        %v2322 = vpack.c.b16 %v2090, %v2089
        %v2323 = vpack.c.b16 %v2092, %v2091
        %v2324 = vpack.c.b16 %v2094, %v2093
        %v2325 = vpack.c.b16 %v2096, %v2095
        %v2326 = vpack.c.b16 %v2098, %v2097
        %v2327 = vpack.c.b16 %v2100, %v2099
        %v2328 = vpack.c.b16 %v2102, %v2101
        %v2329 = vpack.c.b16 %v2104, %v2103
        %v2330 = vpack.c.b16 %v2106, %v2105
        %v2331 = vpack.c.b16 %v2108, %v2107
        %v2332 = vpack.c.b16 %v2110, %v2109
        %v2333 = vpack.c.b16 %v2112, %v2111
        %v2334 = vpack.c.b16 %v2114, %v2113
        %v2335 = vpack.c.b16 %v2116, %v2115
        %v2336 = vpack.c.b16 %v2118, %v2117
        %v2337 = vpack.c.b16 %v2120, %v2119
        %v2338 = vpack.c.b16 %v2122, %v2121
        %v2339 = vpack.c.b16 %v2124, %v2123
        %v2340 = vpack.c.b16 %v2126, %v2125
        %v2341 = vpack.c.b16 %v2128, %v2127
        %v2342 = vpack.c.b16 %v2130, %v2129
        %v2343 = vpack.c.b16 %v2132, %v2131
        %v2344 = vpack.c.b16 %v2134, %v2133
        %v2345 = vpack.c.b16 %v2136, %v2135
        %v2346 = vpack.c.b16 %v2138, %v2137
        %v2347 = vpack.c.b16 %v2140, %v2139
        %v2348 = vpack.c.b16 %v2142, %v2141
        %v2349 = vpack.c.b16 %v2144, %v2143
        %v2350 = vpack.c.b16 %v2146, %v2145
        %v2351 = vpack.c.b16 %v2148, %v2147
        %v2352 = vpack.c.b16 %v2150, %v2149
        %v2353 = vpack.c.b16 %v2152, %v2151
        %v2354 = vpack.c.b16 %v2154, %v2153
        %v2355 = vpack.c.b16 %v2156, %v2155
        %v2356 = vpack.c.b16 %v2158, %v2157
        %v2357 = vpack.c.b16 %v2160, %v2159
        %v2358 = vpack.c.b16 %v2162, %v2161
        %v2359 = vpack.c.b16 %v2164, %v2163
        %v2360 = vpack.c.b16 %v2166, %v2165
        %v2361 = vpack.c.b16 %v2168, %v2167
        %v2362 = vpack.c.b16 %v2170, %v2169
        %v2363 = vpack.c.b16 %v2172, %v2171
        %v2364 = vpack.c.b16 %v2174, %v2173
        %v2365 = vpack.c.b16 %v2176, %v2175
        %v2366 = vpack.c.b16 %v2178, %v2177
        %v2367 = vpack.c.b16 %v2180, %v2179
        %v2368 = vpack.c.b16 %v2182, %v2181
        %v2369 = vpack.c.b16 %v2184, %v2183
        %v2370 = vpack.c.b16 %v2186, %v2185
        %v2371 = vpack.c.b16 %v2188, %v2187
        %v2372 = vpack.c.b16 %v2190, %v2189
        %v2373 = vpack.c.b16 %v2192, %v2191
        %v2374 = vpack.c.b16 %v2194, %v2193
        %v2375 = vpack.c.b16 %v2196, %v2195
        %v2376 = vpack.c.b16 %v2198, %v2197
        %v2377 = vpack.c.b16 %v2200, %v2199
        %v2378 = vpack.c.b16 %v2202, %v2201
        %v2379 = vpack.c.b16 %v2204, %v2203
        %v2380 = vpack.c.b16 %v2206, %v2205
        %v2381 = vpack.c.b16 %v2208, %v2207
        %v2382 = vpack.c.b16 %v2210, %v2209
        %v2383 = vpack.c.b16 %v2212, %v2211
        %v2384 = vpack.c.b16 %v2214, %v2213
        %v2385 = vpack.c.b16 %v2216, %v2215
        %v2386 = vpack.c.b16 %v2218, %v2217
        %v2387 = vpack.c.b16 %v2220, %v2219
        %v2388 = vpack.c.b16 %v2222, %v2221
        %v2389 = vpack.c.b16 %v2224, %v2223
        %v2390 = vpack.c.b16 %v2226, %v2225
        %v2391 = vpack.c.b16 %v2228, %v2227
        %v2392 = vpack.c.b16 %v2230, %v2229
        %v2393 = vpack.c.b16 %v2232, %v2231
        %v2394 = vpack.c.b16 %v2234, %v2233
        %v2395 = vpack.c.b16 %v2236, %v2235
        %v2396 = vpack.c.b16 %v2238, %v2237
        %v2397 = vpack.c.b16 %v2240, %v2239
        %v2398 = vpack.c.b16 %v2242, %v2241
        %v2399 = vpack.c.b16 %v2244, %v2243
        %v2400 = vpack.c.b16 %v2246, %v2245
        %v2401 = vpack.c.b16 %v2248, %v2247
        %v2402 = vpack.c.b16 %v2250, %v2249
        %v2403 = vpack.c.b16 %v2252, %v2251
        %v2404 = vpack.c.b16 %v2254, %v2253
        %v2405 = vpack.c.b16 %v2256, %v2255
        %v2406 = vpack.c.b16 %v2258, %v2257
        %v2407 = vpack.c.b16 %v2260, %v2259
        %v2408 = vpack.c.b16 %v2262, %v2261
        %v2409 = vpack.c.b16 %v2264, %v2263
        %v2410 = vpack.c.b16 %v2266, %v2265
        %v2411 = vpack.c.b16 %v2268, %v2267
        %v2412 = vpack.c.b16 %v2270, %v2269
        %v2413 = vpack.c.b16 %v2272, %v2271
        %v2414 = vpack.c.b16 %v2274, %v2273
        %v2415 = vpack.c.b16 %v2276, %v2275
        %v2416 = vpack.c.b16 %v2278, %v2277
        %v2417 = vpack.c.b16 %v2280, %v2279
        %v2418 = vpack.c.b16 %v2282, %v2281
        %v2419 = vpack.c.b16 %v2284, %v2283
        %v2420 = vpack.c.b16 %v2286, %v2285
        %v2421 = vpack.c.b16 %v2288, %v2287
        %v2422 = vpack.c.b16 %v2290, %v2289
        %v2423 = vpack.c.b16 %v2292, %v2291
        %v2424 = vpack.c.b16 %v2294, %v2293
        %v2425 = vpack.c.b16 %v2296, %v2295
        %v2426 = vpack.c.b16 %v2298, %v2297
        %2555 = vmatpush.bf16.xpose.msra.mxu0 %v2306
        %2556 = vmatpush.bf16.xpose.msra.mxu0 %v2305
        %2557 = vmatpush.bf16.xpose.msra.mxu0 %v2304
        %2558 = vmatpush.bf16.xpose.msra.mxu0 %v2303
        %2559 = vmatpush.bf16.xpose.msra.mxu0 %v2302
        %2560 = vmatpush.bf16.xpose.msra.mxu0 %v2301
        %2561 = vmatpush.bf16.xpose.msra.mxu0 %v2300
        %2562 = vmatpush.bf16.xpose.msra.mxu0 %v2299
        %2563 = vmatmul.bf16.gmra.mxu0 %v1786
        %v2564 = vpop.f32.mrf.mxu0
        %v2565 = vadd.f32 0.0, %v2564
        %v2566 = vpop.f32.mrf.mxu0
        %2567 = vdwg.mxu0
        %2568 = vmatpush.bf16.xpose.msra.mxu0 %v2314
        %2569 = vmatpush.bf16.xpose.msra.mxu0 %v2313
        %2570 = vmatpush.bf16.xpose.msra.mxu0 %v2312
        %2571 = vmatpush.bf16.xpose.msra.mxu0 %v2311
        %2572 = vmatpush.bf16.xpose.msra.mxu0 %v2310
        %2573 = vmatpush.bf16.xpose.msra.mxu0 %v2309
        %2574 = vmatpush.bf16.xpose.msra.mxu0 %v2308
        %2575 = vmatpush.bf16.xpose.msra.mxu0 %v2307
        %2576 = vmatmul.bf16.gmra.mxu0 %v1786
        %v2577 = vpop.f32.mrf.mxu0
        %v2578 = vadd.f32 0.0, %v2577
        %v2579 = vpop.f32.mrf.mxu0
        %2580 = vdwg.mxu0
        %2581 = vmatpush.bf16.xpose.msra.mxu0 %v2322
        %2582 = vmatpush.bf16.xpose.msra.mxu0 %v2321
        %2583 = vmatpush.bf16.xpose.msra.mxu0 %v2320
        %2584 = vmatpush.bf16.xpose.msra.mxu0 %v2319
        %2585 = vmatpush.bf16.xpose.msra.mxu0 %v2318
        %2586 = vmatpush.bf16.xpose.msra.mxu0 %v2317
        %2587 = vmatpush.bf16.xpose.msra.mxu0 %v2316
        %2588 = vmatpush.bf16.xpose.msra.mxu0 %v2315
        %2589 = vmatmul.bf16.gmra.mxu0 %v1786
        %v2590 = vpop.f32.mrf.mxu0
        %v2591 = vadd.f32 0.0, %v2590
        %v2592 = vpop.f32.mrf.mxu0
        %2593 = vdwg.mxu0
        %2594 = vmatpush.bf16.xpose.msra.mxu0 %v2330
        %2595 = vmatpush.bf16.xpose.msra.mxu0 %v2329
        %2596 = vmatpush.bf16.xpose.msra.mxu0 %v2328
        %2597 = vmatpush.bf16.xpose.msra.mxu0 %v2327
        %2598 = vmatpush.bf16.xpose.msra.mxu0 %v2326
        %2599 = vmatpush.bf16.xpose.msra.mxu0 %v2325
        %2600 = vmatpush.bf16.xpose.msra.mxu0 %v2324
        %2601 = vmatpush.bf16.xpose.msra.mxu0 %v2323
        %2602 = vmatmul.bf16.gmra.mxu0 %v1786
        %v2603 = vpop.f32.mrf.mxu0
        %v2604 = vadd.f32 0.0, %v2603
        %v2605 = vpop.f32.mrf.mxu0
        %2606 = vdwg.mxu0
        %2607 = vmatpush.bf16.xpose.msra.mxu0 %v2338
        %2608 = vmatpush.bf16.xpose.msra.mxu0 %v2337
        %2609 = vmatpush.bf16.xpose.msra.mxu0 %v2336
        %2610 = vmatpush.bf16.xpose.msra.mxu0 %v2335
        %2611 = vmatpush.bf16.xpose.msra.mxu0 %v2334
        %2612 = vmatpush.bf16.xpose.msra.mxu0 %v2333
        %2613 = vmatpush.bf16.xpose.msra.mxu0 %v2332
        %2614 = vmatpush.bf16.xpose.msra.mxu0 %v2331
        %2615 = vmatmul.bf16.gmra.mxu0 %v1786
        %v2616 = vpop.f32.mrf.mxu0
        %v2617 = vadd.f32 0.0, %v2616
        %v2618 = vpop.f32.mrf.mxu0
        %2619 = vdwg.mxu0
        %2620 = vmatpush.bf16.xpose.msra.mxu0 %v2346
        %2621 = vmatpush.bf16.xpose.msra.mxu0 %v2345
        %2622 = vmatpush.bf16.xpose.msra.mxu0 %v2344
        %2623 = vmatpush.bf16.xpose.msra.mxu0 %v2343
        %2624 = vmatpush.bf16.xpose.msra.mxu0 %v2342
        %2625 = vmatpush.bf16.xpose.msra.mxu0 %v2341
        %2626 = vmatpush.bf16.xpose.msra.mxu0 %v2340
        %2627 = vmatpush.bf16.xpose.msra.mxu0 %v2339
        %2628 = vmatmul.bf16.gmra.mxu0 %v1786
        %v2629 = vpop.f32.mrf.mxu0
        %v2630 = vadd.f32 0.0, %v2629
        %v2631 = vpop.f32.mrf.mxu0
        %2632 = vdwg.mxu0
        %2633 = vmatpush.bf16.xpose.msra.mxu0 %v2354
        %2634 = vmatpush.bf16.xpose.msra.mxu0 %v2353
        %2635 = vmatpush.bf16.xpose.msra.mxu0 %v2352
        %2636 = vmatpush.bf16.xpose.msra.mxu0 %v2351
        %2637 = vmatpush.bf16.xpose.msra.mxu0 %v2350
        %2638 = vmatpush.bf16.xpose.msra.mxu0 %v2349
        %2639 = vmatpush.bf16.xpose.msra.mxu0 %v2348
        %2640 = vmatpush.bf16.xpose.msra.mxu0 %v2347
        %2641 = vmatmul.bf16.gmra.mxu0 %v1786
        %v2642 = vpop.f32.mrf.mxu0
        %v2643 = vadd.f32 0.0, %v2642
        %v2644 = vpop.f32.mrf.mxu0
        %2645 = vdwg.mxu0
        %2646 = vmatpush.bf16.xpose.msra.mxu0 %v2362
        %2647 = vmatpush.bf16.xpose.msra.mxu0 %v2361
        %2648 = vmatpush.bf16.xpose.msra.mxu0 %v2360
        %2649 = vmatpush.bf16.xpose.msra.mxu0 %v2359
        %2650 = vmatpush.bf16.xpose.msra.mxu0 %v2358
        %2651 = vmatpush.bf16.xpose.msra.mxu0 %v2357
        %2652 = vmatpush.bf16.xpose.msra.mxu0 %v2356
        %2653 = vmatpush.bf16.xpose.msra.mxu0 %v2355
        %2654 = vmatmul.bf16.gmra.mxu0 %v1786
        %v2655 = vpop.f32.mrf.mxu0
        %v2656 = vadd.f32 0.0, %v2655
        %v2657 = vpop.f32.mrf.mxu0
        %2658 = vdwg.mxu0
        %2659 = vmatpush.bf16.xpose.msra.mxu0 %v2370
        %2660 = vmatpush.bf16.xpose.msra.mxu0 %v2369
        %2661 = vmatpush.bf16.xpose.msra.mxu0 %v2368
        %2662 = vmatpush.bf16.xpose.msra.mxu0 %v2367
        %2663 = vmatpush.bf16.xpose.msra.mxu0 %v2366
        %2664 = vmatpush.bf16.xpose.msra.mxu0 %v2365
        %2665 = vmatpush.bf16.xpose.msra.mxu0 %v2364
        %2666 = vmatpush.bf16.xpose.msra.mxu0 %v2363
        %2667 = vmatmul.bf16.gmra.mxu0 %v1786
        %v2668 = vpop.f32.mrf.mxu0
        %v2669 = vadd.f32 0.0, %v2668
        %v2670 = vpop.f32.mrf.mxu0
        %2671 = vdwg.mxu0
        %2672 = vmatpush.bf16.xpose.msra.mxu0 %v2378
        %2673 = vmatpush.bf16.xpose.msra.mxu0 %v2377
        %2674 = vmatpush.bf16.xpose.msra.mxu0 %v2376
        %2675 = vmatpush.bf16.xpose.msra.mxu0 %v2375
        %2676 = vmatpush.bf16.xpose.msra.mxu0 %v2374
        %2677 = vmatpush.bf16.xpose.msra.mxu0 %v2373
        %2678 = vmatpush.bf16.xpose.msra.mxu0 %v2372
        %2679 = vmatpush.bf16.xpose.msra.mxu0 %v2371
        %2680 = vmatmul.bf16.gmra.mxu0 %v1786
        %v2681 = vpop.f32.mrf.mxu0
        %v2682 = vadd.f32 0.0, %v2681
        %v2683 = vpop.f32.mrf.mxu0
        %2684 = vdwg.mxu0
        %2685 = vmatpush.bf16.xpose.msra.mxu0 %v2386
        %2686 = vmatpush.bf16.xpose.msra.mxu0 %v2385
        %2687 = vmatpush.bf16.xpose.msra.mxu0 %v2384
        %2688 = vmatpush.bf16.xpose.msra.mxu0 %v2383
        %2689 = vmatpush.bf16.xpose.msra.mxu0 %v2382
        %2690 = vmatpush.bf16.xpose.msra.mxu0 %v2381
        %2691 = vmatpush.bf16.xpose.msra.mxu0 %v2380
        %2692 = vmatpush.bf16.xpose.msra.mxu0 %v2379
        %2693 = vmatmul.bf16.gmra.mxu0 %v1786
        %v2694 = vpop.f32.mrf.mxu0
        %v2695 = vadd.f32 0.0, %v2694
        %v2696 = vpop.f32.mrf.mxu0
        %2697 = vdwg.mxu0
        %2698 = vmatpush.bf16.xpose.msra.mxu0 %v2394
        %2699 = vmatpush.bf16.xpose.msra.mxu0 %v2393
        %2700 = vmatpush.bf16.xpose.msra.mxu0 %v2392
        %2701 = vmatpush.bf16.xpose.msra.mxu0 %v2391
        %2702 = vmatpush.bf16.xpose.msra.mxu0 %v2390
        %2703 = vmatpush.bf16.xpose.msra.mxu0 %v2389
        %2704 = vmatpush.bf16.xpose.msra.mxu0 %v2388
        %2705 = vmatpush.bf16.xpose.msra.mxu0 %v2387
        %2706 = vmatmul.bf16.gmra.mxu0 %v1786
        %v2707 = vpop.f32.mrf.mxu0
        %v2708 = vadd.f32 0.0, %v2707
        %v2709 = vpop.f32.mrf.mxu0
        %2710 = vdwg.mxu0
        %2711 = vmatpush.bf16.xpose.msra.mxu0 %v2402
        %2712 = vmatpush.bf16.xpose.msra.mxu0 %v2401
        %2713 = vmatpush.bf16.xpose.msra.mxu0 %v2400
        %2714 = vmatpush.bf16.xpose.msra.mxu0 %v2399
        %2715 = vmatpush.bf16.xpose.msra.mxu0 %v2398
        %2716 = vmatpush.bf16.xpose.msra.mxu0 %v2397
        %2717 = vmatpush.bf16.xpose.msra.mxu0 %v2396
        %2718 = vmatpush.bf16.xpose.msra.mxu0 %v2395
        %2719 = vmatmul.bf16.gmra.mxu0 %v1786
        %v2720 = vpop.f32.mrf.mxu0
        %v2721 = vadd.f32 0.0, %v2720
        %v2722 = vpop.f32.mrf.mxu0
        %2723 = vdwg.mxu0
        %2724 = vmatpush.bf16.xpose.msra.mxu0 %v2410
        %2725 = vmatpush.bf16.xpose.msra.mxu0 %v2409
        %2726 = vmatpush.bf16.xpose.msra.mxu0 %v2408
        %2727 = vmatpush.bf16.xpose.msra.mxu0 %v2407
        %2728 = vmatpush.bf16.xpose.msra.mxu0 %v2406
        %2729 = vmatpush.bf16.xpose.msra.mxu0 %v2405
        %2730 = vmatpush.bf16.xpose.msra.mxu0 %v2404
        %2731 = vmatpush.bf16.xpose.msra.mxu0 %v2403
        %2732 = vmatmul.bf16.gmra.mxu0 %v1786
        %v2733 = vpop.f32.mrf.mxu0
        %v2734 = vadd.f32 0.0, %v2733
        %v2735 = vpop.f32.mrf.mxu0
        %2736 = vdwg.mxu0
        %2737 = vmatpush.bf16.xpose.msra.mxu0 %v2418
        %2738 = vmatpush.bf16.xpose.msra.mxu0 %v2417
        %2739 = vmatpush.bf16.xpose.msra.mxu0 %v2416
        %2740 = vmatpush.bf16.xpose.msra.mxu0 %v2415
        %2741 = vmatpush.bf16.xpose.msra.mxu0 %v2414
        %2742 = vmatpush.bf16.xpose.msra.mxu0 %v2413
        %2743 = vmatpush.bf16.xpose.msra.mxu0 %v2412
        %2744 = vmatpush.bf16.xpose.msra.mxu0 %v2411
        %2745 = vmatmul.bf16.gmra.mxu0 %v1786
        %v2746 = vpop.f32.mrf.mxu0
        %v2747 = vadd.f32 0.0, %v2746
        %v2748 = vpop.f32.mrf.mxu0
        %2749 = vdwg.mxu0
        %2750 = vmatpush.bf16.xpose.msra.mxu0 %v2426
        %2751 = vmatpush.bf16.xpose.msra.mxu0 %v2425
        %2752 = vmatpush.bf16.xpose.msra.mxu0 %v2424
        %2753 = vmatpush.bf16.xpose.msra.mxu0 %v2423
        %2754 = vmatpush.bf16.xpose.msra.mxu0 %v2422
        %2755 = vmatpush.bf16.xpose.msra.mxu0 %v2421
        %2756 = vmatpush.bf16.xpose.msra.mxu0 %v2420
        %2757 = vmatpush.bf16.xpose.msra.mxu0 %v2419
        %2758 = vmatmul.bf16.gmra.mxu0 %v1786
        %v2759 = vpop.f32.mrf.mxu0
        %v2760 = vadd.f32 0.0, %v2759
        %v2761 = vpop.f32.mrf.mxu0
        %2762 = vdwg.mxu0
        %v2763 = vxor.u32 %v2565, 2147483648
        %v2764 = vxor.u32 %v2578, 2147483648
        %v2765 = vmul.f32 %v2763, 1.442695
        %v2766 = vpow.pop %v2765
        %v2767 = vmul.f32 %v2764, 1.442695
        %v2768 = vpow.pop %v2767
        %v2769 = vadd.f32 %v2766, 1.0
        %v2770 = vadd.f32 %v2768, 1.0
        %v2771 = vrcp.pop %v2769
        %v2772 = vmul.f32 %v2769, %v2771
        %v2773 = vsub.f32 1.0, %v2772
        %v2774 = vmul.f32 %v2771, %v2773
        %v2775 = vadd.f32 %v2771, %v2774
        %vm2776 = vweird.f32 %v2769
        %vm2777 = vweird.f32 %v2771
        %vm2778 = vmor %vm2776, %vm2777
        %v2779 = vsel %vm2778, %v2771, %v2775
        %v2780 = vand.u32 2147483647, %v2769
        %vm2781 = vcmp.eq.f32.partialorder %v2780, 8.507059e+37
        %v2782 = vand.u32 %v2769, 2147483648
        %v2783 = vor.u32 1.1754944e-38, %v2782
        %v2784 = vsel %vm2781, %v2783, %v2779
        %v2785 = vmul.f32 1.0, %v2784
        %v2786 = vrcp.pop %v2770
        %v2787 = vmul.f32 %v2770, %v2786
        %v2788 = vsub.f32 1.0, %v2787
        %v2789 = vmul.f32 %v2786, %v2788
        %v2790 = vadd.f32 %v2786, %v2789
        %vm2791 = vweird.f32 %v2770
        %vm2792 = vweird.f32 %v2786
        %vm2793 = vmor %vm2791, %vm2792
        %v2794 = vsel %vm2793, %v2786, %v2790
        %v2795 = vand.u32 2147483647, %v2770
        %vm2796 = vcmp.eq.f32.partialorder %v2795, 8.507059e+37
        %v2797 = vand.u32 %v2770, 2147483648
        %v2798 = vor.u32 1.1754944e-38, %v2797
        %v2799 = vsel %vm2796, %v2798, %v2794
        %v2800 = vmul.f32 1.0, %v2799
        %v2801 = vmul.f32 %v2565, %v2785
        %v2802 = vmul.f32 %v2578, %v2800
        %v2803 = vmul.f32 %v2801, %v2591
        %v2804 = vmul.f32 %v2802, %v2604
        %2806 = vset.pattern.permute.xlu0 0
        %2807 = vperm.xlu0 %2806, %v1785
        %v2808 = vpop.permute.xlu0 %2807
        %v2810 = vmul.f32 %v2803, %v2808
        %v2811 = vmul.f32 %v2804, %v2808
        %v2812 = vxor.u32 %v2617, 2147483648
        %v2813 = vxor.u32 %v2630, 2147483648
        %v2814 = vmul.f32 %v2812, 1.442695
        %v2815 = vpow.pop %v2814
        %v2816 = vmul.f32 %v2813, 1.442695
        %v2817 = vpow.pop %v2816
        %v2818 = vadd.f32 %v2815, 1.0
        %v2819 = vadd.f32 %v2817, 1.0
        %v2820 = vrcp.pop %v2818
        %v2821 = vmul.f32 %v2818, %v2820
        %v2822 = vsub.f32 1.0, %v2821
        %v2823 = vmul.f32 %v2820, %v2822
        %v2824 = vadd.f32 %v2820, %v2823
        %vm2825 = vweird.f32 %v2818
        %vm2826 = vweird.f32 %v2820
        %vm2827 = vmor %vm2825, %vm2826
        %v2828 = vsel %vm2827, %v2820, %v2824
        %v2829 = vand.u32 2147483647, %v2818
        %vm2830 = vcmp.eq.f32.partialorder %v2829, 8.507059e+37
        %v2831 = vand.u32 %v2818, 2147483648
        %v2832 = vor.u32 1.1754944e-38, %v2831
        %v2833 = vsel %vm2830, %v2832, %v2828
        %v2834 = vmul.f32 1.0, %v2833
        %v2835 = vrcp.pop %v2819
        %v2836 = vmul.f32 %v2819, %v2835
        %v2837 = vsub.f32 1.0, %v2836
        %v2838 = vmul.f32 %v2835, %v2837
        %v2839 = vadd.f32 %v2835, %v2838
        %vm2840 = vweird.f32 %v2819
        %vm2841 = vweird.f32 %v2835
        %vm2842 = vmor %vm2840, %vm2841
        %v2843 = vsel %vm2842, %v2835, %v2839
        %v2844 = vand.u32 2147483647, %v2819
        %vm2845 = vcmp.eq.f32.partialorder %v2844, 8.507059e+37
        %v2846 = vand.u32 %v2819, 2147483648
        %v2847 = vor.u32 1.1754944e-38, %v2846
        %v2848 = vsel %vm2845, %v2847, %v2843
        %v2849 = vmul.f32 1.0, %v2848
        %v2850 = vmul.f32 %v2617, %v2834
        %v2851 = vmul.f32 %v2630, %v2849
        %v2852 = vmul.f32 %v2850, %v2643
        %v2853 = vmul.f32 %v2851, %v2656
        %2854 = vset.pattern.permute.xlu0 1
        %2855 = vperm.xlu0 %2854, %v1785
        %v2856 = vpop.permute.xlu0 %2855
        %v2858 = vmul.f32 %v2852, %v2856
        %v2859 = vmul.f32 %v2853, %v2856
        %v2860 = vxor.u32 %v2669, 2147483648
        %v2861 = vxor.u32 %v2682, 2147483648
        %v2862 = vmul.f32 %v2860, 1.442695
        %v2863 = vpow.pop %v2862
        %v2864 = vmul.f32 %v2861, 1.442695
        %v2865 = vpow.pop %v2864
        %v2866 = vadd.f32 %v2863, 1.0
        %v2867 = vadd.f32 %v2865, 1.0
        %v2868 = vrcp.pop %v2866
        %v2869 = vmul.f32 %v2866, %v2868
        %v2870 = vsub.f32 1.0, %v2869
        %v2871 = vmul.f32 %v2868, %v2870
        %v2872 = vadd.f32 %v2868, %v2871
        %vm2873 = vweird.f32 %v2866
        %vm2874 = vweird.f32 %v2868
        %vm2875 = vmor %vm2873, %vm2874
        %v2876 = vsel %vm2875, %v2868, %v2872
        %v2877 = vand.u32 2147483647, %v2866
        %vm2878 = vcmp.eq.f32.partialorder %v2877, 8.507059e+37
        %v2879 = vand.u32 %v2866, 2147483648
        %v2880 = vor.u32 1.1754944e-38, %v2879
        %v2881 = vsel %vm2878, %v2880, %v2876
        %v2882 = vmul.f32 1.0, %v2881
        %v2883 = vrcp.pop %v2867
        %v2884 = vmul.f32 %v2867, %v2883
        %v2885 = vsub.f32 1.0, %v2884
        %v2886 = vmul.f32 %v2883, %v2885
        %v2887 = vadd.f32 %v2883, %v2886
        %vm2888 = vweird.f32 %v2867
        %vm2889 = vweird.f32 %v2883
        %vm2890 = vmor %vm2888, %vm2889
        %v2891 = vsel %vm2890, %v2883, %v2887
        %v2892 = vand.u32 2147483647, %v2867
        %vm2893 = vcmp.eq.f32.partialorder %v2892, 8.507059e+37
        %v2894 = vand.u32 %v2867, 2147483648
        %v2895 = vor.u32 1.1754944e-38, %v2894
        %v2896 = vsel %vm2893, %v2895, %v2891
        %v2897 = vmul.f32 1.0, %v2896
        %v2898 = vmul.f32 %v2669, %v2882
        %v2899 = vmul.f32 %v2682, %v2897
        %v2900 = vmul.f32 %v2898, %v2695
        %v2901 = vmul.f32 %v2899, %v2708
        %2902 = vset.pattern.permute.xlu0 2
        %2903 = vperm.xlu0 %2902, %v1785
        %v2904 = vpop.permute.xlu0 %2903
        %v2906 = vmul.f32 %v2900, %v2904
        %v2907 = vmul.f32 %v2901, %v2904
        %v2908 = vxor.u32 %v2721, 2147483648
        %v2909 = vxor.u32 %v2734, 2147483648
        %v2910 = vmul.f32 %v2908, 1.442695
        %v2911 = vpow.pop %v2910
        %v2912 = vmul.f32 %v2909, 1.442695
        %v2913 = vpow.pop %v2912
        %v2914 = vadd.f32 %v2911, 1.0
        %v2915 = vadd.f32 %v2913, 1.0
        %v2916 = vrcp.pop %v2914
        %v2917 = vmul.f32 %v2914, %v2916
        %v2918 = vsub.f32 1.0, %v2917
        %v2919 = vmul.f32 %v2916, %v2918
        %v2920 = vadd.f32 %v2916, %v2919
        %vm2921 = vweird.f32 %v2914
        %vm2922 = vweird.f32 %v2916
        %vm2923 = vmor %vm2921, %vm2922
        %v2924 = vsel %vm2923, %v2916, %v2920
        %v2925 = vand.u32 2147483647, %v2914
        %vm2926 = vcmp.eq.f32.partialorder %v2925, 8.507059e+37
        %v2927 = vand.u32 %v2914, 2147483648
        %v2928 = vor.u32 1.1754944e-38, %v2927
        %v2929 = vsel %vm2926, %v2928, %v2924
        %v2930 = vmul.f32 1.0, %v2929
        %v2931 = vrcp.pop %v2915
        %v2932 = vmul.f32 %v2915, %v2931
        %v2933 = vsub.f32 1.0, %v2932
        %v2934 = vmul.f32 %v2931, %v2933
        %v2935 = vadd.f32 %v2931, %v2934
        %vm2936 = vweird.f32 %v2915
        %vm2937 = vweird.f32 %v2931
        %vm2938 = vmor %vm2936, %vm2937
        %v2939 = vsel %vm2938, %v2931, %v2935
        %v2940 = vand.u32 2147483647, %v2915
        %vm2941 = vcmp.eq.f32.partialorder %v2940, 8.507059e+37
        %v2942 = vand.u32 %v2915, 2147483648
        %v2943 = vor.u32 1.1754944e-38, %v2942
        %v2944 = vsel %vm2941, %v2943, %v2939
        %v2945 = vmul.f32 1.0, %v2944
        %v2946 = vmul.f32 %v2721, %v2930
        %v2947 = vmul.f32 %v2734, %v2945
        %v2948 = vmul.f32 %v2946, %v2747
        %v2949 = vmul.f32 %v2947, %v2760
        %2950 = vset.pattern.permute.xlu0 3
        %2951 = vperm.xlu0 %2950, %v1785
        %v2952 = vpop.permute.xlu0 %2951
        %v2954 = vmul.f32 %v2948, %v2952
        %v2955 = vmul.f32 %v2949, %v2952
        %v2956 = vpack.c.bf16 %v2810, %v2810
        %v2957 = vpack.c.bf16 %v2811, %v2811
        %v2958 = vpack.c.bf16 %v2858, %v2858
        %v2959 = vpack.c.bf16 %v2859, %v2859
        %v2960 = vpack.c.bf16 %v2906, %v2906
        %v2961 = vpack.c.bf16 %v2907, %v2907
        %v2962 = vpack.c.bf16 %v2954, %v2954
        %v2963 = vpack.c.bf16 %v2955, %v2955
        %v3028 = vunpack.c.l.b16 %v1593
        %v3029 = vunpack.c.h.b16 %v1593
        %v3030 = vunpack.c.l.b16 %v1594
        %v3031 = vunpack.c.h.b16 %v1594
        %v3032 = vunpack.c.l.b16 %v1595
        %v3033 = vunpack.c.h.b16 %v1595
        %v3034 = vunpack.c.l.b16 %v1596
        %v3035 = vunpack.c.h.b16 %v1596
        %v3036 = vunpack.c.l.b16 %v1597
        %v3037 = vunpack.c.h.b16 %v1597
        %v3038 = vunpack.c.l.b16 %v1598
        %v3039 = vunpack.c.h.b16 %v1598
        %v3040 = vunpack.c.l.b16 %v1599
        %v3041 = vunpack.c.h.b16 %v1599
        %v3042 = vunpack.c.l.b16 %v1600
        %v3043 = vunpack.c.h.b16 %v1600
        %v3044 = vunpack.c.l.b16 %v1601
        %v3045 = vunpack.c.h.b16 %v1601
        %v3046 = vunpack.c.l.b16 %v1602
        %v3047 = vunpack.c.h.b16 %v1602
        %v3048 = vunpack.c.l.b16 %v1603
        %v3049 = vunpack.c.h.b16 %v1603
        %v3050 = vunpack.c.l.b16 %v1604
        %v3051 = vunpack.c.h.b16 %v1604
        %v3052 = vunpack.c.l.b16 %v1605
        %v3053 = vunpack.c.h.b16 %v1605
        %v3054 = vunpack.c.l.b16 %v1606
        %v3055 = vunpack.c.h.b16 %v1606
        %v3056 = vunpack.c.l.b16 %v1607
        %v3057 = vunpack.c.h.b16 %v1607
        %v3058 = vunpack.c.l.b16 %v1608
        %v3059 = vunpack.c.h.b16 %v1608
        %v3060 = vunpack.c.l.b16 %v1609
        %v3061 = vunpack.c.h.b16 %v1609
        %v3062 = vunpack.c.l.b16 %v1610
        %v3063 = vunpack.c.h.b16 %v1610
        %v3064 = vunpack.c.l.b16 %v1611
        %v3065 = vunpack.c.h.b16 %v1611
        %v3066 = vunpack.c.l.b16 %v1612
        %v3067 = vunpack.c.h.b16 %v1612
        %v3068 = vunpack.c.l.b16 %v1613
        %v3069 = vunpack.c.h.b16 %v1613
        %v3070 = vunpack.c.l.b16 %v1614
        %v3071 = vunpack.c.h.b16 %v1614
        %v3072 = vunpack.c.l.b16 %v1615
        %v3073 = vunpack.c.h.b16 %v1615
        %v3074 = vunpack.c.l.b16 %v1616
        %v3075 = vunpack.c.h.b16 %v1616
        %v3076 = vunpack.c.l.b16 %v1617
        %v3077 = vunpack.c.h.b16 %v1617
        %v3078 = vunpack.c.l.b16 %v1618
        %v3079 = vunpack.c.h.b16 %v1618
        %v3080 = vunpack.c.l.b16 %v1619
        %v3081 = vunpack.c.h.b16 %v1619
        %v3082 = vunpack.c.l.b16 %v1620
        %v3083 = vunpack.c.h.b16 %v1620
        %v3084 = vunpack.c.l.b16 %v1621
        %v3085 = vunpack.c.h.b16 %v1621
        %v3086 = vunpack.c.l.b16 %v1622
        %v3087 = vunpack.c.h.b16 %v1622
        %v3088 = vunpack.c.l.b16 %v1623
        %v3089 = vunpack.c.h.b16 %v1623
        %v3090 = vunpack.c.l.b16 %v1624
        %v3091 = vunpack.c.h.b16 %v1624
        %v3092 = vunpack.c.l.b16 %v1625
        %v3093 = vunpack.c.h.b16 %v1625
        %v3094 = vunpack.c.l.b16 %v1626
        %v3095 = vunpack.c.h.b16 %v1626
        %v3096 = vunpack.c.l.b16 %v1627
        %v3097 = vunpack.c.h.b16 %v1627
        %v3098 = vunpack.c.l.b16 %v1628
        %v3099 = vunpack.c.h.b16 %v1628
        %v3100 = vunpack.c.l.b16 %v1629
        %v3101 = vunpack.c.h.b16 %v1629
        %v3102 = vunpack.c.l.b16 %v1630
        %v3103 = vunpack.c.h.b16 %v1630
        %v3104 = vunpack.c.l.b16 %v1631
        %v3105 = vunpack.c.h.b16 %v1631
        %v3106 = vunpack.c.l.b16 %v1632
        %v3107 = vunpack.c.h.b16 %v1632
        %v3108 = vunpack.c.l.b16 %v1633
        %v3109 = vunpack.c.h.b16 %v1633
        %v3110 = vunpack.c.l.b16 %v1634
        %v3111 = vunpack.c.h.b16 %v1634
        %v3112 = vunpack.c.l.b16 %v1635
        %v3113 = vunpack.c.h.b16 %v1635
        %v3114 = vunpack.c.l.b16 %v1636
        %v3115 = vunpack.c.h.b16 %v1636
        %v3116 = vunpack.c.l.b16 %v1637
        %v3117 = vunpack.c.h.b16 %v1637
        %v3118 = vunpack.c.l.b16 %v1638
        %v3119 = vunpack.c.h.b16 %v1638
        %v3120 = vunpack.c.l.b16 %v1639
        %v3121 = vunpack.c.h.b16 %v1639
        %v3122 = vunpack.c.l.b16 %v1640
        %v3123 = vunpack.c.h.b16 %v1640
        %v3124 = vunpack.c.l.b16 %v1641
        %v3125 = vunpack.c.h.b16 %v1641
        %v3126 = vunpack.c.l.b16 %v1642
        %v3127 = vunpack.c.h.b16 %v1642
        %v3128 = vunpack.c.l.b16 %v1643
        %v3129 = vunpack.c.h.b16 %v1643
        %v3130 = vunpack.c.l.b16 %v1644
        %v3131 = vunpack.c.h.b16 %v1644
        %v3132 = vunpack.c.l.b16 %v1645
        %v3133 = vunpack.c.h.b16 %v1645
        %v3134 = vunpack.c.l.b16 %v1646
        %v3135 = vunpack.c.h.b16 %v1646
        %v3136 = vunpack.c.l.b16 %v1647
        %v3137 = vunpack.c.h.b16 %v1647
        %v3138 = vunpack.c.l.b16 %v1648
        %v3139 = vunpack.c.h.b16 %v1648
        %v3140 = vunpack.c.l.b16 %v1649
        %v3141 = vunpack.c.h.b16 %v1649
        %v3142 = vunpack.c.l.b16 %v1650
        %v3143 = vunpack.c.h.b16 %v1650
        %v3144 = vunpack.c.l.b16 %v1651
        %v3145 = vunpack.c.h.b16 %v1651
        %v3146 = vunpack.c.l.b16 %v1652
        %v3147 = vunpack.c.h.b16 %v1652
        %v3148 = vunpack.c.l.b16 %v1653
        %v3149 = vunpack.c.h.b16 %v1653
        %v3150 = vunpack.c.l.b16 %v1654
        %v3151 = vunpack.c.h.b16 %v1654
        %v3152 = vunpack.c.l.b16 %v1655
        %v3153 = vunpack.c.h.b16 %v1655
        %v3154 = vunpack.c.l.b16 %v1656
        %v3155 = vunpack.c.h.b16 %v1656
        %v3156 = vpack.c.b16 %v3036, %v3028
        %v3157 = vpack.c.b16 %v3037, %v3029
        %v3158 = vpack.c.b16 %v3038, %v3030
        %v3159 = vpack.c.b16 %v3039, %v3031
        %v3160 = vpack.c.b16 %v3040, %v3032
        %v3161 = vpack.c.b16 %v3041, %v3033
        %v3162 = vpack.c.b16 %v3042, %v3034
        %v3163 = vpack.c.b16 %v3043, %v3035
        %v3164 = vpack.c.b16 %v3052, %v3044
        %v3165 = vpack.c.b16 %v3053, %v3045
        %v3166 = vpack.c.b16 %v3054, %v3046
        %v3167 = vpack.c.b16 %v3055, %v3047
        %v3168 = vpack.c.b16 %v3056, %v3048
        %v3169 = vpack.c.b16 %v3057, %v3049
        %v3170 = vpack.c.b16 %v3058, %v3050
        %v3171 = vpack.c.b16 %v3059, %v3051
        %v3172 = vpack.c.b16 %v3068, %v3060
        %v3173 = vpack.c.b16 %v3069, %v3061
        %v3174 = vpack.c.b16 %v3070, %v3062
        %v3175 = vpack.c.b16 %v3071, %v3063
        %v3176 = vpack.c.b16 %v3072, %v3064
        %v3177 = vpack.c.b16 %v3073, %v3065
        %v3178 = vpack.c.b16 %v3074, %v3066
        %v3179 = vpack.c.b16 %v3075, %v3067
        %v3180 = vpack.c.b16 %v3084, %v3076
        %v3181 = vpack.c.b16 %v3085, %v3077
        %v3182 = vpack.c.b16 %v3086, %v3078
        %v3183 = vpack.c.b16 %v3087, %v3079
        %v3184 = vpack.c.b16 %v3088, %v3080
        %v3185 = vpack.c.b16 %v3089, %v3081
        %v3186 = vpack.c.b16 %v3090, %v3082
        %v3187 = vpack.c.b16 %v3091, %v3083
        %v3188 = vpack.c.b16 %v3100, %v3092
        %v3189 = vpack.c.b16 %v3101, %v3093
        %v3190 = vpack.c.b16 %v3102, %v3094
        %v3191 = vpack.c.b16 %v3103, %v3095
        %v3192 = vpack.c.b16 %v3104, %v3096
        %v3193 = vpack.c.b16 %v3105, %v3097
        %v3194 = vpack.c.b16 %v3106, %v3098
        %v3195 = vpack.c.b16 %v3107, %v3099
        %v3196 = vpack.c.b16 %v3116, %v3108
        %v3197 = vpack.c.b16 %v3117, %v3109
        %v3198 = vpack.c.b16 %v3118, %v3110
        %v3199 = vpack.c.b16 %v3119, %v3111
        %v3200 = vpack.c.b16 %v3120, %v3112
        %v3201 = vpack.c.b16 %v3121, %v3113
        %v3202 = vpack.c.b16 %v3122, %v3114
        %v3203 = vpack.c.b16 %v3123, %v3115
        %v3204 = vpack.c.b16 %v3132, %v3124
        %v3205 = vpack.c.b16 %v3133, %v3125
        %v3206 = vpack.c.b16 %v3134, %v3126
        %v3207 = vpack.c.b16 %v3135, %v3127
        %v3208 = vpack.c.b16 %v3136, %v3128
        %v3209 = vpack.c.b16 %v3137, %v3129
        %v3210 = vpack.c.b16 %v3138, %v3130
        %v3211 = vpack.c.b16 %v3139, %v3131
        %v3212 = vpack.c.b16 %v3148, %v3140
        %v3213 = vpack.c.b16 %v3149, %v3141
        %v3214 = vpack.c.b16 %v3150, %v3142
        %v3215 = vpack.c.b16 %v3151, %v3143
        %v3216 = vpack.c.b16 %v3152, %v3144
        %v3217 = vpack.c.b16 %v3153, %v3145
        %v3218 = vpack.c.b16 %v3154, %v3146
        %v3219 = vpack.c.b16 %v3155, %v3147
        %3284 = vmatpush.bf16.xpose.msra.mxu0 %v3212
        %3285 = vmatpush.bf16.xpose.msra.mxu0 %v3204
        %3286 = vmatpush.bf16.xpose.msra.mxu0 %v3196
        %3287 = vmatpush.bf16.xpose.msra.mxu0 %v3188
        %3288 = vmatpush.bf16.xpose.msra.mxu0 %v3180
        %3289 = vmatpush.bf16.xpose.msra.mxu0 %v3172
        %3290 = vmatpush.bf16.xpose.msra.mxu0 %v3164
        %3291 = vmatpush.bf16.xpose.msra.mxu0 %v3156
        %3292 = vmatmul.bf16.gmra.mxu0 %v2956
        %v3293 = vpop.f32.mrf.mxu0
        %v3294 = vadd.f32 0.0, %v3293
        %v3295 = vpop.f32.mrf.mxu0
        %3296 = vdwg.mxu0
        %3297 = vmatpush.bf16.xpose.msra.mxu0 %v3213
        %3298 = vmatpush.bf16.xpose.msra.mxu0 %v3205
        %3299 = vmatpush.bf16.xpose.msra.mxu0 %v3197
        %3300 = vmatpush.bf16.xpose.msra.mxu0 %v3189
        %3301 = vmatpush.bf16.xpose.msra.mxu0 %v3181
        %3302 = vmatpush.bf16.xpose.msra.mxu0 %v3173
        %3303 = vmatpush.bf16.xpose.msra.mxu0 %v3165
        %3304 = vmatpush.bf16.xpose.msra.mxu0 %v3157
        %3305 = vmatmul.bf16.gmra.mxu0 %v2957
        %v3306 = vpop.f32.mrf.mxu0
        %v3307 = vadd.f32 %v3294, %v3306
        %v3308 = vpop.f32.mrf.mxu0
        %3309 = vdwg.mxu0
        %3310 = vmatpush.bf16.xpose.msra.mxu0 %v3214
        %3311 = vmatpush.bf16.xpose.msra.mxu0 %v3206
        %3312 = vmatpush.bf16.xpose.msra.mxu0 %v3198
        %3313 = vmatpush.bf16.xpose.msra.mxu0 %v3190
        %3314 = vmatpush.bf16.xpose.msra.mxu0 %v3182
        %3315 = vmatpush.bf16.xpose.msra.mxu0 %v3174
        %3316 = vmatpush.bf16.xpose.msra.mxu0 %v3166
        %3317 = vmatpush.bf16.xpose.msra.mxu0 %v3158
        %3318 = vmatmul.bf16.gmra.mxu0 %v2958
        %v3319 = vpop.f32.mrf.mxu0
        %v3320 = vadd.f32 %v3307, %v3319
        %v3321 = vpop.f32.mrf.mxu0
        %3322 = vdwg.mxu0
        %3323 = vmatpush.bf16.xpose.msra.mxu0 %v3215
        %3324 = vmatpush.bf16.xpose.msra.mxu0 %v3207
        %3325 = vmatpush.bf16.xpose.msra.mxu0 %v3199
        %3326 = vmatpush.bf16.xpose.msra.mxu0 %v3191
        %3327 = vmatpush.bf16.xpose.msra.mxu0 %v3183
        %3328 = vmatpush.bf16.xpose.msra.mxu0 %v3175
        %3329 = vmatpush.bf16.xpose.msra.mxu0 %v3167
        %3330 = vmatpush.bf16.xpose.msra.mxu0 %v3159
        %3331 = vmatmul.bf16.gmra.mxu0 %v2959
        %v3332 = vpop.f32.mrf.mxu0
        %v3333 = vadd.f32 %v3320, %v3332
        %v3334 = vpop.f32.mrf.mxu0
        %3335 = vdwg.mxu0
        %3336 = vmatpush.bf16.xpose.msra.mxu0 %v3216
        %3337 = vmatpush.bf16.xpose.msra.mxu0 %v3208
        %3338 = vmatpush.bf16.xpose.msra.mxu0 %v3200
        %3339 = vmatpush.bf16.xpose.msra.mxu0 %v3192
        %3340 = vmatpush.bf16.xpose.msra.mxu0 %v3184
        %3341 = vmatpush.bf16.xpose.msra.mxu0 %v3176
        %3342 = vmatpush.bf16.xpose.msra.mxu0 %v3168
        %3343 = vmatpush.bf16.xpose.msra.mxu0 %v3160
        %3344 = vmatmul.bf16.gmra.mxu0 %v2960
        %v3345 = vpop.f32.mrf.mxu0
        %v3346 = vadd.f32 %v3333, %v3345
        %v3347 = vpop.f32.mrf.mxu0
        %3348 = vdwg.mxu0
        %3349 = vmatpush.bf16.xpose.msra.mxu0 %v3217
        %3350 = vmatpush.bf16.xpose.msra.mxu0 %v3209
        %3351 = vmatpush.bf16.xpose.msra.mxu0 %v3201
        %3352 = vmatpush.bf16.xpose.msra.mxu0 %v3193
        %3353 = vmatpush.bf16.xpose.msra.mxu0 %v3185
        %3354 = vmatpush.bf16.xpose.msra.mxu0 %v3177
        %3355 = vmatpush.bf16.xpose.msra.mxu0 %v3169
        %3356 = vmatpush.bf16.xpose.msra.mxu0 %v3161
        %3357 = vmatmul.bf16.gmra.mxu0 %v2961
        %v3358 = vpop.f32.mrf.mxu0
        %v3359 = vadd.f32 %v3346, %v3358
        %v3360 = vpop.f32.mrf.mxu0
        %3361 = vdwg.mxu0
        %3362 = vmatpush.bf16.xpose.msra.mxu0 %v3218
        %3363 = vmatpush.bf16.xpose.msra.mxu0 %v3210
        %3364 = vmatpush.bf16.xpose.msra.mxu0 %v3202
        %3365 = vmatpush.bf16.xpose.msra.mxu0 %v3194
        %3366 = vmatpush.bf16.xpose.msra.mxu0 %v3186
        %3367 = vmatpush.bf16.xpose.msra.mxu0 %v3178
        %3368 = vmatpush.bf16.xpose.msra.mxu0 %v3170
        %3369 = vmatpush.bf16.xpose.msra.mxu0 %v3162
        %3370 = vmatmul.bf16.gmra.mxu0 %v2962
        %v3371 = vpop.f32.mrf.mxu0
        %v3372 = vadd.f32 %v3359, %v3371
        %v3373 = vpop.f32.mrf.mxu0
        %3374 = vdwg.mxu0
        %3375 = vmatpush.bf16.xpose.msra.mxu0 %v3219
        %3376 = vmatpush.bf16.xpose.msra.mxu0 %v3211
        %3377 = vmatpush.bf16.xpose.msra.mxu0 %v3203
        %3378 = vmatpush.bf16.xpose.msra.mxu0 %v3195
        %3379 = vmatpush.bf16.xpose.msra.mxu0 %v3187
        %3380 = vmatpush.bf16.xpose.msra.mxu0 %v3179
        %3381 = vmatpush.bf16.xpose.msra.mxu0 %v3171
        %3382 = vmatpush.bf16.xpose.msra.mxu0 %v3163
        %3383 = vmatmul.bf16.gmra.mxu0 %v2963
        %v3384 = vpop.f32.mrf.mxu0
        %v3385 = vadd.f32 %v3372, %v3384
        %v3386 = vpop.f32.mrf.mxu0
        %3387 = vdwg.mxu0
        %v3388 = vadd.f32 %v1334, %v3385
        %s3389 = scalar_lea.vmem %s6, 1
        %v3390 = vld [vmem:[%s3389] sm:$0x1]
        %s3391 = scalar_lea.vmem [#allocation2], 320
        %v3392 = vld [vmem:[%s3391] sm:$0xf]
        %v3393 = vld [vmem:[%s3391 + $0x4] sm:$0xf]
        %v3394 = vld [vmem:[%s3391 + $0x8] sm:$0xf]
        %v3395 = vld [vmem:[%s3391 + $0xc] sm:$0xf]
        %v3396 = vld [vmem:[%s3391 + $0x10] sm:$0xf]
        %v3397 = vld [vmem:[%s3391 + $0x14] sm:$0xf]
        %v3398 = vld [vmem:[%s3391 + $0x18] sm:$0xf]
        %v3399 = vld [vmem:[%s3391 + $0x1c] sm:$0xf]
        %v3400 = vld [vmem:[%s3391 + $0x20] sm:$0xf]
        %v3401 = vld [vmem:[%s3391 + $0x24] sm:$0xf]
        %v3402 = vld [vmem:[%s3391 + $0x28] sm:$0xf]
        %v3403 = vld [vmem:[%s3391 + $0x2c] sm:$0xf]
        %v3404 = vld [vmem:[%s3391 + $0x30] sm:$0xf]
        %v3405 = vld [vmem:[%s3391 + $0x34] sm:$0xf]
        %v3406 = vld [vmem:[%s3391 + $0x38] sm:$0xf]
        %v3407 = vld [vmem:[%s3391 + $0x3c] sm:$0xf]
        %v3408 = vld [vmem:[%s3391 + $0x40] sm:$0xf]
        %v3409 = vld [vmem:[%s3391 + $0x44] sm:$0xf]
        %v3410 = vld [vmem:[%s3391 + $0x48] sm:$0xf]
        %v3411 = vld [vmem:[%s3391 + $0x4c] sm:$0xf]
        %v3412 = vld [vmem:[%s3391 + $0x50] sm:$0xf]
        %v3413 = vld [vmem:[%s3391 + $0x54] sm:$0xf]
        %v3414 = vld [vmem:[%s3391 + $0x58] sm:$0xf]
        %v3415 = vld [vmem:[%s3391 + $0x5c] sm:$0xf]
        %v3416 = vld [vmem:[%s3391 + $0x60] sm:$0xf]
        %v3417 = vld [vmem:[%s3391 + $0x64] sm:$0xf]
        %v3418 = vld [vmem:[%s3391 + $0x68] sm:$0xf]
        %v3419 = vld [vmem:[%s3391 + $0x6c] sm:$0xf]
        %v3420 = vld [vmem:[%s3391 + $0x70] sm:$0xf]
        %v3421 = vld [vmem:[%s3391 + $0x74] sm:$0xf]
        %v3422 = vld [vmem:[%s3391 + $0x78] sm:$0xf]
        %v3423 = vld [vmem:[%s3391 + $0x7c] sm:$0xf]
        %v3424 = vld [vmem:[%s3391 + $0x80] sm:$0xf]
        %v3425 = vld [vmem:[%s3391 + $0x84] sm:$0xf]
        %v3426 = vld [vmem:[%s3391 + $0x88] sm:$0xf]
        %v3427 = vld [vmem:[%s3391 + $0x8c] sm:$0xf]
        %v3428 = vld [vmem:[%s3391 + $0x90] sm:$0xf]
        %v3429 = vld [vmem:[%s3391 + $0x94] sm:$0xf]
        %v3430 = vld [vmem:[%s3391 + $0x98] sm:$0xf]
        %v3431 = vld [vmem:[%s3391 + $0x9c] sm:$0xf]
        %v3432 = vld [vmem:[%s3391 + $0xa0] sm:$0xf]
        %v3433 = vld [vmem:[%s3391 + $0xa4] sm:$0xf]
        %v3434 = vld [vmem:[%s3391 + $0xa8] sm:$0xf]
        %v3435 = vld [vmem:[%s3391 + $0xac] sm:$0xf]
        %v3436 = vld [vmem:[%s3391 + $0xb0] sm:$0xf]
        %v3437 = vld [vmem:[%s3391 + $0xb4] sm:$0xf]
        %v3438 = vld [vmem:[%s3391 + $0xb8] sm:$0xf]
        %v3439 = vld [vmem:[%s3391 + $0xbc] sm:$0xf]
        %v3440 = vld [vmem:[%s3391 + $0xc0] sm:$0xf]
        %v3441 = vld [vmem:[%s3391 + $0xc4] sm:$0xf]
        %v3442 = vld [vmem:[%s3391 + $0xc8] sm:$0xf]
        %v3443 = vld [vmem:[%s3391 + $0xcc] sm:$0xf]
        %v3444 = vld [vmem:[%s3391 + $0xd0] sm:$0xf]
        %v3445 = vld [vmem:[%s3391 + $0xd4] sm:$0xf]
        %v3446 = vld [vmem:[%s3391 + $0xd8] sm:$0xf]
        %v3447 = vld [vmem:[%s3391 + $0xdc] sm:$0xf]
        %v3448 = vld [vmem:[%s3391 + $0xe0] sm:$0xf]
        %v3449 = vld [vmem:[%s3391 + $0xe4] sm:$0xf]
        %v3450 = vld [vmem:[%s3391 + $0xe8] sm:$0xf]
        %v3451 = vld [vmem:[%s3391 + $0xec] sm:$0xf]
        %v3452 = vld [vmem:[%s3391 + $0xf0] sm:$0xf]
        %v3453 = vld [vmem:[%s3391 + $0xf4] sm:$0xf]
        %v3454 = vld [vmem:[%s3391 + $0xf8] sm:$0xf]
        %v3455 = vld [vmem:[%s3391 + $0xfc] sm:$0xf]
        %v3456 = vld [vmem:[%s3391 + $0x100] sm:$0xf]
        %v3457 = vld [vmem:[%s3391 + $0x104] sm:$0xf]
        %v3458 = vld [vmem:[%s3391 + $0x108] sm:$0xf]
        %v3459 = vld [vmem:[%s3391 + $0x10c] sm:$0xf]
        %v3460 = vld [vmem:[%s3391 + $0x110] sm:$0xf]
        %v3461 = vld [vmem:[%s3391 + $0x114] sm:$0xf]
        %v3462 = vld [vmem:[%s3391 + $0x118] sm:$0xf]
        %v3463 = vld [vmem:[%s3391 + $0x11c] sm:$0xf]
        %v3464 = vld [vmem:[%s3391 + $0x120] sm:$0xf]
        %v3465 = vld [vmem:[%s3391 + $0x124] sm:$0xf]
        %v3466 = vld [vmem:[%s3391 + $0x128] sm:$0xf]
        %v3467 = vld [vmem:[%s3391 + $0x12c] sm:$0xf]
        %v3468 = vld [vmem:[%s3391 + $0x130] sm:$0xf]
        %v3469 = vld [vmem:[%s3391 + $0x134] sm:$0xf]
        %v3470 = vld [vmem:[%s3391 + $0x138] sm:$0xf]
        %v3471 = vld [vmem:[%s3391 + $0x13c] sm:$0xf]
        %s3472 = scalar_lea.vmem %s9, 64
        %v3473 = vld [vmem:[%s3472] sm:$0xf]
        %v3474 = vld [vmem:[%s3472 + $0x4] sm:$0xf]
        %v3475 = vld [vmem:[%s3472 + $0x8] sm:$0xf]
        %v3476 = vld [vmem:[%s3472 + $0xc] sm:$0xf]
        %v3477 = vld [vmem:[%s3472 + $0x10] sm:$0xf]
        %v3478 = vld [vmem:[%s3472 + $0x14] sm:$0xf]
        %v3479 = vld [vmem:[%s3472 + $0x18] sm:$0xf]
        %v3480 = vld [vmem:[%s3472 + $0x1c] sm:$0xf]
        %v3481 = vld [vmem:[%s3472 + $0x20] sm:$0xf]
        %v3482 = vld [vmem:[%s3472 + $0x24] sm:$0xf]
        %v3483 = vld [vmem:[%s3472 + $0x28] sm:$0xf]
        %v3484 = vld [vmem:[%s3472 + $0x2c] sm:$0xf]
        %v3485 = vld [vmem:[%s3472 + $0x30] sm:$0xf]
        %v3486 = vld [vmem:[%s3472 + $0x34] sm:$0xf]
        %v3487 = vld [vmem:[%s3472 + $0x38] sm:$0xf]
        %v3488 = vld [vmem:[%s3472 + $0x3c] sm:$0xf]
        %v3489 = vmul.f32 %v3388, %v3388
        %3490 = vadd.xlane.f32.xlu0 %v3489
        %v3491 = vpop.xlane.xlu0 %3490
        %v3492 = vmul.f32 %v3491, %v657
        %v3493 = vadd.f32 %v3492, 1e-06
        %v3494 = vrsqrt.pop %v3493
        %v3495 = vmul.f32 %v3494, %v3493
        %v3496 = vmul.f32 %v3495, %v3494
        %v3497 = vmul.f32 0.5, %v3496
        %v3498 = vsub.f32 1.5, %v3497
        %v3499 = vmul.f32 %v3494, %v3498
        %vm3500 = vweird.f32 %v3493
        %vm3501 = vweird.f32 %v3494
        %vm3502 = vmor %vm3500, %vm3501
        %v3503 = vsel %vm3502, %v3494, %v3499
        %v3504 = vmul.f32 %v3388, %v3503
        %v3506 = vperm.slane %v3390, 0
        %v3508 = vmul.f32 %v3504, %v3506
        %v3509 = vpack.c.bf16 %v3508, %v3508
        %v3590 = vunpack.c.l.b16 %v3392
        %v3591 = vunpack.c.l.b16 %v3393
        %v3592 = vunpack.c.l.b16 %v3394
        %v3593 = vunpack.c.l.b16 %v3395
        %v3594 = vunpack.c.l.b16 %v3396
        %v3595 = vunpack.c.l.b16 %v3397
        %v3596 = vunpack.c.l.b16 %v3398
        %v3597 = vunpack.c.l.b16 %v3399
        %v3598 = vunpack.c.l.b16 %v3400
        %v3599 = vunpack.c.l.b16 %v3401
        %v3600 = vunpack.c.l.b16 %v3402
        %v3601 = vunpack.c.l.b16 %v3403
        %v3602 = vunpack.c.l.b16 %v3404
        %v3603 = vunpack.c.l.b16 %v3405
        %v3604 = vunpack.c.l.b16 %v3406
        %v3605 = vunpack.c.l.b16 %v3407
        %v3606 = vunpack.c.l.b16 %v3408
        %v3607 = vunpack.c.l.b16 %v3409
        %v3608 = vunpack.c.l.b16 %v3410
        %v3609 = vunpack.c.l.b16 %v3411
        %v3610 = vunpack.c.l.b16 %v3412
        %v3611 = vunpack.c.l.b16 %v3413
        %v3612 = vunpack.c.l.b16 %v3414
        %v3613 = vunpack.c.l.b16 %v3415
        %v3614 = vunpack.c.l.b16 %v3416
        %v3615 = vunpack.c.l.b16 %v3417
        %v3616 = vunpack.c.l.b16 %v3418
        %v3617 = vunpack.c.l.b16 %v3419
        %v3618 = vunpack.c.l.b16 %v3420
        %v3619 = vunpack.c.l.b16 %v3421
        %v3620 = vunpack.c.l.b16 %v3422
        %v3621 = vunpack.c.l.b16 %v3423
        %v3622 = vunpack.c.l.b16 %v3424
        %v3623 = vunpack.c.l.b16 %v3425
        %v3624 = vunpack.c.l.b16 %v3426
        %v3625 = vunpack.c.l.b16 %v3427
        %v3626 = vunpack.c.l.b16 %v3428
        %v3627 = vunpack.c.l.b16 %v3429
        %v3628 = vunpack.c.l.b16 %v3430
        %v3629 = vunpack.c.l.b16 %v3431
        %v3630 = vunpack.c.l.b16 %v3432
        %v3631 = vunpack.c.l.b16 %v3433
        %v3632 = vunpack.c.l.b16 %v3434
        %v3633 = vunpack.c.l.b16 %v3435
        %v3634 = vunpack.c.l.b16 %v3436
        %v3635 = vunpack.c.l.b16 %v3437
        %v3636 = vunpack.c.l.b16 %v3438
        %v3637 = vunpack.c.l.b16 %v3439
        %v3638 = vunpack.c.l.b16 %v3440
        %v3639 = vunpack.c.l.b16 %v3441
        %v3640 = vunpack.c.l.b16 %v3442
        %v3641 = vunpack.c.l.b16 %v3443
        %v3642 = vunpack.c.l.b16 %v3444
        %v3643 = vunpack.c.l.b16 %v3445
        %v3644 = vunpack.c.l.b16 %v3446
        %v3645 = vunpack.c.l.b16 %v3447
        %v3646 = vunpack.c.l.b16 %v3448
        %v3647 = vunpack.c.l.b16 %v3449
        %v3648 = vunpack.c.l.b16 %v3450
        %v3649 = vunpack.c.l.b16 %v3451
        %v3650 = vunpack.c.l.b16 %v3452
        %v3651 = vunpack.c.l.b16 %v3453
        %v3652 = vunpack.c.l.b16 %v3454
        %v3653 = vunpack.c.l.b16 %v3455
        %v3654 = vunpack.c.l.b16 %v3456
        %v3655 = vunpack.c.l.b16 %v3457
        %v3656 = vunpack.c.l.b16 %v3458
        %v3657 = vunpack.c.l.b16 %v3459
        %v3658 = vunpack.c.l.b16 %v3460
        %v3659 = vunpack.c.l.b16 %v3461
        %v3660 = vunpack.c.l.b16 %v3462
        %v3661 = vunpack.c.l.b16 %v3463
        %v3662 = vunpack.c.l.b16 %v3464
        %v3663 = vunpack.c.l.b16 %v3465
        %v3664 = vunpack.c.l.b16 %v3466
        %v3665 = vunpack.c.l.b16 %v3467
        %v3666 = vunpack.c.l.b16 %v3468
        %v3667 = vunpack.c.l.b16 %v3469
        %v3668 = vunpack.c.l.b16 %v3470
        %v3669 = vunpack.c.l.b16 %v3471
        %v3670 = vpack.c.b16 %v3591, %v3590
        %v3671 = vpack.c.b16 %v3593, %v3592
        %v3672 = vpack.c.b16 %v3595, %v3594
        %v3673 = vpack.c.b16 %v3597, %v3596
        %v3674 = vpack.c.b16 %v3599, %v3598
        %v3675 = vpack.c.b16 %v3601, %v3600
        %v3676 = vpack.c.b16 %v3603, %v3602
        %v3677 = vpack.c.b16 %v3605, %v3604
        %v3678 = vpack.c.b16 %v3607, %v3606
        %v3679 = vpack.c.b16 %v3609, %v3608
        %v3680 = vpack.c.b16 %v3611, %v3610
        %v3681 = vpack.c.b16 %v3613, %v3612
        %v3682 = vpack.c.b16 %v3615, %v3614
        %v3683 = vpack.c.b16 %v3617, %v3616
        %v3684 = vpack.c.b16 %v3619, %v3618
        %v3685 = vpack.c.b16 %v3621, %v3620
        %v3686 = vpack.c.b16 %v3623, %v3622
        %v3687 = vpack.c.b16 %v3625, %v3624
        %v3688 = vpack.c.b16 %v3627, %v3626
        %v3689 = vpack.c.b16 %v3629, %v3628
        %v3690 = vpack.c.b16 %v3631, %v3630
        %v3691 = vpack.c.b16 %v3633, %v3632
        %v3692 = vpack.c.b16 %v3635, %v3634
        %v3693 = vpack.c.b16 %v3637, %v3636
        %v3694 = vpack.c.b16 %v3639, %v3638
        %v3695 = vpack.c.b16 %v3641, %v3640
        %v3696 = vpack.c.b16 %v3643, %v3642
        %v3697 = vpack.c.b16 %v3645, %v3644
        %v3698 = vpack.c.b16 %v3647, %v3646
        %v3699 = vpack.c.b16 %v3649, %v3648
        %v3700 = vpack.c.b16 %v3651, %v3650
        %v3701 = vpack.c.b16 %v3653, %v3652
        %v3702 = vpack.c.b16 %v3655, %v3654
        %v3703 = vpack.c.b16 %v3657, %v3656
        %v3704 = vpack.c.b16 %v3659, %v3658
        %v3705 = vpack.c.b16 %v3661, %v3660
        %v3706 = vpack.c.b16 %v3663, %v3662
        %v3707 = vpack.c.b16 %v3665, %v3664
        %v3708 = vpack.c.b16 %v3667, %v3666
        %v3709 = vpack.c.b16 %v3669, %v3668
        %3750 = vmatpush.bf16.xpose.msra.mxu0 %v3677
        %3751 = vmatpush.bf16.xpose.msra.mxu0 %v3676
        %3752 = vmatpush.bf16.xpose.msra.mxu0 %v3675
        %3753 = vmatpush.bf16.xpose.msra.mxu0 %v3674
        %3754 = vmatpush.bf16.xpose.msra.mxu0 %v3673
        %3755 = vmatpush.bf16.xpose.msra.mxu0 %v3672
        %3756 = vmatpush.bf16.xpose.msra.mxu0 %v3671
        %3757 = vmatpush.bf16.xpose.msra.mxu0 %v3670
        %3758 = vmatmul.bf16.gmra.mxu0 %v3509
        %v3759 = vpop.f32.mrf.mxu0
        %v3760 = vadd.f32 0.0, %v3759
        %v3761 = vpop.f32.mrf.mxu0
        %3762 = vdwg.mxu0
        %3763 = vmatpush.bf16.xpose.msra.mxu0 %v3685
        %3764 = vmatpush.bf16.xpose.msra.mxu0 %v3684
        %3765 = vmatpush.bf16.xpose.msra.mxu0 %v3683
        %3766 = vmatpush.bf16.xpose.msra.mxu0 %v3682
        %3767 = vmatpush.bf16.xpose.msra.mxu0 %v3681
        %3768 = vmatpush.bf16.xpose.msra.mxu0 %v3680
        %3769 = vmatpush.bf16.xpose.msra.mxu0 %v3679
        %3770 = vmatpush.bf16.xpose.msra.mxu0 %v3678
        %3771 = vmatmul.bf16.gmra.mxu0 %v3509
        %v3772 = vpop.f32.mrf.mxu0
        %v3773 = vadd.f32 0.0, %v3772
        %v3774 = vpop.f32.mrf.mxu0
        %3775 = vdwg.mxu0
        %3776 = vmatpush.bf16.xpose.msra.mxu0 %v3693
        %3777 = vmatpush.bf16.xpose.msra.mxu0 %v3692
        %3778 = vmatpush.bf16.xpose.msra.mxu0 %v3691
        %3779 = vmatpush.bf16.xpose.msra.mxu0 %v3690
        %3780 = vmatpush.bf16.xpose.msra.mxu0 %v3689
        %3781 = vmatpush.bf16.xpose.msra.mxu0 %v3688
        %3782 = vmatpush.bf16.xpose.msra.mxu0 %v3687
        %3783 = vmatpush.bf16.xpose.msra.mxu0 %v3686
        %3784 = vmatmul.bf16.gmra.mxu0 %v3509
        %v3785 = vpop.f32.mrf.mxu0
        %v3786 = vadd.f32 0.0, %v3785
        %v3787 = vpop.f32.mrf.mxu0
        %3788 = vdwg.mxu0
        %3789 = vmatpush.bf16.xpose.msra.mxu0 %v3701
        %3790 = vmatpush.bf16.xpose.msra.mxu0 %v3700
        %3791 = vmatpush.bf16.xpose.msra.mxu0 %v3699
        %3792 = vmatpush.bf16.xpose.msra.mxu0 %v3698
        %3793 = vmatpush.bf16.xpose.msra.mxu0 %v3697
        %3794 = vmatpush.bf16.xpose.msra.mxu0 %v3696
        %3795 = vmatpush.bf16.xpose.msra.mxu0 %v3695
        %3796 = vmatpush.bf16.xpose.msra.mxu0 %v3694
        %3797 = vmatmul.bf16.gmra.mxu0 %v3509
        %v3798 = vpop.f32.mrf.mxu0
        %v3799 = vadd.f32 0.0, %v3798
        %v3800 = vpop.f32.mrf.mxu0
        %3801 = vdwg.mxu0
        %3802 = vmatpush.bf16.xpose.msra.mxu0 %v3709
        %3803 = vmatpush.bf16.xpose.msra.mxu0 %v3708
        %3804 = vmatpush.bf16.xpose.msra.mxu0 %v3707
        %3805 = vmatpush.bf16.xpose.msra.mxu0 %v3706
        %3806 = vmatpush.bf16.xpose.msra.mxu0 %v3705
        %3807 = vmatpush.bf16.xpose.msra.mxu0 %v3704
        %3808 = vmatpush.bf16.xpose.msra.mxu0 %v3703
        %3809 = vmatpush.bf16.xpose.msra.mxu0 %v3702
        %3810 = vmatmul.bf16.gmra.mxu0 %v3509
        %v3811 = vpop.f32.mrf.mxu0
        %v3812 = vadd.f32 0.0, %v3811
        %v3813 = vpop.f32.mrf.mxu0
        %3814 = vdwg.mxu0
        %v3815 = vmul.f32 %v3760, %v547
        %v3816 = vmul.f32 %v3773, %v548
        %v3817 = vadd.f32 %v3815, %v3816
        %v3818 = vmul.f32 %v3786, %v549
        %v3819 = vmul.f32 %v3799, %v550
        %v3820 = vadd.f32 %v3818, %v3819
        %v3821 = vpack.c.bf16 %v3817, %v3817
        %v3822 = vpack.c.bf16 %v3820, %v3820
        %v3823 = vpack.c.bf16 %v3812, %v3812
        %v3825 = vsel %vm995, %v3821, 0
        %v3828 = vsel %vm995, %v3822, 0
        %3830 = vmatpush.bf16.xpose.msra.mxu0 0
        %3831 = vmatpush.bf16.xpose.msra.mxu0 0
        %3832 = vmatpush.bf16.xpose.msra.mxu0 0
        %3833 = vmatpush.bf16.xpose.msra.mxu0 0
        %3834 = vmatpush.bf16.xpose.msra.mxu0 0
        %3835 = vmatpush.bf16.xpose.msra.mxu0 0
        %3836 = vmatpush.bf16.xpose.msra.mxu0 0
        %3837 = vmatpush.bf16.xpose.msra.mxu0 %v3828
        %3838 = vmatmul.bf16.gmra.mxu0 %v3825
        %v3839 = vpop.f32.mrf.mxu0
        %v3840 = vadd.f32 0.0, %v3839
        %v3841 = vpop.f32.mrf.mxu0
        %3842 = vdwg.mxu0
        %v3843 = vsel %vm991, %v3840, -1e+30
        %v3844 = vsel %vm1016, %v3843, -inf
        %3845 = vmax.xlane.f32.xlu0 %v3844
        %v3846 = vpop.xlane.xlu0 %3845
        %v3847 = vsub.f32 %v3843, %v3846
        %v3848 = vmul.f32 %v3847, 1.442695
        %v3849 = vpow.pop %v3848
        %v3850 = vsel %vm1016, %v3849, 0.0
        %3851 = vadd.xlane.f32.xlu0 %v3850
        %v3852 = vpop.xlane.xlu0 %3851
        %v3853 = vrcp.pop %v3852
        %v3854 = vmul.f32 %v3852, %v3853
        %v3855 = vsub.f32 1.0, %v3854
        %v3856 = vmul.f32 %v3853, %v3855
        %v3857 = vadd.f32 %v3853, %v3856
        %vm3858 = vweird.f32 %v3852
        %vm3859 = vweird.f32 %v3853
        %vm3860 = vmor %vm3858, %vm3859
        %v3861 = vsel %vm3860, %v3853, %v3857
        %v3862 = vand.u32 2147483647, %v3852
        %vm3863 = vcmp.eq.f32.partialorder %v3862, 8.507059e+37
        %v3864 = vand.u32 %v3852, 2147483648
        %v3865 = vor.u32 1.1754944e-38, %v3864
        %v3866 = vsel %vm3863, %v3865, %v3861
        %v3867 = vmul.f32 %v3849, %v3866
        %v3868 = vpack.c.bf16 %v3867, %v3867
        %v3870 = vsel %vm1016, %v3868, 0
        %v3873 = vsel %vm1045, %v3823, 0
        %3875 = vmatpush.bf16.msra.mxu0 0
        %3876 = vmatpush.bf16.msra.mxu0 0
        %3877 = vmatpush.bf16.msra.mxu0 0
        %3878 = vmatpush.bf16.msra.mxu0 0
        %3879 = vmatpush.bf16.msra.mxu0 0
        %3880 = vmatpush.bf16.msra.mxu0 0
        %3881 = vmatpush.bf16.msra.mxu0 0
        %3882 = vmatpush.bf16.msra.mxu0 %v3873
        %3883 = vmatmul.bf16.gmra.mxu0 %v3870
        %v3884 = vpop.f32.mrf.mxu0
        %v3885 = vadd.f32 0.0, %v3884
        %v3886 = vpop.f32.mrf.mxu0
        %3887 = vdwg.mxu0
        %3889 = vrot.lane.b32.xlu0 %v3821, 96
        %v3890 = vpop.permute.xlu0 %3889
        %v3892 = vsel %vm995, %v3890, 0
        %3894 = vmatpush.bf16.xpose.msra.mxu0 0
        %3895 = vmatpush.bf16.xpose.msra.mxu0 0
        %3896 = vmatpush.bf16.xpose.msra.mxu0 0
        %3897 = vmatpush.bf16.xpose.msra.mxu0 0
        %3898 = vmatpush.bf16.xpose.msra.mxu0 0
        %3899 = vmatpush.bf16.xpose.msra.mxu0 0
        %3900 = vmatpush.bf16.xpose.msra.mxu0 0
        %3901 = vmatpush.bf16.xpose.msra.mxu0 %v3828
        %3902 = vmatmul.bf16.gmra.mxu0 %v3892
        %v3903 = vpop.f32.mrf.mxu0
        %v3904 = vadd.f32 0.0, %v3903
        %v3905 = vpop.f32.mrf.mxu0
        %3906 = vdwg.mxu0
        %v3907 = vsel %vm991, %v3904, -1e+30
        %v3908 = vsel %vm1016, %v3907, -inf
        %3909 = vmax.xlane.f32.xlu0 %v3908
        %v3910 = vpop.xlane.xlu0 %3909
        %v3911 = vsub.f32 %v3907, %v3910
        %v3912 = vmul.f32 %v3911, 1.442695
        %v3913 = vpow.pop %v3912
        %v3914 = vsel %vm1016, %v3913, 0.0
        %3915 = vadd.xlane.f32.xlu0 %v3914
        %v3916 = vpop.xlane.xlu0 %3915
        %v3917 = vrcp.pop %v3916
        %v3918 = vmul.f32 %v3916, %v3917
        %v3919 = vsub.f32 1.0, %v3918
        %v3920 = vmul.f32 %v3917, %v3919
        %v3921 = vadd.f32 %v3917, %v3920
        %vm3922 = vweird.f32 %v3916
        %vm3923 = vweird.f32 %v3917
        %vm3924 = vmor %vm3922, %vm3923
        %v3925 = vsel %vm3924, %v3917, %v3921
        %v3926 = vand.u32 2147483647, %v3916
        %vm3927 = vcmp.eq.f32.partialorder %v3926, 8.507059e+37
        %v3928 = vand.u32 %v3916, 2147483648
        %v3929 = vor.u32 1.1754944e-38, %v3928
        %v3930 = vsel %vm3927, %v3929, %v3925
        %v3931 = vmul.f32 %v3913, %v3930
        %v3932 = vpack.c.bf16 %v3931, %v3931
        %v3934 = vsel %vm1016, %v3932, 0
        %3936 = vmatpush.bf16.msra.mxu0 0
        %3937 = vmatpush.bf16.msra.mxu0 0
        %3938 = vmatpush.bf16.msra.mxu0 0
        %3939 = vmatpush.bf16.msra.mxu0 0
        %3940 = vmatpush.bf16.msra.mxu0 0
        %3941 = vmatpush.bf16.msra.mxu0 0
        %3942 = vmatpush.bf16.msra.mxu0 0
        %3943 = vmatpush.bf16.msra.mxu0 %v3873
        %3944 = vmatmul.bf16.gmra.mxu0 %v3934
        %v3945 = vpop.f32.mrf.mxu0
        %v3946 = vadd.f32 0.0, %v3945
        %v3947 = vpop.f32.mrf.mxu0
        %3948 = vdwg.mxu0
        %3949 = vrot.lane.b32.xlu0 %v3821, 64
        %v3950 = vpop.permute.xlu0 %3949
        %3952 = vrot.lane.b32.xlu0 %v3822, 96
        %v3953 = vpop.permute.xlu0 %3952
        %v3955 = vsel %vm995, %v3950, 0
        %v3958 = vsel %vm995, %v3953, 0
        %3960 = vmatpush.bf16.xpose.msra.mxu0 0
        %3961 = vmatpush.bf16.xpose.msra.mxu0 0
        %3962 = vmatpush.bf16.xpose.msra.mxu0 0
        %3963 = vmatpush.bf16.xpose.msra.mxu0 0
        %3964 = vmatpush.bf16.xpose.msra.mxu0 0
        %3965 = vmatpush.bf16.xpose.msra.mxu0 0
        %3966 = vmatpush.bf16.xpose.msra.mxu0 0
        %3967 = vmatpush.bf16.xpose.msra.mxu0 %v3958
        %3968 = vmatmul.bf16.gmra.mxu0 %v3955
        %v3969 = vpop.f32.mrf.mxu0
        %v3970 = vadd.f32 0.0, %v3969
        %v3971 = vpop.f32.mrf.mxu0
        %3972 = vdwg.mxu0
        %v3973 = vsel %vm991, %v3970, -1e+30
        %v3974 = vsel %vm1016, %v3973, -inf
        %3975 = vmax.xlane.f32.xlu0 %v3974
        %v3976 = vpop.xlane.xlu0 %3975
        %v3977 = vsub.f32 %v3973, %v3976
        %v3978 = vmul.f32 %v3977, 1.442695
        %v3979 = vpow.pop %v3978
        %v3980 = vsel %vm1016, %v3979, 0.0
        %3981 = vadd.xlane.f32.xlu0 %v3980
        %v3982 = vpop.xlane.xlu0 %3981
        %v3983 = vrcp.pop %v3982
        %v3984 = vmul.f32 %v3982, %v3983
        %v3985 = vsub.f32 1.0, %v3984
        %v3986 = vmul.f32 %v3983, %v3985
        %v3987 = vadd.f32 %v3983, %v3986
        %vm3988 = vweird.f32 %v3982
        %vm3989 = vweird.f32 %v3983
        %vm3990 = vmor %vm3988, %vm3989
        %v3991 = vsel %vm3990, %v3983, %v3987
        %v3992 = vand.u32 2147483647, %v3982
        %vm3993 = vcmp.eq.f32.partialorder %v3992, 8.507059e+37
        %v3994 = vand.u32 %v3982, 2147483648
        %v3995 = vor.u32 1.1754944e-38, %v3994
        %v3996 = vsel %vm3993, %v3995, %v3991
        %v3997 = vmul.f32 %v3979, %v3996
        %v3998 = vpack.c.bf16 %v3997, %v3997
        %4000 = vrot.lane.b32.xlu0 %v3823, 96
        %v4001 = vpop.permute.xlu0 %4000
        %v4003 = vsel %vm1016, %v3998, 0
        %v4006 = vsel %vm1045, %v4001, 0
        %4008 = vmatpush.bf16.msra.mxu0 0
        %4009 = vmatpush.bf16.msra.mxu0 0
        %4010 = vmatpush.bf16.msra.mxu0 0
        %4011 = vmatpush.bf16.msra.mxu0 0
        %4012 = vmatpush.bf16.msra.mxu0 0
        %4013 = vmatpush.bf16.msra.mxu0 0
        %4014 = vmatpush.bf16.msra.mxu0 0
        %4015 = vmatpush.bf16.msra.mxu0 %v4006
        %4016 = vmatmul.bf16.gmra.mxu0 %v4003
        %v4017 = vpop.f32.mrf.mxu0
        %v4018 = vadd.f32 0.0, %v4017
        %v4019 = vpop.f32.mrf.mxu0
        %4020 = vdwg.mxu0
        %4021 = vrot.lane.b32.xlu0 %v3821, 32
        %v4022 = vpop.permute.xlu0 %4021
        %v4024 = vsel %vm995, %v4022, 0
        %4026 = vmatpush.bf16.xpose.msra.mxu0 0
        %4027 = vmatpush.bf16.xpose.msra.mxu0 0
        %4028 = vmatpush.bf16.xpose.msra.mxu0 0
        %4029 = vmatpush.bf16.xpose.msra.mxu0 0
        %4030 = vmatpush.bf16.xpose.msra.mxu0 0
        %4031 = vmatpush.bf16.xpose.msra.mxu0 0
        %4032 = vmatpush.bf16.xpose.msra.mxu0 0
        %4033 = vmatpush.bf16.xpose.msra.mxu0 %v3958
        %4034 = vmatmul.bf16.gmra.mxu0 %v4024
        %v4035 = vpop.f32.mrf.mxu0
        %v4036 = vadd.f32 0.0, %v4035
        %v4037 = vpop.f32.mrf.mxu0
        %4038 = vdwg.mxu0
        %v4039 = vsel %vm991, %v4036, -1e+30
        %v4040 = vsel %vm1016, %v4039, -inf
        %4041 = vmax.xlane.f32.xlu0 %v4040
        %v4042 = vpop.xlane.xlu0 %4041
        %v4043 = vsub.f32 %v4039, %v4042
        %v4044 = vmul.f32 %v4043, 1.442695
        %v4045 = vpow.pop %v4044
        %v4046 = vsel %vm1016, %v4045, 0.0
        %4047 = vadd.xlane.f32.xlu0 %v4046
        %v4048 = vpop.xlane.xlu0 %4047
        %v4049 = vrcp.pop %v4048
        %v4050 = vmul.f32 %v4048, %v4049
        %v4051 = vsub.f32 1.0, %v4050
        %v4052 = vmul.f32 %v4049, %v4051
        %v4053 = vadd.f32 %v4049, %v4052
        %vm4054 = vweird.f32 %v4048
        %vm4055 = vweird.f32 %v4049
        %vm4056 = vmor %vm4054, %vm4055
        %v4057 = vsel %vm4056, %v4049, %v4053
        %v4058 = vand.u32 2147483647, %v4048
        %vm4059 = vcmp.eq.f32.partialorder %v4058, 8.507059e+37
        %v4060 = vand.u32 %v4048, 2147483648
        %v4061 = vor.u32 1.1754944e-38, %v4060
        %v4062 = vsel %vm4059, %v4061, %v4057
        %v4063 = vmul.f32 %v4045, %v4062
        %v4064 = vpack.c.bf16 %v4063, %v4063
        %v4066 = vsel %vm1016, %v4064, 0
        %4068 = vmatpush.bf16.msra.mxu0 0
        %4069 = vmatpush.bf16.msra.mxu0 0
        %4070 = vmatpush.bf16.msra.mxu0 0
        %4071 = vmatpush.bf16.msra.mxu0 0
        %4072 = vmatpush.bf16.msra.mxu0 0
        %4073 = vmatpush.bf16.msra.mxu0 0
        %4074 = vmatpush.bf16.msra.mxu0 0
        %4075 = vmatpush.bf16.msra.mxu0 %v4006
        %4076 = vmatmul.bf16.gmra.mxu0 %v4066
        %v4077 = vpop.f32.mrf.mxu0
        %v4078 = vadd.f32 0.0, %v4077
        %v4079 = vpop.f32.mrf.mxu0
        %4080 = vdwg.mxu0
        %4082 = vrot.lane.b32.xlu0 %v3946, 32
        %v4083 = vpop.permute.xlu0 %4082
        %4086 = vrot.lane.b32.xlu0 %v4018, 64
        %v4087 = vpop.permute.xlu0 %4086
        %4090 = vrot.lane.b32.xlu0 %v4078, 96
        %v4091 = vpop.permute.xlu0 %4090
        %v4093 = vsel %vm995, %v3885, %v4083
        %v4094 = vsel %vm1268, %v4093, %v4087
        %v4095 = vsel %vm1270, %v4094, %v4091
        %v4096 = vpack.c.bf16 %v4095, %v4095
        %v4113 = vunpack.c.l.b16 %v3473
        %v4114 = vunpack.c.l.b16 %v3474
        %v4115 = vunpack.c.l.b16 %v3475
        %v4116 = vunpack.c.l.b16 %v3476
        %v4117 = vunpack.c.l.b16 %v3477
        %v4118 = vunpack.c.l.b16 %v3478
        %v4119 = vunpack.c.l.b16 %v3479
        %v4120 = vunpack.c.l.b16 %v3480
        %v4121 = vunpack.c.l.b16 %v3481
        %v4122 = vunpack.c.l.b16 %v3482
        %v4123 = vunpack.c.l.b16 %v3483
        %v4124 = vunpack.c.l.b16 %v3484
        %v4125 = vunpack.c.l.b16 %v3485
        %v4126 = vunpack.c.l.b16 %v3486
        %v4127 = vunpack.c.l.b16 %v3487
        %v4128 = vunpack.c.l.b16 %v3488
        %v4129 = vpack.c.b16 %v4114, %v4113
        %v4130 = vpack.c.b16 %v4116, %v4115
        %v4131 = vpack.c.b16 %v4118, %v4117
        %v4132 = vpack.c.b16 %v4120, %v4119
        %v4133 = vpack.c.b16 %v4122, %v4121
        %v4134 = vpack.c.b16 %v4124, %v4123
        %v4135 = vpack.c.b16 %v4126, %v4125
        %v4136 = vpack.c.b16 %v4128, %v4127
        %4145 = vmatpush.bf16.xpose.msra.mxu0 %v4136
        %4146 = vmatpush.bf16.xpose.msra.mxu0 %v4135
        %4147 = vmatpush.bf16.xpose.msra.mxu0 %v4134
        %4148 = vmatpush.bf16.xpose.msra.mxu0 %v4133
        %4149 = vmatpush.bf16.xpose.msra.mxu0 %v4132
        %4150 = vmatpush.bf16.xpose.msra.mxu0 %v4131
        %4151 = vmatpush.bf16.xpose.msra.mxu0 %v4130
        %4152 = vmatpush.bf16.xpose.msra.mxu0 %v4129
        %4153 = vmatmul.bf16.gmra.mxu0 %v4096
        %v4154 = vpop.f32.mrf.mxu0
        %v4155 = vadd.f32 0.0, %v4154
        %v4156 = vpop.f32.mrf.mxu0
        %4157 = vdwg.mxu0
        %v4158 = vadd.f32 %v3388, %v4155
        %s4159 = scalar_lea.vmem %s7, 1
        %v4160 = vld [vmem:[%s4159] sm:$0x1]
        %s4161 = scalar_lea.vmem %s10, 4
        %v4162 = vld [vmem:[%s4161] sm:$0xf]
        %s4163 = scalar_lea.vmem [#allocation5], 1024
        %v4164 = vld [vmem:[%s4163] sm:$0xf]
        %v4165 = vld [vmem:[%s4163 + $0x4] sm:$0xf]
        %v4166 = vld [vmem:[%s4163 + $0x8] sm:$0xf]
        %v4167 = vld [vmem:[%s4163 + $0xc] sm:$0xf]
        %v4168 = vld [vmem:[%s4163 + $0x10] sm:$0xf]
        %v4169 = vld [vmem:[%s4163 + $0x14] sm:$0xf]
        %v4170 = vld [vmem:[%s4163 + $0x18] sm:$0xf]
        %v4171 = vld [vmem:[%s4163 + $0x1c] sm:$0xf]
        %v4172 = vld [vmem:[%s4163 + $0x20] sm:$0xf]
        %v4173 = vld [vmem:[%s4163 + $0x24] sm:$0xf]
        %v4174 = vld [vmem:[%s4163 + $0x28] sm:$0xf]
        %v4175 = vld [vmem:[%s4163 + $0x2c] sm:$0xf]
        %v4176 = vld [vmem:[%s4163 + $0x30] sm:$0xf]
        %v4177 = vld [vmem:[%s4163 + $0x34] sm:$0xf]
        %v4178 = vld [vmem:[%s4163 + $0x38] sm:$0xf]
        %v4179 = vld [vmem:[%s4163 + $0x3c] sm:$0xf]
        %v4180 = vld [vmem:[%s4163 + $0x40] sm:$0xf]
        %v4181 = vld [vmem:[%s4163 + $0x44] sm:$0xf]
        %v4182 = vld [vmem:[%s4163 + $0x48] sm:$0xf]
        %v4183 = vld [vmem:[%s4163 + $0x4c] sm:$0xf]
        %v4184 = vld [vmem:[%s4163 + $0x50] sm:$0xf]
        %v4185 = vld [vmem:[%s4163 + $0x54] sm:$0xf]
        %v4186 = vld [vmem:[%s4163 + $0x58] sm:$0xf]
        %v4187 = vld [vmem:[%s4163 + $0x5c] sm:$0xf]
        %v4188 = vld [vmem:[%s4163 + $0x60] sm:$0xf]
        %v4189 = vld [vmem:[%s4163 + $0x64] sm:$0xf]
        %v4190 = vld [vmem:[%s4163 + $0x68] sm:$0xf]
        %v4191 = vld [vmem:[%s4163 + $0x6c] sm:$0xf]
        %v4192 = vld [vmem:[%s4163 + $0x70] sm:$0xf]
        %v4193 = vld [vmem:[%s4163 + $0x74] sm:$0xf]
        %v4194 = vld [vmem:[%s4163 + $0x78] sm:$0xf]
        %v4195 = vld [vmem:[%s4163 + $0x7c] sm:$0xf]
        %v4196 = vld [vmem:[%s4163 + $0x80] sm:$0xf]
        %v4197 = vld [vmem:[%s4163 + $0x84] sm:$0xf]
        %v4198 = vld [vmem:[%s4163 + $0x88] sm:$0xf]
        %v4199 = vld [vmem:[%s4163 + $0x8c] sm:$0xf]
        %v4200 = vld [vmem:[%s4163 + $0x90] sm:$0xf]
        %v4201 = vld [vmem:[%s4163 + $0x94] sm:$0xf]
        %v4202 = vld [vmem:[%s4163 + $0x98] sm:$0xf]
        %v4203 = vld [vmem:[%s4163 + $0x9c] sm:$0xf]
        %v4204 = vld [vmem:[%s4163 + $0xa0] sm:$0xf]
        %v4205 = vld [vmem:[%s4163 + $0xa4] sm:$0xf]
        %v4206 = vld [vmem:[%s4163 + $0xa8] sm:$0xf]
        %v4207 = vld [vmem:[%s4163 + $0xac] sm:$0xf]
        %v4208 = vld [vmem:[%s4163 + $0xb0] sm:$0xf]
        %v4209 = vld [vmem:[%s4163 + $0xb4] sm:$0xf]
        %v4210 = vld [vmem:[%s4163 + $0xb8] sm:$0xf]
        %v4211 = vld [vmem:[%s4163 + $0xbc] sm:$0xf]
        %v4212 = vld [vmem:[%s4163 + $0xc0] sm:$0xf]
        %v4213 = vld [vmem:[%s4163 + $0xc4] sm:$0xf]
        %v4214 = vld [vmem:[%s4163 + $0xc8] sm:$0xf]
        %v4215 = vld [vmem:[%s4163 + $0xcc] sm:$0xf]
        %v4216 = vld [vmem:[%s4163 + $0xd0] sm:$0xf]
        %v4217 = vld [vmem:[%s4163 + $0xd4] sm:$0xf]
        %v4218 = vld [vmem:[%s4163 + $0xd8] sm:$0xf]
        %v4219 = vld [vmem:[%s4163 + $0xdc] sm:$0xf]
        %v4220 = vld [vmem:[%s4163 + $0xe0] sm:$0xf]
        %v4221 = vld [vmem:[%s4163 + $0xe4] sm:$0xf]
        %v4222 = vld [vmem:[%s4163 + $0xe8] sm:$0xf]
        %v4223 = vld [vmem:[%s4163 + $0xec] sm:$0xf]
        %v4224 = vld [vmem:[%s4163 + $0xf0] sm:$0xf]
        %v4225 = vld [vmem:[%s4163 + $0xf4] sm:$0xf]
        %v4226 = vld [vmem:[%s4163 + $0xf8] sm:$0xf]
        %v4227 = vld [vmem:[%s4163 + $0xfc] sm:$0xf]
        %v4228 = vld [vmem:[%s4163 + $0x100] sm:$0xf]
        %v4229 = vld [vmem:[%s4163 + $0x104] sm:$0xf]
        %v4230 = vld [vmem:[%s4163 + $0x108] sm:$0xf]
        %v4231 = vld [vmem:[%s4163 + $0x10c] sm:$0xf]
        %v4232 = vld [vmem:[%s4163 + $0x110] sm:$0xf]
        %v4233 = vld [vmem:[%s4163 + $0x114] sm:$0xf]
        %v4234 = vld [vmem:[%s4163 + $0x118] sm:$0xf]
        %v4235 = vld [vmem:[%s4163 + $0x11c] sm:$0xf]
        %v4236 = vld [vmem:[%s4163 + $0x120] sm:$0xf]
        %v4237 = vld [vmem:[%s4163 + $0x124] sm:$0xf]
        %v4238 = vld [vmem:[%s4163 + $0x128] sm:$0xf]
        %v4239 = vld [vmem:[%s4163 + $0x12c] sm:$0xf]
        %v4240 = vld [vmem:[%s4163 + $0x130] sm:$0xf]
        %v4241 = vld [vmem:[%s4163 + $0x134] sm:$0xf]
        %v4242 = vld [vmem:[%s4163 + $0x138] sm:$0xf]
        %v4243 = vld [vmem:[%s4163 + $0x13c] sm:$0xf]
        %v4244 = vld [vmem:[%s4163 + $0x140] sm:$0xf]
        %v4245 = vld [vmem:[%s4163 + $0x144] sm:$0xf]
        %v4246 = vld [vmem:[%s4163 + $0x148] sm:$0xf]
        %v4247 = vld [vmem:[%s4163 + $0x14c] sm:$0xf]
        %v4248 = vld [vmem:[%s4163 + $0x150] sm:$0xf]
        %v4249 = vld [vmem:[%s4163 + $0x154] sm:$0xf]
        %v4250 = vld [vmem:[%s4163 + $0x158] sm:$0xf]
        %v4251 = vld [vmem:[%s4163 + $0x15c] sm:$0xf]
        %v4252 = vld [vmem:[%s4163 + $0x160] sm:$0xf]
        %v4253 = vld [vmem:[%s4163 + $0x164] sm:$0xf]
        %v4254 = vld [vmem:[%s4163 + $0x168] sm:$0xf]
        %v4255 = vld [vmem:[%s4163 + $0x16c] sm:$0xf]
        %v4256 = vld [vmem:[%s4163 + $0x170] sm:$0xf]
        %v4257 = vld [vmem:[%s4163 + $0x174] sm:$0xf]
        %v4258 = vld [vmem:[%s4163 + $0x178] sm:$0xf]
        %v4259 = vld [vmem:[%s4163 + $0x17c] sm:$0xf]
        %v4260 = vld [vmem:[%s4163 + $0x180] sm:$0xf]
        %v4261 = vld [vmem:[%s4163 + $0x184] sm:$0xf]
        %v4262 = vld [vmem:[%s4163 + $0x188] sm:$0xf]
        %v4263 = vld [vmem:[%s4163 + $0x18c] sm:$0xf]
        %v4264 = vld [vmem:[%s4163 + $0x190] sm:$0xf]
        %v4265 = vld [vmem:[%s4163 + $0x194] sm:$0xf]
        %v4266 = vld [vmem:[%s4163 + $0x198] sm:$0xf]
        %v4267 = vld [vmem:[%s4163 + $0x19c] sm:$0xf]
        %v4268 = vld [vmem:[%s4163 + $0x1a0] sm:$0xf]
        %v4269 = vld [vmem:[%s4163 + $0x1a4] sm:$0xf]
        %v4270 = vld [vmem:[%s4163 + $0x1a8] sm:$0xf]
        %v4271 = vld [vmem:[%s4163 + $0x1ac] sm:$0xf]
        %v4272 = vld [vmem:[%s4163 + $0x1b0] sm:$0xf]
        %v4273 = vld [vmem:[%s4163 + $0x1b4] sm:$0xf]
        %v4274 = vld [vmem:[%s4163 + $0x1b8] sm:$0xf]
        %v4275 = vld [vmem:[%s4163 + $0x1bc] sm:$0xf]
        %v4276 = vld [vmem:[%s4163 + $0x1c0] sm:$0xf]
        %v4277 = vld [vmem:[%s4163 + $0x1c4] sm:$0xf]
        %v4278 = vld [vmem:[%s4163 + $0x1c8] sm:$0xf]
        %v4279 = vld [vmem:[%s4163 + $0x1cc] sm:$0xf]
        %v4280 = vld [vmem:[%s4163 + $0x1d0] sm:$0xf]
        %v4281 = vld [vmem:[%s4163 + $0x1d4] sm:$0xf]
        %v4282 = vld [vmem:[%s4163 + $0x1d8] sm:$0xf]
        %v4283 = vld [vmem:[%s4163 + $0x1dc] sm:$0xf]
        %v4284 = vld [vmem:[%s4163 + $0x1e0] sm:$0xf]
        %v4285 = vld [vmem:[%s4163 + $0x1e4] sm:$0xf]
        %v4286 = vld [vmem:[%s4163 + $0x1e8] sm:$0xf]
        %v4287 = vld [vmem:[%s4163 + $0x1ec] sm:$0xf]
        %v4288 = vld [vmem:[%s4163 + $0x1f0] sm:$0xf]
        %v4289 = vld [vmem:[%s4163 + $0x1f4] sm:$0xf]
        %v4290 = vld [vmem:[%s4163 + $0x1f8] sm:$0xf]
        %v4291 = vld [vmem:[%s4163 + $0x1fc] sm:$0xf]
        %v4292 = vld [vmem:[%s4163 + $0x200] sm:$0xf]
        %v4293 = vld [vmem:[%s4163 + $0x204] sm:$0xf]
        %v4294 = vld [vmem:[%s4163 + $0x208] sm:$0xf]
        %v4295 = vld [vmem:[%s4163 + $0x20c] sm:$0xf]
        %v4296 = vld [vmem:[%s4163 + $0x210] sm:$0xf]
        %v4297 = vld [vmem:[%s4163 + $0x214] sm:$0xf]
        %v4298 = vld [vmem:[%s4163 + $0x218] sm:$0xf]
        %v4299 = vld [vmem:[%s4163 + $0x21c] sm:$0xf]
        %v4300 = vld [vmem:[%s4163 + $0x220] sm:$0xf]
        %v4301 = vld [vmem:[%s4163 + $0x224] sm:$0xf]
        %v4302 = vld [vmem:[%s4163 + $0x228] sm:$0xf]
        %v4303 = vld [vmem:[%s4163 + $0x22c] sm:$0xf]
        %v4304 = vld [vmem:[%s4163 + $0x230] sm:$0xf]
        %v4305 = vld [vmem:[%s4163 + $0x234] sm:$0xf]
        %v4306 = vld [vmem:[%s4163 + $0x238] sm:$0xf]
        %v4307 = vld [vmem:[%s4163 + $0x23c] sm:$0xf]
        %v4308 = vld [vmem:[%s4163 + $0x240] sm:$0xf]
        %v4309 = vld [vmem:[%s4163 + $0x244] sm:$0xf]
        %v4310 = vld [vmem:[%s4163 + $0x248] sm:$0xf]
        %v4311 = vld [vmem:[%s4163 + $0x24c] sm:$0xf]
        %v4312 = vld [vmem:[%s4163 + $0x250] sm:$0xf]
        %v4313 = vld [vmem:[%s4163 + $0x254] sm:$0xf]
        %v4314 = vld [vmem:[%s4163 + $0x258] sm:$0xf]
        %v4315 = vld [vmem:[%s4163 + $0x25c] sm:$0xf]
        %v4316 = vld [vmem:[%s4163 + $0x260] sm:$0xf]
        %v4317 = vld [vmem:[%s4163 + $0x264] sm:$0xf]
        %v4318 = vld [vmem:[%s4163 + $0x268] sm:$0xf]
        %v4319 = vld [vmem:[%s4163 + $0x26c] sm:$0xf]
        %v4320 = vld [vmem:[%s4163 + $0x270] sm:$0xf]
        %v4321 = vld [vmem:[%s4163 + $0x274] sm:$0xf]
        %v4322 = vld [vmem:[%s4163 + $0x278] sm:$0xf]
        %v4323 = vld [vmem:[%s4163 + $0x27c] sm:$0xf]
        %v4324 = vld [vmem:[%s4163 + $0x280] sm:$0xf]
        %v4325 = vld [vmem:[%s4163 + $0x284] sm:$0xf]
        %v4326 = vld [vmem:[%s4163 + $0x288] sm:$0xf]
        %v4327 = vld [vmem:[%s4163 + $0x28c] sm:$0xf]
        %v4328 = vld [vmem:[%s4163 + $0x290] sm:$0xf]
        %v4329 = vld [vmem:[%s4163 + $0x294] sm:$0xf]
        %v4330 = vld [vmem:[%s4163 + $0x298] sm:$0xf]
        %v4331 = vld [vmem:[%s4163 + $0x29c] sm:$0xf]
        %v4332 = vld [vmem:[%s4163 + $0x2a0] sm:$0xf]
        %v4333 = vld [vmem:[%s4163 + $0x2a4] sm:$0xf]
        %v4334 = vld [vmem:[%s4163 + $0x2a8] sm:$0xf]
        %v4335 = vld [vmem:[%s4163 + $0x2ac] sm:$0xf]
        %v4336 = vld [vmem:[%s4163 + $0x2b0] sm:$0xf]
        %v4337 = vld [vmem:[%s4163 + $0x2b4] sm:$0xf]
        %v4338 = vld [vmem:[%s4163 + $0x2b8] sm:$0xf]
        %v4339 = vld [vmem:[%s4163 + $0x2bc] sm:$0xf]
        %v4340 = vld [vmem:[%s4163 + $0x2c0] sm:$0xf]
        %v4341 = vld [vmem:[%s4163 + $0x2c4] sm:$0xf]
        %v4342 = vld [vmem:[%s4163 + $0x2c8] sm:$0xf]
        %v4343 = vld [vmem:[%s4163 + $0x2cc] sm:$0xf]
        %v4344 = vld [vmem:[%s4163 + $0x2d0] sm:$0xf]
        %v4345 = vld [vmem:[%s4163 + $0x2d4] sm:$0xf]
        %v4346 = vld [vmem:[%s4163 + $0x2d8] sm:$0xf]
        %v4347 = vld [vmem:[%s4163 + $0x2dc] sm:$0xf]
        %v4348 = vld [vmem:[%s4163 + $0x2e0] sm:$0xf]
        %v4349 = vld [vmem:[%s4163 + $0x2e4] sm:$0xf]
        %v4350 = vld [vmem:[%s4163 + $0x2e8] sm:$0xf]
        %v4351 = vld [vmem:[%s4163 + $0x2ec] sm:$0xf]
        %v4352 = vld [vmem:[%s4163 + $0x2f0] sm:$0xf]
        %v4353 = vld [vmem:[%s4163 + $0x2f4] sm:$0xf]
        %v4354 = vld [vmem:[%s4163 + $0x2f8] sm:$0xf]
        %v4355 = vld [vmem:[%s4163 + $0x2fc] sm:$0xf]
        %v4356 = vld [vmem:[%s4163 + $0x300] sm:$0xf]
        %v4357 = vld [vmem:[%s4163 + $0x304] sm:$0xf]
        %v4358 = vld [vmem:[%s4163 + $0x308] sm:$0xf]
        %v4359 = vld [vmem:[%s4163 + $0x30c] sm:$0xf]
        %v4360 = vld [vmem:[%s4163 + $0x310] sm:$0xf]
        %v4361 = vld [vmem:[%s4163 + $0x314] sm:$0xf]
        %v4362 = vld [vmem:[%s4163 + $0x318] sm:$0xf]
        %v4363 = vld [vmem:[%s4163 + $0x31c] sm:$0xf]
        %v4364 = vld [vmem:[%s4163 + $0x320] sm:$0xf]
        %v4365 = vld [vmem:[%s4163 + $0x324] sm:$0xf]
        %v4366 = vld [vmem:[%s4163 + $0x328] sm:$0xf]
        %v4367 = vld [vmem:[%s4163 + $0x32c] sm:$0xf]
        %v4368 = vld [vmem:[%s4163 + $0x330] sm:$0xf]
        %v4369 = vld [vmem:[%s4163 + $0x334] sm:$0xf]
        %v4370 = vld [vmem:[%s4163 + $0x338] sm:$0xf]
        %v4371 = vld [vmem:[%s4163 + $0x33c] sm:$0xf]
        %v4372 = vld [vmem:[%s4163 + $0x340] sm:$0xf]
        %v4373 = vld [vmem:[%s4163 + $0x344] sm:$0xf]
        %v4374 = vld [vmem:[%s4163 + $0x348] sm:$0xf]
        %v4375 = vld [vmem:[%s4163 + $0x34c] sm:$0xf]
        %v4376 = vld [vmem:[%s4163 + $0x350] sm:$0xf]
        %v4377 = vld [vmem:[%s4163 + $0x354] sm:$0xf]
        %v4378 = vld [vmem:[%s4163 + $0x358] sm:$0xf]
        %v4379 = vld [vmem:[%s4163 + $0x35c] sm:$0xf]
        %v4380 = vld [vmem:[%s4163 + $0x360] sm:$0xf]
        %v4381 = vld [vmem:[%s4163 + $0x364] sm:$0xf]
        %v4382 = vld [vmem:[%s4163 + $0x368] sm:$0xf]
        %v4383 = vld [vmem:[%s4163 + $0x36c] sm:$0xf]
        %v4384 = vld [vmem:[%s4163 + $0x370] sm:$0xf]
        %v4385 = vld [vmem:[%s4163 + $0x374] sm:$0xf]
        %v4386 = vld [vmem:[%s4163 + $0x378] sm:$0xf]
        %v4387 = vld [vmem:[%s4163 + $0x37c] sm:$0xf]
        %v4388 = vld [vmem:[%s4163 + $0x380] sm:$0xf]
        %v4389 = vld [vmem:[%s4163 + $0x384] sm:$0xf]
        %v4390 = vld [vmem:[%s4163 + $0x388] sm:$0xf]
        %v4391 = vld [vmem:[%s4163 + $0x38c] sm:$0xf]
        %v4392 = vld [vmem:[%s4163 + $0x390] sm:$0xf]
        %v4393 = vld [vmem:[%s4163 + $0x394] sm:$0xf]
        %v4394 = vld [vmem:[%s4163 + $0x398] sm:$0xf]
        %v4395 = vld [vmem:[%s4163 + $0x39c] sm:$0xf]
        %v4396 = vld [vmem:[%s4163 + $0x3a0] sm:$0xf]
        %v4397 = vld [vmem:[%s4163 + $0x3a4] sm:$0xf]
        %v4398 = vld [vmem:[%s4163 + $0x3a8] sm:$0xf]
        %v4399 = vld [vmem:[%s4163 + $0x3ac] sm:$0xf]
        %v4400 = vld [vmem:[%s4163 + $0x3b0] sm:$0xf]
        %v4401 = vld [vmem:[%s4163 + $0x3b4] sm:$0xf]
        %v4402 = vld [vmem:[%s4163 + $0x3b8] sm:$0xf]
        %v4403 = vld [vmem:[%s4163 + $0x3bc] sm:$0xf]
        %v4404 = vld [vmem:[%s4163 + $0x3c0] sm:$0xf]
        %v4405 = vld [vmem:[%s4163 + $0x3c4] sm:$0xf]
        %v4406 = vld [vmem:[%s4163 + $0x3c8] sm:$0xf]
        %v4407 = vld [vmem:[%s4163 + $0x3cc] sm:$0xf]
        %v4408 = vld [vmem:[%s4163 + $0x3d0] sm:$0xf]
        %v4409 = vld [vmem:[%s4163 + $0x3d4] sm:$0xf]
        %v4410 = vld [vmem:[%s4163 + $0x3d8] sm:$0xf]
        %v4411 = vld [vmem:[%s4163 + $0x3dc] sm:$0xf]
        %v4412 = vld [vmem:[%s4163 + $0x3e0] sm:$0xf]
        %v4413 = vld [vmem:[%s4163 + $0x3e4] sm:$0xf]
        %v4414 = vld [vmem:[%s4163 + $0x3e8] sm:$0xf]
        %v4415 = vld [vmem:[%s4163 + $0x3ec] sm:$0xf]
        %v4416 = vld [vmem:[%s4163 + $0x3f0] sm:$0xf]
        %v4417 = vld [vmem:[%s4163 + $0x3f4] sm:$0xf]
        %v4418 = vld [vmem:[%s4163 + $0x3f8] sm:$0xf]
        %v4419 = vld [vmem:[%s4163 + $0x3fc] sm:$0xf]
        %s4420 = scalar_lea.vmem [#allocation7], 512
        %v4421 = vld [vmem:[%s4420] sm:$0xff]
        %v4422 = vld [vmem:[%s4420 + $0x8] sm:$0xff]
        %v4423 = vld [vmem:[%s4420 + $0x10] sm:$0xff]
        %v4424 = vld [vmem:[%s4420 + $0x18] sm:$0xff]
        %v4425 = vld [vmem:[%s4420 + $0x20] sm:$0xff]
        %v4426 = vld [vmem:[%s4420 + $0x28] sm:$0xff]
        %v4427 = vld [vmem:[%s4420 + $0x30] sm:$0xff]
        %v4428 = vld [vmem:[%s4420 + $0x38] sm:$0xff]
        %v4429 = vld [vmem:[%s4420 + $0x40] sm:$0xff]
        %v4430 = vld [vmem:[%s4420 + $0x48] sm:$0xff]
        %v4431 = vld [vmem:[%s4420 + $0x50] sm:$0xff]
        %v4432 = vld [vmem:[%s4420 + $0x58] sm:$0xff]
        %v4433 = vld [vmem:[%s4420 + $0x60] sm:$0xff]
        %v4434 = vld [vmem:[%s4420 + $0x68] sm:$0xff]
        %v4435 = vld [vmem:[%s4420 + $0x70] sm:$0xff]
        %v4436 = vld [vmem:[%s4420 + $0x78] sm:$0xff]
        %v4437 = vld [vmem:[%s4420 + $0x80] sm:$0xff]
        %v4438 = vld [vmem:[%s4420 + $0x88] sm:$0xff]
        %v4439 = vld [vmem:[%s4420 + $0x90] sm:$0xff]
        %v4440 = vld [vmem:[%s4420 + $0x98] sm:$0xff]
        %v4441 = vld [vmem:[%s4420 + $0xa0] sm:$0xff]
        %v4442 = vld [vmem:[%s4420 + $0xa8] sm:$0xff]
        %v4443 = vld [vmem:[%s4420 + $0xb0] sm:$0xff]
        %v4444 = vld [vmem:[%s4420 + $0xb8] sm:$0xff]
        %v4445 = vld [vmem:[%s4420 + $0xc0] sm:$0xff]
        %v4446 = vld [vmem:[%s4420 + $0xc8] sm:$0xff]
        %v4447 = vld [vmem:[%s4420 + $0xd0] sm:$0xff]
        %v4448 = vld [vmem:[%s4420 + $0xd8] sm:$0xff]
        %v4449 = vld [vmem:[%s4420 + $0xe0] sm:$0xff]
        %v4450 = vld [vmem:[%s4420 + $0xe8] sm:$0xff]
        %v4451 = vld [vmem:[%s4420 + $0xf0] sm:$0xff]
        %v4452 = vld [vmem:[%s4420 + $0xf8] sm:$0xff]
        %v4453 = vld [vmem:[%s4420 + $0x100] sm:$0xff]
        %v4454 = vld [vmem:[%s4420 + $0x108] sm:$0xff]
        %v4455 = vld [vmem:[%s4420 + $0x110] sm:$0xff]
        %v4456 = vld [vmem:[%s4420 + $0x118] sm:$0xff]
        %v4457 = vld [vmem:[%s4420 + $0x120] sm:$0xff]
        %v4458 = vld [vmem:[%s4420 + $0x128] sm:$0xff]
        %v4459 = vld [vmem:[%s4420 + $0x130] sm:$0xff]
        %v4460 = vld [vmem:[%s4420 + $0x138] sm:$0xff]
        %v4461 = vld [vmem:[%s4420 + $0x140] sm:$0xff]
        %v4462 = vld [vmem:[%s4420 + $0x148] sm:$0xff]
        %v4463 = vld [vmem:[%s4420 + $0x150] sm:$0xff]
        %v4464 = vld [vmem:[%s4420 + $0x158] sm:$0xff]
        %v4465 = vld [vmem:[%s4420 + $0x160] sm:$0xff]
        %v4466 = vld [vmem:[%s4420 + $0x168] sm:$0xff]
        %v4467 = vld [vmem:[%s4420 + $0x170] sm:$0xff]
        %v4468 = vld [vmem:[%s4420 + $0x178] sm:$0xff]
        %v4469 = vld [vmem:[%s4420 + $0x180] sm:$0xff]
        %v4470 = vld [vmem:[%s4420 + $0x188] sm:$0xff]
        %v4471 = vld [vmem:[%s4420 + $0x190] sm:$0xff]
        %v4472 = vld [vmem:[%s4420 + $0x198] sm:$0xff]
        %v4473 = vld [vmem:[%s4420 + $0x1a0] sm:$0xff]
        %v4474 = vld [vmem:[%s4420 + $0x1a8] sm:$0xff]
        %v4475 = vld [vmem:[%s4420 + $0x1b0] sm:$0xff]
        %v4476 = vld [vmem:[%s4420 + $0x1b8] sm:$0xff]
        %v4477 = vld [vmem:[%s4420 + $0x1c0] sm:$0xff]
        %v4478 = vld [vmem:[%s4420 + $0x1c8] sm:$0xff]
        %v4479 = vld [vmem:[%s4420 + $0x1d0] sm:$0xff]
        %v4480 = vld [vmem:[%s4420 + $0x1d8] sm:$0xff]
        %v4481 = vld [vmem:[%s4420 + $0x1e0] sm:$0xff]
        %v4482 = vld [vmem:[%s4420 + $0x1e8] sm:$0xff]
        %v4483 = vld [vmem:[%s4420 + $0x1f0] sm:$0xff]
        %v4484 = vld [vmem:[%s4420 + $0x1f8] sm:$0xff]
        %v4485 = vmul.f32 %v4158, %v4158
        %4486 = vadd.xlane.f32.xlu0 %v4485
        %v4487 = vpop.xlane.xlu0 %4486
        %v4488 = vmul.f32 %v4487, %v657
        %v4489 = vadd.f32 %v4488, 1e-06
        %v4490 = vrsqrt.pop %v4489
        %v4491 = vmul.f32 %v4490, %v4489
        %v4492 = vmul.f32 %v4491, %v4490
        %v4493 = vmul.f32 0.5, %v4492
        %v4494 = vsub.f32 1.5, %v4493
        %v4495 = vmul.f32 %v4490, %v4494
        %vm4496 = vweird.f32 %v4489
        %vm4497 = vweird.f32 %v4490
        %vm4498 = vmor %vm4496, %vm4497
        %v4499 = vsel %vm4498, %v4490, %v4495
        %v4500 = vmul.f32 %v4158, %v4499
        %v4502 = vperm.slane %v4160, 0
        %v4504 = vmul.f32 %v4500, %v4502
        %4505 = vmatpush.xpose.msra.mxu0 0.0
        %4506 = vmatpush.xpose.msra.mxu0 0.0
        %4507 = vmatpush.xpose.msra.mxu0 0.0
        %4508 = vmatpush.xpose.msra.mxu0 0.0
        %4509 = vmatpush.xpose.msra.mxu0 0.0
        %4510 = vmatpush.xpose.msra.mxu0 0.0
        %4511 = vmatpush.xpose.msra.mxu0 0.0
        %4512 = vmatpush.xpose.msra.mxu0 0.0
        %4513 = vmatpush.xpose.msra.mxu0 0.0
        %4514 = vmatpush.xpose.msra.mxu0 0.0
        %4515 = vmatpush.xpose.msra.mxu0 0.0
        %4516 = vmatpush.xpose.msra.mxu0 0.0
        %4517 = vmatpush.xpose.msra.mxu0 0.0
        %4518 = vmatpush.xpose.msra.mxu0 0.0
        %4519 = vmatpush.xpose.msra.mxu0 0.0
        %4520 = vmatpush.xpose.msra.mxu0 %v4162
        %4521 = vmatmul.f32.gmra.mxu0 %v4504
        %v4522 = vpop.f32.mrf.mxu0
        %v4523 = vadd.f32 0.0, %v4522
        %4524 = vdwg.mxu0
        %v4525 = vsel %vm1697, %v4523, -inf
        %4526 = vmax.xlane.f32.xlu0 %v4525
        %v4527 = vpop.xlane.xlu0 %4526
        %v4528 = vsub.f32 %v4523, %v4527
        %v4529 = vmul.f32 %v4528, 1.442695
        %v4530 = vpow.pop %v4529
        %v4531 = vsel %vm1697, %v4530, 0.0
        %4532 = vadd.xlane.f32.xlu0 %v4531
        %v4533 = vpop.xlane.xlu0 %4532
        %v4534 = vrcp.pop %v4533
        %v4535 = vmul.f32 %v4533, %v4534
        %v4536 = vsub.f32 1.0, %v4535
        %v4537 = vmul.f32 %v4534, %v4536
        %v4538 = vadd.f32 %v4534, %v4537
        %vm4539 = vweird.f32 %v4533
        %vm4540 = vweird.f32 %v4534
        %vm4541 = vmor %vm4539, %vm4540
        %v4542 = vsel %vm4541, %v4534, %v4538
        %v4543 = vand.u32 2147483647, %v4533
        %vm4544 = vcmp.eq.f32.partialorder %v4543, 8.507059e+37
        %v4545 = vand.u32 %v4533, 2147483648
        %v4546 = vor.u32 1.1754944e-38, %v4545
        %v4547 = vsel %vm4544, %v4546, %v4542
        %v4548 = vmul.f32 %v4530, %v4547
        %4550 = vset.pattern.permute.xlu0 0
        %4551 = vperm.xlu0 %4550, %v4548
        %v4552 = vpop.permute.xlu0 %4551
        %vm4554 = vcmp.gt.f32.partialorder %v4552, %v4548
        %vm4555 = vcmp.eq.f32.partialorder %v4552, %v4548
        %vm4556 = vmand %vm4555, %vm1729
        %vm4557 = vmor %vm4554, %vm4556
        %v4558 = vsel %vm4557, 1, 0
        %4559 = vset.pattern.permute.xlu0 1
        %4560 = vperm.xlu0 %4559, %v4548
        %v4561 = vpop.permute.xlu0 %4560
        %vm4563 = vcmp.gt.f32.partialorder %v4561, %v4548
        %vm4564 = vcmp.eq.f32.partialorder %v4561, %v4548
        %vm4565 = vmand %vm4564, %vm1739
        %vm4566 = vmor %vm4563, %vm4565
        %v4567 = vsel %vm4566, 1, 0
        %v4568 = vadd.s32 %v4558, %v4567
        %4569 = vset.pattern.permute.xlu0 2
        %4570 = vperm.xlu0 %4569, %v4548
        %v4571 = vpop.permute.xlu0 %4570
        %vm4573 = vcmp.gt.f32.partialorder %v4571, %v4548
        %vm4574 = vcmp.eq.f32.partialorder %v4571, %v4548
        %vm4575 = vmand %vm4574, %vm1750
        %vm4576 = vmor %vm4573, %vm4575
        %v4577 = vsel %vm4576, 1, 0
        %v4578 = vadd.s32 %v4568, %v4577
        %4579 = vset.pattern.permute.xlu0 3
        %4580 = vperm.xlu0 %4579, %v4548
        %v4581 = vpop.permute.xlu0 %4580
        %vm4583 = vcmp.gt.f32.partialorder %v4581, %v4548
        %vm4584 = vcmp.eq.f32.partialorder %v4581, %v4548
        %vm4585 = vmand %vm4584, %vm1761
        %vm4586 = vmor %vm4583, %vm4585
        %v4587 = vsel %vm4586, 1, 0
        %v4588 = vadd.s32 %v4578, %v4587
        %vm4589 = vcmp.lt.s32.totalorder %v4588, 2
        %v4590 = vsel %vm4589, %v4548, 0.0
        %v4591 = vsel %vm1697, %v4590, 0.0
        %4592 = vadd.xlane.f32.xlu0 %v4591
        %v4593 = vpop.xlane.xlu0 %4592
        %v4594 = vrcp.pop %v4593
        %v4595 = vmul.f32 %v4593, %v4594
        %v4596 = vsub.f32 1.0, %v4595
        %v4597 = vmul.f32 %v4594, %v4596
        %v4598 = vadd.f32 %v4594, %v4597
        %vm4599 = vweird.f32 %v4593
        %vm4600 = vweird.f32 %v4594
        %vm4601 = vmor %vm4599, %vm4600
        %v4602 = vsel %vm4601, %v4594, %v4598
        %v4603 = vand.u32 2147483647, %v4593
        %vm4604 = vcmp.eq.f32.partialorder %v4603, 8.507059e+37
        %v4605 = vand.u32 %v4593, 2147483648
        %v4606 = vor.u32 1.1754944e-38, %v4605
        %v4607 = vsel %vm4604, %v4606, %v4602
        %v4608 = vmul.f32 %v4590, %v4607
        %v4609 = vpack.c.bf16 %v4504, %v4504
        %v4866 = vunpack.c.l.b16 %v4164
        %v4867 = vunpack.c.l.b16 %v4165
        %v4868 = vunpack.c.l.b16 %v4166
        %v4869 = vunpack.c.l.b16 %v4167
        %v4870 = vunpack.c.l.b16 %v4168
        %v4871 = vunpack.c.l.b16 %v4169
        %v4872 = vunpack.c.l.b16 %v4170
        %v4873 = vunpack.c.l.b16 %v4171
        %v4874 = vunpack.c.l.b16 %v4172
        %v4875 = vunpack.c.l.b16 %v4173
        %v4876 = vunpack.c.l.b16 %v4174
        %v4877 = vunpack.c.l.b16 %v4175
        %v4878 = vunpack.c.l.b16 %v4176
        %v4879 = vunpack.c.l.b16 %v4177
        %v4880 = vunpack.c.l.b16 %v4178
        %v4881 = vunpack.c.l.b16 %v4179
        %v4882 = vunpack.c.l.b16 %v4180
        %v4883 = vunpack.c.l.b16 %v4181
        %v4884 = vunpack.c.l.b16 %v4182
        %v4885 = vunpack.c.l.b16 %v4183
        %v4886 = vunpack.c.l.b16 %v4184
        %v4887 = vunpack.c.l.b16 %v4185
        %v4888 = vunpack.c.l.b16 %v4186
        %v4889 = vunpack.c.l.b16 %v4187
        %v4890 = vunpack.c.l.b16 %v4188
        %v4891 = vunpack.c.l.b16 %v4189
        %v4892 = vunpack.c.l.b16 %v4190
        %v4893 = vunpack.c.l.b16 %v4191
        %v4894 = vunpack.c.l.b16 %v4192
        %v4895 = vunpack.c.l.b16 %v4193
        %v4896 = vunpack.c.l.b16 %v4194
        %v4897 = vunpack.c.l.b16 %v4195
        %v4898 = vunpack.c.l.b16 %v4196
        %v4899 = vunpack.c.l.b16 %v4197
        %v4900 = vunpack.c.l.b16 %v4198
        %v4901 = vunpack.c.l.b16 %v4199
        %v4902 = vunpack.c.l.b16 %v4200
        %v4903 = vunpack.c.l.b16 %v4201
        %v4904 = vunpack.c.l.b16 %v4202
        %v4905 = vunpack.c.l.b16 %v4203
        %v4906 = vunpack.c.l.b16 %v4204
        %v4907 = vunpack.c.l.b16 %v4205
        %v4908 = vunpack.c.l.b16 %v4206
        %v4909 = vunpack.c.l.b16 %v4207
        %v4910 = vunpack.c.l.b16 %v4208
        %v4911 = vunpack.c.l.b16 %v4209
        %v4912 = vunpack.c.l.b16 %v4210
        %v4913 = vunpack.c.l.b16 %v4211
        %v4914 = vunpack.c.l.b16 %v4212
        %v4915 = vunpack.c.l.b16 %v4213
        %v4916 = vunpack.c.l.b16 %v4214
        %v4917 = vunpack.c.l.b16 %v4215
        %v4918 = vunpack.c.l.b16 %v4216
        %v4919 = vunpack.c.l.b16 %v4217
        %v4920 = vunpack.c.l.b16 %v4218
        %v4921 = vunpack.c.l.b16 %v4219
        %v4922 = vunpack.c.l.b16 %v4220
        %v4923 = vunpack.c.l.b16 %v4221
        %v4924 = vunpack.c.l.b16 %v4222
        %v4925 = vunpack.c.l.b16 %v4223
        %v4926 = vunpack.c.l.b16 %v4224
        %v4927 = vunpack.c.l.b16 %v4225
        %v4928 = vunpack.c.l.b16 %v4226
        %v4929 = vunpack.c.l.b16 %v4227
        %v4930 = vunpack.c.l.b16 %v4228
        %v4931 = vunpack.c.l.b16 %v4229
        %v4932 = vunpack.c.l.b16 %v4230
        %v4933 = vunpack.c.l.b16 %v4231
        %v4934 = vunpack.c.l.b16 %v4232
        %v4935 = vunpack.c.l.b16 %v4233
        %v4936 = vunpack.c.l.b16 %v4234
        %v4937 = vunpack.c.l.b16 %v4235
        %v4938 = vunpack.c.l.b16 %v4236
        %v4939 = vunpack.c.l.b16 %v4237
        %v4940 = vunpack.c.l.b16 %v4238
        %v4941 = vunpack.c.l.b16 %v4239
        %v4942 = vunpack.c.l.b16 %v4240
        %v4943 = vunpack.c.l.b16 %v4241
        %v4944 = vunpack.c.l.b16 %v4242
        %v4945 = vunpack.c.l.b16 %v4243
        %v4946 = vunpack.c.l.b16 %v4244
        %v4947 = vunpack.c.l.b16 %v4245
        %v4948 = vunpack.c.l.b16 %v4246
        %v4949 = vunpack.c.l.b16 %v4247
        %v4950 = vunpack.c.l.b16 %v4248
        %v4951 = vunpack.c.l.b16 %v4249
        %v4952 = vunpack.c.l.b16 %v4250
        %v4953 = vunpack.c.l.b16 %v4251
        %v4954 = vunpack.c.l.b16 %v4252
        %v4955 = vunpack.c.l.b16 %v4253
        %v4956 = vunpack.c.l.b16 %v4254
        %v4957 = vunpack.c.l.b16 %v4255
        %v4958 = vunpack.c.l.b16 %v4256
        %v4959 = vunpack.c.l.b16 %v4257
        %v4960 = vunpack.c.l.b16 %v4258
        %v4961 = vunpack.c.l.b16 %v4259
        %v4962 = vunpack.c.l.b16 %v4260
        %v4963 = vunpack.c.l.b16 %v4261
        %v4964 = vunpack.c.l.b16 %v4262
        %v4965 = vunpack.c.l.b16 %v4263
        %v4966 = vunpack.c.l.b16 %v4264
        %v4967 = vunpack.c.l.b16 %v4265
        %v4968 = vunpack.c.l.b16 %v4266
        %v4969 = vunpack.c.l.b16 %v4267
        %v4970 = vunpack.c.l.b16 %v4268
        %v4971 = vunpack.c.l.b16 %v4269
        %v4972 = vunpack.c.l.b16 %v4270
        %v4973 = vunpack.c.l.b16 %v4271
        %v4974 = vunpack.c.l.b16 %v4272
        %v4975 = vunpack.c.l.b16 %v4273
        %v4976 = vunpack.c.l.b16 %v4274
        %v4977 = vunpack.c.l.b16 %v4275
        %v4978 = vunpack.c.l.b16 %v4276
        %v4979 = vunpack.c.l.b16 %v4277
        %v4980 = vunpack.c.l.b16 %v4278
        %v4981 = vunpack.c.l.b16 %v4279
        %v4982 = vunpack.c.l.b16 %v4280
        %v4983 = vunpack.c.l.b16 %v4281
        %v4984 = vunpack.c.l.b16 %v4282
        %v4985 = vunpack.c.l.b16 %v4283
        %v4986 = vunpack.c.l.b16 %v4284
        %v4987 = vunpack.c.l.b16 %v4285
        %v4988 = vunpack.c.l.b16 %v4286
        %v4989 = vunpack.c.l.b16 %v4287
        %v4990 = vunpack.c.l.b16 %v4288
        %v4991 = vunpack.c.l.b16 %v4289
        %v4992 = vunpack.c.l.b16 %v4290
        %v4993 = vunpack.c.l.b16 %v4291
        %v4994 = vunpack.c.l.b16 %v4292
        %v4995 = vunpack.c.l.b16 %v4293
        %v4996 = vunpack.c.l.b16 %v4294
        %v4997 = vunpack.c.l.b16 %v4295
        %v4998 = vunpack.c.l.b16 %v4296
        %v4999 = vunpack.c.l.b16 %v4297
        %v5000 = vunpack.c.l.b16 %v4298
        %v5001 = vunpack.c.l.b16 %v4299
        %v5002 = vunpack.c.l.b16 %v4300
        %v5003 = vunpack.c.l.b16 %v4301
        %v5004 = vunpack.c.l.b16 %v4302
        %v5005 = vunpack.c.l.b16 %v4303
        %v5006 = vunpack.c.l.b16 %v4304
        %v5007 = vunpack.c.l.b16 %v4305
        %v5008 = vunpack.c.l.b16 %v4306
        %v5009 = vunpack.c.l.b16 %v4307
        %v5010 = vunpack.c.l.b16 %v4308
        %v5011 = vunpack.c.l.b16 %v4309
        %v5012 = vunpack.c.l.b16 %v4310
        %v5013 = vunpack.c.l.b16 %v4311
        %v5014 = vunpack.c.l.b16 %v4312
        %v5015 = vunpack.c.l.b16 %v4313
        %v5016 = vunpack.c.l.b16 %v4314
        %v5017 = vunpack.c.l.b16 %v4315
        %v5018 = vunpack.c.l.b16 %v4316
        %v5019 = vunpack.c.l.b16 %v4317
        %v5020 = vunpack.c.l.b16 %v4318
        %v5021 = vunpack.c.l.b16 %v4319
        %v5022 = vunpack.c.l.b16 %v4320
        %v5023 = vunpack.c.l.b16 %v4321
        %v5024 = vunpack.c.l.b16 %v4322
        %v5025 = vunpack.c.l.b16 %v4323
        %v5026 = vunpack.c.l.b16 %v4324
        %v5027 = vunpack.c.l.b16 %v4325
        %v5028 = vunpack.c.l.b16 %v4326
        %v5029 = vunpack.c.l.b16 %v4327
        %v5030 = vunpack.c.l.b16 %v4328
        %v5031 = vunpack.c.l.b16 %v4329
        %v5032 = vunpack.c.l.b16 %v4330
        %v5033 = vunpack.c.l.b16 %v4331
        %v5034 = vunpack.c.l.b16 %v4332
        %v5035 = vunpack.c.l.b16 %v4333
        %v5036 = vunpack.c.l.b16 %v4334
        %v5037 = vunpack.c.l.b16 %v4335
        %v5038 = vunpack.c.l.b16 %v4336
        %v5039 = vunpack.c.l.b16 %v4337
        %v5040 = vunpack.c.l.b16 %v4338
        %v5041 = vunpack.c.l.b16 %v4339
        %v5042 = vunpack.c.l.b16 %v4340
        %v5043 = vunpack.c.l.b16 %v4341
        %v5044 = vunpack.c.l.b16 %v4342
        %v5045 = vunpack.c.l.b16 %v4343
        %v5046 = vunpack.c.l.b16 %v4344
        %v5047 = vunpack.c.l.b16 %v4345
        %v5048 = vunpack.c.l.b16 %v4346
        %v5049 = vunpack.c.l.b16 %v4347
        %v5050 = vunpack.c.l.b16 %v4348
        %v5051 = vunpack.c.l.b16 %v4349
        %v5052 = vunpack.c.l.b16 %v4350
        %v5053 = vunpack.c.l.b16 %v4351
        %v5054 = vunpack.c.l.b16 %v4352
        %v5055 = vunpack.c.l.b16 %v4353
        %v5056 = vunpack.c.l.b16 %v4354
        %v5057 = vunpack.c.l.b16 %v4355
        %v5058 = vunpack.c.l.b16 %v4356
        %v5059 = vunpack.c.l.b16 %v4357
        %v5060 = vunpack.c.l.b16 %v4358
        %v5061 = vunpack.c.l.b16 %v4359
        %v5062 = vunpack.c.l.b16 %v4360
        %v5063 = vunpack.c.l.b16 %v4361
        %v5064 = vunpack.c.l.b16 %v4362
        %v5065 = vunpack.c.l.b16 %v4363
        %v5066 = vunpack.c.l.b16 %v4364
        %v5067 = vunpack.c.l.b16 %v4365
        %v5068 = vunpack.c.l.b16 %v4366
        %v5069 = vunpack.c.l.b16 %v4367
        %v5070 = vunpack.c.l.b16 %v4368
        %v5071 = vunpack.c.l.b16 %v4369
        %v5072 = vunpack.c.l.b16 %v4370
        %v5073 = vunpack.c.l.b16 %v4371
        %v5074 = vunpack.c.l.b16 %v4372
        %v5075 = vunpack.c.l.b16 %v4373
        %v5076 = vunpack.c.l.b16 %v4374
        %v5077 = vunpack.c.l.b16 %v4375
        %v5078 = vunpack.c.l.b16 %v4376
        %v5079 = vunpack.c.l.b16 %v4377
        %v5080 = vunpack.c.l.b16 %v4378
        %v5081 = vunpack.c.l.b16 %v4379
        %v5082 = vunpack.c.l.b16 %v4380
        %v5083 = vunpack.c.l.b16 %v4381
        %v5084 = vunpack.c.l.b16 %v4382
        %v5085 = vunpack.c.l.b16 %v4383
        %v5086 = vunpack.c.l.b16 %v4384
        %v5087 = vunpack.c.l.b16 %v4385
        %v5088 = vunpack.c.l.b16 %v4386
        %v5089 = vunpack.c.l.b16 %v4387
        %v5090 = vunpack.c.l.b16 %v4388
        %v5091 = vunpack.c.l.b16 %v4389
        %v5092 = vunpack.c.l.b16 %v4390
        %v5093 = vunpack.c.l.b16 %v4391
        %v5094 = vunpack.c.l.b16 %v4392
        %v5095 = vunpack.c.l.b16 %v4393
        %v5096 = vunpack.c.l.b16 %v4394
        %v5097 = vunpack.c.l.b16 %v4395
        %v5098 = vunpack.c.l.b16 %v4396
        %v5099 = vunpack.c.l.b16 %v4397
        %v5100 = vunpack.c.l.b16 %v4398
        %v5101 = vunpack.c.l.b16 %v4399
        %v5102 = vunpack.c.l.b16 %v4400
        %v5103 = vunpack.c.l.b16 %v4401
        %v5104 = vunpack.c.l.b16 %v4402
        %v5105 = vunpack.c.l.b16 %v4403
        %v5106 = vunpack.c.l.b16 %v4404
        %v5107 = vunpack.c.l.b16 %v4405
        %v5108 = vunpack.c.l.b16 %v4406
        %v5109 = vunpack.c.l.b16 %v4407
        %v5110 = vunpack.c.l.b16 %v4408
        %v5111 = vunpack.c.l.b16 %v4409
        %v5112 = vunpack.c.l.b16 %v4410
        %v5113 = vunpack.c.l.b16 %v4411
        %v5114 = vunpack.c.l.b16 %v4412
        %v5115 = vunpack.c.l.b16 %v4413
        %v5116 = vunpack.c.l.b16 %v4414
        %v5117 = vunpack.c.l.b16 %v4415
        %v5118 = vunpack.c.l.b16 %v4416
        %v5119 = vunpack.c.l.b16 %v4417
        %v5120 = vunpack.c.l.b16 %v4418
        %v5121 = vunpack.c.l.b16 %v4419
        %v5122 = vpack.c.b16 %v4867, %v4866
        %v5123 = vpack.c.b16 %v4869, %v4868
        %v5124 = vpack.c.b16 %v4871, %v4870
        %v5125 = vpack.c.b16 %v4873, %v4872
        %v5126 = vpack.c.b16 %v4875, %v4874
        %v5127 = vpack.c.b16 %v4877, %v4876
        %v5128 = vpack.c.b16 %v4879, %v4878
        %v5129 = vpack.c.b16 %v4881, %v4880
        %v5130 = vpack.c.b16 %v4883, %v4882
        %v5131 = vpack.c.b16 %v4885, %v4884
        %v5132 = vpack.c.b16 %v4887, %v4886
        %v5133 = vpack.c.b16 %v4889, %v4888
        %v5134 = vpack.c.b16 %v4891, %v4890
        %v5135 = vpack.c.b16 %v4893, %v4892
        %v5136 = vpack.c.b16 %v4895, %v4894
        %v5137 = vpack.c.b16 %v4897, %v4896
        %v5138 = vpack.c.b16 %v4899, %v4898
        %v5139 = vpack.c.b16 %v4901, %v4900
        %v5140 = vpack.c.b16 %v4903, %v4902
        %v5141 = vpack.c.b16 %v4905, %v4904
        %v5142 = vpack.c.b16 %v4907, %v4906
        %v5143 = vpack.c.b16 %v4909, %v4908
        %v5144 = vpack.c.b16 %v4911, %v4910
        %v5145 = vpack.c.b16 %v4913, %v4912
        %v5146 = vpack.c.b16 %v4915, %v4914
        %v5147 = vpack.c.b16 %v4917, %v4916
        %v5148 = vpack.c.b16 %v4919, %v4918
        %v5149 = vpack.c.b16 %v4921, %v4920
        %v5150 = vpack.c.b16 %v4923, %v4922
        %v5151 = vpack.c.b16 %v4925, %v4924
        %v5152 = vpack.c.b16 %v4927, %v4926
        %v5153 = vpack.c.b16 %v4929, %v4928
        %v5154 = vpack.c.b16 %v4931, %v4930
        %v5155 = vpack.c.b16 %v4933, %v4932
        %v5156 = vpack.c.b16 %v4935, %v4934
        %v5157 = vpack.c.b16 %v4937, %v4936
        %v5158 = vpack.c.b16 %v4939, %v4938
        %v5159 = vpack.c.b16 %v4941, %v4940
        %v5160 = vpack.c.b16 %v4943, %v4942
        %v5161 = vpack.c.b16 %v4945, %v4944
        %v5162 = vpack.c.b16 %v4947, %v4946
        %v5163 = vpack.c.b16 %v4949, %v4948
        %v5164 = vpack.c.b16 %v4951, %v4950
        %v5165 = vpack.c.b16 %v4953, %v4952
        %v5166 = vpack.c.b16 %v4955, %v4954
        %v5167 = vpack.c.b16 %v4957, %v4956
        %v5168 = vpack.c.b16 %v4959, %v4958
        %v5169 = vpack.c.b16 %v4961, %v4960
        %v5170 = vpack.c.b16 %v4963, %v4962
        %v5171 = vpack.c.b16 %v4965, %v4964
        %v5172 = vpack.c.b16 %v4967, %v4966
        %v5173 = vpack.c.b16 %v4969, %v4968
        %v5174 = vpack.c.b16 %v4971, %v4970
        %v5175 = vpack.c.b16 %v4973, %v4972
        %v5176 = vpack.c.b16 %v4975, %v4974
        %v5177 = vpack.c.b16 %v4977, %v4976
        %v5178 = vpack.c.b16 %v4979, %v4978
        %v5179 = vpack.c.b16 %v4981, %v4980
        %v5180 = vpack.c.b16 %v4983, %v4982
        %v5181 = vpack.c.b16 %v4985, %v4984
        %v5182 = vpack.c.b16 %v4987, %v4986
        %v5183 = vpack.c.b16 %v4989, %v4988
        %v5184 = vpack.c.b16 %v4991, %v4990
        %v5185 = vpack.c.b16 %v4993, %v4992
        %v5186 = vpack.c.b16 %v4995, %v4994
        %v5187 = vpack.c.b16 %v4997, %v4996
        %v5188 = vpack.c.b16 %v4999, %v4998
        %v5189 = vpack.c.b16 %v5001, %v5000
        %v5190 = vpack.c.b16 %v5003, %v5002
        %v5191 = vpack.c.b16 %v5005, %v5004
        %v5192 = vpack.c.b16 %v5007, %v5006
        %v5193 = vpack.c.b16 %v5009, %v5008
        %v5194 = vpack.c.b16 %v5011, %v5010
        %v5195 = vpack.c.b16 %v5013, %v5012
        %v5196 = vpack.c.b16 %v5015, %v5014
        %v5197 = vpack.c.b16 %v5017, %v5016
        %v5198 = vpack.c.b16 %v5019, %v5018
        %v5199 = vpack.c.b16 %v5021, %v5020
        %v5200 = vpack.c.b16 %v5023, %v5022
        %v5201 = vpack.c.b16 %v5025, %v5024
        %v5202 = vpack.c.b16 %v5027, %v5026
        %v5203 = vpack.c.b16 %v5029, %v5028
        %v5204 = vpack.c.b16 %v5031, %v5030
        %v5205 = vpack.c.b16 %v5033, %v5032
        %v5206 = vpack.c.b16 %v5035, %v5034
        %v5207 = vpack.c.b16 %v5037, %v5036
        %v5208 = vpack.c.b16 %v5039, %v5038
        %v5209 = vpack.c.b16 %v5041, %v5040
        %v5210 = vpack.c.b16 %v5043, %v5042
        %v5211 = vpack.c.b16 %v5045, %v5044
        %v5212 = vpack.c.b16 %v5047, %v5046
        %v5213 = vpack.c.b16 %v5049, %v5048
        %v5214 = vpack.c.b16 %v5051, %v5050
        %v5215 = vpack.c.b16 %v5053, %v5052
        %v5216 = vpack.c.b16 %v5055, %v5054
        %v5217 = vpack.c.b16 %v5057, %v5056
        %v5218 = vpack.c.b16 %v5059, %v5058
        %v5219 = vpack.c.b16 %v5061, %v5060
        %v5220 = vpack.c.b16 %v5063, %v5062
        %v5221 = vpack.c.b16 %v5065, %v5064
        %v5222 = vpack.c.b16 %v5067, %v5066
        %v5223 = vpack.c.b16 %v5069, %v5068
        %v5224 = vpack.c.b16 %v5071, %v5070
        %v5225 = vpack.c.b16 %v5073, %v5072
        %v5226 = vpack.c.b16 %v5075, %v5074
        %v5227 = vpack.c.b16 %v5077, %v5076
        %v5228 = vpack.c.b16 %v5079, %v5078
        %v5229 = vpack.c.b16 %v5081, %v5080
        %v5230 = vpack.c.b16 %v5083, %v5082
        %v5231 = vpack.c.b16 %v5085, %v5084
        %v5232 = vpack.c.b16 %v5087, %v5086
        %v5233 = vpack.c.b16 %v5089, %v5088
        %v5234 = vpack.c.b16 %v5091, %v5090
        %v5235 = vpack.c.b16 %v5093, %v5092
        %v5236 = vpack.c.b16 %v5095, %v5094
        %v5237 = vpack.c.b16 %v5097, %v5096
        %v5238 = vpack.c.b16 %v5099, %v5098
        %v5239 = vpack.c.b16 %v5101, %v5100
        %v5240 = vpack.c.b16 %v5103, %v5102
        %v5241 = vpack.c.b16 %v5105, %v5104
        %v5242 = vpack.c.b16 %v5107, %v5106
        %v5243 = vpack.c.b16 %v5109, %v5108
        %v5244 = vpack.c.b16 %v5111, %v5110
        %v5245 = vpack.c.b16 %v5113, %v5112
        %v5246 = vpack.c.b16 %v5115, %v5114
        %v5247 = vpack.c.b16 %v5117, %v5116
        %v5248 = vpack.c.b16 %v5119, %v5118
        %v5249 = vpack.c.b16 %v5121, %v5120
        %5378 = vmatpush.bf16.xpose.msra.mxu0 %v5129
        %5379 = vmatpush.bf16.xpose.msra.mxu0 %v5128
        %5380 = vmatpush.bf16.xpose.msra.mxu0 %v5127
        %5381 = vmatpush.bf16.xpose.msra.mxu0 %v5126
        %5382 = vmatpush.bf16.xpose.msra.mxu0 %v5125
        %5383 = vmatpush.bf16.xpose.msra.mxu0 %v5124
        %5384 = vmatpush.bf16.xpose.msra.mxu0 %v5123
        %5385 = vmatpush.bf16.xpose.msra.mxu0 %v5122
        %5386 = vmatmul.bf16.gmra.mxu0 %v4609
        %v5387 = vpop.f32.mrf.mxu0
        %v5388 = vadd.f32 0.0, %v5387
        %v5389 = vpop.f32.mrf.mxu0
        %5390 = vdwg.mxu0
        %5391 = vmatpush.bf16.xpose.msra.mxu0 %v5137
        %5392 = vmatpush.bf16.xpose.msra.mxu0 %v5136
        %5393 = vmatpush.bf16.xpose.msra.mxu0 %v5135
        %5394 = vmatpush.bf16.xpose.msra.mxu0 %v5134
        %5395 = vmatpush.bf16.xpose.msra.mxu0 %v5133
        %5396 = vmatpush.bf16.xpose.msra.mxu0 %v5132
        %5397 = vmatpush.bf16.xpose.msra.mxu0 %v5131
        %5398 = vmatpush.bf16.xpose.msra.mxu0 %v5130
        %5399 = vmatmul.bf16.gmra.mxu0 %v4609
        %v5400 = vpop.f32.mrf.mxu0
        %v5401 = vadd.f32 0.0, %v5400
        %v5402 = vpop.f32.mrf.mxu0
        %5403 = vdwg.mxu0
        %5404 = vmatpush.bf16.xpose.msra.mxu0 %v5145
        %5405 = vmatpush.bf16.xpose.msra.mxu0 %v5144
        %5406 = vmatpush.bf16.xpose.msra.mxu0 %v5143
        %5407 = vmatpush.bf16.xpose.msra.mxu0 %v5142
        %5408 = vmatpush.bf16.xpose.msra.mxu0 %v5141
        %5409 = vmatpush.bf16.xpose.msra.mxu0 %v5140
        %5410 = vmatpush.bf16.xpose.msra.mxu0 %v5139
        %5411 = vmatpush.bf16.xpose.msra.mxu0 %v5138
        %5412 = vmatmul.bf16.gmra.mxu0 %v4609
        %v5413 = vpop.f32.mrf.mxu0
        %v5414 = vadd.f32 0.0, %v5413
        %v5415 = vpop.f32.mrf.mxu0
        %5416 = vdwg.mxu0
        %5417 = vmatpush.bf16.xpose.msra.mxu0 %v5153
        %5418 = vmatpush.bf16.xpose.msra.mxu0 %v5152
        %5419 = vmatpush.bf16.xpose.msra.mxu0 %v5151
        %5420 = vmatpush.bf16.xpose.msra.mxu0 %v5150
        %5421 = vmatpush.bf16.xpose.msra.mxu0 %v5149
        %5422 = vmatpush.bf16.xpose.msra.mxu0 %v5148
        %5423 = vmatpush.bf16.xpose.msra.mxu0 %v5147
        %5424 = vmatpush.bf16.xpose.msra.mxu0 %v5146
        %5425 = vmatmul.bf16.gmra.mxu0 %v4609
        %v5426 = vpop.f32.mrf.mxu0
        %v5427 = vadd.f32 0.0, %v5426
        %v5428 = vpop.f32.mrf.mxu0
        %5429 = vdwg.mxu0
        %5430 = vmatpush.bf16.xpose.msra.mxu0 %v5161
        %5431 = vmatpush.bf16.xpose.msra.mxu0 %v5160
        %5432 = vmatpush.bf16.xpose.msra.mxu0 %v5159
        %5433 = vmatpush.bf16.xpose.msra.mxu0 %v5158
        %5434 = vmatpush.bf16.xpose.msra.mxu0 %v5157
        %5435 = vmatpush.bf16.xpose.msra.mxu0 %v5156
        %5436 = vmatpush.bf16.xpose.msra.mxu0 %v5155
        %5437 = vmatpush.bf16.xpose.msra.mxu0 %v5154
        %5438 = vmatmul.bf16.gmra.mxu0 %v4609
        %v5439 = vpop.f32.mrf.mxu0
        %v5440 = vadd.f32 0.0, %v5439
        %v5441 = vpop.f32.mrf.mxu0
        %5442 = vdwg.mxu0
        %5443 = vmatpush.bf16.xpose.msra.mxu0 %v5169
        %5444 = vmatpush.bf16.xpose.msra.mxu0 %v5168
        %5445 = vmatpush.bf16.xpose.msra.mxu0 %v5167
        %5446 = vmatpush.bf16.xpose.msra.mxu0 %v5166
        %5447 = vmatpush.bf16.xpose.msra.mxu0 %v5165
        %5448 = vmatpush.bf16.xpose.msra.mxu0 %v5164
        %5449 = vmatpush.bf16.xpose.msra.mxu0 %v5163
        %5450 = vmatpush.bf16.xpose.msra.mxu0 %v5162
        %5451 = vmatmul.bf16.gmra.mxu0 %v4609
        %v5452 = vpop.f32.mrf.mxu0
        %v5453 = vadd.f32 0.0, %v5452
        %v5454 = vpop.f32.mrf.mxu0
        %5455 = vdwg.mxu0
        %5456 = vmatpush.bf16.xpose.msra.mxu0 %v5177
        %5457 = vmatpush.bf16.xpose.msra.mxu0 %v5176
        %5458 = vmatpush.bf16.xpose.msra.mxu0 %v5175
        %5459 = vmatpush.bf16.xpose.msra.mxu0 %v5174
        %5460 = vmatpush.bf16.xpose.msra.mxu0 %v5173
        %5461 = vmatpush.bf16.xpose.msra.mxu0 %v5172
        %5462 = vmatpush.bf16.xpose.msra.mxu0 %v5171
        %5463 = vmatpush.bf16.xpose.msra.mxu0 %v5170
        %5464 = vmatmul.bf16.gmra.mxu0 %v4609
        %v5465 = vpop.f32.mrf.mxu0
        %v5466 = vadd.f32 0.0, %v5465
        %v5467 = vpop.f32.mrf.mxu0
        %5468 = vdwg.mxu0
        %5469 = vmatpush.bf16.xpose.msra.mxu0 %v5185
        %5470 = vmatpush.bf16.xpose.msra.mxu0 %v5184
        %5471 = vmatpush.bf16.xpose.msra.mxu0 %v5183
        %5472 = vmatpush.bf16.xpose.msra.mxu0 %v5182
        %5473 = vmatpush.bf16.xpose.msra.mxu0 %v5181
        %5474 = vmatpush.bf16.xpose.msra.mxu0 %v5180
        %5475 = vmatpush.bf16.xpose.msra.mxu0 %v5179
        %5476 = vmatpush.bf16.xpose.msra.mxu0 %v5178
        %5477 = vmatmul.bf16.gmra.mxu0 %v4609
        %v5478 = vpop.f32.mrf.mxu0
        %v5479 = vadd.f32 0.0, %v5478
        %v5480 = vpop.f32.mrf.mxu0
        %5481 = vdwg.mxu0
        %5482 = vmatpush.bf16.xpose.msra.mxu0 %v5193
        %5483 = vmatpush.bf16.xpose.msra.mxu0 %v5192
        %5484 = vmatpush.bf16.xpose.msra.mxu0 %v5191
        %5485 = vmatpush.bf16.xpose.msra.mxu0 %v5190
        %5486 = vmatpush.bf16.xpose.msra.mxu0 %v5189
        %5487 = vmatpush.bf16.xpose.msra.mxu0 %v5188
        %5488 = vmatpush.bf16.xpose.msra.mxu0 %v5187
        %5489 = vmatpush.bf16.xpose.msra.mxu0 %v5186
        %5490 = vmatmul.bf16.gmra.mxu0 %v4609
        %v5491 = vpop.f32.mrf.mxu0
        %v5492 = vadd.f32 0.0, %v5491
        %v5493 = vpop.f32.mrf.mxu0
        %5494 = vdwg.mxu0
        %5495 = vmatpush.bf16.xpose.msra.mxu0 %v5201
        %5496 = vmatpush.bf16.xpose.msra.mxu0 %v5200
        %5497 = vmatpush.bf16.xpose.msra.mxu0 %v5199
        %5498 = vmatpush.bf16.xpose.msra.mxu0 %v5198
        %5499 = vmatpush.bf16.xpose.msra.mxu0 %v5197
        %5500 = vmatpush.bf16.xpose.msra.mxu0 %v5196
        %5501 = vmatpush.bf16.xpose.msra.mxu0 %v5195
        %5502 = vmatpush.bf16.xpose.msra.mxu0 %v5194
        %5503 = vmatmul.bf16.gmra.mxu0 %v4609
        %v5504 = vpop.f32.mrf.mxu0
        %v5505 = vadd.f32 0.0, %v5504
        %v5506 = vpop.f32.mrf.mxu0
        %5507 = vdwg.mxu0
        %5508 = vmatpush.bf16.xpose.msra.mxu0 %v5209
        %5509 = vmatpush.bf16.xpose.msra.mxu0 %v5208
        %5510 = vmatpush.bf16.xpose.msra.mxu0 %v5207
        %5511 = vmatpush.bf16.xpose.msra.mxu0 %v5206
        %5512 = vmatpush.bf16.xpose.msra.mxu0 %v5205
        %5513 = vmatpush.bf16.xpose.msra.mxu0 %v5204
        %5514 = vmatpush.bf16.xpose.msra.mxu0 %v5203
        %5515 = vmatpush.bf16.xpose.msra.mxu0 %v5202
        %5516 = vmatmul.bf16.gmra.mxu0 %v4609
        %v5517 = vpop.f32.mrf.mxu0
        %v5518 = vadd.f32 0.0, %v5517
        %v5519 = vpop.f32.mrf.mxu0
        %5520 = vdwg.mxu0
        %5521 = vmatpush.bf16.xpose.msra.mxu0 %v5217
        %5522 = vmatpush.bf16.xpose.msra.mxu0 %v5216
        %5523 = vmatpush.bf16.xpose.msra.mxu0 %v5215
        %5524 = vmatpush.bf16.xpose.msra.mxu0 %v5214
        %5525 = vmatpush.bf16.xpose.msra.mxu0 %v5213
        %5526 = vmatpush.bf16.xpose.msra.mxu0 %v5212
        %5527 = vmatpush.bf16.xpose.msra.mxu0 %v5211
        %5528 = vmatpush.bf16.xpose.msra.mxu0 %v5210
        %5529 = vmatmul.bf16.gmra.mxu0 %v4609
        %v5530 = vpop.f32.mrf.mxu0
        %v5531 = vadd.f32 0.0, %v5530
        %v5532 = vpop.f32.mrf.mxu0
        %5533 = vdwg.mxu0
        %5534 = vmatpush.bf16.xpose.msra.mxu0 %v5225
        %5535 = vmatpush.bf16.xpose.msra.mxu0 %v5224
        %5536 = vmatpush.bf16.xpose.msra.mxu0 %v5223
        %5537 = vmatpush.bf16.xpose.msra.mxu0 %v5222
        %5538 = vmatpush.bf16.xpose.msra.mxu0 %v5221
        %5539 = vmatpush.bf16.xpose.msra.mxu0 %v5220
        %5540 = vmatpush.bf16.xpose.msra.mxu0 %v5219
        %5541 = vmatpush.bf16.xpose.msra.mxu0 %v5218
        %5542 = vmatmul.bf16.gmra.mxu0 %v4609
        %v5543 = vpop.f32.mrf.mxu0
        %v5544 = vadd.f32 0.0, %v5543
        %v5545 = vpop.f32.mrf.mxu0
        %5546 = vdwg.mxu0
        %5547 = vmatpush.bf16.xpose.msra.mxu0 %v5233
        %5548 = vmatpush.bf16.xpose.msra.mxu0 %v5232
        %5549 = vmatpush.bf16.xpose.msra.mxu0 %v5231
        %5550 = vmatpush.bf16.xpose.msra.mxu0 %v5230
        %5551 = vmatpush.bf16.xpose.msra.mxu0 %v5229
        %5552 = vmatpush.bf16.xpose.msra.mxu0 %v5228
        %5553 = vmatpush.bf16.xpose.msra.mxu0 %v5227
        %5554 = vmatpush.bf16.xpose.msra.mxu0 %v5226
        %5555 = vmatmul.bf16.gmra.mxu0 %v4609
        %v5556 = vpop.f32.mrf.mxu0
        %v5557 = vadd.f32 0.0, %v5556
        %v5558 = vpop.f32.mrf.mxu0
        %5559 = vdwg.mxu0
        %5560 = vmatpush.bf16.xpose.msra.mxu0 %v5241
        %5561 = vmatpush.bf16.xpose.msra.mxu0 %v5240
        %5562 = vmatpush.bf16.xpose.msra.mxu0 %v5239
        %5563 = vmatpush.bf16.xpose.msra.mxu0 %v5238
        %5564 = vmatpush.bf16.xpose.msra.mxu0 %v5237
        %5565 = vmatpush.bf16.xpose.msra.mxu0 %v5236
        %5566 = vmatpush.bf16.xpose.msra.mxu0 %v5235
        %5567 = vmatpush.bf16.xpose.msra.mxu0 %v5234
        %5568 = vmatmul.bf16.gmra.mxu0 %v4609
        %v5569 = vpop.f32.mrf.mxu0
        %v5570 = vadd.f32 0.0, %v5569
        %v5571 = vpop.f32.mrf.mxu0
        %5572 = vdwg.mxu0
        %5573 = vmatpush.bf16.xpose.msra.mxu0 %v5249
        %5574 = vmatpush.bf16.xpose.msra.mxu0 %v5248
        %5575 = vmatpush.bf16.xpose.msra.mxu0 %v5247
        %5576 = vmatpush.bf16.xpose.msra.mxu0 %v5246
        %5577 = vmatpush.bf16.xpose.msra.mxu0 %v5245
        %5578 = vmatpush.bf16.xpose.msra.mxu0 %v5244
        %5579 = vmatpush.bf16.xpose.msra.mxu0 %v5243
        %5580 = vmatpush.bf16.xpose.msra.mxu0 %v5242
        %5581 = vmatmul.bf16.gmra.mxu0 %v4609
        %v5582 = vpop.f32.mrf.mxu0
        %v5583 = vadd.f32 0.0, %v5582
        %v5584 = vpop.f32.mrf.mxu0
        %5585 = vdwg.mxu0
        %v5586 = vxor.u32 %v5388, 2147483648
        %v5587 = vxor.u32 %v5401, 2147483648
        %v5588 = vmul.f32 %v5586, 1.442695
        %v5589 = vpow.pop %v5588
        %v5590 = vmul.f32 %v5587, 1.442695
        %v5591 = vpow.pop %v5590
        %v5592 = vadd.f32 %v5589, 1.0
        %v5593 = vadd.f32 %v5591, 1.0
        %v5594 = vrcp.pop %v5592
        %v5595 = vmul.f32 %v5592, %v5594
        %v5596 = vsub.f32 1.0, %v5595
        %v5597 = vmul.f32 %v5594, %v5596
        %v5598 = vadd.f32 %v5594, %v5597
        %vm5599 = vweird.f32 %v5592
        %vm5600 = vweird.f32 %v5594
        %vm5601 = vmor %vm5599, %vm5600
        %v5602 = vsel %vm5601, %v5594, %v5598
        %v5603 = vand.u32 2147483647, %v5592
        %vm5604 = vcmp.eq.f32.partialorder %v5603, 8.507059e+37
        %v5605 = vand.u32 %v5592, 2147483648
        %v5606 = vor.u32 1.1754944e-38, %v5605
        %v5607 = vsel %vm5604, %v5606, %v5602
        %v5608 = vmul.f32 1.0, %v5607
        %v5609 = vrcp.pop %v5593
        %v5610 = vmul.f32 %v5593, %v5609
        %v5611 = vsub.f32 1.0, %v5610
        %v5612 = vmul.f32 %v5609, %v5611
        %v5613 = vadd.f32 %v5609, %v5612
        %vm5614 = vweird.f32 %v5593
        %vm5615 = vweird.f32 %v5609
        %vm5616 = vmor %vm5614, %vm5615
        %v5617 = vsel %vm5616, %v5609, %v5613
        %v5618 = vand.u32 2147483647, %v5593
        %vm5619 = vcmp.eq.f32.partialorder %v5618, 8.507059e+37
        %v5620 = vand.u32 %v5593, 2147483648
        %v5621 = vor.u32 1.1754944e-38, %v5620
        %v5622 = vsel %vm5619, %v5621, %v5617
        %v5623 = vmul.f32 1.0, %v5622
        %v5624 = vmul.f32 %v5388, %v5608
        %v5625 = vmul.f32 %v5401, %v5623
        %v5626 = vmul.f32 %v5624, %v5414
        %v5627 = vmul.f32 %v5625, %v5427
        %5629 = vset.pattern.permute.xlu0 0
        %5630 = vperm.xlu0 %5629, %v4608
        %v5631 = vpop.permute.xlu0 %5630
        %v5633 = vmul.f32 %v5626, %v5631
        %v5634 = vmul.f32 %v5627, %v5631
        %v5635 = vxor.u32 %v5440, 2147483648
        %v5636 = vxor.u32 %v5453, 2147483648
        %v5637 = vmul.f32 %v5635, 1.442695
        %v5638 = vpow.pop %v5637
        %v5639 = vmul.f32 %v5636, 1.442695
        %v5640 = vpow.pop %v5639
        %v5641 = vadd.f32 %v5638, 1.0
        %v5642 = vadd.f32 %v5640, 1.0
        %v5643 = vrcp.pop %v5641
        %v5644 = vmul.f32 %v5641, %v5643
        %v5645 = vsub.f32 1.0, %v5644
        %v5646 = vmul.f32 %v5643, %v5645
        %v5647 = vadd.f32 %v5643, %v5646
        %vm5648 = vweird.f32 %v5641
        %vm5649 = vweird.f32 %v5643
        %vm5650 = vmor %vm5648, %vm5649
        %v5651 = vsel %vm5650, %v5643, %v5647
        %v5652 = vand.u32 2147483647, %v5641
        %vm5653 = vcmp.eq.f32.partialorder %v5652, 8.507059e+37
        %v5654 = vand.u32 %v5641, 2147483648
        %v5655 = vor.u32 1.1754944e-38, %v5654
        %v5656 = vsel %vm5653, %v5655, %v5651
        %v5657 = vmul.f32 1.0, %v5656
        %v5658 = vrcp.pop %v5642
        %v5659 = vmul.f32 %v5642, %v5658
        %v5660 = vsub.f32 1.0, %v5659
        %v5661 = vmul.f32 %v5658, %v5660
        %v5662 = vadd.f32 %v5658, %v5661
        %vm5663 = vweird.f32 %v5642
        %vm5664 = vweird.f32 %v5658
        %vm5665 = vmor %vm5663, %vm5664
        %v5666 = vsel %vm5665, %v5658, %v5662
        %v5667 = vand.u32 2147483647, %v5642
        %vm5668 = vcmp.eq.f32.partialorder %v5667, 8.507059e+37
        %v5669 = vand.u32 %v5642, 2147483648
        %v5670 = vor.u32 1.1754944e-38, %v5669
        %v5671 = vsel %vm5668, %v5670, %v5666
        %v5672 = vmul.f32 1.0, %v5671
        %v5673 = vmul.f32 %v5440, %v5657
        %v5674 = vmul.f32 %v5453, %v5672
        %v5675 = vmul.f32 %v5673, %v5466
        %v5676 = vmul.f32 %v5674, %v5479
        %5677 = vset.pattern.permute.xlu0 1
        %5678 = vperm.xlu0 %5677, %v4608
        %v5679 = vpop.permute.xlu0 %5678
        %v5681 = vmul.f32 %v5675, %v5679
        %v5682 = vmul.f32 %v5676, %v5679
        %v5683 = vxor.u32 %v5492, 2147483648
        %v5684 = vxor.u32 %v5505, 2147483648
        %v5685 = vmul.f32 %v5683, 1.442695
        %v5686 = vpow.pop %v5685
        %v5687 = vmul.f32 %v5684, 1.442695
        %v5688 = vpow.pop %v5687
        %v5689 = vadd.f32 %v5686, 1.0
        %v5690 = vadd.f32 %v5688, 1.0
        %v5691 = vrcp.pop %v5689
        %v5692 = vmul.f32 %v5689, %v5691
        %v5693 = vsub.f32 1.0, %v5692
        %v5694 = vmul.f32 %v5691, %v5693
        %v5695 = vadd.f32 %v5691, %v5694
        %vm5696 = vweird.f32 %v5689
        %vm5697 = vweird.f32 %v5691
        %vm5698 = vmor %vm5696, %vm5697
        %v5699 = vsel %vm5698, %v5691, %v5695
        %v5700 = vand.u32 2147483647, %v5689
        %vm5701 = vcmp.eq.f32.partialorder %v5700, 8.507059e+37
        %v5702 = vand.u32 %v5689, 2147483648
        %v5703 = vor.u32 1.1754944e-38, %v5702
        %v5704 = vsel %vm5701, %v5703, %v5699
        %v5705 = vmul.f32 1.0, %v5704
        %v5706 = vrcp.pop %v5690
        %v5707 = vmul.f32 %v5690, %v5706
        %v5708 = vsub.f32 1.0, %v5707
        %v5709 = vmul.f32 %v5706, %v5708
        %v5710 = vadd.f32 %v5706, %v5709
        %vm5711 = vweird.f32 %v5690
        %vm5712 = vweird.f32 %v5706
        %vm5713 = vmor %vm5711, %vm5712
        %v5714 = vsel %vm5713, %v5706, %v5710
        %v5715 = vand.u32 2147483647, %v5690
        %vm5716 = vcmp.eq.f32.partialorder %v5715, 8.507059e+37
        %v5717 = vand.u32 %v5690, 2147483648
        %v5718 = vor.u32 1.1754944e-38, %v5717
        %v5719 = vsel %vm5716, %v5718, %v5714
        %v5720 = vmul.f32 1.0, %v5719
        %v5721 = vmul.f32 %v5492, %v5705
        %v5722 = vmul.f32 %v5505, %v5720
        %v5723 = vmul.f32 %v5721, %v5518
        %v5724 = vmul.f32 %v5722, %v5531
        %5725 = vset.pattern.permute.xlu0 2
        %5726 = vperm.xlu0 %5725, %v4608
        %v5727 = vpop.permute.xlu0 %5726
        %v5729 = vmul.f32 %v5723, %v5727
        %v5730 = vmul.f32 %v5724, %v5727
        %v5731 = vxor.u32 %v5544, 2147483648
        %v5732 = vxor.u32 %v5557, 2147483648
        %v5733 = vmul.f32 %v5731, 1.442695
        %v5734 = vpow.pop %v5733
        %v5735 = vmul.f32 %v5732, 1.442695
        %v5736 = vpow.pop %v5735
        %v5737 = vadd.f32 %v5734, 1.0
        %v5738 = vadd.f32 %v5736, 1.0
        %v5739 = vrcp.pop %v5737
        %v5740 = vmul.f32 %v5737, %v5739
        %v5741 = vsub.f32 1.0, %v5740
        %v5742 = vmul.f32 %v5739, %v5741
        %v5743 = vadd.f32 %v5739, %v5742
        %vm5744 = vweird.f32 %v5737
        %vm5745 = vweird.f32 %v5739
        %vm5746 = vmor %vm5744, %vm5745
        %v5747 = vsel %vm5746, %v5739, %v5743
        %v5748 = vand.u32 2147483647, %v5737
        %vm5749 = vcmp.eq.f32.partialorder %v5748, 8.507059e+37
        %v5750 = vand.u32 %v5737, 2147483648
        %v5751 = vor.u32 1.1754944e-38, %v5750
        %v5752 = vsel %vm5749, %v5751, %v5747
        %v5753 = vmul.f32 1.0, %v5752
        %v5754 = vrcp.pop %v5738
        %v5755 = vmul.f32 %v5738, %v5754
        %v5756 = vsub.f32 1.0, %v5755
        %v5757 = vmul.f32 %v5754, %v5756
        %v5758 = vadd.f32 %v5754, %v5757
        %vm5759 = vweird.f32 %v5738
        %vm5760 = vweird.f32 %v5754
        %vm5761 = vmor %vm5759, %vm5760
        %v5762 = vsel %vm5761, %v5754, %v5758
        %v5763 = vand.u32 2147483647, %v5738
        %vm5764 = vcmp.eq.f32.partialorder %v5763, 8.507059e+37
        %v5765 = vand.u32 %v5738, 2147483648
        %v5766 = vor.u32 1.1754944e-38, %v5765
        %v5767 = vsel %vm5764, %v5766, %v5762
        %v5768 = vmul.f32 1.0, %v5767
        %v5769 = vmul.f32 %v5544, %v5753
        %v5770 = vmul.f32 %v5557, %v5768
        %v5771 = vmul.f32 %v5769, %v5570
        %v5772 = vmul.f32 %v5770, %v5583
        %5773 = vset.pattern.permute.xlu0 3
        %5774 = vperm.xlu0 %5773, %v4608
        %v5775 = vpop.permute.xlu0 %5774
        %v5777 = vmul.f32 %v5771, %v5775
        %v5778 = vmul.f32 %v5772, %v5775
        %v5779 = vpack.c.bf16 %v5633, %v5633
        %v5780 = vpack.c.bf16 %v5634, %v5634
        %v5781 = vpack.c.bf16 %v5681, %v5681
        %v5782 = vpack.c.bf16 %v5682, %v5682
        %v5783 = vpack.c.bf16 %v5729, %v5729
        %v5784 = vpack.c.bf16 %v5730, %v5730
        %v5785 = vpack.c.bf16 %v5777, %v5777
        %v5786 = vpack.c.bf16 %v5778, %v5778
        %v5851 = vunpack.c.l.b16 %v4421
        %v5852 = vunpack.c.h.b16 %v4421
        %v5853 = vunpack.c.l.b16 %v4422
        %v5854 = vunpack.c.h.b16 %v4422
        %v5855 = vunpack.c.l.b16 %v4423
        %v5856 = vunpack.c.h.b16 %v4423
        %v5857 = vunpack.c.l.b16 %v4424
        %v5858 = vunpack.c.h.b16 %v4424
        %v5859 = vunpack.c.l.b16 %v4425
        %v5860 = vunpack.c.h.b16 %v4425
        %v5861 = vunpack.c.l.b16 %v4426
        %v5862 = vunpack.c.h.b16 %v4426
        %v5863 = vunpack.c.l.b16 %v4427
        %v5864 = vunpack.c.h.b16 %v4427
        %v5865 = vunpack.c.l.b16 %v4428
        %v5866 = vunpack.c.h.b16 %v4428
        %v5867 = vunpack.c.l.b16 %v4429
        %v5868 = vunpack.c.h.b16 %v4429
        %v5869 = vunpack.c.l.b16 %v4430
        %v5870 = vunpack.c.h.b16 %v4430
        %v5871 = vunpack.c.l.b16 %v4431
        %v5872 = vunpack.c.h.b16 %v4431
        %v5873 = vunpack.c.l.b16 %v4432
        %v5874 = vunpack.c.h.b16 %v4432
        %v5875 = vunpack.c.l.b16 %v4433
        %v5876 = vunpack.c.h.b16 %v4433
        %v5877 = vunpack.c.l.b16 %v4434
        %v5878 = vunpack.c.h.b16 %v4434
        %v5879 = vunpack.c.l.b16 %v4435
        %v5880 = vunpack.c.h.b16 %v4435
        %v5881 = vunpack.c.l.b16 %v4436
        %v5882 = vunpack.c.h.b16 %v4436
        %v5883 = vunpack.c.l.b16 %v4437
        %v5884 = vunpack.c.h.b16 %v4437
        %v5885 = vunpack.c.l.b16 %v4438
        %v5886 = vunpack.c.h.b16 %v4438
        %v5887 = vunpack.c.l.b16 %v4439
        %v5888 = vunpack.c.h.b16 %v4439
        %v5889 = vunpack.c.l.b16 %v4440
        %v5890 = vunpack.c.h.b16 %v4440
        %v5891 = vunpack.c.l.b16 %v4441
        %v5892 = vunpack.c.h.b16 %v4441
        %v5893 = vunpack.c.l.b16 %v4442
        %v5894 = vunpack.c.h.b16 %v4442
        %v5895 = vunpack.c.l.b16 %v4443
        %v5896 = vunpack.c.h.b16 %v4443
        %v5897 = vunpack.c.l.b16 %v4444
        %v5898 = vunpack.c.h.b16 %v4444
        %v5899 = vunpack.c.l.b16 %v4445
        %v5900 = vunpack.c.h.b16 %v4445
        %v5901 = vunpack.c.l.b16 %v4446
        %v5902 = vunpack.c.h.b16 %v4446
        %v5903 = vunpack.c.l.b16 %v4447
        %v5904 = vunpack.c.h.b16 %v4447
        %v5905 = vunpack.c.l.b16 %v4448
        %v5906 = vunpack.c.h.b16 %v4448
        %v5907 = vunpack.c.l.b16 %v4449
        %v5908 = vunpack.c.h.b16 %v4449
        %v5909 = vunpack.c.l.b16 %v4450
        %v5910 = vunpack.c.h.b16 %v4450
        %v5911 = vunpack.c.l.b16 %v4451
        %v5912 = vunpack.c.h.b16 %v4451
        %v5913 = vunpack.c.l.b16 %v4452
        %v5914 = vunpack.c.h.b16 %v4452
        %v5915 = vunpack.c.l.b16 %v4453
        %v5916 = vunpack.c.h.b16 %v4453
        %v5917 = vunpack.c.l.b16 %v4454
        %v5918 = vunpack.c.h.b16 %v4454
        %v5919 = vunpack.c.l.b16 %v4455
        %v5920 = vunpack.c.h.b16 %v4455
        %v5921 = vunpack.c.l.b16 %v4456
        %v5922 = vunpack.c.h.b16 %v4456
        %v5923 = vunpack.c.l.b16 %v4457
        %v5924 = vunpack.c.h.b16 %v4457
        %v5925 = vunpack.c.l.b16 %v4458
        %v5926 = vunpack.c.h.b16 %v4458
        %v5927 = vunpack.c.l.b16 %v4459
        %v5928 = vunpack.c.h.b16 %v4459
        %v5929 = vunpack.c.l.b16 %v4460
        %v5930 = vunpack.c.h.b16 %v4460
        %v5931 = vunpack.c.l.b16 %v4461
        %v5932 = vunpack.c.h.b16 %v4461
        %v5933 = vunpack.c.l.b16 %v4462
        %v5934 = vunpack.c.h.b16 %v4462
        %v5935 = vunpack.c.l.b16 %v4463
        %v5936 = vunpack.c.h.b16 %v4463
        %v5937 = vunpack.c.l.b16 %v4464
        %v5938 = vunpack.c.h.b16 %v4464
        %v5939 = vunpack.c.l.b16 %v4465
        %v5940 = vunpack.c.h.b16 %v4465
        %v5941 = vunpack.c.l.b16 %v4466
        %v5942 = vunpack.c.h.b16 %v4466
        %v5943 = vunpack.c.l.b16 %v4467
        %v5944 = vunpack.c.h.b16 %v4467
        %v5945 = vunpack.c.l.b16 %v4468
        %v5946 = vunpack.c.h.b16 %v4468
        %v5947 = vunpack.c.l.b16 %v4469
        %v5948 = vunpack.c.h.b16 %v4469
        %v5949 = vunpack.c.l.b16 %v4470
        %v5950 = vunpack.c.h.b16 %v4470
        %v5951 = vunpack.c.l.b16 %v4471
        %v5952 = vunpack.c.h.b16 %v4471
        %v5953 = vunpack.c.l.b16 %v4472
        %v5954 = vunpack.c.h.b16 %v4472
        %v5955 = vunpack.c.l.b16 %v4473
        %v5956 = vunpack.c.h.b16 %v4473
        %v5957 = vunpack.c.l.b16 %v4474
        %v5958 = vunpack.c.h.b16 %v4474
        %v5959 = vunpack.c.l.b16 %v4475
        %v5960 = vunpack.c.h.b16 %v4475
        %v5961 = vunpack.c.l.b16 %v4476
        %v5962 = vunpack.c.h.b16 %v4476
        %v5963 = vunpack.c.l.b16 %v4477
        %v5964 = vunpack.c.h.b16 %v4477
        %v5965 = vunpack.c.l.b16 %v4478
        %v5966 = vunpack.c.h.b16 %v4478
        %v5967 = vunpack.c.l.b16 %v4479
        %v5968 = vunpack.c.h.b16 %v4479
        %v5969 = vunpack.c.l.b16 %v4480
        %v5970 = vunpack.c.h.b16 %v4480
        %v5971 = vunpack.c.l.b16 %v4481
        %v5972 = vunpack.c.h.b16 %v4481
        %v5973 = vunpack.c.l.b16 %v4482
        %v5974 = vunpack.c.h.b16 %v4482
        %v5975 = vunpack.c.l.b16 %v4483
        %v5976 = vunpack.c.h.b16 %v4483
        %v5977 = vunpack.c.l.b16 %v4484
        %v5978 = vunpack.c.h.b16 %v4484
        %v5979 = vpack.c.b16 %v5859, %v5851
        %v5980 = vpack.c.b16 %v5860, %v5852
        %v5981 = vpack.c.b16 %v5861, %v5853
        %v5982 = vpack.c.b16 %v5862, %v5854
        %v5983 = vpack.c.b16 %v5863, %v5855
        %v5984 = vpack.c.b16 %v5864, %v5856
        %v5985 = vpack.c.b16 %v5865, %v5857
        %v5986 = vpack.c.b16 %v5866, %v5858
        %v5987 = vpack.c.b16 %v5875, %v5867
        %v5988 = vpack.c.b16 %v5876, %v5868
        %v5989 = vpack.c.b16 %v5877, %v5869
        %v5990 = vpack.c.b16 %v5878, %v5870
        %v5991 = vpack.c.b16 %v5879, %v5871
        %v5992 = vpack.c.b16 %v5880, %v5872
        %v5993 = vpack.c.b16 %v5881, %v5873
        %v5994 = vpack.c.b16 %v5882, %v5874
        %v5995 = vpack.c.b16 %v5891, %v5883
        %v5996 = vpack.c.b16 %v5892, %v5884
        %v5997 = vpack.c.b16 %v5893, %v5885
        %v5998 = vpack.c.b16 %v5894, %v5886
        %v5999 = vpack.c.b16 %v5895, %v5887
        %v6000 = vpack.c.b16 %v5896, %v5888
        %v6001 = vpack.c.b16 %v5897, %v5889
        %v6002 = vpack.c.b16 %v5898, %v5890
        %v6003 = vpack.c.b16 %v5907, %v5899
        %v6004 = vpack.c.b16 %v5908, %v5900
        %v6005 = vpack.c.b16 %v5909, %v5901
        %v6006 = vpack.c.b16 %v5910, %v5902
        %v6007 = vpack.c.b16 %v5911, %v5903
        %v6008 = vpack.c.b16 %v5912, %v5904
        %v6009 = vpack.c.b16 %v5913, %v5905
        %v6010 = vpack.c.b16 %v5914, %v5906
        %v6011 = vpack.c.b16 %v5923, %v5915
        %v6012 = vpack.c.b16 %v5924, %v5916
        %v6013 = vpack.c.b16 %v5925, %v5917
        %v6014 = vpack.c.b16 %v5926, %v5918
        %v6015 = vpack.c.b16 %v5927, %v5919
        %v6016 = vpack.c.b16 %v5928, %v5920
        %v6017 = vpack.c.b16 %v5929, %v5921
        %v6018 = vpack.c.b16 %v5930, %v5922
        %v6019 = vpack.c.b16 %v5939, %v5931
        %v6020 = vpack.c.b16 %v5940, %v5932
        %v6021 = vpack.c.b16 %v5941, %v5933
        %v6022 = vpack.c.b16 %v5942, %v5934
        %v6023 = vpack.c.b16 %v5943, %v5935
        %v6024 = vpack.c.b16 %v5944, %v5936
        %v6025 = vpack.c.b16 %v5945, %v5937
        %v6026 = vpack.c.b16 %v5946, %v5938
        %v6027 = vpack.c.b16 %v5955, %v5947
        %v6028 = vpack.c.b16 %v5956, %v5948
        %v6029 = vpack.c.b16 %v5957, %v5949
        %v6030 = vpack.c.b16 %v5958, %v5950
        %v6031 = vpack.c.b16 %v5959, %v5951
        %v6032 = vpack.c.b16 %v5960, %v5952
        %v6033 = vpack.c.b16 %v5961, %v5953
        %v6034 = vpack.c.b16 %v5962, %v5954
        %v6035 = vpack.c.b16 %v5971, %v5963
        %v6036 = vpack.c.b16 %v5972, %v5964
        %v6037 = vpack.c.b16 %v5973, %v5965
        %v6038 = vpack.c.b16 %v5974, %v5966
        %v6039 = vpack.c.b16 %v5975, %v5967
        %v6040 = vpack.c.b16 %v5976, %v5968
        %v6041 = vpack.c.b16 %v5977, %v5969
        %v6042 = vpack.c.b16 %v5978, %v5970
        %6107 = vmatpush.bf16.xpose.msra.mxu0 %v6035
        %6108 = vmatpush.bf16.xpose.msra.mxu0 %v6027
        %6109 = vmatpush.bf16.xpose.msra.mxu0 %v6019
        %6110 = vmatpush.bf16.xpose.msra.mxu0 %v6011
        %6111 = vmatpush.bf16.xpose.msra.mxu0 %v6003
        %6112 = vmatpush.bf16.xpose.msra.mxu0 %v5995
        %6113 = vmatpush.bf16.xpose.msra.mxu0 %v5987
        %6114 = vmatpush.bf16.xpose.msra.mxu0 %v5979
        %6115 = vmatmul.bf16.gmra.mxu0 %v5779
        %v6116 = vpop.f32.mrf.mxu0
        %v6117 = vadd.f32 0.0, %v6116
        %v6118 = vpop.f32.mrf.mxu0
        %6119 = vdwg.mxu0
        %6120 = vmatpush.bf16.xpose.msra.mxu0 %v6036
        %6121 = vmatpush.bf16.xpose.msra.mxu0 %v6028
        %6122 = vmatpush.bf16.xpose.msra.mxu0 %v6020
        %6123 = vmatpush.bf16.xpose.msra.mxu0 %v6012
        %6124 = vmatpush.bf16.xpose.msra.mxu0 %v6004
        %6125 = vmatpush.bf16.xpose.msra.mxu0 %v5996
        %6126 = vmatpush.bf16.xpose.msra.mxu0 %v5988
        %6127 = vmatpush.bf16.xpose.msra.mxu0 %v5980
        %6128 = vmatmul.bf16.gmra.mxu0 %v5780
        %v6129 = vpop.f32.mrf.mxu0
        %v6130 = vadd.f32 %v6117, %v6129
        %v6131 = vpop.f32.mrf.mxu0
        %6132 = vdwg.mxu0
        %6133 = vmatpush.bf16.xpose.msra.mxu0 %v6037
        %6134 = vmatpush.bf16.xpose.msra.mxu0 %v6029
        %6135 = vmatpush.bf16.xpose.msra.mxu0 %v6021
        %6136 = vmatpush.bf16.xpose.msra.mxu0 %v6013
        %6137 = vmatpush.bf16.xpose.msra.mxu0 %v6005
        %6138 = vmatpush.bf16.xpose.msra.mxu0 %v5997
        %6139 = vmatpush.bf16.xpose.msra.mxu0 %v5989
        %6140 = vmatpush.bf16.xpose.msra.mxu0 %v5981
        %6141 = vmatmul.bf16.gmra.mxu0 %v5781
        %v6142 = vpop.f32.mrf.mxu0
        %v6143 = vadd.f32 %v6130, %v6142
        %v6144 = vpop.f32.mrf.mxu0
        %6145 = vdwg.mxu0
        %6146 = vmatpush.bf16.xpose.msra.mxu0 %v6038
        %6147 = vmatpush.bf16.xpose.msra.mxu0 %v6030
        %6148 = vmatpush.bf16.xpose.msra.mxu0 %v6022
        %6149 = vmatpush.bf16.xpose.msra.mxu0 %v6014
        %6150 = vmatpush.bf16.xpose.msra.mxu0 %v6006
        %6151 = vmatpush.bf16.xpose.msra.mxu0 %v5998
        %6152 = vmatpush.bf16.xpose.msra.mxu0 %v5990
        %6153 = vmatpush.bf16.xpose.msra.mxu0 %v5982
        %6154 = vmatmul.bf16.gmra.mxu0 %v5782
        %v6155 = vpop.f32.mrf.mxu0
        %v6156 = vadd.f32 %v6143, %v6155
        %v6157 = vpop.f32.mrf.mxu0
        %6158 = vdwg.mxu0
        %6159 = vmatpush.bf16.xpose.msra.mxu0 %v6039
        %6160 = vmatpush.bf16.xpose.msra.mxu0 %v6031
        %6161 = vmatpush.bf16.xpose.msra.mxu0 %v6023
        %6162 = vmatpush.bf16.xpose.msra.mxu0 %v6015
        %6163 = vmatpush.bf16.xpose.msra.mxu0 %v6007
        %6164 = vmatpush.bf16.xpose.msra.mxu0 %v5999
        %6165 = vmatpush.bf16.xpose.msra.mxu0 %v5991
        %6166 = vmatpush.bf16.xpose.msra.mxu0 %v5983
        %6167 = vmatmul.bf16.gmra.mxu0 %v5783
        %v6168 = vpop.f32.mrf.mxu0
        %v6169 = vadd.f32 %v6156, %v6168
        %v6170 = vpop.f32.mrf.mxu0
        %6171 = vdwg.mxu0
        %6172 = vmatpush.bf16.xpose.msra.mxu0 %v6040
        %6173 = vmatpush.bf16.xpose.msra.mxu0 %v6032
        %6174 = vmatpush.bf16.xpose.msra.mxu0 %v6024
        %6175 = vmatpush.bf16.xpose.msra.mxu0 %v6016
        %6176 = vmatpush.bf16.xpose.msra.mxu0 %v6008
        %6177 = vmatpush.bf16.xpose.msra.mxu0 %v6000
        %6178 = vmatpush.bf16.xpose.msra.mxu0 %v5992
        %6179 = vmatpush.bf16.xpose.msra.mxu0 %v5984
        %6180 = vmatmul.bf16.gmra.mxu0 %v5784
        %v6181 = vpop.f32.mrf.mxu0
        %v6182 = vadd.f32 %v6169, %v6181
        %v6183 = vpop.f32.mrf.mxu0
        %6184 = vdwg.mxu0
        %6185 = vmatpush.bf16.xpose.msra.mxu0 %v6041
        %6186 = vmatpush.bf16.xpose.msra.mxu0 %v6033
        %6187 = vmatpush.bf16.xpose.msra.mxu0 %v6025
        %6188 = vmatpush.bf16.xpose.msra.mxu0 %v6017
        %6189 = vmatpush.bf16.xpose.msra.mxu0 %v6009
        %6190 = vmatpush.bf16.xpose.msra.mxu0 %v6001
        %6191 = vmatpush.bf16.xpose.msra.mxu0 %v5993
        %6192 = vmatpush.bf16.xpose.msra.mxu0 %v5985
        %6193 = vmatmul.bf16.gmra.mxu0 %v5785
        %v6194 = vpop.f32.mrf.mxu0
        %v6195 = vadd.f32 %v6182, %v6194
        %v6196 = vpop.f32.mrf.mxu0
        %6197 = vdwg.mxu0
        %6198 = vmatpush.bf16.xpose.msra.mxu0 %v6042
        %6199 = vmatpush.bf16.xpose.msra.mxu0 %v6034
        %6200 = vmatpush.bf16.xpose.msra.mxu0 %v6026
        %6201 = vmatpush.bf16.xpose.msra.mxu0 %v6018
        %6202 = vmatpush.bf16.xpose.msra.mxu0 %v6010
        %6203 = vmatpush.bf16.xpose.msra.mxu0 %v6002
        %6204 = vmatpush.bf16.xpose.msra.mxu0 %v5994
        %6205 = vmatpush.bf16.xpose.msra.mxu0 %v5986
        %6206 = vmatmul.bf16.gmra.mxu0 %v5786
        %v6207 = vpop.f32.mrf.mxu0
        %v6208 = vadd.f32 %v6195, %v6207
        %v6209 = vpop.f32.mrf.mxu0
        %6210 = vdwg.mxu0
        %v6211 = vadd.f32 %v4158, %v6208
        %v6212 = vld [vmem:[%s13] sm:$0x1]
        %v6213 = vmul.f32 %v6211, %v6211
        %6214 = vadd.xlane.f32.xlu0 %v6213
        %v6215 = vpop.xlane.xlu0 %6214
        %v6216 = vmul.f32 %v6215, %v657
        %v6217 = vadd.f32 %v6216, 1e-06
        %v6218 = vrsqrt.pop %v6217
        %v6219 = vmul.f32 %v6218, %v6217
        %v6220 = vmul.f32 %v6219, %v6218
        %v6221 = vmul.f32 0.5, %v6220
        %v6222 = vsub.f32 1.5, %v6221
        %v6223 = vmul.f32 %v6218, %v6222
        %vm6224 = vweird.f32 %v6217
        %vm6225 = vweird.f32 %v6218
        %vm6226 = vmor %vm6224, %vm6225
        %v6227 = vsel %vm6226, %v6218, %v6223
        %v6228 = vmul.f32 %v6211, %v6227
        %v6230 = vperm.slane %v6212, 0
        %v6232 = vmul.f32 %v6228, %v6230
        %v6233 = vld [vmem:[%s14] sm:$0xf]
        %v6234 = vld [vmem:[%s14 + $0x4] sm:$0xf]
        %v6235 = vld [vmem:[%s14 + $0x8] sm:$0xf]
        %v6236 = vld [vmem:[%s14 + $0xc] sm:$0xf]
        %v6237 = vld [vmem:[%s14 + $0x10] sm:$0xf]
        %v6238 = vld [vmem:[%s14 + $0x14] sm:$0xf]
        %v6239 = vld [vmem:[%s14 + $0x18] sm:$0xf]
        %v6240 = vld [vmem:[%s14 + $0x1c] sm:$0xf]
        %v6241 = vld [vmem:[%s14 + $0x20] sm:$0xf]
        %v6242 = vld [vmem:[%s14 + $0x24] sm:$0xf]
        %v6243 = vld [vmem:[%s14 + $0x28] sm:$0xf]
        %v6244 = vld [vmem:[%s14 + $0x2c] sm:$0xf]
        %v6245 = vld [vmem:[%s14 + $0x30] sm:$0xf]
        %v6246 = vld [vmem:[%s14 + $0x34] sm:$0xf]
        %v6247 = vld [vmem:[%s14 + $0x38] sm:$0xf]
        %v6248 = vld [vmem:[%s14 + $0x3c] sm:$0xf]
        %v6249 = vld [vmem:[%s14 + $0x40] sm:$0xf]
        %v6250 = vld [vmem:[%s14 + $0x44] sm:$0xf]
        %v6251 = vld [vmem:[%s14 + $0x48] sm:$0xf]
        %v6252 = vld [vmem:[%s14 + $0x4c] sm:$0xf]
        %v6253 = vld [vmem:[%s14 + $0x50] sm:$0xf]
        %v6254 = vld [vmem:[%s14 + $0x54] sm:$0xf]
        %v6255 = vld [vmem:[%s14 + $0x58] sm:$0xf]
        %v6256 = vld [vmem:[%s14 + $0x5c] sm:$0xf]
        %v6257 = vld [vmem:[%s14 + $0x60] sm:$0xf]
        %v6258 = vld [vmem:[%s14 + $0x64] sm:$0xf]
        %v6259 = vld [vmem:[%s14 + $0x68] sm:$0xf]
        %v6260 = vld [vmem:[%s14 + $0x6c] sm:$0xf]
        %v6261 = vld [vmem:[%s14 + $0x70] sm:$0xf]
        %v6262 = vld [vmem:[%s14 + $0x74] sm:$0xf]
        %v6263 = vld [vmem:[%s14 + $0x78] sm:$0xf]
        %v6264 = vld [vmem:[%s14 + $0x7c] sm:$0xf]
        %v6265 = vpack.c.bf16 %v6232, %v6232
        %v6298 = vunpack.c.l.b16 %v6233
        %v6299 = vunpack.c.l.b16 %v6234
        %v6300 = vunpack.c.l.b16 %v6235
        %v6301 = vunpack.c.l.b16 %v6236
        %v6302 = vunpack.c.l.b16 %v6237
        %v6303 = vunpack.c.l.b16 %v6238
        %v6304 = vunpack.c.l.b16 %v6239
        %v6305 = vunpack.c.l.b16 %v6240
        %v6306 = vunpack.c.l.b16 %v6241
        %v6307 = vunpack.c.l.b16 %v6242
        %v6308 = vunpack.c.l.b16 %v6243
        %v6309 = vunpack.c.l.b16 %v6244
        %v6310 = vunpack.c.l.b16 %v6245
        %v6311 = vunpack.c.l.b16 %v6246
        %v6312 = vunpack.c.l.b16 %v6247
        %v6313 = vunpack.c.l.b16 %v6248
        %v6314 = vunpack.c.l.b16 %v6249
        %v6315 = vunpack.c.l.b16 %v6250
        %v6316 = vunpack.c.l.b16 %v6251
        %v6317 = vunpack.c.l.b16 %v6252
        %v6318 = vunpack.c.l.b16 %v6253
        %v6319 = vunpack.c.l.b16 %v6254
        %v6320 = vunpack.c.l.b16 %v6255
        %v6321 = vunpack.c.l.b16 %v6256
        %v6322 = vunpack.c.l.b16 %v6257
        %v6323 = vunpack.c.l.b16 %v6258
        %v6324 = vunpack.c.l.b16 %v6259
        %v6325 = vunpack.c.l.b16 %v6260
        %v6326 = vunpack.c.l.b16 %v6261
        %v6327 = vunpack.c.l.b16 %v6262
        %v6328 = vunpack.c.l.b16 %v6263
        %v6329 = vunpack.c.l.b16 %v6264
        %v6330 = vpack.c.b16 %v6299, %v6298
        %v6331 = vpack.c.b16 %v6301, %v6300
        %v6332 = vpack.c.b16 %v6303, %v6302
        %v6333 = vpack.c.b16 %v6305, %v6304
        %v6334 = vpack.c.b16 %v6307, %v6306
        %v6335 = vpack.c.b16 %v6309, %v6308
        %v6336 = vpack.c.b16 %v6311, %v6310
        %v6337 = vpack.c.b16 %v6313, %v6312
        %v6338 = vpack.c.b16 %v6315, %v6314
        %v6339 = vpack.c.b16 %v6317, %v6316
        %v6340 = vpack.c.b16 %v6319, %v6318
        %v6341 = vpack.c.b16 %v6321, %v6320
        %v6342 = vpack.c.b16 %v6323, %v6322
        %v6343 = vpack.c.b16 %v6325, %v6324
        %v6344 = vpack.c.b16 %v6327, %v6326
        %v6345 = vpack.c.b16 %v6329, %v6328
        %6362 = vmatpush.bf16.xpose.msra.mxu0 %v6337
        %6363 = vmatpush.bf16.xpose.msra.mxu0 %v6336
        %6364 = vmatpush.bf16.xpose.msra.mxu0 %v6335
        %6365 = vmatpush.bf16.xpose.msra.mxu0 %v6334
        %6366 = vmatpush.bf16.xpose.msra.mxu0 %v6333
        %6367 = vmatpush.bf16.xpose.msra.mxu0 %v6332
        %6368 = vmatpush.bf16.xpose.msra.mxu0 %v6331
        %6369 = vmatpush.bf16.xpose.msra.mxu0 %v6330
        %6370 = vmatmul.bf16.gmra.mxu0 %v6265
        %v6371 = vpop.f32.mrf.mxu0
        %v6372 = vadd.f32 0.0, %v6371
        %v6373 = vpop.f32.mrf.mxu0
        %6374 = vdwg.mxu0
        %6375 = vmatpush.bf16.xpose.msra.mxu0 %v6345
        %6376 = vmatpush.bf16.xpose.msra.mxu0 %v6344
        %6377 = vmatpush.bf16.xpose.msra.mxu0 %v6343
        %6378 = vmatpush.bf16.xpose.msra.mxu0 %v6342
        %6379 = vmatpush.bf16.xpose.msra.mxu0 %v6341
        %6380 = vmatpush.bf16.xpose.msra.mxu0 %v6340
        %6381 = vmatpush.bf16.xpose.msra.mxu0 %v6339
        %6382 = vmatpush.bf16.xpose.msra.mxu0 %v6338
        %6383 = vmatmul.bf16.gmra.mxu0 %v6265
        %v6384 = vpop.f32.mrf.mxu0
        %v6385 = vadd.f32 0.0, %v6384
        %v6386 = vpop.f32.mrf.mxu0
        %6387 = vdwg.mxu0
        %v6388 = vld [vmem:[%s544] sm:$0xff]
        %v6389 = vmax.f32 %v6372, %v6385
        %6390 = vmax.xlane.f32.xlu0 %v6389
        %v6391 = vpop.xlane.xlu0 %6390
        %v6392 = vsub.f32 %v6372, %v6391
        %v6393 = vsub.f32 %v6385, %v6391
        %v6394 = vmul.f32 %v6392, 1.442695
        %v6395 = vpow.pop %v6394
        %v6396 = vmul.f32 %v6393, 1.442695
        %v6397 = vpow.pop %v6396
        %v6398 = vadd.f32 %v6395, %v6397
        %6399 = vadd.xlane.f32.xlu0 %v6398
        %v6400 = vpop.xlane.xlu0 %6399
        %v6401 = vlog2.pop %v6400
        %v6402 = vmul.f32 %v6401, 0.6931472
        %v6403 = vadd.f32 %v6402, %v6391
        %v6404 = vadd.s32 %v990, 128
        %6405 = vset.pattern.permute.xlu0 0
        %6406 = vperm.xlu0 %6405, %v6388
        %v6407 = vpop.permute.xlu0 %6406
        %vm6408 = vcmp.eq.s32.totalorder %v990, %v6407
        %vm6409 = vcmp.eq.s32.totalorder %v6404, %v6407
        %v6410 = vsel %vm6408, %v6372, 0.0
        %v6411 = vsel %vm6409, %v6385, 0.0
        %v6412 = vadd.f32 %v6410, %v6411
        %6413 = vadd.xlane.f32.xlu0 %v6412
        %v6414 = vpop.xlane.xlu0 %6413
        %v6415 = vsub.f32 %v6403, %v6414
        %vm6416 = vcmask 7168
        %v6417 = vsel %vm6416, %v6415, 0.0
        %6418 = vadd.xlane.f32.xlu0 %v6417
        %v6419 = vpop.xlane.xlu0 %6418
        %v6420 = vrot.slane %v6419, 4
        %v6421 = vadd.f32 %v6419, %v6420
        %v6422 = vrot.slane %v6421, 2
        %v6423 = vadd.f32 %v6421, %v6422
        %v6424 = vrot.slane %v6423, 1
        %v6425 = vadd.f32 %v6423, %v6424
        %s6426 = vtos %v6425
        %v6427 = vstv %s6426
        %v6428 = vmul.f32 %v6427, 0.0625
        %p6429 = scmp.eq.s32.totalorder %s29, 0
        // Predicated region
        $region93: #{net_forward.1} parent=79 // pred_check
          %p6430 = pneg %p6429
        $region94: #{net_forward.1} parent=79 // pred_check_branch
          %6432 = sbr.rel (%p6430) target = $region96
        $region95: #{net_forward.1} parent=79 // pred_region
          %vm6433 = vcmask 0
          %6434 = vst.msk [vmem:[#allocation8] sm:$0x1] %vm6433, 0.0
        $region96: #{net_forward.1} parent=79 // pred_fallthru
          _
        %v6435 = vld [vmem:[#allocation8] sm:$0x1]
        %v6436 = vadd.f32 %v6435, %v6428
        %vm6437 = vcmask 0
        %6438 = vst.msk [vmem:[#allocation8] sm:$0x1] %vm6437, %v6436
        // Predicated region
        $region97: #{net_forward.1} parent=79 // pred_check
          %p6439 = pneg %p367
        $region98: #{net_forward.1} parent=79 // pred_check_branch
          %6441 = sbr.rel (%p6439) target = $region100
        $region99: #{net_forward.1} parent=79 // pred_region
          %6443 = vsyncadd [#allocation4], 0
          %s6445 = sshll.u32 [#allocation8], 4
          %s6446 = int_to_ptr.vmem [resolvable:$true] %s6445
          %s6447 = sshll.u32 %s15, 4
          %s6448 = int_to_ptr.hbm [resolvable:$true] %s6447
          %6450 = dma.vmem_to_hbm [thread:$0]  %s6446, 16, %s6448, [#allocation4]
        $region100: #{net_forward.1} parent=79 // pred_fallthru
          _
        // Predicated region
        $region101: #{net_forward.1} parent=79 // pred_check
          %p6451 = pneg %p367
        $region102: #{net_forward.1} parent=79 // pred_check_branch
          %6453 = sbr.rel (%p6451) target = $region104
        $region103: #{net_forward.1} parent=79 // pred_region
          %6455 = dma.done [#allocation4], 16
        $region104: #{net_forward.1} parent=79 // pred_fallthru
          _
      $region80: #{net_forward.1} parent=5 // pred_fallthru
        _
      %p6456 = scmp.le.s32.totalorder 2, %s24
      // Predicated region
      $region105: #{net_forward.1} parent=5 // pred_check
        %p6457 = pneg %p6456
      $region106: #{net_forward.1} parent=5 // pred_check_branch
        %6459 = sbr.rel (%p6457) target = $region108
      $region107: #{net_forward.1} parent=5 // pred_region
        %s6460 = ssub.s32 %s24, 2
      $region108: #{net_forward.1} parent=5 // pred_fallthru
        _
    $region6: #{net_forward.1} parent=1 // loop_footer
      %s28 = sadd.s32 1, %s24
    $region7: #{net_forward.1} parent=1 // loop_footer_branch
      %23 = sbr.rel target = $region3
    $region8: #{net_forward.1} parent=1 // loop_exit
      _
    %6461 = vsyncpa [#allocation3], 1
    %s6462 = scalar_lea.sflag [#allocation3], 1
    %6463 = vsyncpa %s6462, 1
    %6464 = vsyncpa [#allocation6], 1
    %6465 = vsyncpa [#allocation4], 1
    %s6466 = scalar_lea.sflag [#allocation4], 1
    %6467 = vsyncpa %s6466, 1

</llo_original>
